<compile_context>
chip_gen: v7x
topology: tpu7x:2x2x1
jax: 0.10.0
libtpu: 0.0.40
codegen_flags: <defaults>
</compile_context>

<pallas_src>
import functools
import numpy as np
import jax
import jax.numpy as jnp
from jax.experimental import pallas as pl
from jax.experimental.pallas import tpu as pltpu

# ---------------- model hyper-parameters (small, lane-dense stand-ins) ----------------
BATCH = 2
SEQ = 8            # text sequence length
DIM = 128          # hidden dim (stands in for 768)
NUM_HEADS = 4
HEAD_DIM = DIM // NUM_HEADS
FF_DIM = 256
NUM_PATCH = 6      # stands in for 36
VIS_DIM = 256      # stands in for 2048
LEN_VOCAB = 128    # output vocabulary of the head
BERT_VOCAB = 32    # token-embedding vocabulary of the mini-BERT
BERT_DEPTH = 2
TR_DEPTH = 3       # depth of visual / cross transformers (as in the module)
MASK_TOKEN_ID = 4
PAD_ID = 0


# ------------------------------ in-kernel math helpers --------------------------------
def _ln(x, gamma, beta, eps=1e-5):
    mean = jnp.mean(x, axis=-1, keepdims=True)
    var = jnp.mean(jnp.square(x - mean), axis=-1, keepdims=True)
    return (x - mean) * jax.lax.rsqrt(var + eps) * gamma + beta


def _gelu(x):
    # TODO(synk): torch nn.GELU defaults to the exact erf form; tanh approximation used here.
    c = jnp.float32(0.7978845608028654)  # sqrt(2/pi)
    return 0.5 * x * (1.0 + jnp.tanh(c * (x + 0.044715 * x * x * x)))


def _mm(x, w_bf16):
    # bf16 MXU inputs, f32 accumulation.
    return jnp.dot(x.astype(jnp.bfloat16), w_bf16, preferred_element_type=jnp.float32)


def _mha(qkv, bias3, b, s, nh, dh):
    """qkv: (b*s, 3*nh*dh) f32; bias3: (b, 1, s) additive mask bias. Returns (b*s, nh*dh)."""
    d = nh * dh
    scale = jnp.float32(1.0 / np.sqrt(dh))
    heads = []
    for h in range(nh):
        q = qkv[:, h * dh:(h + 1) * dh].reshape(b, s, dh).astype(jnp.bfloat16)
        k = qkv[:, d + h * dh:d + (h + 1) * dh].reshape(b, s, dh).astype(jnp.bfloat16)
        v = qkv[:, 2 * d + h * dh:2 * d + (h + 1) * dh].reshape(b, s, dh).astype(jnp.bfloat16)
        sc = jnp.einsum('bqd,bkd->bqk', q, k, preferred_element_type=jnp.float32)
        sc = sc * scale + bias3
        m = jnp.max(sc, axis=-1, keepdims=True)
        p = jnp.exp(sc - m)
        p = p * pl.reciprocal(jnp.sum(p, axis=-1, keepdims=True), approx=True)
        o = jnp.einsum('bqk,bkd->bqd', p.astype(jnp.bfloat16), v,
                       preferred_element_type=jnp.float32)
        heads.append(o.reshape(b * s, dh))
    return jnp.concatenate(heads, axis=-1)


# -------------------------- fused transformer-stack kernel ----------------------------
def _stack_kernel(x_ref, bias_ref, inln_ref,
                  wqkv_ref, bqkv_ref, wo_ref, bo_ref, ln1_ref, ln2_ref,
                  w1_ref, b1_ref, w2_ref, b2_ref, o_ref,
                  *, b, s, nh, dh, preln, apply_input_ln):
    layer = pl.program_id(0)

    @pl.when(layer == 0)
    def _init():
        x = x_ref[...]
        if apply_input_ln:
            inln = inln_ref[...]
            x = _ln(x, inln[0:1, :], inln[1:2, :])
        o_ref[...] = x

    h = o_ref[...]                   # (b*s, d) f32, resident across layers
    bias3 = bias_ref[...]            # (b, 1, s)

    wqkv = wqkv_ref[0]               # (d, 3d) bf16
    bqkv = bqkv_ref[0]               # (1, 3d) f32
    wo = wo_ref[0]
    bo = bo_ref[0]
    ln1 = ln1_ref[0]                 # (2, d)
    ln2 = ln2_ref[0]
    g1, be1 = ln1[0:1, :], ln1[1:2, :]
    g2, be2 = ln2[0:1, :], ln2[1:2, :]
    w1 = w1_ref[0]
    b1 = b1_ref[0]
    w2 = w2_ref[0]
    b2 = b2_ref[0]

    hn = _ln(h, g1, be1) if preln else h
    qkv = _mm(hn, wqkv) + bqkv                         # fused Q/K/V projection
    ao = _mha(qkv, bias3, b, s, nh, dh)
    ao = _mm(ao, wo) + bo

    if preln:                                          # custom Transformer (pre-LN)
        h = h + ao
        f = _gelu(_mm(_ln(h, g2, be2), w1) + b1)
        h = h + (_mm(f, w2) + b2)
    else:                                              # BERT (post-LN)
        h = _ln(h + ao, g1, be1)
        f = _gelu(_mm(h, w1) + b1)
        h = _ln(h + (_mm(f, w2) + b2), g2, be2)

    o_ref[...] = h


def transformer_stack(x2d, bias3, stacked, in_ln, *, batch, seq, preln, apply_input_ln):
    depth = stacked['wqkv'].shape[0]
    n, d = x2d.shape
    ff = stacked['w1'].shape[2]
    kernel = functools.partial(_stack_kernel, b=batch, s=seq, nh=NUM_HEADS, dh=HEAD_DIM,
                               preln=preln, apply_input_ln=apply_input_ln)
    return pl.pallas_call(
        kernel,
        grid=(depth,),
        out_shape=jax.ShapeDtypeStruct((n, d), jnp.float32),
        in_specs=[
            pl.BlockSpec((n, d), lambda l: (0, 0)),                # input hidden (resident)
            pl.BlockSpec((batch, 1, seq), lambda l: (0, 0, 0)),    # mask bias
            pl.BlockSpec((2, d), lambda l: (0, 0)),                # optional input LN params
            pl.BlockSpec((1, d, 3 * d), lambda l: (l, 0, 0)),      # wqkv (bf16)
            pl.BlockSpec((1, 1, 3 * d), lambda l: (l, 0, 0)),      # bqkv
            pl.BlockSpec((1, d, d), lambda l: (l, 0, 0)),          # wo (bf16)
            pl.BlockSpec((1, 1, d), lambda l: (l, 0, 0)),          # bo
            pl.BlockSpec((1, 2, d), lambda l: (l, 0, 0)),          # ln1
            pl.BlockSpec((1, 2, d), lambda l: (l, 0, 0)),          # ln2
            pl.BlockSpec((1, d, ff), lambda l: (l, 0, 0)),         # w1 (bf16)
            pl.BlockSpec((1, 1, ff), lambda l: (l, 0, 0)),         # b1
            pl.BlockSpec((1, ff, d), lambda l: (l, 0, 0)),         # w2 (bf16)
            pl.BlockSpec((1, 1, d), lambda l: (l, 0, 0)),          # b2
        ],
        out_specs=pl.BlockSpec((n, d), lambda l: (0, 0)),          # carry (resident)
        compiler_params=pltpu.CompilerParams(dimension_semantics=("arbitrary",)),
    )(x2d, bias3, in_ln,
      stacked['wqkv'], stacked['bqkv'], stacked['wo'], stacked['bo'],
      stacked['ln1'], stacked['ln2'],
      stacked['w1'], stacked['b1'], stacked['w2'], stacked['b2'])


# ------------------------------ fused visual projection -------------------------------
def _visual_kernel(y_ref, w_ref, b_ref, ln_ref, pos_ref, o_ref):
    h = _mm(y_ref[...], w_ref[...]) + b_ref[...]
    ln = ln_ref[...]
    h = _ln(h, ln[0:1, :], ln[1:2, :])
    h = _gelu(h)
    o_ref[...] = h + pos_ref[...]


def visual_projection(y2d, w, b, ln, pos2d):
    n, dv = y2d.shape
    d = w.shape[1]
    return pl.pallas_call(
        _visual_kernel,
        out_shape=jax.ShapeDtypeStruct((n, d), jnp.float32),
        in_specs=[pl.BlockSpec((n, dv), lambda: (0, 0)),
                  pl.BlockSpec((dv, d), lambda: (0, 0)),
                  pl.BlockSpec((1, d), lambda: (0, 0)),
                  pl.BlockSpec((2, d), lambda: (0, 0)),
                  pl.BlockSpec((n, d), lambda: (0, 0))],
        out_specs=pl.BlockSpec((n, d), lambda: (0, 0)),
    )(y2d, w, b, ln, pos2d)


# ------------------------------------ fused head --------------------------------------
def _head_kernel(x_ref, w1_ref, b1_ref, ln_ref, w2_ref, b2_ref, o_ref):
    h = _mm(x_ref[...], w1_ref[...]) + b1_ref[...]
    ln = ln_ref[...]
    h = _ln(h, ln[0:1, :], ln[1:2, :])
    h = _gelu(h)
    logits = _mm(h, w2_ref[...]) + b2_ref[...]
    m = jnp.max(logits, axis=-1, keepdims=True)
    sh = logits - m
    lse = jnp.log(jnp.sum(jnp.exp(sh), axis=-1, keepdims=True))
    o_ref[...] = sh - lse


def head_forward(hp, se):
    n, d = se.shape
    vocab = hp['w2'].shape[1]
    return pl.pallas_call(
        _head_kernel,
        out_shape=jax.ShapeDtypeStruct((n, vocab), jnp.float32),
        in_specs=[pl.BlockSpec((n, d), lambda: (0, 0)),
                  pl.BlockSpec((d, d), lambda: (0, 0)),
                  pl.BlockSpec((1, d), lambda: (0, 0)),
                  pl.BlockSpec((2, d), lambda: (0, 0)),
                  pl.BlockSpec((d, vocab), lambda: (0, 0)),
                  pl.BlockSpec((1, vocab), lambda: (0, 0))],
        out_specs=pl.BlockSpec((n, vocab), lambda: (0, 0)),
    )(se, hp['w1'], hp['b1'], hp['ln'], hp['w2'], hp['b2'])


# ---------------------------------- model forward -------------------------------------
def forward_mode0(params, x_tokens, y_visual):
    b, s = x_tokens.shape
    p = y_visual.shape[1]

    x_mask = (x_tokens != PAD_ID).astype(jnp.float32)                     # (B, S)
    text_bias = ((1.0 - x_mask) * jnp.float32(-1e9))[:, None, :]          # (B, 1, S)

    # --- text branch: mini-BERT (embedding gather = glue; LN + layers fused in one call) ---
    # TODO(synk): pretrained bert-base-uncased weights replaced by deterministic random weights.
    emb = params['bert']['tok_emb'][x_tokens] + params['bert']['pos_emb'][None]   # (B, S, D)
    text = transformer_stack(emb.reshape(b * s, DIM), text_bias,
                             params['bert']['stack'], params['bert']['emb_ln'],
                             batch=b, seq=s, preln=False, apply_input_ln=True)
    text = text.reshape(b, s, DIM)

    # --- visual branch: Linear -> Dropout(id) -> LayerNorm -> GELU, + pos embedding ---
    pos2d = jnp.broadcast_to(params['vis_pos'], (b, p, DIM)).reshape(b * p, DIM)
    vis = visual_projection(y_visual.reshape(b * p, VIS_DIM),
                            params['vis_lin_w'], params['vis_lin_b'],
                            params['vis_ln'], pos2d)
    vis_bias = jnp.zeros((b, 1, p), jnp.float32)                          # no mask
    vis = transformer_stack(vis, vis_bias, params['vis_stack'], params['no_input_ln'],
                            batch=b, seq=p, preln=True, apply_input_ln=False)
    vis = vis.reshape(b, p, DIM)

    # --- cross transformer over [text ; visual] ---
    cross_mask = jnp.concatenate([x_mask, jnp.ones((b, p), jnp.float32)], axis=1)
    cross_bias = ((1.0 - cross_mask) * jnp.float32(-1e9))[:, None, :]     # (B, 1, S+P)
    hidden = jnp.concatenate([text, vis], axis=1)                          # (B, S+P, D)
    hidden = transformer_stack(hidden.reshape(b * (s + p), DIM), cross_bias,
                               params['cross_stack'], params['no_input_ln'],
                               batch=b, seq=s + p, preln=True, apply_input_ln=False)
    return hidden.reshape(b, s + p, DIM)


def model_mode0(params, x_tokens, y_visual):
    hidden = forward_mode0(params, x_tokens, y_visual)                    # (B, S+P, D)
    # TODO(synk): bounded on-device gather assumes exactly one [MASK] per row; the torch
    # reference uses dynamic-shape nonzero for arbitrary mask counts.
    mask_pos = jnp.argmax(x_tokens == MASK_TOKEN_ID, axis=1)              # (B,)
    se = hidden[jnp.arange(x_tokens.shape[0]), mask_pos]                  # (B, D)
    set_distributions = head_forward(params['head'], se)                  # (B, LEN_VOCAB)
    # TODO(synk): projection_head / cluster_head / momentum (_m) branches (modes '1'-'4')
    # are not implemented.
    return set_distributions


# --------------------------------------- init ------------------------------------------
def _ln_params():
    return jnp.stack([jnp.ones((DIM,), jnp.float32), jnp.zeros((DIM,), jnp.float32)])


def _init_stack(key, depth):
    def one(k):
        ks = jax.random.split(k, 6)
        w = lambda kk, shape: 0.02 * jax.random.normal(kk, shape, jnp.float32)
        wq, wk, wv = w(ks[0], (DIM, DIM)), w(ks[1], (DIM, DIM)), w(ks[2], (DIM, DIM))
        return {
            'wqkv': jnp.concatenate([wq, wk, wv], axis=1),        # (D, 3D)
            'bqkv': jnp.zeros((1, 3 * DIM), jnp.float32),
            'wo': w(ks[3], (DIM, DIM)),
            'bo': jnp.zeros((1, DIM), jnp.float32),
            'ln1': _ln_params(),
            'ln2': _ln_params(),
            'w1': w(ks[4], (DIM, FF_DIM)),
            'b1': jnp.zeros((1, FF_DIM), jnp.float32),
            'w2': w(ks[5], (FF_DIM, DIM)),
            'b2': jnp.zeros((1, DIM), jnp.float32),
        }
    layers = [one(k) for k in jax.random.split(key, depth)]
    stacked = {}
    for name in layers[0]:
        arr = jnp.stack([lyr[name] for lyr in layers], axis=0)
        if name in ('wqkv', 'wo', 'w1', 'w2'):
            arr = arr.astype(jnp.bfloat16)                         # bf16 MXU weights
        stacked[name] = arr
    return stacked


def init_params(key):
    keys = jax.random.split(key, 10)
    w = lambda k, shape: 0.02 * jax.random.normal(k, shape, jnp.float32)
    return {
        'bert': {
            'tok_emb': w(keys[0], (BERT_VOCAB, DIM)),
            'pos_emb': w(keys[1], (SEQ, DIM)),
            'emb_ln': _ln_params(),
            'stack': _init_stack(keys[2], BERT_DEPTH),
        },
        'vis_lin_w': w(keys[3], (VIS_DIM, DIM)).astype(jnp.bfloat16),
        'vis_lin_b': jnp.zeros((1, DIM), jnp.float32),
        'vis_ln': _ln_params(),
        'vis_pos': w(keys[4], (1, NUM_PATCH, DIM)),
        'vis_stack': _init_stack(keys[5], TR_DEPTH),
        'cross_stack': _init_stack(keys[6], TR_DEPTH),
        'head': {
            'w1': w(keys[7], (DIM, DIM)).astype(jnp.bfloat16),
            'b1': jnp.zeros((1, DIM), jnp.float32),
            'ln': _ln_params(),
            'w2': w(keys[8], (DIM, LEN_VOCAB)).astype(jnp.bfloat16),
            'b2': jnp.zeros((1, LEN_VOCAB), jnp.float32),
        },
        'no_input_ln': _ln_params(),   # dummy (unused) for the pre-LN stacks
    }


# --------------------------------------- main ------------------------------------------
if __name__ == "__main__":
    key = jax.random.PRNGKey(0)
    k_param, k_tok, k_vis = jax.random.split(key, 3)

    params = init_params(k_param)

    # deterministic text tokens: random ids in [5, BERT_VOCAB), one [MASK] per row, padding at end
    tok = np.array(jax.random.randint(k_tok, (BATCH, SEQ), 5, BERT_VOCAB), dtype=np.int32)
    tok[0, 2] = MASK_TOKEN_ID
    tok[0, 6:] = PAD_ID
    tok[1, 1] = MASK_TOKEN_ID
    tok[1, 7:] = PAD_ID
    x_tokens = jnp.asarray(tok)

    y_visual = jax.random.normal(k_vis, (BATCH, NUM_PATCH, VIS_DIM), jnp.float32)

    fwd = jax.jit(model_mode0)
    set_distributions = fwd(params, x_tokens, y_visual)     # (B, LEN_VOCAB)
    jax.block_until_ready(set_distributions)

    assert set_distributions.shape == (BATCH, LEN_VOCAB)
    assert bool(jnp.all(jnp.isfinite(set_distributions)))
    prob_sums = jnp.sum(jnp.exp(set_distributions), axis=-1)
    assert bool(jnp.all(jnp.abs(prob_sums - 1.0) < 1e-2))
    print("KERNEL_OK")
</pallas_src>

<mosaic_0001>
module attributes {stable_mosaic.version = 11 : i64} {
  func.func @_visual_kernel(%arg0: memref<12x256xf32, #tpu.memory_space<vmem>>, %arg1: memref<256x128xbf16, #tpu.memory_space<vmem>>, %arg2: memref<1x128xf32, #tpu.memory_space<vmem>>, %arg3: memref<2x128xf32, #tpu.memory_space<vmem>>, %arg4: memref<12x128xf32, #tpu.memory_space<vmem>>, %arg5: memref<12x128xf32, #tpu.memory_space<vmem>>) attributes {dimension_semantics = [], scalar_prefetch = 0 : i64, scratch_operands = 0 : i64, tpu.core_type = #tpu.core_type<tc>} {
    %c0 = arith.constant 0 : index
    %c0_0 = arith.constant 0 : index
    %0 = vector.load %arg0[%c0, %c0_0] : memref<12x256xf32, #tpu.memory_space<vmem>>, vector<12x256xf32>
    %c0_1 = arith.constant 0 : index
    %c0_2 = arith.constant 0 : index
    %1 = vector.load %arg1[%c0_1, %c0_2] : memref<256x128xbf16, #tpu.memory_space<vmem>>, vector<256x128xbf16>
    %2 = arith.truncf %0 : vector<12x256xf32> to vector<12x256xbf16>
    %cst = arith.constant dense<0.000000e+00> : vector<12x128xf32>
    %3 = tpu.matmul %2, %1, %cst {dimension_numbers = #tpu.dot_dimension_numbers<[1], [0], [0], [1], [0, 0, 1, 1], [], []>} : vector<12x256xbf16>, vector<256x128xbf16>, vector<12x128xf32> -> vector<12x128xf32>
    %c0_3 = arith.constant 0 : index
    %c0_4 = arith.constant 0 : index
    %4 = vector.load %arg2[%c0_3, %c0_4] : memref<1x128xf32, #tpu.memory_space<vmem>>, vector<1x128xf32>
    %5 = vector.broadcast %4 : vector<1x128xf32> to vector<12x128xf32>
    %6 = arith.addf %3, %5 : vector<12x128xf32>
    %c0_5 = arith.constant 0 : index
    %c0_6 = arith.constant 0 : index
    %7 = vector.load %arg3[%c0_5, %c0_6] : memref<2x128xf32, #tpu.memory_space<vmem>>, vector<2x128xf32>
    %8 = vector.extract_strided_slice %7 {offsets = [0, 0], sizes = [1, 128], strides = [1, 1]} : vector<2x128xf32> to vector<1x128xf32>
    %9 = vector.extract_strided_slice %7 {offsets = [1, 0], sizes = [1, 128], strides = [1, 1]} : vector<2x128xf32> to vector<1x128xf32>
    %cst_7 = arith.constant dense<0.000000e+00> : vector<12xf32>
    %10 = vector.multi_reduction <add>, %6, %cst_7 [1] : vector<12x128xf32> to vector<12xf32>
    %11 = vector.shape_cast %10 : vector<12xf32> to vector<12x1xf32>
    %cst_8 = arith.constant 1.280000e+02 : f32
    %12 = vector.broadcast %cst_8 : f32 to vector<12x1xf32>
    %13 = arith.divf %11, %12 : vector<12x1xf32>
    %14 = vector.broadcast %13 : vector<12x1xf32> to vector<12x128xf32>
    %15 = arith.subf %6, %14 : vector<12x128xf32>
    %16 = arith.mulf %15, %15 : vector<12x128xf32>
    %cst_9 = arith.constant dense<0.000000e+00> : vector<12xf32>
    %17 = vector.multi_reduction <add>, %16, %cst_9 [1] : vector<12x128xf32> to vector<12xf32>
    %18 = vector.shape_cast %17 : vector<12xf32> to vector<12x1xf32>
    %cst_10 = arith.constant 1.280000e+02 : f32
    %19 = vector.broadcast %cst_10 : f32 to vector<12x1xf32>
    %20 = arith.divf %18, %19 : vector<12x1xf32>
    %21 = vector.broadcast %13 : vector<12x1xf32> to vector<12x128xf32>
    %22 = arith.subf %6, %21 : vector<12x128xf32>
    %cst_11 = arith.constant 9.99999974E-6 : f32
    %23 = vector.broadcast %cst_11 : f32 to vector<12x1xf32>
    %24 = arith.addf %20, %23 : vector<12x1xf32>
    %25 = math.rsqrt %24 : vector<12x1xf32>
    %26 = vector.broadcast %25 : vector<12x1xf32> to vector<12x128xf32>
    %27 = arith.mulf %22, %26 : vector<12x128xf32>
    %28 = vector.broadcast %8 : vector<1x128xf32> to vector<12x128xf32>
    %29 = arith.mulf %27, %28 : vector<12x128xf32>
    %30 = vector.broadcast %9 : vector<1x128xf32> to vector<12x128xf32>
    %31 = arith.addf %29, %30 : vector<12x128xf32>
    %cst_12 = arith.constant 5.000000e-01 : f32
    %32 = vector.broadcast %cst_12 : f32 to vector<12x128xf32>
    %33 = arith.mulf %32, %31 : vector<12x128xf32>
    %cst_13 = arith.constant 4.471500e-02 : f32
    %34 = vector.broadcast %cst_13 : f32 to vector<12x128xf32>
    %35 = arith.mulf %34, %31 : vector<12x128xf32>
    %36 = arith.mulf %35, %31 : vector<12x128xf32>
    %37 = arith.mulf %36, %31 : vector<12x128xf32>
    %38 = arith.addf %31, %37 : vector<12x128xf32>
    %cst_14 = arith.constant 0.797884583 : f32
    %39 = vector.broadcast %cst_14 : f32 to vector<12x128xf32>
    %40 = arith.mulf %39, %38 : vector<12x128xf32>
    %41 = math.tanh %40 : vector<12x128xf32>
    %cst_15 = arith.constant 1.000000e+00 : f32
    %42 = vector.broadcast %cst_15 : f32 to vector<12x128xf32>
    %43 = arith.addf %42, %41 : vector<12x128xf32>
    %44 = arith.mulf %33, %43 : vector<12x128xf32>
    %c0_16 = arith.constant 0 : index
    %c0_17 = arith.constant 0 : index
    %45 = vector.load %arg4[%c0_16, %c0_17] : memref<12x128xf32, #tpu.memory_space<vmem>>, vector<12x128xf32>
    %46 = arith.addf %44, %45 : vector<12x128xf32>
    %c0_18 = arith.constant 0 : index
    %c0_19 = arith.constant 0 : index
    %47 = vector.load %arg5[%c0_18, %c0_19] : memref<12x128xf32, #tpu.memory_space<vmem>>, vector<12x128xf32>
    tpu.vector_store %arg5[%c0_18, %c0_19], %46 {strides = array<i32>} : memref<12x128xf32, #tpu.memory_space<vmem>>, vector<12x128xf32>,
    return
  }
}

module attributes {stable_mosaic.version = 11 : i64} {
  func.func @_stack_kernel(%arg0: i32, %arg1: memref<12x128xf32, #tpu.memory_space<vmem>>, %arg2: memref<2x1x6xf32, #tpu.memory_space<vmem>>, %arg3: memref<2x128xf32, #tpu.memory_space<vmem>>, %arg4: memref<1x128x384xbf16, #tpu.memory_space<vmem>>, %arg5: memref<1x1x384xf32, #tpu.memory_space<vmem>>, %arg6: memref<1x128x128xbf16, #tpu.memory_space<vmem>>, %arg7: memref<1x1x128xf32, #tpu.memory_space<vmem>>, %arg8: memref<1x2x128xf32, #tpu.memory_space<vmem>>, %arg9: memref<1x2x128xf32, #tpu.memory_space<vmem>>, %arg10: memref<1x128x256xbf16, #tpu.memory_space<vmem>>, %arg11: memref<1x1x256xf32, #tpu.memory_space<vmem>>, %arg12: memref<1x256x128xbf16, #tpu.memory_space<vmem>>, %arg13: memref<1x1x128xf32, #tpu.memory_space<vmem>>, %arg14: memref<12x128xf32, #tpu.memory_space<vmem>>) attributes {dimension_semantics = [#tpu.dimension_semantics<arbitrary>], iteration_bounds = array<i64: 3>, scalar_prefetch = 0 : i64, scratch_operands = 0 : i64, tpu.core_type = #tpu.core_type<tc>, window_params = [{pipeline_mode = #tpu.pipeline_mode<synchronous>, transform_indices = @transform_0, window_bounds = array<i64: 12, 128>}, {pipeline_mode = #tpu.pipeline_mode<synchronous>, transform_indices = @transform_1, window_bounds = array<i64: 2, 1, 6>}, {pipeline_mode = #tpu.pipeline_mode<synchronous>, transform_indices = @transform_2, window_bounds = array<i64: 2, 128>}, {transform_indices = @transform_3, window_bounds = array<i64: 1, 128, 384>}, {transform_indices = @transform_4, window_bounds = array<i64: 1, 1, 384>}, {transform_indices = @transform_5, window_bounds = array<i64: 1, 128, 128>}, {transform_indices = @transform_6, window_bounds = array<i64: 1, 1, 128>}, {transform_indices = @transform_7, window_bounds = array<i64: 1, 2, 128>}, {transform_indices = @transform_8, window_bounds = array<i64: 1, 2, 128>}, {transform_indices = @transform_9, window_bounds = array<i64: 1, 128, 256>}, {transform_indices = @transform_10, window_bounds = array<i64: 1, 1, 256>}, {transform_indices = @transform_11, window_bounds = array<i64: 1, 256, 128>}, {transform_indices = @transform_12, window_bounds = array<i64: 1, 1, 128>}, {pipeline_mode = #tpu.pipeline_mode<synchronous>, transform_indices = @transform_13, window_bounds = array<i64: 12, 128>}]} {
    %c0_i32 = arith.constant 0 : i32
    %0 = arith.cmpi eq, %arg0, %c0_i32 : i32
    %1 = arith.extui %0 : i1 to i32
    %c0_i32_0 = arith.constant 0 : i32
    %2 = arith.cmpi ne, %1, %c0_i32_0 : i32
    scf.if %2 {
      %c0_74 = arith.constant 0 : index
      %c0_75 = arith.constant 0 : index
      %214 = vector.load %arg1[%c0_74, %c0_75] : memref<12x128xf32, #tpu.memory_space<vmem>>, vector<12x128xf32>
      %c0_76 = arith.constant 0 : index
      %c0_77 = arith.constant 0 : index
      %215 = vector.load %arg14[%c0_76, %c0_77] : memref<12x128xf32, #tpu.memory_space<vmem>>, vector<12x128xf32>
      tpu.vector_store %arg14[%c0_76, %c0_77], %214 {strides = array<i32>} : memref<12x128xf32, #tpu.memory_space<vmem>>, vector<12x128xf32>,
    } else {
    }
    %c0 = arith.constant 0 : index
    %c0_1 = arith.constant 0 : index
    %3 = vector.load %arg14[%c0, %c0_1] : memref<12x128xf32, #tpu.memory_space<vmem>>, vector<12x128xf32>
    %c0_2 = arith.constant 0 : index
    %c0_3 = arith.constant 0 : index
    %c0_4 = arith.constant 0 : index
    %4 = vector.load %arg2[%c0_2, %c0_3, %c0_4] : memref<2x1x6xf32, #tpu.memory_space<vmem>>, vector<2x1x6xf32>
    %c0_5 = arith.constant 0 : index
    %c0_6 = arith.constant 0 : index
    %c0_7 = arith.constant 0 : index
    %5 = vector.load %arg4[%c0_5, %c0_6, %c0_7] : memref<1x128x384xbf16, #tpu.memory_space<vmem>>, vector<1x128x384xbf16>
    %6 = vector.shape_cast %5 : vector<1x128x384xbf16> to vector<128x384xbf16>
    %c0_8 = arith.constant 0 : index
    %c0_9 = arith.constant 0 : index
    %c0_10 = arith.constant 0 : index
    %7 = vector.load %arg5[%c0_8, %c0_9, %c0_10] : memref<1x1x384xf32, #tpu.memory_space<vmem>>, vector<1x1x384xf32>
    %8 = vector.shape_cast %7 : vector<1x1x384xf32> to vector<1x384xf32>
    %c0_11 = arith.constant 0 : index
    %c0_12 = arith.constant 0 : index
    %c0_13 = arith.constant 0 : index
    %9 = vector.load %arg6[%c0_11, %c0_12, %c0_13] : memref<1x128x128xbf16, #tpu.memory_space<vmem>>, vector<1x128x128xbf16>
    %10 = vector.shape_cast %9 : vector<1x128x128xbf16> to vector<128x128xbf16>
    %c0_14 = arith.constant 0 : index
    %c0_15 = arith.constant 0 : index
    %c0_16 = arith.constant 0 : index
    %11 = vector.load %arg7[%c0_14, %c0_15, %c0_16] : memref<1x1x128xf32, #tpu.memory_space<vmem>>, vector<1x1x128xf32>
    %12 = vector.shape_cast %11 : vector<1x1x128xf32> to vector<1x128xf32>
    %c0_17 = arith.constant 0 : index
    %c0_18 = arith.constant 0 : index
    %c0_19 = arith.constant 0 : index
    %13 = vector.load %arg8[%c0_17, %c0_18, %c0_19] : memref<1x2x128xf32, #tpu.memory_space<vmem>>, vector<1x2x128xf32>
    %14 = vector.shape_cast %13 : vector<1x2x128xf32> to vector<2x128xf32>
    %c0_20 = arith.constant 0 : index
    %c0_21 = arith.constant 0 : index
    %c0_22 = arith.constant 0 : index
    %15 = vector.load %arg9[%c0_20, %c0_21, %c0_22] : memref<1x2x128xf32, #tpu.memory_space<vmem>>, vector<1x2x128xf32>
    %16 = vector.shape_cast %15 : vector<1x2x128xf32> to vector<2x128xf32>
    %17 = vector.extract_strided_slice %14 {offsets = [0, 0], sizes = [1, 128], strides = [1, 1]} : vector<2x128xf32> to vector<1x128xf32>
    %18 = vector.extract_strided_slice %14 {offsets = [1, 0], sizes = [1, 128], strides = [1, 1]} : vector<2x128xf32> to vector<1x128xf32>
    %19 = vector.extract_strided_slice %16 {offsets = [0, 0], sizes = [1, 128], strides = [1, 1]} : vector<2x128xf32> to vector<1x128xf32>
    %20 = vector.extract_strided_slice %16 {offsets = [1, 0], sizes = [1, 128], strides = [1, 1]} : vector<2x128xf32> to vector<1x128xf32>
    %c0_23 = arith.constant 0 : index
    %c0_24 = arith.constant 0 : index
    %c0_25 = arith.constant 0 : index
    %21 = vector.load %arg10[%c0_23, %c0_24, %c0_25] : memref<1x128x256xbf16, #tpu.memory_space<vmem>>, vector<1x128x256xbf16>
    %22 = vector.shape_cast %21 : vector<1x128x256xbf16> to vector<128x256xbf16>
    %c0_26 = arith.constant 0 : index
    %c0_27 = arith.constant 0 : index
    %c0_28 = arith.constant 0 : index
    %23 = vector.load %arg11[%c0_26, %c0_27, %c0_28] : memref<1x1x256xf32, #tpu.memory_space<vmem>>, vector<1x1x256xf32>
    %24 = vector.shape_cast %23 : vector<1x1x256xf32> to vector<1x256xf32>
    %c0_29 = arith.constant 0 : index
    %c0_30 = arith.constant 0 : index
    %c0_31 = arith.constant 0 : index
    %25 = vector.load %arg12[%c0_29, %c0_30, %c0_31] : memref<1x256x128xbf16, #tpu.memory_space<vmem>>, vector<1x256x128xbf16>
    %26 = vector.shape_cast %25 : vector<1x256x128xbf16> to vector<256x128xbf16>
    %c0_32 = arith.constant 0 : index
    %c0_33 = arith.constant 0 : index
    %c0_34 = arith.constant 0 : index
    %27 = vector.load %arg13[%c0_32, %c0_33, %c0_34] : memref<1x1x128xf32, #tpu.memory_space<vmem>>, vector<1x1x128xf32>
    %28 = vector.shape_cast %27 : vector<1x1x128xf32> to vector<1x128xf32>
    %cst = arith.constant dense<0.000000e+00> : vector<12xf32>
    %29 = vector.multi_reduction <add>, %3, %cst [1] : vector<12x128xf32> to vector<12xf32>
    %30 = vector.shape_cast %29 : vector<12xf32> to vector<12x1xf32>
    %cst_35 = arith.constant 1.280000e+02 : f32
    %31 = vector.broadcast %cst_35 : f32 to vector<12x1xf32>
    %32 = arith.divf %30, %31 : vector<12x1xf32>
    %33 = vector.broadcast %32 : vector<12x1xf32> to vector<12x128xf32>
    %34 = arith.subf %3, %33 : vector<12x128xf32>
    %35 = arith.mulf %34, %34 : vector<12x128xf32>
    %cst_36 = arith.constant dense<0.000000e+00> : vector<12xf32>
    %36 = vector.multi_reduction <add>, %35, %cst_36 [1] : vector<12x128xf32> to vector<12xf32>
    %37 = vector.shape_cast %36 : vector<12xf32> to vector<12x1xf32>
    %cst_37 = arith.constant 1.280000e+02 : f32
    %38 = vector.broadcast %cst_37 : f32 to vector<12x1xf32>
    %39 = arith.divf %37, %38 : vector<12x1xf32>
    %40 = vector.broadcast %32 : vector<12x1xf32> to vector<12x128xf32>
    %41 = arith.subf %3, %40 : vector<12x128xf32>
    %cst_38 = arith.constant 9.99999974E-6 : f32
    %42 = vector.broadcast %cst_38 : f32 to vector<12x1xf32>
    %43 = arith.addf %39, %42 : vector<12x1xf32>
    %44 = math.rsqrt %43 : vector<12x1xf32>
    %45 = vector.broadcast %44 : vector<12x1xf32> to vector<12x128xf32>
    %46 = arith.mulf %41, %45 : vector<12x128xf32>
    %47 = vector.broadcast %17 : vector<1x128xf32> to vector<12x128xf32>
    %48 = arith.mulf %46, %47 : vector<12x128xf32>
    %49 = vector.broadcast %18 : vector<1x128xf32> to vector<12x128xf32>
    %50 = arith.addf %48, %49 : vector<12x128xf32>
    %51 = arith.truncf %50 : vector<12x128xf32> to vector<12x128xbf16>
    %cst_39 = arith.constant dense<0.000000e+00> : vector<12x384xf32>
    %52 = tpu.matmul %51, %6, %cst_39 {dimension_numbers = #tpu.dot_dimension_numbers<[1], [0], [0], [1], [0, 0, 1, 1], [], []>} : vector<12x128xbf16>, vector<128x384xbf16>, vector<12x384xf32> -> vector<12x384xf32>
    %53 = vector.broadcast %8 : vector<1x384xf32> to vector<12x384xf32>
    %54 = arith.addf %52, %53 : vector<12x384xf32>
    %55 = vector.extract_strided_slice %54 {offsets = [0, 0], sizes = [12, 32], strides = [1, 1]} : vector<12x384xf32> to vector<12x32xf32>
    %56 = vector.shape_cast %55 : vector<12x32xf32> to vector<2x6x32xf32>
    %57 = arith.truncf %56 : vector<2x6x32xf32> to vector<2x6x32xbf16>
    %58 = vector.extract_strided_slice %54 {offsets = [0, 128], sizes = [12, 32], strides = [1, 1]} : vector<12x384xf32> to vector<12x32xf32>
    %59 = vector.shape_cast %58 : vector<12x32xf32> to vector<2x6x32xf32>
    %60 = arith.truncf %59 : vector<2x6x32xf32> to vector<2x6x32xbf16>
    %61 = vector.extract_strided_slice %54 {offsets = [0, 256], sizes = [12, 32], strides = [1, 1]} : vector<12x384xf32> to vector<12x32xf32>
    %62 = vector.shape_cast %61 : vector<12x32xf32> to vector<2x6x32xf32>
    %63 = arith.truncf %62 : vector<2x6x32xf32> to vector<2x6x32xbf16>
    "tpu.trace_start"() <{level = 10 : i32, message = "bqd,bkd->bqk"}> : () -> ()
    %cst_40 = arith.constant dense<0.000000e+00> : vector<2x6x6xf32>
    %64 = tpu.matmul %57, %60, %cst_40 {dimension_numbers = #tpu.dot_dimension_numbers<[2], [2], [1], [1], [0, 0, 0, 1, 1, 1], [0], [0]>} : vector<2x6x32xbf16>, vector<2x6x32xbf16>, vector<2x6x6xf32> -> vector<2x6x6xf32>
    "tpu.trace_stop"() : () -> ()
    %cst_41 = arith.constant 0.176776692 : f32
    %65 = vector.broadcast %cst_41 : f32 to vector<2x6x6xf32>
    %66 = arith.mulf %64, %65 : vector<2x6x6xf32>
    %67 = vector.broadcast %4 : vector<2x1x6xf32> to vector<2x6x6xf32>
    %68 = arith.addf %66, %67 : vector<2x6x6xf32>
    %cst_42 = arith.constant dense<0xFF800000> : vector<2x6xf32>
    %69 = vector.multi_reduction <maximumf>, %68, %cst_42 [2] : vector<2x6x6xf32> to vector<2x6xf32>
    %70 = vector.shape_cast %69 : vector<2x6xf32> to vector<2x6x1xf32>
    %71 = vector.broadcast %70 : vector<2x6x1xf32> to vector<2x6x6xf32>
    %72 = arith.subf %68, %71 : vector<2x6x6xf32>
    %73 = math.exp %72 : vector<2x6x6xf32>
    %cst_43 = arith.constant dense<0.000000e+00> : vector<2x6xf32>
    %74 = vector.multi_reduction <add>, %73, %cst_43 [2] : vector<2x6x6xf32> to vector<2x6xf32>
    %75 = vector.shape_cast %74 : vector<2x6xf32> to vector<2x6x1xf32>
    %76 = tpu.reciprocal %75 {approx = true} : vector<2x6x1xf32> -> vector<2x6x1xf32>
    %77 = vector.broadcast %76 : vector<2x6x1xf32> to vector<2x6x6xf32>
    %78 = arith.mulf %73, %77 : vector<2x6x6xf32>
    %79 = arith.truncf %78 : vector<2x6x6xf32> to vector<2x6x6xbf16>
    "tpu.trace_start"() <{level = 10 : i32, message = "bqk,bkd->bqd"}> : () -> ()
    %cst_44 = arith.constant dense<0.000000e+00> : vector<2x6x32xf32>
    %80 = tpu.matmul %79, %63, %cst_44 {dimension_numbers = #tpu.dot_dimension_numbers<[2], [1], [1], [2], [0, 0, 0, 1, 1, 2], [0], [0]>} : vector<2x6x6xbf16>, vector<2x6x32xbf16>, vector<2x6x32xf32> -> vector<2x6x32xf32>
    "tpu.trace_stop"() : () -> ()
    %81 = vector.shape_cast %80 : vector<2x6x32xf32> to vector<12x32xf32>
    %82 = vector.extract_strided_slice %54 {offsets = [0, 32], sizes = [12, 32], strides = [1, 1]} : vector<12x384xf32> to vector<12x32xf32>
    %83 = vector.shape_cast %82 : vector<12x32xf32> to vector<2x6x32xf32>
    %84 = arith.truncf %83 : vector<2x6x32xf32> to vector<2x6x32xbf16>
    %85 = vector.extract_strided_slice %54 {offsets = [0, 160], sizes = [12, 32], strides = [1, 1]} : vector<12x384xf32> to vector<12x32xf32>
    %86 = vector.shape_cast %85 : vector<12x32xf32> to vector<2x6x32xf32>
    %87 = arith.truncf %86 : vector<2x6x32xf32> to vector<2x6x32xbf16>
    %88 = vector.extract_strided_slice %54 {offsets = [0, 288], sizes = [12, 32], strides = [1, 1]} : vector<12x384xf32> to vector<12x32xf32>
    %89 = vector.shape_cast %88 : vector<12x32xf32> to vector<2x6x32xf32>
    %90 = arith.truncf %89 : vector<2x6x32xf32> to vector<2x6x32xbf16>
    "tpu.trace_start"() <{level = 10 : i32, message = "bqd,bkd->bqk"}> : () -> ()
    %cst_45 = arith.constant dense<0.000000e+00> : vector<2x6x6xf32>
    %91 = tpu.matmul %84, %87, %cst_45 {dimension_numbers = #tpu.dot_dimension_numbers<[2], [2], [1], [1], [0, 0, 0, 1, 1, 1], [0], [0]>} : vector<2x6x32xbf16>, vector<2x6x32xbf16>, vector<2x6x6xf32> -> vector<2x6x6xf32>
    "tpu.trace_stop"() : () -> ()
    %cst_46 = arith.constant 0.176776692 : f32
    %92 = vector.broadcast %cst_46 : f32 to vector<2x6x6xf32>
    %93 = arith.mulf %91, %92 : vector<2x6x6xf32>
    %94 = vector.broadcast %4 : vector<2x1x6xf32> to vector<2x6x6xf32>
    %95 = arith.addf %93, %94 : vector<2x6x6xf32>
    %cst_47 = arith.constant dense<0xFF800000> : vector<2x6xf32>
    %96 = vector.multi_reduction <maximumf>, %95, %cst_47 [2] : vector<2x6x6xf32> to vector<2x6xf32>
    %97 = vector.shape_cast %96 : vector<2x6xf32> to vector<2x6x1xf32>
    %98 = vector.broadcast %97 : vector<2x6x1xf32> to vector<2x6x6xf32>
    %99 = arith.subf %95, %98 : vector<2x6x6xf32>
    %100 = math.exp %99 : vector<2x6x6xf32>
    %cst_48 = arith.constant dense<0.000000e+00> : vector<2x6xf32>
    %101 = vector.multi_reduction <add>, %100, %cst_48 [2] : vector<2x6x6xf32> to vector<2x6xf32>
    %102 = vector.shape_cast %101 : vector<2x6xf32> to vector<2x6x1xf32>
    %103 = tpu.reciprocal %102 {approx = true} : vector<2x6x1xf32> -> vector<2x6x1xf32>
    %104 = vector.broadcast %103 : vector<2x6x1xf32> to vector<2x6x6xf32>
    %105 = arith.mulf %100, %104 : vector<2x6x6xf32>
    %106 = arith.truncf %105 : vector<2x6x6xf32> to vector<2x6x6xbf16>
    "tpu.trace_start"() <{level = 10 : i32, message = "bqk,bkd->bqd"}> : () -> ()
    %cst_49 = arith.constant dense<0.000000e+00> : vector<2x6x32xf32>
    %107 = tpu.matmul %106, %90, %cst_49 {dimension_numbers = #tpu.dot_dimension_numbers<[2], [1], [1], [2], [0, 0, 0, 1, 1, 2], [0], [0]>} : vector<2x6x6xbf16>, vector<2x6x32xbf16>, vector<2x6x32xf32> -> vector<2x6x32xf32>
    "tpu.trace_stop"() : () -> ()
    %108 = vector.shape_cast %107 : vector<2x6x32xf32> to vector<12x32xf32>
    %109 = vector.extract_strided_slice %54 {offsets = [0, 64], sizes = [12, 32], strides = [1, 1]} : vector<12x384xf32> to vector<12x32xf32>
    %110 = vector.shape_cast %109 : vector<12x32xf32> to vector<2x6x32xf32>
    %111 = arith.truncf %110 : vector<2x6x32xf32> to vector<2x6x32xbf16>
    %112 = vector.extract_strided_slice %54 {offsets = [0, 192], sizes = [12, 32], strides = [1, 1]} : vector<12x384xf32> to vector<12x32xf32>
    %113 = vector.shape_cast %112 : vector<12x32xf32> to vector<2x6x32xf32>
    %114 = arith.truncf %113 : vector<2x6x32xf32> to vector<2x6x32xbf16>
    %115 = vector.extract_strided_slice %54 {offsets = [0, 320], sizes = [12, 32], strides = [1, 1]} : vector<12x384xf32> to vector<12x32xf32>
    %116 = vector.shape_cast %115 : vector<12x32xf32> to vector<2x6x32xf32>
    %117 = arith.truncf %116 : vector<2x6x32xf32> to vector<2x6x32xbf16>
    "tpu.trace_start"() <{level = 10 : i32, message = "bqd,bkd->bqk"}> : () -> ()
    %cst_50 = arith.constant dense<0.000000e+00> : vector<2x6x6xf32>
    %118 = tpu.matmul %111, %114, %cst_50 {dimension_numbers = #tpu.dot_dimension_numbers<[2], [2], [1], [1], [0, 0, 0, 1, 1, 1], [0], [0]>} : vector<2x6x32xbf16>, vector<2x6x32xbf16>, vector<2x6x6xf32> -> vector<2x6x6xf32>
    "tpu.trace_stop"() : () -> ()
    %cst_51 = arith.constant 0.176776692 : f32
    %119 = vector.broadcast %cst_51 : f32 to vector<2x6x6xf32>
    %120 = arith.mulf %118, %119 : vector<2x6x6xf32>
    %121 = vector.broadcast %4 : vector<2x1x6xf32> to vector<2x6x6xf32>
    %122 = arith.addf %120, %121 : vector<2x6x6xf32>
    %cst_52 = arith.constant dense<0xFF800000> : vector<2x6xf32>
    %123 = vector.multi_reduction <maximumf>, %122, %cst_52 [2] : vector<2x6x6xf32> to vector<2x6xf32>
    %124 = vector.shape_cast %123 : vector<2x6xf32> to vector<2x6x1xf32>
    %125 = vector.broadcast %124 : vector<2x6x1xf32> to vector<2x6x6xf32>
    %126 = arith.subf %122, %125 : vector<2x6x6xf32>
    %127 = math.exp %126 : vector<2x6x6xf32>
    %cst_53 = arith.constant dense<0.000000e+00> : vector<2x6xf32>
    %128 = vector.multi_reduction <add>, %127, %cst_53 [2] : vector<2x6x6xf32> to vector<2x6xf32>
    %129 = vector.shape_cast %128 : vector<2x6xf32> to vector<2x6x1xf32>
    %130 = tpu.reciprocal %129 {approx = true} : vector<2x6x1xf32> -> vector<2x6x1xf32>
    %131 = vector.broadcast %130 : vector<2x6x1xf32> to vector<2x6x6xf32>
    %132 = arith.mulf %127, %131 : vector<2x6x6xf32>
    %133 = arith.truncf %132 : vector<2x6x6xf32> to vector<2x6x6xbf16>
    "tpu.trace_start"() <{level = 10 : i32, message = "bqk,bkd->bqd"}> : () -> ()
    %cst_54 = arith.constant dense<0.000000e+00> : vector<2x6x32xf32>
    %134 = tpu.matmul %133, %117, %cst_54 {dimension_numbers = #tpu.dot_dimension_numbers<[2], [1], [1], [2], [0, 0, 0, 1, 1, 2], [0], [0]>} : vector<2x6x6xbf16>, vector<2x6x32xbf16>, vector<2x6x32xf32> -> vector<2x6x32xf32>
    "tpu.trace_stop"() : () -> ()
    %135 = vector.shape_cast %134 : vector<2x6x32xf32> to vector<12x32xf32>
    %136 = vector.extract_strided_slice %54 {offsets = [0, 96], sizes = [12, 32], strides = [1, 1]} : vector<12x384xf32> to vector<12x32xf32>
    %137 = vector.shape_cast %136 : vector<12x32xf32> to vector<2x6x32xf32>
    %138 = arith.truncf %137 : vector<2x6x32xf32> to vector<2x6x32xbf16>
    %139 = vector.extract_strided_slice %54 {offsets = [0, 224], sizes = [12, 32], strides = [1, 1]} : vector<12x384xf32> to vector<12x32xf32>
    %140 = vector.shape_cast %139 : vector<12x32xf32> to vector<2x6x32xf32>
    %141 = arith.truncf %140 : vector<2x6x32xf32> to vector<2x6x32xbf16>
    %142 = vector.extract_strided_slice %54 {offsets = [0, 352], sizes = [12, 32], strides = [1, 1]} : vector<12x384xf32> to vector<12x32xf32>
    %143 = vector.shape_cast %142 : vector<12x32xf32> to vector<2x6x32xf32>
    %144 = arith.truncf %143 : vector<2x6x32xf32> to vector<2x6x32xbf16>
    "tpu.trace_start"() <{level = 10 : i32, message = "bqd,bkd->bqk"}> : () -> ()
    %cst_55 = arith.constant dense<0.000000e+00> : vector<2x6x6xf32>
    %145 = tpu.matmul %138, %141, %cst_55 {dimension_numbers = #tpu.dot_dimension_numbers<[2], [2], [1], [1], [0, 0, 0, 1, 1, 1], [0], [0]>} : vector<2x6x32xbf16>, vector<2x6x32xbf16>, vector<2x6x6xf32> -> vector<2x6x6xf32>
    "tpu.trace_stop"() : () -> ()
    %cst_56 = arith.constant 0.176776692 : f32
    %146 = vector.broadcast %cst_56 : f32 to vector<2x6x6xf32>
    %147 = arith.mulf %145, %146 : vector<2x6x6xf32>
    %148 = vector.broadcast %4 : vector<2x1x6xf32> to vector<2x6x6xf32>
    %149 = arith.addf %147, %148 : vector<2x6x6xf32>
    %cst_57 = arith.constant dense<0xFF800000> : vector<2x6xf32>
    %150 = vector.multi_reduction <maximumf>, %149, %cst_57 [2] : vector<2x6x6xf32> to vector<2x6xf32>
    %151 = vector.shape_cast %150 : vector<2x6xf32> to vector<2x6x1xf32>
    %152 = vector.broadcast %151 : vector<2x6x1xf32> to vector<2x6x6xf32>
    %153 = arith.subf %149, %152 : vector<2x6x6xf32>
    %154 = math.exp %153 : vector<2x6x6xf32>
    %cst_58 = arith.constant dense<0.000000e+00> : vector<2x6xf32>
    %155 = vector.multi_reduction <add>, %154, %cst_58 [2] : vector<2x6x6xf32> to vector<2x6xf32>
    %156 = vector.shape_cast %155 : vector<2x6xf32> to vector<2x6x1xf32>
    %157 = tpu.reciprocal %156 {approx = true} : vector<2x6x1xf32> -> vector<2x6x1xf32>
    %158 = vector.broadcast %157 : vector<2x6x1xf32> to vector<2x6x6xf32>
    %159 = arith.mulf %154, %158 : vector<2x6x6xf32>
    %160 = arith.truncf %159 : vector<2x6x6xf32> to vector<2x6x6xbf16>
    "tpu.trace_start"() <{level = 10 : i32, message = "bqk,bkd->bqd"}> : () -> ()
    %cst_59 = arith.constant dense<0.000000e+00> : vector<2x6x32xf32>
    %161 = tpu.matmul %160, %144, %cst_59 {dimension_numbers = #tpu.dot_dimension_numbers<[2], [1], [1], [2], [0, 0, 0, 1, 1, 2], [0], [0]>} : vector<2x6x6xbf16>, vector<2x6x32xbf16>, vector<2x6x32xf32> -> vector<2x6x32xf32>
    "tpu.trace_stop"() : () -> ()
    %162 = vector.shape_cast %161 : vector<2x6x32xf32> to vector<12x32xf32>
    %163 = tpu.concatenate %81, %108, %135, %162 in 1 : vector<12x32xf32>, vector<12x32xf32>, vector<12x32xf32>, vector<12x32xf32> -> vector<12x128xf32>
    %164 = arith.truncf %163 : vector<12x128xf32> to vector<12x128xbf16>
    %cst_60 = arith.constant dense<0.000000e+00> : vector<12x128xf32>
    %165 = tpu.matmul %164, %10, %cst_60 {dimension_numbers = #tpu.dot_dimension_numbers<[1], [0], [0], [1], [0, 0, 1, 1], [], []>} : vector<12x128xbf16>, vector<128x128xbf16>, vector<12x128xf32> -> vector<12x128xf32>
    %166 = vector.broadcast %12 : vector<1x128xf32> to vector<12x128xf32>
    %167 = arith.addf %165, %166 : vector<12x128xf32>
    %168 = arith.addf %3, %167 : vector<12x128xf32>
    %cst_61 = arith.constant dense<0.000000e+00> : vector<12xf32>
    %169 = vector.multi_reduction <add>, %168, %cst_61 [1] : vector<12x128xf32> to vector<12xf32>
    %170 = vector.shape_cast %169 : vector<12xf32> to vector<12x1xf32>
    %cst_62 = arith.constant 1.280000e+02 : f32
    %171 = vector.broadcast %cst_62 : f32 to vector<12x1xf32>
    %172 = arith.divf %170, %171 : vector<12x1xf32>
    %173 = vector.broadcast %172 : vector<12x1xf32> to vector<12x128xf32>
    %174 = arith.subf %168, %173 : vector<12x128xf32>
    %175 = arith.mulf %174, %174 : vector<12x128xf32>
    %cst_63 = arith.constant dense<0.000000e+00> : vector<12xf32>
    %176 = vector.multi_reduction <add>, %175, %cst_63 [1] : vector<12x128xf32> to vector<12xf32>
    %177 = vector.shape_cast %176 : vector<12xf32> to vector<12x1xf32>
    %cst_64 = arith.constant 1.280000e+02 : f32
    %178 = vector.broadcast %cst_64 : f32 to vector<12x1xf32>
    %179 = arith.divf %177, %178 : vector<12x1xf32>
    %180 = vector.broadcast %172 : vector<12x1xf32> to vector<12x128xf32>
    %181 = arith.subf %168, %180 : vector<12x128xf32>
    %cst_65 = arith.constant 9.99999974E-6 : f32
    %182 = vector.broadcast %cst_65 : f32 to vector<12x1xf32>
    %183 = arith.addf %179, %182 : vector<12x1xf32>
    %184 = math.rsqrt %183 : vector<12x1xf32>
    %185 = vector.broadcast %184 : vector<12x1xf32> to vector<12x128xf32>
    %186 = arith.mulf %181, %185 : vector<12x128xf32>
    %187 = vector.broadcast %19 : vector<1x128xf32> to vector<12x128xf32>
    %188 = arith.mulf %186, %187 : vector<12x128xf32>
    %189 = vector.broadcast %20 : vector<1x128xf32> to vector<12x128xf32>
    %190 = arith.addf %188, %189 : vector<12x128xf32>
    %191 = arith.truncf %190 : vector<12x128xf32> to vector<12x128xbf16>
    %cst_66 = arith.constant dense<0.000000e+00> : vector<12x256xf32>
    %192 = tpu.matmul %191, %22, %cst_66 {dimension_numbers = #tpu.dot_dimension_numbers<[1], [0], [0], [1], [0, 0, 1, 1], [], []>} : vector<12x128xbf16>, vector<128x256xbf16>, vector<12x256xf32> -> vector<12x256xf32>
    %193 = vector.broadcast %24 : vector<1x256xf32> to vector<12x256xf32>
    %194 = arith.addf %192, %193 : vector<12x256xf32>
    %cst_67 = arith.constant 5.000000e-01 : f32
    %195 = vector.broadcast %cst_67 : f32 to vector<12x256xf32>
    %196 = arith.mulf %195, %194 : vector<12x256xf32>
    %cst_68 = arith.constant 4.471500e-02 : f32
    %197 = vector.broadcast %cst_68 : f32 to vector<12x256xf32>
    %198 = arith.mulf %197, %194 : vector<12x256xf32>
    %199 = arith.mulf %198, %194 : vector<12x256xf32>
    %200 = arith.mulf %199, %194 : vector<12x256xf32>
    %201 = arith.addf %194, %200 : vector<12x256xf32>
    %cst_69 = arith.constant 0.797884583 : f32
    %202 = vector.broadcast %cst_69 : f32 to vector<12x256xf32>
    %203 = arith.mulf %202, %201 : vector<12x256xf32>
    %204 = math.tanh %203 : vector<12x256xf32>
    %cst_70 = arith.constant 1.000000e+00 : f32
    %205 = vector.broadcast %cst_70 : f32 to vector<12x256xf32>
    %206 = arith.addf %205, %204 : vector<12x256xf32>
    %207 = arith.mulf %196, %206 : vector<12x256xf32>
    %208 = arith.truncf %207 : vector<12x256xf32> to vector<12x256xbf16>
    %cst_71 = arith.constant dense<0.000000e+00> : vector<12x128xf32>
    %209 = tpu.matmul %208, %26, %cst_71 {dimension_numbers = #tpu.dot_dimension_numbers<[1], [0], [0], [1], [0, 0, 1, 1], [], []>} : vector<12x256xbf16>, vector<256x128xbf16>, vector<12x128xf32> -> vector<12x128xf32>
    %210 = vector.broadcast %28 : vector<1x128xf32> to vector<12x128xf32>
    %211 = arith.addf %209, %210 : vector<12x128xf32>
    %212 = arith.addf %168, %211 : vector<12x128xf32>
    %c0_72 = arith.constant 0 : index
    %c0_73 = arith.constant 0 : index
    %213 = vector.load %arg14[%c0_72, %c0_73] : memref<12x128xf32, #tpu.memory_space<vmem>>, vector<12x128xf32>
    tpu.vector_store %arg14[%c0_72, %c0_73], %212 {strides = array<i32>} : memref<12x128xf32, #tpu.memory_space<vmem>>, vector<12x128xf32>,
    return
  }
  func.func @transform_0(%arg0: i32) -> (i32, i32) {
    %c0_i32 = arith.constant 0 : i32
    %c0_i32_0 = arith.constant 0 : i32
    %c0_i32_1 = arith.constant 0 : i32
    return %c0_i32, %c0_i32_0 : i32, i32
  }
  func.func @transform_1(%arg0: i32) -> (i32, i32, i32) {
    %c0_i32 = arith.constant 0 : i32
    %c0_i32_0 = arith.constant 0 : i32
    %c0_i32_1 = arith.constant 0 : i32
    %c0_i32_2 = arith.constant 0 : i32
    return %c0_i32, %c0_i32_0, %c0_i32_1 : i32, i32, i32
  }
  func.func @transform_2(%arg0: i32) -> (i32, i32) {
    %c0_i32 = arith.constant 0 : i32
    %c0_i32_0 = arith.constant 0 : i32
    %c0_i32_1 = arith.constant 0 : i32
    return %c0_i32, %c0_i32_0 : i32, i32
  }
  func.func @transform_3(%arg0: i32) -> (i32, i32, i32) {
    %c0_i32 = arith.constant 0 : i32
    %c0_i32_0 = arith.constant 0 : i32
    %c0_i32_1 = arith.constant 0 : i32
    return %arg0, %c0_i32, %c0_i32_0 : i32, i32, i32
  }
  func.func @transform_4(%arg0: i32) -> (i32, i32, i32) {
    %c0_i32 = arith.constant 0 : i32
    %c0_i32_0 = arith.constant 0 : i32
    %c0_i32_1 = arith.constant 0 : i32
    return %arg0, %c0_i32, %c0_i32_0 : i32, i32, i32
  }
  func.func @transform_5(%arg0: i32) -> (i32, i32, i32) {
    %c0_i32 = arith.constant 0 : i32
    %c0_i32_0 = arith.constant 0 : i32
    %c0_i32_1 = arith.constant 0 : i32
    return %arg0, %c0_i32, %c0_i32_0 : i32, i32, i32
  }
  func.func @transform_6(%arg0: i32) -> (i32, i32, i32) {
    %c0_i32 = arith.constant 0 : i32
    %c0_i32_0 = arith.constant 0 : i32
    %c0_i32_1 = arith.constant 0 : i32
    return %arg0, %c0_i32, %c0_i32_0 : i32, i32, i32
  }
  func.func @transform_7(%arg0: i32) -> (i32, i32, i32) {
    %c0_i32 = arith.constant 0 : i32
    %c0_i32_0 = arith.constant 0 : i32
    %c0_i32_1 = arith.constant 0 : i32
    return %arg0, %c0_i32, %c0_i32_0 : i32, i32, i32
  }
  func.func @transform_8(%arg0: i32) -> (i32, i32, i32) {
    %c0_i32 = arith.constant 0 : i32
    %c0_i32_0 = arith.constant 0 : i32
    %c0_i32_1 = arith.constant 0 : i32
    return %arg0, %c0_i32, %c0_i32_0 : i32, i32, i32
  }
  func.func @transform_9(%arg0: i32) -> (i32, i32, i32) {
    %c0_i32 = arith.constant 0 : i32
    %c0_i32_0 = arith.constant 0 : i32
    %c0_i32_1 = arith.constant 0 : i32
    return %arg0, %c0_i32, %c0_i32_0 : i32, i32, i32
  }
  func.func @transform_10(%arg0: i32) -> (i32, i32, i32) {
    %c0_i32 = arith.constant 0 : i32
    %c0_i32_0 = arith.constant 0 : i32
    %c0_i32_1 = arith.constant 0 : i32
    return %arg0, %c0_i32, %c0_i32_0 : i32, i32, i32
  }
  func.func @transform_11(%arg0: i32) -> (i32, i32, i32) {
    %c0_i32 = arith.constant 0 : i32
    %c0_i32_0 = arith.constant 0 : i32
    %c0_i32_1 = arith.constant 0 : i32
    return %arg0, %c0_i32, %c0_i32_0 : i32, i32, i32
  }
  func.func @transform_12(%arg0: i32) -> (i32, i32, i32) {
    %c0_i32 = arith.constant 0 : i32
    %c0_i32_0 = arith.constant 0 : i32
    %c0_i32_1 = arith.constant 0 : i32
    return %arg0, %c0_i32, %c0_i32_0 : i32, i32, i32
  }
  func.func @transform_13(%arg0: i32) -> (i32, i32) {
    %c0_i32 = arith.constant 0 : i32
    %c0_i32_0 = arith.constant 0 : i32
    %c0_i32_1 = arith.constant 0 : i32
    return %c0_i32, %c0_i32_0 : i32, i32
  }
}

module attributes {stable_mosaic.version = 11 : i64} {
  func.func @_stack_kernel(%arg0: i32, %arg1: memref<28x128xf32, #tpu.memory_space<vmem>>, %arg2: memref<2x1x14xf32, #tpu.memory_space<vmem>>, %arg3: memref<2x128xf32, #tpu.memory_space<vmem>>, %arg4: memref<1x128x384xbf16, #tpu.memory_space<vmem>>, %arg5: memref<1x1x384xf32, #tpu.memory_space<vmem>>, %arg6: memref<1x128x128xbf16, #tpu.memory_space<vmem>>, %arg7: memref<1x1x128xf32, #tpu.memory_space<vmem>>, %arg8: memref<1x2x128xf32, #tpu.memory_space<vmem>>, %arg9: memref<1x2x128xf32, #tpu.memory_space<vmem>>, %arg10: memref<1x128x256xbf16, #tpu.memory_space<vmem>>, %arg11: memref<1x1x256xf32, #tpu.memory_space<vmem>>, %arg12: memref<1x256x128xbf16, #tpu.memory_space<vmem>>, %arg13: memref<1x1x128xf32, #tpu.memory_space<vmem>>, %arg14: memref<28x128xf32, #tpu.memory_space<vmem>>) attributes {dimension_semantics = [#tpu.dimension_semantics<arbitrary>], iteration_bounds = array<i64: 3>, scalar_prefetch = 0 : i64, scratch_operands = 0 : i64, tpu.core_type = #tpu.core_type<tc>, window_params = [{pipeline_mode = #tpu.pipeline_mode<synchronous>, transform_indices = @transform_0, window_bounds = array<i64: 28, 128>}, {pipeline_mode = #tpu.pipeline_mode<synchronous>, transform_indices = @transform_1, window_bounds = array<i64: 2, 1, 14>}, {pipeline_mode = #tpu.pipeline_mode<synchronous>, transform_indices = @transform_2, window_bounds = array<i64: 2, 128>}, {transform_indices = @transform_3, window_bounds = array<i64: 1, 128, 384>}, {transform_indices = @transform_4, window_bounds = array<i64: 1, 1, 384>}, {transform_indices = @transform_5, window_bounds = array<i64: 1, 128, 128>}, {transform_indices = @transform_6, window_bounds = array<i64: 1, 1, 128>}, {transform_indices = @transform_7, window_bounds = array<i64: 1, 2, 128>}, {transform_indices = @transform_8, window_bounds = array<i64: 1, 2, 128>}, {transform_indices = @transform_9, window_bounds = array<i64: 1, 128, 256>}, {transform_indices = @transform_10, window_bounds = array<i64: 1, 1, 256>}, {transform_indices = @transform_11, window_bounds = array<i64: 1, 256, 128>}, {transform_indices = @transform_12, window_bounds = array<i64: 1, 1, 128>}, {pipeline_mode = #tpu.pipeline_mode<synchronous>, transform_indices = @transform_13, window_bounds = array<i64: 28, 128>}]} {
    %c0_i32 = arith.constant 0 : i32
    %0 = arith.cmpi eq, %arg0, %c0_i32 : i32
    %1 = arith.extui %0 : i1 to i32
    %c0_i32_0 = arith.constant 0 : i32
    %2 = arith.cmpi ne, %1, %c0_i32_0 : i32
    scf.if %2 {
      %c0_74 = arith.constant 0 : index
      %c0_75 = arith.constant 0 : index
      %214 = vector.load %arg1[%c0_74, %c0_75] : memref<28x128xf32, #tpu.memory_space<vmem>>, vector<28x128xf32>
      %c0_76 = arith.constant 0 : index
      %c0_77 = arith.constant 0 : index
      %215 = vector.load %arg14[%c0_76, %c0_77] : memref<28x128xf32, #tpu.memory_space<vmem>>, vector<28x128xf32>
      tpu.vector_store %arg14[%c0_76, %c0_77], %214 {strides = array<i32>} : memref<28x128xf32, #tpu.memory_space<vmem>>, vector<28x128xf32>,
    } else {
    }
    %c0 = arith.constant 0 : index
    %c0_1 = arith.constant 0 : index
    %3 = vector.load %arg14[%c0, %c0_1] : memref<28x128xf32, #tpu.memory_space<vmem>>, vector<28x128xf32>
    %c0_2 = arith.constant 0 : index
    %c0_3 = arith.constant 0 : index
    %c0_4 = arith.constant 0 : index
    %4 = vector.load %arg2[%c0_2, %c0_3, %c0_4] : memref<2x1x14xf32, #tpu.memory_space<vmem>>, vector<2x1x14xf32>
    %c0_5 = arith.constant 0 : index
    %c0_6 = arith.constant 0 : index
    %c0_7 = arith.constant 0 : index
    %5 = vector.load %arg4[%c0_5, %c0_6, %c0_7] : memref<1x128x384xbf16, #tpu.memory_space<vmem>>, vector<1x128x384xbf16>
    %6 = vector.shape_cast %5 : vector<1x128x384xbf16> to vector<128x384xbf16>
    %c0_8 = arith.constant 0 : index
    %c0_9 = arith.constant 0 : index
    %c0_10 = arith.constant 0 : index
    %7 = vector.load %arg5[%c0_8, %c0_9, %c0_10] : memref<1x1x384xf32, #tpu.memory_space<vmem>>, vector<1x1x384xf32>
    %8 = vector.shape_cast %7 : vector<1x1x384xf32> to vector<1x384xf32>
    %c0_11 = arith.constant 0 : index
    %c0_12 = arith.constant 0 : index
    %c0_13 = arith.constant 0 : index
    %9 = vector.load %arg6[%c0_11, %c0_12, %c0_13] : memref<1x128x128xbf16, #tpu.memory_space<vmem>>, vector<1x128x128xbf16>
    %10 = vector.shape_cast %9 : vector<1x128x128xbf16> to vector<128x128xbf16>
    %c0_14 = arith.constant 0 : index
    %c0_15 = arith.constant 0 : index
    %c0_16 = arith.constant 0 : index
    %11 = vector.load %arg7[%c0_14, %c0_15, %c0_16] : memref<1x1x128xf32, #tpu.memory_space<vmem>>, vector<1x1x128xf32>
    %12 = vector.shape_cast %11 : vector<1x1x128xf32> to vector<1x128xf32>
    %c0_17 = arith.constant 0 : index
    %c0_18 = arith.constant 0 : index
    %c0_19 = arith.constant 0 : index
    %13 = vector.load %arg8[%c0_17, %c0_18, %c0_19] : memref<1x2x128xf32, #tpu.memory_space<vmem>>, vector<1x2x128xf32>
    %14 = vector.shape_cast %13 : vector<1x2x128xf32> to vector<2x128xf32>
    %c0_20 = arith.constant 0 : index
    %c0_21 = arith.constant 0 : index
    %c0_22 = arith.constant 0 : index
    %15 = vector.load %arg9[%c0_20, %c0_21, %c0_22] : memref<1x2x128xf32, #tpu.memory_space<vmem>>, vector<1x2x128xf32>
    %16 = vector.shape_cast %15 : vector<1x2x128xf32> to vector<2x128xf32>
    %17 = vector.extract_strided_slice %14 {offsets = [0, 0], sizes = [1, 128], strides = [1, 1]} : vector<2x128xf32> to vector<1x128xf32>
    %18 = vector.extract_strided_slice %14 {offsets = [1, 0], sizes = [1, 128], strides = [1, 1]} : vector<2x128xf32> to vector<1x128xf32>
    %19 = vector.extract_strided_slice %16 {offsets = [0, 0], sizes = [1, 128], strides = [1, 1]} : vector<2x128xf32> to vector<1x128xf32>
    %20 = vector.extract_strided_slice %16 {offsets = [1, 0], sizes = [1, 128], strides = [1, 1]} : vector<2x128xf32> to vector<1x128xf32>
    %c0_23 = arith.constant 0 : index
    %c0_24 = arith.constant 0 : index
    %c0_25 = arith.constant 0 : index
    %21 = vector.load %arg10[%c0_23, %c0_24, %c0_25] : memref<1x128x256xbf16, #tpu.memory_space<vmem>>, vector<1x128x256xbf16>
    %22 = vector.shape_cast %21 : vector<1x128x256xbf16> to vector<128x256xbf16>
    %c0_26 = arith.constant 0 : index
    %c0_27 = arith.constant 0 : index
    %c0_28 = arith.constant 0 : index
    %23 = vector.load %arg11[%c0_26, %c0_27, %c0_28] : memref<1x1x256xf32, #tpu.memory_space<vmem>>, vector<1x1x256xf32>
    %24 = vector.shape_cast %23 : vector<1x1x256xf32> to vector<1x256xf32>
    %c0_29 = arith.constant 0 : index
    %c0_30 = arith.constant 0 : index
    %c0_31 = arith.constant 0 : index
    %25 = vector.load %arg12[%c0_29, %c0_30, %c0_31] : memref<1x256x128xbf16, #tpu.memory_space<vmem>>, vector<1x256x128xbf16>
    %26 = vector.shape_cast %25 : vector<1x256x128xbf16> to vector<256x128xbf16>
    %c0_32 = arith.constant 0 : index
    %c0_33 = arith.constant 0 : index
    %c0_34 = arith.constant 0 : index
    %27 = vector.load %arg13[%c0_32, %c0_33, %c0_34] : memref<1x1x128xf32, #tpu.memory_space<vmem>>, vector<1x1x128xf32>
    %28 = vector.shape_cast %27 : vector<1x1x128xf32> to vector<1x128xf32>
    %cst = arith.constant dense<0.000000e+00> : vector<28xf32>
    %29 = vector.multi_reduction <add>, %3, %cst [1] : vector<28x128xf32> to vector<28xf32>
    %30 = vector.shape_cast %29 : vector<28xf32> to vector<28x1xf32>
    %cst_35 = arith.constant 1.280000e+02 : f32
    %31 = vector.broadcast %cst_35 : f32 to vector<28x1xf32>
    %32 = arith.divf %30, %31 : vector<28x1xf32>
    %33 = vector.broadcast %32 : vector<28x1xf32> to vector<28x128xf32>
    %34 = arith.subf %3, %33 : vector<28x128xf32>
    %35 = arith.mulf %34, %34 : vector<28x128xf32>
    %cst_36 = arith.constant dense<0.000000e+00> : vector<28xf32>
    %36 = vector.multi_reduction <add>, %35, %cst_36 [1] : vector<28x128xf32> to vector<28xf32>
    %37 = vector.shape_cast %36 : vector<28xf32> to vector<28x1xf32>
    %cst_37 = arith.constant 1.280000e+02 : f32
    %38 = vector.broadcast %cst_37 : f32 to vector<28x1xf32>
    %39 = arith.divf %37, %38 : vector<28x1xf32>
    %40 = vector.broadcast %32 : vector<28x1xf32> to vector<28x128xf32>
    %41 = arith.subf %3, %40 : vector<28x128xf32>
    %cst_38 = arith.constant 9.99999974E-6 : f32
    %42 = vector.broadcast %cst_38 : f32 to vector<28x1xf32>
    %43 = arith.addf %39, %42 : vector<28x1xf32>
    %44 = math.rsqrt %43 : vector<28x1xf32>
    %45 = vector.broadcast %44 : vector<28x1xf32> to vector<28x128xf32>
    %46 = arith.mulf %41, %45 : vector<28x128xf32>
    %47 = vector.broadcast %17 : vector<1x128xf32> to vector<28x128xf32>
    %48 = arith.mulf %46, %47 : vector<28x128xf32>
    %49 = vector.broadcast %18 : vector<1x128xf32> to vector<28x128xf32>
    %50 = arith.addf %48, %49 : vector<28x128xf32>
    %51 = arith.truncf %50 : vector<28x128xf32> to vector<28x128xbf16>
    %cst_39 = arith.constant dense<0.000000e+00> : vector<28x384xf32>
    %52 = tpu.matmul %51, %6, %cst_39 {dimension_numbers = #tpu.dot_dimension_numbers<[1], [0], [0], [1], [0, 0, 1, 1], [], []>} : vector<28x128xbf16>, vector<128x384xbf16>, vector<28x384xf32> -> vector<28x384xf32>
    %53 = vector.broadcast %8 : vector<1x384xf32> to vector<28x384xf32>
    %54 = arith.addf %52, %53 : vector<28x384xf32>
    %55 = vector.extract_strided_slice %54 {offsets = [0, 0], sizes = [28, 32], strides = [1, 1]} : vector<28x384xf32> to vector<28x32xf32>
    %56 = vector.shape_cast %55 : vector<28x32xf32> to vector<2x14x32xf32>
    %57 = arith.truncf %56 : vector<2x14x32xf32> to vector<2x14x32xbf16>
    %58 = vector.extract_strided_slice %54 {offsets = [0, 128], sizes = [28, 32], strides = [1, 1]} : vector<28x384xf32> to vector<28x32xf32>
    %59 = vector.shape_cast %58 : vector<28x32xf32> to vector<2x14x32xf32>
    %60 = arith.truncf %59 : vector<2x14x32xf32> to vector<2x14x32xbf16>
    %61 = vector.extract_strided_slice %54 {offsets = [0, 256], sizes = [28, 32], strides = [1, 1]} : vector<28x384xf32> to vector<28x32xf32>
    %62 = vector.shape_cast %61 : vector<28x32xf32> to vector<2x14x32xf32>
    %63 = arith.truncf %62 : vector<2x14x32xf32> to vector<2x14x32xbf16>
    "tpu.trace_start"() <{level = 10 : i32, message = "bqd,bkd->bqk"}> : () -> ()
    %cst_40 = arith.constant dense<0.000000e+00> : vector<2x14x14xf32>
    %64 = tpu.matmul %57, %60, %cst_40 {dimension_numbers = #tpu.dot_dimension_numbers<[2], [2], [1], [1], [0, 0, 0, 1, 1, 1], [0], [0]>} : vector<2x14x32xbf16>, vector<2x14x32xbf16>, vector<2x14x14xf32> -> vector<2x14x14xf32>
    "tpu.trace_stop"() : () -> ()
    %cst_41 = arith.constant 0.176776692 : f32
    %65 = vector.broadcast %cst_41 : f32 to vector<2x14x14xf32>
    %66 = arith.mulf %64, %65 : vector<2x14x14xf32>
    %67 = vector.broadcast %4 : vector<2x1x14xf32> to vector<2x14x14xf32>
    %68 = arith.addf %66, %67 : vector<2x14x14xf32>
    %cst_42 = arith.constant dense<0xFF800000> : vector<2x14xf32>
    %69 = vector.multi_reduction <maximumf>, %68, %cst_42 [2] : vector<2x14x14xf32> to vector<2x14xf32>
    %70 = vector.shape_cast %69 : vector<2x14xf32> to vector<2x14x1xf32>
    %71 = vector.broadcast %70 : vector<2x14x1xf32> to vector<2x14x14xf32>
    %72 = arith.subf %68, %71 : vector<2x14x14xf32>
    %73 = math.exp %72 : vector<2x14x14xf32>
    %cst_43 = arith.constant dense<0.000000e+00> : vector<2x14xf32>
    %74 = vector.multi_reduction <add>, %73, %cst_43 [2] : vector<2x14x14xf32> to vector<2x14xf32>
    %75 = vector.shape_cast %74 : vector<2x14xf32> to vector<2x14x1xf32>
    %76 = tpu.reciprocal %75 {approx = true} : vector<2x14x1xf32> -> vector<2x14x1xf32>
    %77 = vector.broadcast %76 : vector<2x14x1xf32> to vector<2x14x14xf32>
    %78 = arith.mulf %73, %77 : vector<2x14x14xf32>
    %79 = arith.truncf %78 : vector<2x14x14xf32> to vector<2x14x14xbf16>
    "tpu.trace_start"() <{level = 10 : i32, message = "bqk,bkd->bqd"}> : () -> ()
    %cst_44 = arith.constant dense<0.000000e+00> : vector<2x14x32xf32>
    %80 = tpu.matmul %79, %63, %cst_44 {dimension_numbers = #tpu.dot_dimension_numbers<[2], [1], [1], [2], [0, 0, 0, 1, 1, 2], [0], [0]>} : vector<2x14x14xbf16>, vector<2x14x32xbf16>, vector<2x14x32xf32> -> vector<2x14x32xf32>
    "tpu.trace_stop"() : () -> ()
    %81 = vector.shape_cast %80 : vector<2x14x32xf32> to vector<28x32xf32>
    %82 = vector.extract_strided_slice %54 {offsets = [0, 32], sizes = [28, 32], strides = [1, 1]} : vector<28x384xf32> to vector<28x32xf32>
    %83 = vector.shape_cast %82 : vector<28x32xf32> to vector<2x14x32xf32>
    %84 = arith.truncf %83 : vector<2x14x32xf32> to vector<2x14x32xbf16>
    %85 = vector.extract_strided_slice %54 {offsets = [0, 160], sizes = [28, 32], strides = [1, 1]} : vector<28x384xf32> to vector<28x32xf32>
    %86 = vector.shape_cast %85 : vector<28x32xf32> to vector<2x14x32xf32>
    %87 = arith.truncf %86 : vector<2x14x32xf32> to vector<2x14x32xbf16>
    %88 = vector.extract_strided_slice %54 {offsets = [0, 288], sizes = [28, 32], strides = [1, 1]} : vector<28x384xf32> to vector<28x32xf32>
    %89 = vector.shape_cast %88 : vector<28x32xf32> to vector<2x14x32xf32>
    %90 = arith.truncf %89 : vector<2x14x32xf32> to vector<2x14x32xbf16>
    "tpu.trace_start"() <{level = 10 : i32, message = "bqd,bkd->bqk"}> : () -> ()
    %cst_45 = arith.constant dense<0.000000e+00> : vector<2x14x14xf32>
    %91 = tpu.matmul %84, %87, %cst_45 {dimension_numbers = #tpu.dot_dimension_numbers<[2], [2], [1], [1], [0, 0, 0, 1, 1, 1], [0], [0]>} : vector<2x14x32xbf16>, vector<2x14x32xbf16>, vector<2x14x14xf32> -> vector<2x14x14xf32>
    "tpu.trace_stop"() : () -> ()
    %cst_46 = arith.constant 0.176776692 : f32
    %92 = vector.broadcast %cst_46 : f32 to vector<2x14x14xf32>
    %93 = arith.mulf %91, %92 : vector<2x14x14xf32>
    %94 = vector.broadcast %4 : vector<2x1x14xf32> to vector<2x14x14xf32>
    %95 = arith.addf %93, %94 : vector<2x14x14xf32>
    %cst_47 = arith.constant dense<0xFF800000> : vector<2x14xf32>
    %96 = vector.multi_reduction <maximumf>, %95, %cst_47 [2] : vector<2x14x14xf32> to vector<2x14xf32>
    %97 = vector.shape_cast %96 : vector<2x14xf32> to vector<2x14x1xf32>
    %98 = vector.broadcast %97 : vector<2x14x1xf32> to vector<2x14x14xf32>
    %99 = arith.subf %95, %98 : vector<2x14x14xf32>
    %100 = math.exp %99 : vector<2x14x14xf32>
    %cst_48 = arith.constant dense<0.000000e+00> : vector<2x14xf32>
    %101 = vector.multi_reduction <add>, %100, %cst_48 [2] : vector<2x14x14xf32> to vector<2x14xf32>
    %102 = vector.shape_cast %101 : vector<2x14xf32> to vector<2x14x1xf32>
    %103 = tpu.reciprocal %102 {approx = true} : vector<2x14x1xf32> -> vector<2x14x1xf32>
    %104 = vector.broadcast %103 : vector<2x14x1xf32> to vector<2x14x14xf32>
    %105 = arith.mulf %100, %104 : vector<2x14x14xf32>
    %106 = arith.truncf %105 : vector<2x14x14xf32> to vector<2x14x14xbf16>
    "tpu.trace_start"() <{level = 10 : i32, message = "bqk,bkd->bqd"}> : () -> ()
    %cst_49 = arith.constant dense<0.000000e+00> : vector<2x14x32xf32>
    %107 = tpu.matmul %106, %90, %cst_49 {dimension_numbers = #tpu.dot_dimension_numbers<[2], [1], [1], [2], [0, 0, 0, 1, 1, 2], [0], [0]>} : vector<2x14x14xbf16>, vector<2x14x32xbf16>, vector<2x14x32xf32> -> vector<2x14x32xf32>
    "tpu.trace_stop"() : () -> ()
    %108 = vector.shape_cast %107 : vector<2x14x32xf32> to vector<28x32xf32>
    %109 = vector.extract_strided_slice %54 {offsets = [0, 64], sizes = [28, 32], strides = [1, 1]} : vector<28x384xf32> to vector<28x32xf32>
    %110 = vector.shape_cast %109 : vector<28x32xf32> to vector<2x14x32xf32>
    %111 = arith.truncf %110 : vector<2x14x32xf32> to vector<2x14x32xbf16>
    %112 = vector.extract_strided_slice %54 {offsets = [0, 192], sizes = [28, 32], strides = [1, 1]} : vector<28x384xf32> to vector<28x32xf32>
    %113 = vector.shape_cast %112 : vector<28x32xf32> to vector<2x14x32xf32>
    %114 = arith.truncf %113 : vector<2x14x32xf32> to vector<2x14x32xbf16>
    %115 = vector.extract_strided_slice %54 {offsets = [0, 320], sizes = [28, 32], strides = [1, 1]} : vector<28x384xf32> to vector<28x32xf32>
    %116 = vector.shape_cast %115 : vector<28x32xf32> to vector<2x14x32xf32>
    %117 = arith.truncf %116 : vector<2x14x32xf32> to vector<2x14x32xbf16>
    "tpu.trace_start"() <{level = 10 : i32, message = "bqd,bkd->bqk"}> : () -> ()
    %cst_50 = arith.constant dense<0.000000e+00> : vector<2x14x14xf32>
    %118 = tpu.matmul %111, %114, %cst_50 {dimension_numbers = #tpu.dot_dimension_numbers<[2], [2], [1], [1], [0, 0, 0, 1, 1, 1], [0], [0]>} : vector<2x14x32xbf16>, vector<2x14x32xbf16>, vector<2x14x14xf32> -> vector<2x14x14xf32>
    "tpu.trace_stop"() : () -> ()
    %cst_51 = arith.constant 0.176776692 : f32
    %119 = vector.broadcast %cst_51 : f32 to vector<2x14x14xf32>
    %120 = arith.mulf %118, %119 : vector<2x14x14xf32>
    %121 = vector.broadcast %4 : vector<2x1x14xf32> to vector<2x14x14xf32>
    %122 = arith.addf %120, %121 : vector<2x14x14xf32>
    %cst_52 = arith.constant dense<0xFF800000> : vector<2x14xf32>
    %123 = vector.multi_reduction <maximumf>, %122, %cst_52 [2] : vector<2x14x14xf32> to vector<2x14xf32>
    %124 = vector.shape_cast %123 : vector<2x14xf32> to vector<2x14x1xf32>
    %125 = vector.broadcast %124 : vector<2x14x1xf32> to vector<2x14x14xf32>
    %126 = arith.subf %122, %125 : vector<2x14x14xf32>
    %127 = math.exp %126 : vector<2x14x14xf32>
    %cst_53 = arith.constant dense<0.000000e+00> : vector<2x14xf32>
    %128 = vector.multi_reduction <add>, %127, %cst_53 [2] : vector<2x14x14xf32> to vector<2x14xf32>
    %129 = vector.shape_cast %128 : vector<2x14xf32> to vector<2x14x1xf32>
    %130 = tpu.reciprocal %129 {approx = true} : vector<2x14x1xf32> -> vector<2x14x1xf32>
    %131 = vector.broadcast %130 : vector<2x14x1xf32> to vector<2x14x14xf32>
    %132 = arith.mulf %127, %131 : vector<2x14x14xf32>
    %133 = arith.truncf %132 : vector<2x14x14xf32> to vector<2x14x14xbf16>
    "tpu.trace_start"() <{level = 10 : i32, message = "bqk,bkd->bqd"}> : () -> ()
    %cst_54 = arith.constant dense<0.000000e+00> : vector<2x14x32xf32>
    %134 = tpu.matmul %133, %117, %cst_54 {dimension_numbers = #tpu.dot_dimension_numbers<[2], [1], [1], [2], [0, 0, 0, 1, 1, 2], [0], [0]>} : vector<2x14x14xbf16>, vector<2x14x32xbf16>, vector<2x14x32xf32> -> vector<2x14x32xf32>
    "tpu.trace_stop"() : () -> ()
    %135 = vector.shape_cast %134 : vector<2x14x32xf32> to vector<28x32xf32>
    %136 = vector.extract_strided_slice %54 {offsets = [0, 96], sizes = [28, 32], strides = [1, 1]} : vector<28x384xf32> to vector<28x32xf32>
    %137 = vector.shape_cast %136 : vector<28x32xf32> to vector<2x14x32xf32>
    %138 = arith.truncf %137 : vector<2x14x32xf32> to vector<2x14x32xbf16>
    %139 = vector.extract_strided_slice %54 {offsets = [0, 224], sizes = [28, 32], strides = [1, 1]} : vector<28x384xf32> to vector<28x32xf32>
    %140 = vector.shape_cast %139 : vector<28x32xf32> to vector<2x14x32xf32>
    %141 = arith.truncf %140 : vector<2x14x32xf32> to vector<2x14x32xbf16>
    %142 = vector.extract_strided_slice %54 {offsets = [0, 352], sizes = [28, 32], strides = [1, 1]} : vector<28x384xf32> to vector<28x32xf32>
    %143 = vector.shape_cast %142 : vector<28x32xf32> to vector<2x14x32xf32>
    %144 = arith.truncf %143 : vector<2x14x32xf32> to vector<2x14x32xbf16>
    "tpu.trace_start"() <{level = 10 : i32, message = "bqd,bkd->bqk"}> : () -> ()
    %cst_55 = arith.constant dense<0.000000e+00> : vector<2x14x14xf32>
    %145 = tpu.matmul %138, %141, %cst_55 {dimension_numbers = #tpu.dot_dimension_numbers<[2], [2], [1], [1], [0, 0, 0, 1, 1, 1], [0], [0]>} : vector<2x14x32xbf16>, vector<2x14x32xbf16>, vector<2x14x14xf32> -> vector<2x14x14xf32>
    "tpu.trace_stop"() : () -> ()
    %cst_56 = arith.constant 0.176776692 : f32
    %146 = vector.broadcast %cst_56 : f32 to vector<2x14x14xf32>
    %147 = arith.mulf %145, %146 : vector<2x14x14xf32>
    %148 = vector.broadcast %4 : vector<2x1x14xf32> to vector<2x14x14xf32>
    %149 = arith.addf %147, %148 : vector<2x14x14xf32>
    %cst_57 = arith.constant dense<0xFF800000> : vector<2x14xf32>
    %150 = vector.multi_reduction <maximumf>, %149, %cst_57 [2] : vector<2x14x14xf32> to vector<2x14xf32>
    %151 = vector.shape_cast %150 : vector<2x14xf32> to vector<2x14x1xf32>
    %152 = vector.broadcast %151 : vector<2x14x1xf32> to vector<2x14x14xf32>
    %153 = arith.subf %149, %152 : vector<2x14x14xf32>
    %154 = math.exp %153 : vector<2x14x14xf32>
    %cst_58 = arith.constant dense<0.000000e+00> : vector<2x14xf32>
    %155 = vector.multi_reduction <add>, %154, %cst_58 [2] : vector<2x14x14xf32> to vector<2x14xf32>
    %156 = vector.shape_cast %155 : vector<2x14xf32> to vector<2x14x1xf32>
    %157 = tpu.reciprocal %156 {approx = true} : vector<2x14x1xf32> -> vector<2x14x1xf32>
    %158 = vector.broadcast %157 : vector<2x14x1xf32> to vector<2x14x14xf32>
    %159 = arith.mulf %154, %158 : vector<2x14x14xf32>
    %160 = arith.truncf %159 : vector<2x14x14xf32> to vector<2x14x14xbf16>
    "tpu.trace_start"() <{level = 10 : i32, message = "bqk,bkd->bqd"}> : () -> ()
    %cst_59 = arith.constant dense<0.000000e+00> : vector<2x14x32xf32>
    %161 = tpu.matmul %160, %144, %cst_59 {dimension_numbers = #tpu.dot_dimension_numbers<[2], [1], [1], [2], [0, 0, 0, 1, 1, 2], [0], [0]>} : vector<2x14x14xbf16>, vector<2x14x32xbf16>, vector<2x14x32xf32> -> vector<2x14x32xf32>
    "tpu.trace_stop"() : () -> ()
    %162 = vector.shape_cast %161 : vector<2x14x32xf32> to vector<28x32xf32>
    %163 = tpu.concatenate %81, %108, %135, %162 in 1 : vector<28x32xf32>, vector<28x32xf32>, vector<28x32xf32>, vector<28x32xf32> -> vector<28x128xf32>
    %164 = arith.truncf %163 : vector<28x128xf32> to vector<28x128xbf16>
    %cst_60 = arith.constant dense<0.000000e+00> : vector<28x128xf32>
    %165 = tpu.matmul %164, %10, %cst_60 {dimension_numbers = #tpu.dot_dimension_numbers<[1], [0], [0], [1], [0, 0, 1, 1], [], []>} : vector<28x128xbf16>, vector<128x128xbf16>, vector<28x128xf32> -> vector<28x128xf32>
    %166 = vector.broadcast %12 : vector<1x128xf32> to vector<28x128xf32>
    %167 = arith.addf %165, %166 : vector<28x128xf32>
    %168 = arith.addf %3, %167 : vector<28x128xf32>
    %cst_61 = arith.constant dense<0.000000e+00> : vector<28xf32>
    %169 = vector.multi_reduction <add>, %168, %cst_61 [1] : vector<28x128xf32> to vector<28xf32>
    %170 = vector.shape_cast %169 : vector<28xf32> to vector<28x1xf32>
    %cst_62 = arith.constant 1.280000e+02 : f32
    %171 = vector.broadcast %cst_62 : f32 to vector<28x1xf32>
    %172 = arith.divf %170, %171 : vector<28x1xf32>
    %173 = vector.broadcast %172 : vector<28x1xf32> to vector<28x128xf32>
    %174 = arith.subf %168, %173 : vector<28x128xf32>
    %175 = arith.mulf %174, %174 : vector<28x128xf32>
    %cst_63 = arith.constant dense<0.000000e+00> : vector<28xf32>
    %176 = vector.multi_reduction <add>, %175, %cst_63 [1] : vector<28x128xf32> to vector<28xf32>
    %177 = vector.shape_cast %176 : vector<28xf32> to vector<28x1xf32>
    %cst_64 = arith.constant 1.280000e+02 : f32
    %178 = vector.broadcast %cst_64 : f32 to vector<28x1xf32>
    %179 = arith.divf %177, %178 : vector<28x1xf32>
    %180 = vector.broadcast %172 : vector<28x1xf32> to vector<28x128xf32>
    %181 = arith.subf %168, %180 : vector<28x128xf32>
    %cst_65 = arith.constant 9.99999974E-6 : f32
    %182 = vector.broadcast %cst_65 : f32 to vector<28x1xf32>
    %183 = arith.addf %179, %182 : vector<28x1xf32>
    %184 = math.rsqrt %183 : vector<28x1xf32>
    %185 = vector.broadcast %184 : vector<28x1xf32> to vector<28x128xf32>
    %186 = arith.mulf %181, %185 : vector<28x128xf32>
    %187 = vector.broadcast %19 : vector<1x128xf32> to vector<28x128xf32>
    %188 = arith.mulf %186, %187 : vector<28x128xf32>
    %189 = vector.broadcast %20 : vector<1x128xf32> to vector<28x128xf32>
    %190 = arith.addf %188, %189 : vector<28x128xf32>
    %191 = arith.truncf %190 : vector<28x128xf32> to vector<28x128xbf16>
    %cst_66 = arith.constant dense<0.000000e+00> : vector<28x256xf32>
    %192 = tpu.matmul %191, %22, %cst_66 {dimension_numbers = #tpu.dot_dimension_numbers<[1], [0], [0], [1], [0, 0, 1, 1], [], []>} : vector<28x128xbf16>, vector<128x256xbf16>, vector<28x256xf32> -> vector<28x256xf32>
    %193 = vector.broadcast %24 : vector<1x256xf32> to vector<28x256xf32>
    %194 = arith.addf %192, %193 : vector<28x256xf32>
    %cst_67 = arith.constant 5.000000e-01 : f32
    %195 = vector.broadcast %cst_67 : f32 to vector<28x256xf32>
    %196 = arith.mulf %195, %194 : vector<28x256xf32>
    %cst_68 = arith.constant 4.471500e-02 : f32
    %197 = vector.broadcast %cst_68 : f32 to vector<28x256xf32>
    %198 = arith.mulf %197, %194 : vector<28x256xf32>
    %199 = arith.mulf %198, %194 : vector<28x256xf32>
    %200 = arith.mulf %199, %194 : vector<28x256xf32>
    %201 = arith.addf %194, %200 : vector<28x256xf32>
    %cst_69 = arith.constant 0.797884583 : f32
    %202 = vector.broadcast %cst_69 : f32 to vector<28x256xf32>
    %203 = arith.mulf %202, %201 : vector<28x256xf32>
    %204 = math.tanh %203 : vector<28x256xf32>
    %cst_70 = arith.constant 1.000000e+00 : f32
    %205 = vector.broadcast %cst_70 : f32 to vector<28x256xf32>
    %206 = arith.addf %205, %204 : vector<28x256xf32>
    %207 = arith.mulf %196, %206 : vector<28x256xf32>
    %208 = arith.truncf %207 : vector<28x256xf32> to vector<28x256xbf16>
    %cst_71 = arith.constant dense<0.000000e+00> : vector<28x128xf32>
    %209 = tpu.matmul %208, %26, %cst_71 {dimension_numbers = #tpu.dot_dimension_numbers<[1], [0], [0], [1], [0, 0, 1, 1], [], []>} : vector<28x256xbf16>, vector<256x128xbf16>, vector<28x128xf32> -> vector<28x128xf32>
    %210 = vector.broadcast %28 : vector<1x128xf32> to vector<28x128xf32>
    %211 = arith.addf %209, %210 : vector<28x128xf32>
    %212 = arith.addf %168, %211 : vector<28x128xf32>
    %c0_72 = arith.constant 0 : index
    %c0_73 = arith.constant 0 : index
    %213 = vector.load %arg14[%c0_72, %c0_73] : memref<28x128xf32, #tpu.memory_space<vmem>>, vector<28x128xf32>
    tpu.vector_store %arg14[%c0_72, %c0_73], %212 {strides = array<i32>} : memref<28x128xf32, #tpu.memory_space<vmem>>, vector<28x128xf32>,
    return
  }
  func.func @transform_0(%arg0: i32) -> (i32, i32) {
    %c0_i32 = arith.constant 0 : i32
    %c0_i32_0 = arith.constant 0 : i32
    %c0_i32_1 = arith.constant 0 : i32
    return %c0_i32, %c0_i32_0 : i32, i32
  }
  func.func @transform_1(%arg0: i32) -> (i32, i32, i32) {
    %c0_i32 = arith.constant 0 : i32
    %c0_i32_0 = arith.constant 0 : i32
    %c0_i32_1 = arith.constant 0 : i32
    %c0_i32_2 = arith.constant 0 : i32
    return %c0_i32, %c0_i32_0, %c0_i32_1 : i32, i32, i32
  }
  func.func @transform_2(%arg0: i32) -> (i32, i32) {
    %c0_i32 = arith.constant 0 : i32
    %c0_i32_0 = arith.constant 0 : i32
    %c0_i32_1 = arith.constant 0 : i32
    return %c0_i32, %c0_i32_0 : i32, i32
  }
  func.func @transform_3(%arg0: i32) -> (i32, i32, i32) {
    %c0_i32 = arith.constant 0 : i32
    %c0_i32_0 = arith.constant 0 : i32
    %c0_i32_1 = arith.constant 0 : i32
    return %arg0, %c0_i32, %c0_i32_0 : i32, i32, i32
  }
  func.func @transform_4(%arg0: i32) -> (i32, i32, i32) {
    %c0_i32 = arith.constant 0 : i32
    %c0_i32_0 = arith.constant 0 : i32
    %c0_i32_1 = arith.constant 0 : i32
    return %arg0, %c0_i32, %c0_i32_0 : i32, i32, i32
  }
  func.func @transform_5(%arg0: i32) -> (i32, i32, i32) {
    %c0_i32 = arith.constant 0 : i32
    %c0_i32_0 = arith.constant 0 : i32
    %c0_i32_1 = arith.constant 0 : i32
    return %arg0, %c0_i32, %c0_i32_0 : i32, i32, i32
  }
  func.func @transform_6(%arg0: i32) -> (i32, i32, i32) {
    %c0_i32 = arith.constant 0 : i32
    %c0_i32_0 = arith.constant 0 : i32
    %c0_i32_1 = arith.constant 0 : i32
    return %arg0, %c0_i32, %c0_i32_0 : i32, i32, i32
  }
  func.func @transform_7(%arg0: i32) -> (i32, i32, i32) {
    %c0_i32 = arith.constant 0 : i32
    %c0_i32_0 = arith.constant 0 : i32
    %c0_i32_1 = arith.constant 0 : i32
    return %arg0, %c0_i32, %c0_i32_0 : i32, i32, i32
  }
  func.func @transform_8(%arg0: i32) -> (i32, i32, i32) {
    %c0_i32 = arith.constant 0 : i32
    %c0_i32_0 = arith.constant 0 : i32
    %c0_i32_1 = arith.constant 0 : i32
    return %arg0, %c0_i32, %c0_i32_0 : i32, i32, i32
  }
  func.func @transform_9(%arg0: i32) -> (i32, i32, i32) {
    %c0_i32 = arith.constant 0 : i32
    %c0_i32_0 = arith.constant 0 : i32
    %c0_i32_1 = arith.constant 0 : i32
    return %arg0, %c0_i32, %c0_i32_0 : i32, i32, i32
  }
  func.func @transform_10(%arg0: i32) -> (i32, i32, i32) {
    %c0_i32 = arith.constant 0 : i32
    %c0_i32_0 = arith.constant 0 : i32
    %c0_i32_1 = arith.constant 0 : i32
    return %arg0, %c0_i32, %c0_i32_0 : i32, i32, i32
  }
  func.func @transform_11(%arg0: i32) -> (i32, i32, i32) {
    %c0_i32 = arith.constant 0 : i32
    %c0_i32_0 = arith.constant 0 : i32
    %c0_i32_1 = arith.constant 0 : i32
    return %arg0, %c0_i32, %c0_i32_0 : i32, i32, i32
  }
  func.func @transform_12(%arg0: i32) -> (i32, i32, i32) {
    %c0_i32 = arith.constant 0 : i32
    %c0_i32_0 = arith.constant 0 : i32
    %c0_i32_1 = arith.constant 0 : i32
    return %arg0, %c0_i32, %c0_i32_0 : i32, i32, i32
  }
  func.func @transform_13(%arg0: i32) -> (i32, i32) {
    %c0_i32 = arith.constant 0 : i32
    %c0_i32_0 = arith.constant 0 : i32
    %c0_i32_1 = arith.constant 0 : i32
    return %c0_i32, %c0_i32_0 : i32, i32
  }
}

module attributes {stable_mosaic.version = 11 : i64} {
  func.func @_stack_kernel(%arg0: i32, %arg1: memref<16x128xf32, #tpu.memory_space<vmem>>, %arg2: memref<2x1x8xf32, #tpu.memory_space<vmem>>, %arg3: memref<2x128xf32, #tpu.memory_space<vmem>>, %arg4: memref<1x128x384xbf16, #tpu.memory_space<vmem>>, %arg5: memref<1x1x384xf32, #tpu.memory_space<vmem>>, %arg6: memref<1x128x128xbf16, #tpu.memory_space<vmem>>, %arg7: memref<1x1x128xf32, #tpu.memory_space<vmem>>, %arg8: memref<1x2x128xf32, #tpu.memory_space<vmem>>, %arg9: memref<1x2x128xf32, #tpu.memory_space<vmem>>, %arg10: memref<1x128x256xbf16, #tpu.memory_space<vmem>>, %arg11: memref<1x1x256xf32, #tpu.memory_space<vmem>>, %arg12: memref<1x256x128xbf16, #tpu.memory_space<vmem>>, %arg13: memref<1x1x128xf32, #tpu.memory_space<vmem>>, %arg14: memref<16x128xf32, #tpu.memory_space<vmem>>) attributes {dimension_semantics = [#tpu.dimension_semantics<arbitrary>], iteration_bounds = array<i64: 2>, scalar_prefetch = 0 : i64, scratch_operands = 0 : i64, tpu.core_type = #tpu.core_type<tc>, window_params = [{pipeline_mode = #tpu.pipeline_mode<synchronous>, transform_indices = @transform_0, window_bounds = array<i64: 16, 128>}, {pipeline_mode = #tpu.pipeline_mode<synchronous>, transform_indices = @transform_1, window_bounds = array<i64: 2, 1, 8>}, {pipeline_mode = #tpu.pipeline_mode<synchronous>, transform_indices = @transform_2, window_bounds = array<i64: 2, 128>}, {transform_indices = @transform_3, window_bounds = array<i64: 1, 128, 384>}, {transform_indices = @transform_4, window_bounds = array<i64: 1, 1, 384>}, {transform_indices = @transform_5, window_bounds = array<i64: 1, 128, 128>}, {transform_indices = @transform_6, window_bounds = array<i64: 1, 1, 128>}, {transform_indices = @transform_7, window_bounds = array<i64: 1, 2, 128>}, {transform_indices = @transform_8, window_bounds = array<i64: 1, 2, 128>}, {transform_indices = @transform_9, window_bounds = array<i64: 1, 128, 256>}, {transform_indices = @transform_10, window_bounds = array<i64: 1, 1, 256>}, {transform_indices = @transform_11, window_bounds = array<i64: 1, 256, 128>}, {transform_indices = @transform_12, window_bounds = array<i64: 1, 1, 128>}, {pipeline_mode = #tpu.pipeline_mode<synchronous>, transform_indices = @transform_13, window_bounds = array<i64: 16, 128>}]} {
    %c0_i32 = arith.constant 0 : i32
    %0 = arith.cmpi eq, %arg0, %c0_i32 : i32
    %1 = arith.extui %0 : i1 to i32
    %c0_i32_0 = arith.constant 0 : i32
    %2 = arith.cmpi ne, %1, %c0_i32_0 : i32
    scf.if %2 {
      %c0_74 = arith.constant 0 : index
      %c0_75 = arith.constant 0 : index
      %214 = vector.load %arg1[%c0_74, %c0_75] : memref<16x128xf32, #tpu.memory_space<vmem>>, vector<16x128xf32>
      %c0_76 = arith.constant 0 : index
      %c0_77 = arith.constant 0 : index
      %215 = vector.load %arg3[%c0_76, %c0_77] : memref<2x128xf32, #tpu.memory_space<vmem>>, vector<2x128xf32>
      %216 = vector.extract_strided_slice %215 {offsets = [0, 0], sizes = [1, 128], strides = [1, 1]} : vector<2x128xf32> to vector<1x128xf32>
      %217 = vector.extract_strided_slice %215 {offsets = [1, 0], sizes = [1, 128], strides = [1, 1]} : vector<2x128xf32> to vector<1x128xf32>
      %cst_78 = arith.constant dense<0.000000e+00> : vector<16xf32>
      %218 = vector.multi_reduction <add>, %214, %cst_78 [1] : vector<16x128xf32> to vector<16xf32>
      %219 = vector.shape_cast %218 : vector<16xf32> to vector<16x1xf32>
      %cst_79 = arith.constant 1.280000e+02 : f32
      %220 = vector.broadcast %cst_79 : f32 to vector<16x1xf32>
      %221 = arith.divf %219, %220 : vector<16x1xf32>
      %222 = vector.broadcast %221 : vector<16x1xf32> to vector<16x128xf32>
      %223 = arith.subf %214, %222 : vector<16x128xf32>
      %224 = arith.mulf %223, %223 : vector<16x128xf32>
      %cst_80 = arith.constant dense<0.000000e+00> : vector<16xf32>
      %225 = vector.multi_reduction <add>, %224, %cst_80 [1] : vector<16x128xf32> to vector<16xf32>
      %226 = vector.shape_cast %225 : vector<16xf32> to vector<16x1xf32>
      %cst_81 = arith.constant 1.280000e+02 : f32
      %227 = vector.broadcast %cst_81 : f32 to vector<16x1xf32>
      %228 = arith.divf %226, %227 : vector<16x1xf32>
      %229 = vector.broadcast %221 : vector<16x1xf32> to vector<16x128xf32>
      %230 = arith.subf %214, %229 : vector<16x128xf32>
      %cst_82 = arith.constant 9.99999974E-6 : f32
      %231 = vector.broadcast %cst_82 : f32 to vector<16x1xf32>
      %232 = arith.addf %228, %231 : vector<16x1xf32>
      %233 = math.rsqrt %232 : vector<16x1xf32>
      %234 = vector.broadcast %233 : vector<16x1xf32> to vector<16x128xf32>
      %235 = arith.mulf %230, %234 : vector<16x128xf32>
      %236 = vector.broadcast %216 : vector<1x128xf32> to vector<16x128xf32>
      %237 = arith.mulf %235, %236 : vector<16x128xf32>
      %238 = vector.broadcast %217 : vector<1x128xf32> to vector<16x128xf32>
      %239 = arith.addf %237, %238 : vector<16x128xf32>
      %c0_83 = arith.constant 0 : index
      %c0_84 = arith.constant 0 : index
      %240 = vector.load %arg14[%c0_83, %c0_84] : memref<16x128xf32, #tpu.memory_space<vmem>>, vector<16x128xf32>
      tpu.vector_store %arg14[%c0_83, %c0_84], %239 {strides = array<i32>} : memref<16x128xf32, #tpu.memory_space<vmem>>, vector<16x128xf32>,
    } else {
    }
    %c0 = arith.constant 0 : index
    %c0_1 = arith.constant 0 : index
    %3 = vector.load %arg14[%c0, %c0_1] : memref<16x128xf32, #tpu.memory_space<vmem>>, vector<16x128xf32>
    %c0_2 = arith.constant 0 : index
    %c0_3 = arith.constant 0 : index
    %c0_4 = arith.constant 0 : index
    %4 = vector.load %arg2[%c0_2, %c0_3, %c0_4] : memref<2x1x8xf32, #tpu.memory_space<vmem>>, vector<2x1x8xf32>
    %c0_5 = arith.constant 0 : index
    %c0_6 = arith.constant 0 : index
    %c0_7 = arith.constant 0 : index
    %5 = vector.load %arg4[%c0_5, %c0_6, %c0_7] : memref<1x128x384xbf16, #tpu.memory_space<vmem>>, vector<1x128x384xbf16>
    %6 = vector.shape_cast %5 : vector<1x128x384xbf16> to vector<128x384xbf16>
    %c0_8 = arith.constant 0 : index
    %c0_9 = arith.constant 0 : index
    %c0_10 = arith.constant 0 : index
    %7 = vector.load %arg5[%c0_8, %c0_9, %c0_10] : memref<1x1x384xf32, #tpu.memory_space<vmem>>, vector<1x1x384xf32>
    %8 = vector.shape_cast %7 : vector<1x1x384xf32> to vector<1x384xf32>
    %c0_11 = arith.constant 0 : index
    %c0_12 = arith.constant 0 : index
    %c0_13 = arith.constant 0 : index
    %9 = vector.load %arg6[%c0_11, %c0_12, %c0_13] : memref<1x128x128xbf16, #tpu.memory_space<vmem>>, vector<1x128x128xbf16>
    %10 = vector.shape_cast %9 : vector<1x128x128xbf16> to vector<128x128xbf16>
    %c0_14 = arith.constant 0 : index
    %c0_15 = arith.constant 0 : index
    %c0_16 = arith.constant 0 : index
    %11 = vector.load %arg7[%c0_14, %c0_15, %c0_16] : memref<1x1x128xf32, #tpu.memory_space<vmem>>, vector<1x1x128xf32>
    %12 = vector.shape_cast %11 : vector<1x1x128xf32> to vector<1x128xf32>
    %c0_17 = arith.constant 0 : index
    %c0_18 = arith.constant 0 : index
    %c0_19 = arith.constant 0 : index
    %13 = vector.load %arg8[%c0_17, %c0_18, %c0_19] : memref<1x2x128xf32, #tpu.memory_space<vmem>>, vector<1x2x128xf32>
    %14 = vector.shape_cast %13 : vector<1x2x128xf32> to vector<2x128xf32>
    %c0_20 = arith.constant 0 : index
    %c0_21 = arith.constant 0 : index
    %c0_22 = arith.constant 0 : index
    %15 = vector.load %arg9[%c0_20, %c0_21, %c0_22] : memref<1x2x128xf32, #tpu.memory_space<vmem>>, vector<1x2x128xf32>
    %16 = vector.shape_cast %15 : vector<1x2x128xf32> to vector<2x128xf32>
    %17 = vector.extract_strided_slice %14 {offsets = [0, 0], sizes = [1, 128], strides = [1, 1]} : vector<2x128xf32> to vector<1x128xf32>
    %18 = vector.extract_strided_slice %14 {offsets = [1, 0], sizes = [1, 128], strides = [1, 1]} : vector<2x128xf32> to vector<1x128xf32>
    %19 = vector.extract_strided_slice %16 {offsets = [0, 0], sizes = [1, 128], strides = [1, 1]} : vector<2x128xf32> to vector<1x128xf32>
    %20 = vector.extract_strided_slice %16 {offsets = [1, 0], sizes = [1, 128], strides = [1, 1]} : vector<2x128xf32> to vector<1x128xf32>
    %c0_23 = arith.constant 0 : index
    %c0_24 = arith.constant 0 : index
    %c0_25 = arith.constant 0 : index
    %21 = vector.load %arg10[%c0_23, %c0_24, %c0_25] : memref<1x128x256xbf16, #tpu.memory_space<vmem>>, vector<1x128x256xbf16>
    %22 = vector.shape_cast %21 : vector<1x128x256xbf16> to vector<128x256xbf16>
    %c0_26 = arith.constant 0 : index
    %c0_27 = arith.constant 0 : index
    %c0_28 = arith.constant 0 : index
    %23 = vector.load %arg11[%c0_26, %c0_27, %c0_28] : memref<1x1x256xf32, #tpu.memory_space<vmem>>, vector<1x1x256xf32>
    %24 = vector.shape_cast %23 : vector<1x1x256xf32> to vector<1x256xf32>
    %c0_29 = arith.constant 0 : index
    %c0_30 = arith.constant 0 : index
    %c0_31 = arith.constant 0 : index
    %25 = vector.load %arg12[%c0_29, %c0_30, %c0_31] : memref<1x256x128xbf16, #tpu.memory_space<vmem>>, vector<1x256x128xbf16>
    %26 = vector.shape_cast %25 : vector<1x256x128xbf16> to vector<256x128xbf16>
    %c0_32 = arith.constant 0 : index
    %c0_33 = arith.constant 0 : index
    %c0_34 = arith.constant 0 : index
    %27 = vector.load %arg13[%c0_32, %c0_33, %c0_34] : memref<1x1x128xf32, #tpu.memory_space<vmem>>, vector<1x1x128xf32>
    %28 = vector.shape_cast %27 : vector<1x1x128xf32> to vector<1x128xf32>
    %29 = arith.truncf %3 : vector<16x128xf32> to vector<16x128xbf16>
    %cst = arith.constant dense<0.000000e+00> : vector<16x384xf32>
    %30 = tpu.matmul %29, %6, %cst {dimension_numbers = #tpu.dot_dimension_numbers<[1], [0], [0], [1], [0, 0, 1, 1], [], []>} : vector<16x128xbf16>, vector<128x384xbf16>, vector<16x384xf32> -> vector<16x384xf32>
    %31 = vector.broadcast %8 : vector<1x384xf32> to vector<16x384xf32>
    %32 = arith.addf %30, %31 : vector<16x384xf32>
    %33 = vector.extract_strided_slice %32 {offsets = [0, 0], sizes = [16, 32], strides = [1, 1]} : vector<16x384xf32> to vector<16x32xf32>
    %34 = vector.shape_cast %33 : vector<16x32xf32> to vector<2x8x32xf32>
    %35 = arith.truncf %34 : vector<2x8x32xf32> to vector<2x8x32xbf16>
    %36 = vector.extract_strided_slice %32 {offsets = [0, 128], sizes = [16, 32], strides = [1, 1]} : vector<16x384xf32> to vector<16x32xf32>
    %37 = vector.shape_cast %36 : vector<16x32xf32> to vector<2x8x32xf32>
    %38 = arith.truncf %37 : vector<2x8x32xf32> to vector<2x8x32xbf16>
    %39 = vector.extract_strided_slice %32 {offsets = [0, 256], sizes = [16, 32], strides = [1, 1]} : vector<16x384xf32> to vector<16x32xf32>
    %40 = vector.shape_cast %39 : vector<16x32xf32> to vector<2x8x32xf32>
    %41 = arith.truncf %40 : vector<2x8x32xf32> to vector<2x8x32xbf16>
    "tpu.trace_start"() <{level = 10 : i32, message = "bqd,bkd->bqk"}> : () -> ()
    %cst_35 = arith.constant dense<0.000000e+00> : vector<2x8x8xf32>
    %42 = tpu.matmul %35, %38, %cst_35 {dimension_numbers = #tpu.dot_dimension_numbers<[2], [2], [1], [1], [0, 0, 0, 1, 1, 1], [0], [0]>} : vector<2x8x32xbf16>, vector<2x8x32xbf16>, vector<2x8x8xf32> -> vector<2x8x8xf32>
    "tpu.trace_stop"() : () -> ()
    %cst_36 = arith.constant 0.176776692 : f32
    %43 = vector.broadcast %cst_36 : f32 to vector<2x8x8xf32>
    %44 = arith.mulf %42, %43 : vector<2x8x8xf32>
    %45 = vector.broadcast %4 : vector<2x1x8xf32> to vector<2x8x8xf32>
    %46 = arith.addf %44, %45 : vector<2x8x8xf32>
    %cst_37 = arith.constant dense<0xFF800000> : vector<2x8xf32>
    %47 = vector.multi_reduction <maximumf>, %46, %cst_37 [2] : vector<2x8x8xf32> to vector<2x8xf32>
    %48 = vector.shape_cast %47 : vector<2x8xf32> to vector<2x8x1xf32>
    %49 = vector.broadcast %48 : vector<2x8x1xf32> to vector<2x8x8xf32>
    %50 = arith.subf %46, %49 : vector<2x8x8xf32>
    %51 = math.exp %50 : vector<2x8x8xf32>
    %cst_38 = arith.constant dense<0.000000e+00> : vector<2x8xf32>
    %52 = vector.multi_reduction <add>, %51, %cst_38 [2] : vector<2x8x8xf32> to vector<2x8xf32>
    %53 = vector.shape_cast %52 : vector<2x8xf32> to vector<2x8x1xf32>
    %54 = tpu.reciprocal %53 {approx = true} : vector<2x8x1xf32> -> vector<2x8x1xf32>
    %55 = vector.broadcast %54 : vector<2x8x1xf32> to vector<2x8x8xf32>
    %56 = arith.mulf %51, %55 : vector<2x8x8xf32>
    %57 = arith.truncf %56 : vector<2x8x8xf32> to vector<2x8x8xbf16>
    "tpu.trace_start"() <{level = 10 : i32, message = "bqk,bkd->bqd"}> : () -> ()
    %cst_39 = arith.constant dense<0.000000e+00> : vector<2x8x32xf32>
    %58 = tpu.matmul %57, %41, %cst_39 {dimension_numbers = #tpu.dot_dimension_numbers<[2], [1], [1], [2], [0, 0, 0, 1, 1, 2], [0], [0]>} : vector<2x8x8xbf16>, vector<2x8x32xbf16>, vector<2x8x32xf32> -> vector<2x8x32xf32>
    "tpu.trace_stop"() : () -> ()
    %59 = vector.shape_cast %58 : vector<2x8x32xf32> to vector<16x32xf32>
    %60 = vector.extract_strided_slice %32 {offsets = [0, 32], sizes = [16, 32], strides = [1, 1]} : vector<16x384xf32> to vector<16x32xf32>
    %61 = vector.shape_cast %60 : vector<16x32xf32> to vector<2x8x32xf32>
    %62 = arith.truncf %61 : vector<2x8x32xf32> to vector<2x8x32xbf16>
    %63 = vector.extract_strided_slice %32 {offsets = [0, 160], sizes = [16, 32], strides = [1, 1]} : vector<16x384xf32> to vector<16x32xf32>
    %64 = vector.shape_cast %63 : vector<16x32xf32> to vector<2x8x32xf32>
    %65 = arith.truncf %64 : vector<2x8x32xf32> to vector<2x8x32xbf16>
    %66 = vector.extract_strided_slice %32 {offsets = [0, 288], sizes = [16, 32], strides = [1, 1]} : vector<16x384xf32> to vector<16x32xf32>
    %67 = vector.shape_cast %66 : vector<16x32xf32> to vector<2x8x32xf32>
    %68 = arith.truncf %67 : vector<2x8x32xf32> to vector<2x8x32xbf16>
    "tpu.trace_start"() <{level = 10 : i32, message = "bqd,bkd->bqk"}> : () -> ()
    %cst_40 = arith.constant dense<0.000000e+00> : vector<2x8x8xf32>
    %69 = tpu.matmul %62, %65, %cst_40 {dimension_numbers = #tpu.dot_dimension_numbers<[2], [2], [1], [1], [0, 0, 0, 1, 1, 1], [0], [0]>} : vector<2x8x32xbf16>, vector<2x8x32xbf16>, vector<2x8x8xf32> -> vector<2x8x8xf32>
    "tpu.trace_stop"() : () -> ()
    %cst_41 = arith.constant 0.176776692 : f32
    %70 = vector.broadcast %cst_41 : f32 to vector<2x8x8xf32>
    %71 = arith.mulf %69, %70 : vector<2x8x8xf32>
    %72 = vector.broadcast %4 : vector<2x1x8xf32> to vector<2x8x8xf32>
    %73 = arith.addf %71, %72 : vector<2x8x8xf32>
    %cst_42 = arith.constant dense<0xFF800000> : vector<2x8xf32>
    %74 = vector.multi_reduction <maximumf>, %73, %cst_42 [2] : vector<2x8x8xf32> to vector<2x8xf32>
    %75 = vector.shape_cast %74 : vector<2x8xf32> to vector<2x8x1xf32>
    %76 = vector.broadcast %75 : vector<2x8x1xf32> to vector<2x8x8xf32>
    %77 = arith.subf %73, %76 : vector<2x8x8xf32>
    %78 = math.exp %77 : vector<2x8x8xf32>
    %cst_43 = arith.constant dense<0.000000e+00> : vector<2x8xf32>
    %79 = vector.multi_reduction <add>, %78, %cst_43 [2] : vector<2x8x8xf32> to vector<2x8xf32>
    %80 = vector.shape_cast %79 : vector<2x8xf32> to vector<2x8x1xf32>
    %81 = tpu.reciprocal %80 {approx = true} : vector<2x8x1xf32> -> vector<2x8x1xf32>
    %82 = vector.broadcast %81 : vector<2x8x1xf32> to vector<2x8x8xf32>
    %83 = arith.mulf %78, %82 : vector<2x8x8xf32>
    %84 = arith.truncf %83 : vector<2x8x8xf32> to vector<2x8x8xbf16>
    "tpu.trace_start"() <{level = 10 : i32, message = "bqk,bkd->bqd"}> : () -> ()
    %cst_44 = arith.constant dense<0.000000e+00> : vector<2x8x32xf32>
    %85 = tpu.matmul %84, %68, %cst_44 {dimension_numbers = #tpu.dot_dimension_numbers<[2], [1], [1], [2], [0, 0, 0, 1, 1, 2], [0], [0]>} : vector<2x8x8xbf16>, vector<2x8x32xbf16>, vector<2x8x32xf32> -> vector<2x8x32xf32>
    "tpu.trace_stop"() : () -> ()
    %86 = vector.shape_cast %85 : vector<2x8x32xf32> to vector<16x32xf32>
    %87 = vector.extract_strided_slice %32 {offsets = [0, 64], sizes = [16, 32], strides = [1, 1]} : vector<16x384xf32> to vector<16x32xf32>
    %88 = vector.shape_cast %87 : vector<16x32xf32> to vector<2x8x32xf32>
    %89 = arith.truncf %88 : vector<2x8x32xf32> to vector<2x8x32xbf16>
    %90 = vector.extract_strided_slice %32 {offsets = [0, 192], sizes = [16, 32], strides = [1, 1]} : vector<16x384xf32> to vector<16x32xf32>
    %91 = vector.shape_cast %90 : vector<16x32xf32> to vector<2x8x32xf32>
    %92 = arith.truncf %91 : vector<2x8x32xf32> to vector<2x8x32xbf16>
    %93 = vector.extract_strided_slice %32 {offsets = [0, 320], sizes = [16, 32], strides = [1, 1]} : vector<16x384xf32> to vector<16x32xf32>
    %94 = vector.shape_cast %93 : vector<16x32xf32> to vector<2x8x32xf32>
    %95 = arith.truncf %94 : vector<2x8x32xf32> to vector<2x8x32xbf16>
    "tpu.trace_start"() <{level = 10 : i32, message = "bqd,bkd->bqk"}> : () -> ()
    %cst_45 = arith.constant dense<0.000000e+00> : vector<2x8x8xf32>
    %96 = tpu.matmul %89, %92, %cst_45 {dimension_numbers = #tpu.dot_dimension_numbers<[2], [2], [1], [1], [0, 0, 0, 1, 1, 1], [0], [0]>} : vector<2x8x32xbf16>, vector<2x8x32xbf16>, vector<2x8x8xf32> -> vector<2x8x8xf32>
    "tpu.trace_stop"() : () -> ()
    %cst_46 = arith.constant 0.176776692 : f32
    %97 = vector.broadcast %cst_46 : f32 to vector<2x8x8xf32>
    %98 = arith.mulf %96, %97 : vector<2x8x8xf32>
    %99 = vector.broadcast %4 : vector<2x1x8xf32> to vector<2x8x8xf32>
    %100 = arith.addf %98, %99 : vector<2x8x8xf32>
    %cst_47 = arith.constant dense<0xFF800000> : vector<2x8xf32>
    %101 = vector.multi_reduction <maximumf>, %100, %cst_47 [2] : vector<2x8x8xf32> to vector<2x8xf32>
    %102 = vector.shape_cast %101 : vector<2x8xf32> to vector<2x8x1xf32>
    %103 = vector.broadcast %102 : vector<2x8x1xf32> to vector<2x8x8xf32>
    %104 = arith.subf %100, %103 : vector<2x8x8xf32>
    %105 = math.exp %104 : vector<2x8x8xf32>
    %cst_48 = arith.constant dense<0.000000e+00> : vector<2x8xf32>
    %106 = vector.multi_reduction <add>, %105, %cst_48 [2] : vector<2x8x8xf32> to vector<2x8xf32>
    %107 = vector.shape_cast %106 : vector<2x8xf32> to vector<2x8x1xf32>
    %108 = tpu.reciprocal %107 {approx = true} : vector<2x8x1xf32> -> vector<2x8x1xf32>
    %109 = vector.broadcast %108 : vector<2x8x1xf32> to vector<2x8x8xf32>
    %110 = arith.mulf %105, %109 : vector<2x8x8xf32>
    %111 = arith.truncf %110 : vector<2x8x8xf32> to vector<2x8x8xbf16>
    "tpu.trace_start"() <{level = 10 : i32, message = "bqk,bkd->bqd"}> : () -> ()
    %cst_49 = arith.constant dense<0.000000e+00> : vector<2x8x32xf32>
    %112 = tpu.matmul %111, %95, %cst_49 {dimension_numbers = #tpu.dot_dimension_numbers<[2], [1], [1], [2], [0, 0, 0, 1, 1, 2], [0], [0]>} : vector<2x8x8xbf16>, vector<2x8x32xbf16>, vector<2x8x32xf32> -> vector<2x8x32xf32>
    "tpu.trace_stop"() : () -> ()
    %113 = vector.shape_cast %112 : vector<2x8x32xf32> to vector<16x32xf32>
    %114 = vector.extract_strided_slice %32 {offsets = [0, 96], sizes = [16, 32], strides = [1, 1]} : vector<16x384xf32> to vector<16x32xf32>
    %115 = vector.shape_cast %114 : vector<16x32xf32> to vector<2x8x32xf32>
    %116 = arith.truncf %115 : vector<2x8x32xf32> to vector<2x8x32xbf16>
    %117 = vector.extract_strided_slice %32 {offsets = [0, 224], sizes = [16, 32], strides = [1, 1]} : vector<16x384xf32> to vector<16x32xf32>
    %118 = vector.shape_cast %117 : vector<16x32xf32> to vector<2x8x32xf32>
    %119 = arith.truncf %118 : vector<2x8x32xf32> to vector<2x8x32xbf16>
    %120 = vector.extract_strided_slice %32 {offsets = [0, 352], sizes = [16, 32], strides = [1, 1]} : vector<16x384xf32> to vector<16x32xf32>
    %121 = vector.shape_cast %120 : vector<16x32xf32> to vector<2x8x32xf32>
    %122 = arith.truncf %121 : vector<2x8x32xf32> to vector<2x8x32xbf16>
    "tpu.trace_start"() <{level = 10 : i32, message = "bqd,bkd->bqk"}> : () -> ()
    %cst_50 = arith.constant dense<0.000000e+00> : vector<2x8x8xf32>
    %123 = tpu.matmul %116, %119, %cst_50 {dimension_numbers = #tpu.dot_dimension_numbers<[2], [2], [1], [1], [0, 0, 0, 1, 1, 1], [0], [0]>} : vector<2x8x32xbf16>, vector<2x8x32xbf16>, vector<2x8x8xf32> -> vector<2x8x8xf32>
    "tpu.trace_stop"() : () -> ()
    %cst_51 = arith.constant 0.176776692 : f32
    %124 = vector.broadcast %cst_51 : f32 to vector<2x8x8xf32>
    %125 = arith.mulf %123, %124 : vector<2x8x8xf32>
    %126 = vector.broadcast %4 : vector<2x1x8xf32> to vector<2x8x8xf32>
    %127 = arith.addf %125, %126 : vector<2x8x8xf32>
    %cst_52 = arith.constant dense<0xFF800000> : vector<2x8xf32>
    %128 = vector.multi_reduction <maximumf>, %127, %cst_52 [2] : vector<2x8x8xf32> to vector<2x8xf32>
    %129 = vector.shape_cast %128 : vector<2x8xf32> to vector<2x8x1xf32>
    %130 = vector.broadcast %129 : vector<2x8x1xf32> to vector<2x8x8xf32>
    %131 = arith.subf %127, %130 : vector<2x8x8xf32>
    %132 = math.exp %131 : vector<2x8x8xf32>
    %cst_53 = arith.constant dense<0.000000e+00> : vector<2x8xf32>
    %133 = vector.multi_reduction <add>, %132, %cst_53 [2] : vector<2x8x8xf32> to vector<2x8xf32>
    %134 = vector.shape_cast %133 : vector<2x8xf32> to vector<2x8x1xf32>
    %135 = tpu.reciprocal %134 {approx = true} : vector<2x8x1xf32> -> vector<2x8x1xf32>
    %136 = vector.broadcast %135 : vector<2x8x1xf32> to vector<2x8x8xf32>
    %137 = arith.mulf %132, %136 : vector<2x8x8xf32>
    %138 = arith.truncf %137 : vector<2x8x8xf32> to vector<2x8x8xbf16>
    "tpu.trace_start"() <{level = 10 : i32, message = "bqk,bkd->bqd"}> : () -> ()
    %cst_54 = arith.constant dense<0.000000e+00> : vector<2x8x32xf32>
    %139 = tpu.matmul %138, %122, %cst_54 {dimension_numbers = #tpu.dot_dimension_numbers<[2], [1], [1], [2], [0, 0, 0, 1, 1, 2], [0], [0]>} : vector<2x8x8xbf16>, vector<2x8x32xbf16>, vector<2x8x32xf32> -> vector<2x8x32xf32>
    "tpu.trace_stop"() : () -> ()
    %140 = vector.shape_cast %139 : vector<2x8x32xf32> to vector<16x32xf32>
    %141 = tpu.concatenate %59, %86, %113, %140 in 1 : vector<16x32xf32>, vector<16x32xf32>, vector<16x32xf32>, vector<16x32xf32> -> vector<16x128xf32>
    %142 = arith.truncf %141 : vector<16x128xf32> to vector<16x128xbf16>
    %cst_55 = arith.constant dense<0.000000e+00> : vector<16x128xf32>
    %143 = tpu.matmul %142, %10, %cst_55 {dimension_numbers = #tpu.dot_dimension_numbers<[1], [0], [0], [1], [0, 0, 1, 1], [], []>} : vector<16x128xbf16>, vector<128x128xbf16>, vector<16x128xf32> -> vector<16x128xf32>
    %144 = vector.broadcast %12 : vector<1x128xf32> to vector<16x128xf32>
    %145 = arith.addf %143, %144 : vector<16x128xf32>
    %146 = arith.addf %3, %145 : vector<16x128xf32>
    %cst_56 = arith.constant dense<0.000000e+00> : vector<16xf32>
    %147 = vector.multi_reduction <add>, %146, %cst_56 [1] : vector<16x128xf32> to vector<16xf32>
    %148 = vector.shape_cast %147 : vector<16xf32> to vector<16x1xf32>
    %cst_57 = arith.constant 1.280000e+02 : f32
    %149 = vector.broadcast %cst_57 : f32 to vector<16x1xf32>
    %150 = arith.divf %148, %149 : vector<16x1xf32>
    %151 = vector.broadcast %150 : vector<16x1xf32> to vector<16x128xf32>
    %152 = arith.subf %146, %151 : vector<16x128xf32>
    %153 = arith.mulf %152, %152 : vector<16x128xf32>
    %cst_58 = arith.constant dense<0.000000e+00> : vector<16xf32>
    %154 = vector.multi_reduction <add>, %153, %cst_58 [1] : vector<16x128xf32> to vector<16xf32>
    %155 = vector.shape_cast %154 : vector<16xf32> to vector<16x1xf32>
    %cst_59 = arith.constant 1.280000e+02 : f32
    %156 = vector.broadcast %cst_59 : f32 to vector<16x1xf32>
    %157 = arith.divf %155, %156 : vector<16x1xf32>
    %158 = vector.broadcast %150 : vector<16x1xf32> to vector<16x128xf32>
    %159 = arith.subf %146, %158 : vector<16x128xf32>
    %cst_60 = arith.constant 9.99999974E-6 : f32
    %160 = vector.broadcast %cst_60 : f32 to vector<16x1xf32>
    %161 = arith.addf %157, %160 : vector<16x1xf32>
    %162 = math.rsqrt %161 : vector<16x1xf32>
    %163 = vector.broadcast %162 : vector<16x1xf32> to vector<16x128xf32>
    %164 = arith.mulf %159, %163 : vector<16x128xf32>
    %165 = vector.broadcast %17 : vector<1x128xf32> to vector<16x128xf32>
    %166 = arith.mulf %164, %165 : vector<16x128xf32>
    %167 = vector.broadcast %18 : vector<1x128xf32> to vector<16x128xf32>
    %168 = arith.addf %166, %167 : vector<16x128xf32>
    %169 = arith.truncf %168 : vector<16x128xf32> to vector<16x128xbf16>
    %cst_61 = arith.constant dense<0.000000e+00> : vector<16x256xf32>
    %170 = tpu.matmul %169, %22, %cst_61 {dimension_numbers = #tpu.dot_dimension_numbers<[1], [0], [0], [1], [0, 0, 1, 1], [], []>} : vector<16x128xbf16>, vector<128x256xbf16>, vector<16x256xf32> -> vector<16x256xf32>
    %171 = vector.broadcast %24 : vector<1x256xf32> to vector<16x256xf32>
    %172 = arith.addf %170, %171 : vector<16x256xf32>
    %cst_62 = arith.constant 5.000000e-01 : f32
    %173 = vector.broadcast %cst_62 : f32 to vector<16x256xf32>
    %174 = arith.mulf %173, %172 : vector<16x256xf32>
    %cst_63 = arith.constant 4.471500e-02 : f32
    %175 = vector.broadcast %cst_63 : f32 to vector<16x256xf32>
    %176 = arith.mulf %175, %172 : vector<16x256xf32>
    %177 = arith.mulf %176, %172 : vector<16x256xf32>
    %178 = arith.mulf %177, %172 : vector<16x256xf32>
    %179 = arith.addf %172, %178 : vector<16x256xf32>
    %cst_64 = arith.constant 0.797884583 : f32
    %180 = vector.broadcast %cst_64 : f32 to vector<16x256xf32>
    %181 = arith.mulf %180, %179 : vector<16x256xf32>
    %182 = math.tanh %181 : vector<16x256xf32>
    %cst_65 = arith.constant 1.000000e+00 : f32
    %183 = vector.broadcast %cst_65 : f32 to vector<16x256xf32>
    %184 = arith.addf %183, %182 : vector<16x256xf32>
    %185 = arith.mulf %174, %184 : vector<16x256xf32>
    %186 = arith.truncf %185 : vector<16x256xf32> to vector<16x256xbf16>
    %cst_66 = arith.constant dense<0.000000e+00> : vector<16x128xf32>
    %187 = tpu.matmul %186, %26, %cst_66 {dimension_numbers = #tpu.dot_dimension_numbers<[1], [0], [0], [1], [0, 0, 1, 1], [], []>} : vector<16x256xbf16>, vector<256x128xbf16>, vector<16x128xf32> -> vector<16x128xf32>
    %188 = vector.broadcast %28 : vector<1x128xf32> to vector<16x128xf32>
    %189 = arith.addf %187, %188 : vector<16x128xf32>
    %190 = arith.addf %168, %189 : vector<16x128xf32>
    %cst_67 = arith.constant dense<0.000000e+00> : vector<16xf32>
    %191 = vector.multi_reduction <add>, %190, %cst_67 [1] : vector<16x128xf32> to vector<16xf32>
    %192 = vector.shape_cast %191 : vector<16xf32> to vector<16x1xf32>
    %cst_68 = arith.constant 1.280000e+02 : f32
    %193 = vector.broadcast %cst_68 : f32 to vector<16x1xf32>
    %194 = arith.divf %192, %193 : vector<16x1xf32>
    %195 = vector.broadcast %194 : vector<16x1xf32> to vector<16x128xf32>
    %196 = arith.subf %190, %195 : vector<16x128xf32>
    %197 = arith.mulf %196, %196 : vector<16x128xf32>
    %cst_69 = arith.constant dense<0.000000e+00> : vector<16xf32>
    %198 = vector.multi_reduction <add>, %197, %cst_69 [1] : vector<16x128xf32> to vector<16xf32>
    %199 = vector.shape_cast %198 : vector<16xf32> to vector<16x1xf32>
    %cst_70 = arith.constant 1.280000e+02 : f32
    %200 = vector.broadcast %cst_70 : f32 to vector<16x1xf32>
    %201 = arith.divf %199, %200 : vector<16x1xf32>
    %202 = vector.broadcast %194 : vector<16x1xf32> to vector<16x128xf32>
    %203 = arith.subf %190, %202 : vector<16x128xf32>
    %cst_71 = arith.constant 9.99999974E-6 : f32
    %204 = vector.broadcast %cst_71 : f32 to vector<16x1xf32>
    %205 = arith.addf %201, %204 : vector<16x1xf32>
    %206 = math.rsqrt %205 : vector<16x1xf32>
    %207 = vector.broadcast %206 : vector<16x1xf32> to vector<16x128xf32>
    %208 = arith.mulf %203, %207 : vector<16x128xf32>
    %209 = vector.broadcast %19 : vector<1x128xf32> to vector<16x128xf32>
    %210 = arith.mulf %208, %209 : vector<16x128xf32>
    %211 = vector.broadcast %20 : vector<1x128xf32> to vector<16x128xf32>
    %212 = arith.addf %210, %211 : vector<16x128xf32>
    %c0_72 = arith.constant 0 : index
    %c0_73 = arith.constant 0 : index
    %213 = vector.load %arg14[%c0_72, %c0_73] : memref<16x128xf32, #tpu.memory_space<vmem>>, vector<16x128xf32>
    tpu.vector_store %arg14[%c0_72, %c0_73], %212 {strides = array<i32>} : memref<16x128xf32, #tpu.memory_space<vmem>>, vector<16x128xf32>,
    return
  }
  func.func @transform_0(%arg0: i32) -> (i32, i32) {
    %c0_i32 = arith.constant 0 : i32
    %c0_i32_0 = arith.constant 0 : i32
    %c0_i32_1 = arith.constant 0 : i32
    return %c0_i32, %c0_i32_0 : i32, i32
  }
  func.func @transform_1(%arg0: i32) -> (i32, i32, i32) {
    %c0_i32 = arith.constant 0 : i32
    %c0_i32_0 = arith.constant 0 : i32
    %c0_i32_1 = arith.constant 0 : i32
    %c0_i32_2 = arith.constant 0 : i32
    return %c0_i32, %c0_i32_0, %c0_i32_1 : i32, i32, i32
  }
  func.func @transform_2(%arg0: i32) -> (i32, i32) {
    %c0_i32 = arith.constant 0 : i32
    %c0_i32_0 = arith.constant 0 : i32
    %c0_i32_1 = arith.constant 0 : i32
    return %c0_i32, %c0_i32_0 : i32, i32
  }
  func.func @transform_3(%arg0: i32) -> (i32, i32, i32) {
    %c0_i32 = arith.constant 0 : i32
    %c0_i32_0 = arith.constant 0 : i32
    %c0_i32_1 = arith.constant 0 : i32
    return %arg0, %c0_i32, %c0_i32_0 : i32, i32, i32
  }
  func.func @transform_4(%arg0: i32) -> (i32, i32, i32) {
    %c0_i32 = arith.constant 0 : i32
    %c0_i32_0 = arith.constant 0 : i32
    %c0_i32_1 = arith.constant 0 : i32
    return %arg0, %c0_i32, %c0_i32_0 : i32, i32, i32
  }
  func.func @transform_5(%arg0: i32) -> (i32, i32, i32) {
    %c0_i32 = arith.constant 0 : i32
    %c0_i32_0 = arith.constant 0 : i32
    %c0_i32_1 = arith.constant 0 : i32
    return %arg0, %c0_i32, %c0_i32_0 : i32, i32, i32
  }
  func.func @transform_6(%arg0: i32) -> (i32, i32, i32) {
    %c0_i32 = arith.constant 0 : i32
    %c0_i32_0 = arith.constant 0 : i32
    %c0_i32_1 = arith.constant 0 : i32
    return %arg0, %c0_i32, %c0_i32_0 : i32, i32, i32
  }
  func.func @transform_7(%arg0: i32) -> (i32, i32, i32) {
    %c0_i32 = arith.constant 0 : i32
    %c0_i32_0 = arith.constant 0 : i32
    %c0_i32_1 = arith.constant 0 : i32
    return %arg0, %c0_i32, %c0_i32_0 : i32, i32, i32
  }
  func.func @transform_8(%arg0: i32) -> (i32, i32, i32) {
    %c0_i32 = arith.constant 0 : i32
    %c0_i32_0 = arith.constant 0 : i32
    %c0_i32_1 = arith.constant 0 : i32
    return %arg0, %c0_i32, %c0_i32_0 : i32, i32, i32
  }
  func.func @transform_9(%arg0: i32) -> (i32, i32, i32) {
    %c0_i32 = arith.constant 0 : i32
    %c0_i32_0 = arith.constant 0 : i32
    %c0_i32_1 = arith.constant 0 : i32
    return %arg0, %c0_i32, %c0_i32_0 : i32, i32, i32
  }
  func.func @transform_10(%arg0: i32) -> (i32, i32, i32) {
    %c0_i32 = arith.constant 0 : i32
    %c0_i32_0 = arith.constant 0 : i32
    %c0_i32_1 = arith.constant 0 : i32
    return %arg0, %c0_i32, %c0_i32_0 : i32, i32, i32
  }
  func.func @transform_11(%arg0: i32) -> (i32, i32, i32) {
    %c0_i32 = arith.constant 0 : i32
    %c0_i32_0 = arith.constant 0 : i32
    %c0_i32_1 = arith.constant 0 : i32
    return %arg0, %c0_i32, %c0_i32_0 : i32, i32, i32
  }
  func.func @transform_12(%arg0: i32) -> (i32, i32, i32) {
    %c0_i32 = arith.constant 0 : i32
    %c0_i32_0 = arith.constant 0 : i32
    %c0_i32_1 = arith.constant 0 : i32
    return %arg0, %c0_i32, %c0_i32_0 : i32, i32, i32
  }
  func.func @transform_13(%arg0: i32) -> (i32, i32) {
    %c0_i32 = arith.constant 0 : i32
    %c0_i32_0 = arith.constant 0 : i32
    %c0_i32_1 = arith.constant 0 : i32
    return %c0_i32, %c0_i32_0 : i32, i32
  }
}

module attributes {stable_mosaic.version = 11 : i64} {
  func.func @_head_kernel(%arg0: memref<2x128xf32, #tpu.memory_space<vmem>>, %arg1: memref<128x128xbf16, #tpu.memory_space<vmem>>, %arg2: memref<1x128xf32, #tpu.memory_space<vmem>>, %arg3: memref<2x128xf32, #tpu.memory_space<vmem>>, %arg4: memref<128x128xbf16, #tpu.memory_space<vmem>>, %arg5: memref<1x128xf32, #tpu.memory_space<vmem>>, %arg6: memref<2x128xf32, #tpu.memory_space<vmem>>) attributes {dimension_semantics = [], scalar_prefetch = 0 : i64, scratch_operands = 0 : i64, tpu.core_type = #tpu.core_type<tc>} {
    %c0 = arith.constant 0 : index
    %c0_0 = arith.constant 0 : index
    %0 = vector.load %arg0[%c0, %c0_0] : memref<2x128xf32, #tpu.memory_space<vmem>>, vector<2x128xf32>
    %c0_1 = arith.constant 0 : index
    %c0_2 = arith.constant 0 : index
    %1 = vector.load %arg1[%c0_1, %c0_2] : memref<128x128xbf16, #tpu.memory_space<vmem>>, vector<128x128xbf16>
    %2 = arith.truncf %0 : vector<2x128xf32> to vector<2x128xbf16>
    %cst = arith.constant dense<0.000000e+00> : vector<2x128xf32>
    %3 = tpu.matmul %2, %1, %cst {dimension_numbers = #tpu.dot_dimension_numbers<[1], [0], [0], [1], [0, 0, 1, 1], [], []>} : vector<2x128xbf16>, vector<128x128xbf16>, vector<2x128xf32> -> vector<2x128xf32>
    %c0_3 = arith.constant 0 : index
    %c0_4 = arith.constant 0 : index
    %4 = vector.load %arg2[%c0_3, %c0_4] : memref<1x128xf32, #tpu.memory_space<vmem>>, vector<1x128xf32>
    %5 = vector.broadcast %4 : vector<1x128xf32> to vector<2x128xf32>
    %6 = arith.addf %3, %5 : vector<2x128xf32>
    %c0_5 = arith.constant 0 : index
    %c0_6 = arith.constant 0 : index
    %7 = vector.load %arg3[%c0_5, %c0_6] : memref<2x128xf32, #tpu.memory_space<vmem>>, vector<2x128xf32>
    %8 = vector.extract_strided_slice %7 {offsets = [0, 0], sizes = [1, 128], strides = [1, 1]} : vector<2x128xf32> to vector<1x128xf32>
    %9 = vector.extract_strided_slice %7 {offsets = [1, 0], sizes = [1, 128], strides = [1, 1]} : vector<2x128xf32> to vector<1x128xf32>
    %cst_7 = arith.constant dense<0.000000e+00> : vector<2xf32>
    %10 = vector.multi_reduction <add>, %6, %cst_7 [1] : vector<2x128xf32> to vector<2xf32>
    %11 = vector.shape_cast %10 : vector<2xf32> to vector<2x1xf32>
    %cst_8 = arith.constant 1.280000e+02 : f32
    %12 = vector.broadcast %cst_8 : f32 to vector<2x1xf32>
    %13 = arith.divf %11, %12 : vector<2x1xf32>
    %14 = vector.broadcast %13 : vector<2x1xf32> to vector<2x128xf32>
    %15 = arith.subf %6, %14 : vector<2x128xf32>
    %16 = arith.mulf %15, %15 : vector<2x128xf32>
    %cst_9 = arith.constant dense<0.000000e+00> : vector<2xf32>
    %17 = vector.multi_reduction <add>, %16, %cst_9 [1] : vector<2x128xf32> to vector<2xf32>
    %18 = vector.shape_cast %17 : vector<2xf32> to vector<2x1xf32>
    %cst_10 = arith.constant 1.280000e+02 : f32
    %19 = vector.broadcast %cst_10 : f32 to vector<2x1xf32>
    %20 = arith.divf %18, %19 : vector<2x1xf32>
    %21 = vector.broadcast %13 : vector<2x1xf32> to vector<2x128xf32>
    %22 = arith.subf %6, %21 : vector<2x128xf32>
    %cst_11 = arith.constant 9.99999974E-6 : f32
    %23 = vector.broadcast %cst_11 : f32 to vector<2x1xf32>
    %24 = arith.addf %20, %23 : vector<2x1xf32>
    %25 = math.rsqrt %24 : vector<2x1xf32>
    %26 = vector.broadcast %25 : vector<2x1xf32> to vector<2x128xf32>
    %27 = arith.mulf %22, %26 : vector<2x128xf32>
    %28 = vector.broadcast %8 : vector<1x128xf32> to vector<2x128xf32>
    %29 = arith.mulf %27, %28 : vector<2x128xf32>
    %30 = vector.broadcast %9 : vector<1x128xf32> to vector<2x128xf32>
    %31 = arith.addf %29, %30 : vector<2x128xf32>
    %cst_12 = arith.constant 5.000000e-01 : f32
    %32 = vector.broadcast %cst_12 : f32 to vector<2x128xf32>
    %33 = arith.mulf %32, %31 : vector<2x128xf32>
    %cst_13 = arith.constant 4.471500e-02 : f32
    %34 = vector.broadcast %cst_13 : f32 to vector<2x128xf32>
    %35 = arith.mulf %34, %31 : vector<2x128xf32>
    %36 = arith.mulf %35, %31 : vector<2x128xf32>
    %37 = arith.mulf %36, %31 : vector<2x128xf32>
    %38 = arith.addf %31, %37 : vector<2x128xf32>
    %cst_14 = arith.constant 0.797884583 : f32
    %39 = vector.broadcast %cst_14 : f32 to vector<2x128xf32>
    %40 = arith.mulf %39, %38 : vector<2x128xf32>
    %41 = math.tanh %40 : vector<2x128xf32>
    %cst_15 = arith.constant 1.000000e+00 : f32
    %42 = vector.broadcast %cst_15 : f32 to vector<2x128xf32>
    %43 = arith.addf %42, %41 : vector<2x128xf32>
    %44 = arith.mulf %33, %43 : vector<2x128xf32>
    %c0_16 = arith.constant 0 : index
    %c0_17 = arith.constant 0 : index
    %45 = vector.load %arg4[%c0_16, %c0_17] : memref<128x128xbf16, #tpu.memory_space<vmem>>, vector<128x128xbf16>
    %46 = arith.truncf %44 : vector<2x128xf32> to vector<2x128xbf16>
    %cst_18 = arith.constant dense<0.000000e+00> : vector<2x128xf32>
    %47 = tpu.matmul %46, %45, %cst_18 {dimension_numbers = #tpu.dot_dimension_numbers<[1], [0], [0], [1], [0, 0, 1, 1], [], []>} : vector<2x128xbf16>, vector<128x128xbf16>, vector<2x128xf32> -> vector<2x128xf32>
    %c0_19 = arith.constant 0 : index
    %c0_20 = arith.constant 0 : index
    %48 = vector.load %arg5[%c0_19, %c0_20] : memref<1x128xf32, #tpu.memory_space<vmem>>, vector<1x128xf32>
    %49 = vector.broadcast %48 : vector<1x128xf32> to vector<2x128xf32>
    %50 = arith.addf %47, %49 : vector<2x128xf32>
    %cst_21 = arith.constant dense<0xFF800000> : vector<2xf32>
    %51 = vector.multi_reduction <maximumf>, %50, %cst_21 [1] : vector<2x128xf32> to vector<2xf32>
    %52 = vector.shape_cast %51 : vector<2xf32> to vector<2x1xf32>
    %53 = vector.broadcast %52 : vector<2x1xf32> to vector<2x128xf32>
    %54 = arith.subf %50, %53 : vector<2x128xf32>
    %55 = math.exp %54 : vector<2x128xf32>
    %cst_22 = arith.constant dense<0.000000e+00> : vector<2xf32>
    %56 = vector.multi_reduction <add>, %55, %cst_22 [1] : vector<2x128xf32> to vector<2xf32>
    %57 = vector.shape_cast %56 : vector<2xf32> to vector<2x1xf32>
    %58 = math.log %57 : vector<2x1xf32>
    %59 = vector.broadcast %58 : vector<2x1xf32> to vector<2x128xf32>
    %60 = arith.subf %54, %59 : vector<2x128xf32>
    %c0_23 = arith.constant 0 : index
    %c0_24 = arith.constant 0 : index
    %61 = vector.load %arg6[%c0_23, %c0_24] : memref<2x128xf32, #tpu.memory_space<vmem>>, vector<2x128xf32>
    tpu.vector_store %arg6[%c0_23, %c0_24], %60 {strides = array<i32>} : memref<2x128xf32, #tpu.memory_space<vmem>>, vector<2x128xf32>,
    return
  }
}

</mosaic_0001>

<llo_original>
// kernel: model_mode0.6
$region0: #{model_mode0.6}
  #allocation0 [shape = 'u32[]', space=smem, size = 0x4, offset = 0x4, fixed_abs, tag = 'smem constant byte address 0x4 - core index']
  #allocation1 [shape = 'u32[144,128]{1,0:T(1,128)}', space=vmem, size = 0x12000, scoped, tag = 'internal scratch']
  %s0 = inlined_call_operand.vmem [shape: f32[12,256], index: 0, kind: input, shape index: {}]
  %s1 = inlined_call_operand.vmem [shape: bf16[256,128], index: 1, kind: input, shape index: {}]
  %s2 = inlined_call_operand.vmem [shape: f32[1,128], index: 2, kind: input, shape index: {}]
  %s3 = inlined_call_operand.hbm [shape: f32[2,128], index: 3, kind: input, shape index: {}]
  %s4 = inlined_call_operand.vmem [shape: f32[12,128], index: 4, kind: input, shape index: {}]
  %s5 = inlined_call_operand.vmem [shape: f32[12,128], index: 5, kind: output, shape index: {}]
  %s6 = sld [smem:[#allocation0]]
  $region34: #{model_mode0.6} parent=0
    _
  %s8 = ssub.s32 1, %s6
  %s9 = scalar_select 0, %s8, %s6
  $region1: #{model_mode0.6} parent=0
    #allocation2 [shape = 'u8[1024]{0}', space=vmem, size = 0x400, scoped, tag = 'input window, operand 3, single buffered']
    #allocation3 [shape = 's32[1]{0}', space=sflag, size = 0x4, scoped, tag = 'scoped memory for model_mode0.6']
    %10 = vsyncpa [#allocation3], 0
    // Predicated region
    $region2: #{model_mode0.6} parent=1 // pred_check
      _
    $region3: #{model_mode0.6} parent=1 // pred_check_branch
      %12 = sbr.rel (0) target = $region5
    $region4: #{model_mode0.6} parent=1 // pred_region
      _
    $region5: #{model_mode0.6} parent=1 // pred_fallthru
      _
    // Predicated region
    $region6: #{model_mode0.6} parent=1 // pred_check
      _
    $region7: #{model_mode0.6} parent=1 // pred_check_branch
      %14 = sbr.rel (0) target = $region9
    $region8: #{model_mode0.6} parent=1 // pred_region
      _
    $region9: #{model_mode0.6} parent=1 // pred_fallthru
      _
    // Predicated region
    $region10: #{model_mode0.6} parent=1 // pred_check
      _
    $region11: #{model_mode0.6} parent=1 // pred_check_branch
      %16 = sbr.rel (0) target = $region13
    $region12: #{model_mode0.6} parent=1 // pred_region
      _
    $region13: #{model_mode0.6} parent=1 // pred_fallthru
      _
    // Predicated region
    $region14: #{model_mode0.6} parent=1 // pred_check
      _
    $region15: #{model_mode0.6} parent=1 // pred_check_branch
      %18 = sbr.rel (0) target = $region17
    $region16: #{model_mode0.6} parent=1 // pred_region
      %s20 = ssub.s32 32, 32
      %21 = vsyncadd [#allocation3], %s20
      %s23 = sshll.u32 [#allocation2], 4
      %s24 = int_to_ptr.vmem [resolvable:$true] %s23
      %26 = dma.hbm_to_vmem [thread:$0]  %s3, 32, %s24, [#allocation3]
    $region17: #{model_mode0.6} parent=1 // pred_fallthru
      _
    // Predicated region
    $region18: #{model_mode0.6} parent=1 // pred_check
      _
    $region19: #{model_mode0.6} parent=1 // pred_check_branch
      %28 = sbr.rel (0) target = $region21
    $region20: #{model_mode0.6} parent=1 // pred_region
      _
    $region21: #{model_mode0.6} parent=1 // pred_fallthru
      _
    // Predicated region
    $region22: #{model_mode0.6} parent=1 // pred_check
      _
    $region23: #{model_mode0.6} parent=1 // pred_check_branch
      %30 = sbr.rel (0) target = $region25
    $region24: #{model_mode0.6} parent=1 // pred_region
      %31 = dma.done [#allocation3], 32
    $region25: #{model_mode0.6} parent=1 // pred_fallthru
      _
    %v33 = vld [vmem:[%s0] sm:$0xff]
    %v34 = vld [vmem:[%s0 + $0x8] sm:$0xff]
    %v35 = vld [vmem:[%s0 + $0x10] sm:$0xf]
    %v36 = vld [vmem:[%s0 + $0x18] sm:$0xf]
    %v37 = vld [vmem:[%s1] sm:$0xf]
    %v38 = vld [vmem:[%s1 + $0x4] sm:$0xf]
    %v39 = vld [vmem:[%s1 + $0x8] sm:$0xf]
    %v40 = vld [vmem:[%s1 + $0xc] sm:$0xf]
    %v41 = vld [vmem:[%s1 + $0x10] sm:$0xf]
    %v42 = vld [vmem:[%s1 + $0x14] sm:$0xf]
    %v43 = vld [vmem:[%s1 + $0x18] sm:$0xf]
    %v44 = vld [vmem:[%s1 + $0x1c] sm:$0xf]
    %v45 = vld [vmem:[%s1 + $0x20] sm:$0xf]
    %v46 = vld [vmem:[%s1 + $0x24] sm:$0xf]
    %v47 = vld [vmem:[%s1 + $0x28] sm:$0xf]
    %v48 = vld [vmem:[%s1 + $0x2c] sm:$0xf]
    %v49 = vld [vmem:[%s1 + $0x30] sm:$0xf]
    %v50 = vld [vmem:[%s1 + $0x34] sm:$0xf]
    %v51 = vld [vmem:[%s1 + $0x38] sm:$0xf]
    %v52 = vld [vmem:[%s1 + $0x3c] sm:$0xf]
    %v53 = vld [vmem:[%s1 + $0x40] sm:$0xf]
    %v54 = vld [vmem:[%s1 + $0x44] sm:$0xf]
    %v55 = vld [vmem:[%s1 + $0x48] sm:$0xf]
    %v56 = vld [vmem:[%s1 + $0x4c] sm:$0xf]
    %v57 = vld [vmem:[%s1 + $0x50] sm:$0xf]
    %v58 = vld [vmem:[%s1 + $0x54] sm:$0xf]
    %v59 = vld [vmem:[%s1 + $0x58] sm:$0xf]
    %v60 = vld [vmem:[%s1 + $0x5c] sm:$0xf]
    %v61 = vld [vmem:[%s1 + $0x60] sm:$0xf]
    %v62 = vld [vmem:[%s1 + $0x64] sm:$0xf]
    %v63 = vld [vmem:[%s1 + $0x68] sm:$0xf]
    %v64 = vld [vmem:[%s1 + $0x6c] sm:$0xf]
    %v65 = vld [vmem:[%s1 + $0x70] sm:$0xf]
    %v66 = vld [vmem:[%s1 + $0x74] sm:$0xf]
    %v67 = vld [vmem:[%s1 + $0x78] sm:$0xf]
    %v68 = vld [vmem:[%s1 + $0x7c] sm:$0xf]
    %v69 = vpack.c.bf16 %v35, %v33
    %v70 = vpack.c.bf16 %v36, %v34
    %v71 = vld [vmem:[%s2] sm:$0x1]
    %v73 = vlaneseq
    %v74 = vshrl.u32 %v73, 7
    %v75 = vsub.s32 0, %v74
    %v76 = vrot.slane %v71, %v75
    %v110 = vunpack.c.l.b16 %v37
    %v111 = vunpack.c.l.b16 %v38
    %v112 = vunpack.c.l.b16 %v39
    %v113 = vunpack.c.l.b16 %v40
    %v114 = vunpack.c.l.b16 %v41
    %v115 = vunpack.c.l.b16 %v42
    %v116 = vunpack.c.l.b16 %v43
    %v117 = vunpack.c.l.b16 %v44
    %v118 = vunpack.c.l.b16 %v45
    %v119 = vunpack.c.l.b16 %v46
    %v120 = vunpack.c.l.b16 %v47
    %v121 = vunpack.c.l.b16 %v48
    %v122 = vunpack.c.l.b16 %v49
    %v123 = vunpack.c.l.b16 %v50
    %v124 = vunpack.c.l.b16 %v51
    %v125 = vunpack.c.l.b16 %v52
    %v126 = vunpack.c.l.b16 %v53
    %v127 = vunpack.c.l.b16 %v54
    %v128 = vunpack.c.l.b16 %v55
    %v129 = vunpack.c.l.b16 %v56
    %v130 = vunpack.c.l.b16 %v57
    %v131 = vunpack.c.l.b16 %v58
    %v132 = vunpack.c.l.b16 %v59
    %v133 = vunpack.c.l.b16 %v60
    %v134 = vunpack.c.l.b16 %v61
    %v135 = vunpack.c.l.b16 %v62
    %v136 = vunpack.c.l.b16 %v63
    %v137 = vunpack.c.l.b16 %v64
    %v138 = vunpack.c.l.b16 %v65
    %v139 = vunpack.c.l.b16 %v66
    %v140 = vunpack.c.l.b16 %v67
    %v141 = vunpack.c.l.b16 %v68
    %v142 = vpack.c.b16 %v111, %v110
    %v143 = vpack.c.b16 %v113, %v112
    %v144 = vpack.c.b16 %v115, %v114
    %v145 = vpack.c.b16 %v117, %v116
    %v146 = vpack.c.b16 %v119, %v118
    %v147 = vpack.c.b16 %v121, %v120
    %v148 = vpack.c.b16 %v123, %v122
    %v149 = vpack.c.b16 %v125, %v124
    %v150 = vpack.c.b16 %v127, %v126
    %v151 = vpack.c.b16 %v129, %v128
    %v152 = vpack.c.b16 %v131, %v130
    %v153 = vpack.c.b16 %v133, %v132
    %v154 = vpack.c.b16 %v135, %v134
    %v155 = vpack.c.b16 %v137, %v136
    %v156 = vpack.c.b16 %v139, %v138
    %v157 = vpack.c.b16 %v141, %v140
    %174 = vmatprep.subr.bf16.mxu0 0
    %175 = vmatpush1.bf16.msra.mxu0 %v142
    %176 = vmatprep.subr.bf16.mxu0 0
    %177 = vmatpush1.bf16.msra.mxu0 %v143
    %178 = vmatprep.subr.bf16.mxu0 0
    %179 = vmatpush1.bf16.msra.mxu0 %v144
    %180 = vmatprep.subr.bf16.mxu0 0
    %181 = vmatpush1.bf16.msra.mxu0 %v145
    %182 = vmatprep.subr.bf16.mxu0 0
    %183 = vmatpush1.bf16.msra.mxu0 %v146
    %184 = vmatprep.subr.bf16.mxu0 0
    %185 = vmatpush1.bf16.msra.mxu0 %v147
    %186 = vmatprep.subr.bf16.mxu0 0
    %187 = vmatpush1.bf16.msra.mxu0 %v148
    %188 = vmatprep.subr.bf16.mxu0 0
    %189 = vmatpush1.bf16.msra.mxu0 %v149
    %190 = vmatprep.subr.bf16.mxu0 0
    %191 = vmatpush1.bf16.msra.mxu0 %v150
    %192 = vmatprep.subr.bf16.mxu0 0
    %193 = vmatpush1.bf16.msra.mxu0 %v151
    %194 = vmatprep.subr.bf16.mxu0 0
    %195 = vmatpush1.bf16.msra.mxu0 %v152
    %196 = vmatprep.subr.bf16.mxu0 0
    %197 = vmatpush1.bf16.msra.mxu0 %v153
    %198 = vmatprep.subr.bf16.mxu0 0
    %199 = vmatpush1.bf16.msra.mxu0 %v154
    %200 = vmatprep.subr.bf16.mxu0 0
    %201 = vmatpush1.bf16.msra.mxu0 %v155
    %202 = vmatprep.subr.bf16.mxu0 0
    %203 = vmatpush1.bf16.msra.mxu0 %v156
    %204 = vmatprep.subr.bf16.mxu0 0
    %205 = vmatpush1.bf16.msra.mxu0 %v157
    %206 = vmatprep.mubr.bf16.mxu0 %v70
    %207 = vmatmul.mubr.bf16.gmra.mrb[0].mxu0 %v69
    %v208 = vpop.f32.mrb[0].mxu0
    %v209 = vadd.f32 %v76, %v208
    %v210 = vpop.f32.mrb[0].mxu0
    %v211 = vpop.f32.mrb[0].mxu0
    %v212 = vadd.f32 %v76, %v211
    %v213 = vpop.f32.mrb[0].mxu0
    %214 = vdwg.mxu0
    %v215 = vld [vmem:[#allocation2] sm:$0x3]
    %216 = vadd.xlane.f32.xlu0 %v209
    %v217 = vpop.xlane.xlu0 %216
    %vm218 = vcmask 1043456
    %v219 = vsel %vm218, %v212, 0.0
    %220 = vadd.xlane.f32.xlu0 %v219
    %v221 = vpop.xlane.xlu0 %220
    %v222 = vrcp.pop 128.0
    %v223 = vmul.f32 %v217, %v222
    %v224 = vmul.f32 %v221, %v222
    %v225 = vsub.f32 %v209, %v223
    %v226 = vsub.f32 %v212, %v224
    %v227 = vmul.f32 %v225, %v225
    %v228 = vmul.f32 %v226, %v226
    %229 = vadd.xlane.f32.xlu0 %v227
    %v230 = vpop.xlane.xlu0 %229
    %v231 = vsel %vm218, %v228, 0.0
    %232 = vadd.xlane.f32.xlu0 %v231
    %v233 = vpop.xlane.xlu0 %232
    %v234 = vmul.f32 %v230, %v222
    %v235 = vmul.f32 %v233, %v222
    %v236 = vadd.f32 %v234, 1e-05
    %v237 = vadd.f32 %v235, 1e-05
    %v238 = vrsqrt.pop %v236
    %v239 = vrsqrt.pop %v237
    %v240 = vmul.f32 %v225, %v238
    %v241 = vmul.f32 %v226, %v239
    %v242 = vlaneseq
    %v243 = vshrl.u32 %v242, 7
    %v244 = vsub.s32 0, %v243
    %v245 = vrot.slane %v215, %v244
    %v246 = vmul.f32 %v240, %v245
    %v247 = vmul.f32 %v241, %v245
    %v248 = vlaneseq
    %v249 = vshrl.u32 %v248, 7
    %v250 = vsub.s32 1, %v249
    %v251 = vrot.slane %v215, %v250
    %v252 = vadd.f32 %v246, %v251
    %v253 = vadd.f32 %v247, %v251
    %v254 = vmul.f32 %v252, 0.5
    %v255 = vmul.f32 %v253, 0.5
    %v256 = vmul.f32 %v252, 0.044715
    %v257 = vmul.f32 %v253, 0.044715
    %v258 = vmul.f32 %v256, %v252
    %v259 = vmul.f32 %v257, %v253
    %v260 = vmul.f32 %v258, %v252
    %v261 = vmul.f32 %v259, %v253
    %v262 = vadd.f32 %v252, %v260
    %v263 = vadd.f32 %v253, %v261
    %v264 = vmul.f32 %v262, 0.7978846
    %v265 = vmul.f32 %v263, 0.7978846
    %v266 = vtanh.pop %v264
    %v267 = vtanh.pop %v265
    %v268 = vadd.f32 %v266, 1.0
    %v269 = vadd.f32 %v267, 1.0
    %v270 = vmul.f32 %v254, %v268
    %v271 = vmul.f32 %v255, %v269
    %v272 = vld [vmem:[%s4] sm:$0xff]
    %v273 = vld [vmem:[%s4 + $0x8] sm:$0xf]
    %v274 = vadd.f32 %v270, %v272
    %v275 = vadd.f32 %v271, %v273
    %276 = vst [vmem:[%s5] sm:$0xff] %v274
    %277 = vst [vmem:[%s5 + $0x8] sm:$0xf] %v275
    // Predicated region
    $region26: #{model_mode0.6} parent=1 // pred_check
      _
    $region27: #{model_mode0.6} parent=1 // pred_check_branch
      %279 = sbr.rel (0) target = $region29
    $region28: #{model_mode0.6} parent=1 // pred_region
      _
    $region29: #{model_mode0.6} parent=1 // pred_fallthru
      _
    // Predicated region
    $region30: #{model_mode0.6} parent=1 // pred_check
      _
    $region31: #{model_mode0.6} parent=1 // pred_check_branch
      %281 = sbr.rel (0) target = $region33
    $region32: #{model_mode0.6} parent=1 // pred_region
      _
    $region33: #{model_mode0.6} parent=1 // pred_fallthru
      _
    %282 = vsyncpa [#allocation3], 1

// kernel: model_mode0.9
$region0: #{model_mode0.9}
  #allocation0 [shape = 'u32[]', space=smem, size = 0x4, offset = 0x4, fixed_abs, tag = 'smem constant byte address 0x4 - core index']
  #allocation1 [shape = 'u32[144,128]{1,0:T(1,128)}', space=vmem, size = 0x12000, scoped, tag = 'internal scratch']
  %s0 = inlined_call_operand.vmem [shape: f32[2,128], index: 0, kind: input, shape index: {}]
  %s1 = inlined_call_operand.vmem [shape: bf16[128,128], index: 1, kind: input, shape index: {}]
  %s2 = inlined_call_operand.vmem [shape: f32[1,128], index: 2, kind: input, shape index: {}]
  %s3 = inlined_call_operand.vmem [shape: f32[2,128], index: 3, kind: input, shape index: {}]
  %s4 = inlined_call_operand.vmem [shape: bf16[128,128], index: 4, kind: input, shape index: {}]
  %s5 = inlined_call_operand.vmem [shape: f32[1,128], index: 5, kind: input, shape index: {}]
  %s6 = inlined_call_operand.hbm [shape: f32[2,128], index: 6, kind: output, shape index: {}]
  %s7 = sld [smem:[#allocation0]]
  $region34: #{model_mode0.9} parent=0
    _
  %s9 = ssub.s32 1, %s7
  %s10 = scalar_select 0, %s9, %s7
  $region1: #{model_mode0.9} parent=0
    #allocation2 [shape = 'u8[1024]{0}', space=vmem, size = 0x400, scoped, tag = 'output window, operand 0, single buffered']
    #allocation3 [shape = 's32[1]{0}', space=sflag, size = 0x4, scoped, tag = 'scoped memory for model_mode0.9']
    %11 = vsyncpa [#allocation3], 0
    // Predicated region
    $region2: #{model_mode0.9} parent=1 // pred_check
      _
    $region3: #{model_mode0.9} parent=1 // pred_check_branch
      %13 = sbr.rel (0) target = $region5
    $region4: #{model_mode0.9} parent=1 // pred_region
      _
    $region5: #{model_mode0.9} parent=1 // pred_fallthru
      _
    // Predicated region
    $region6: #{model_mode0.9} parent=1 // pred_check
      _
    $region7: #{model_mode0.9} parent=1 // pred_check_branch
      %15 = sbr.rel (0) target = $region9
    $region8: #{model_mode0.9} parent=1 // pred_region
      _
    $region9: #{model_mode0.9} parent=1 // pred_fallthru
      _
    // Predicated region
    $region10: #{model_mode0.9} parent=1 // pred_check
      _
    $region11: #{model_mode0.9} parent=1 // pred_check_branch
      %17 = sbr.rel (0) target = $region13
    $region12: #{model_mode0.9} parent=1 // pred_region
      _
    $region13: #{model_mode0.9} parent=1 // pred_fallthru
      _
    // Predicated region
    $region14: #{model_mode0.9} parent=1 // pred_check
      _
    $region15: #{model_mode0.9} parent=1 // pred_check_branch
      %19 = sbr.rel (0) target = $region17
    $region16: #{model_mode0.9} parent=1 // pred_region
      _
    $region17: #{model_mode0.9} parent=1 // pred_fallthru
      _
    // Predicated region
    $region18: #{model_mode0.9} parent=1 // pred_check
      _
    $region19: #{model_mode0.9} parent=1 // pred_check_branch
      %21 = sbr.rel (0) target = $region21
    $region20: #{model_mode0.9} parent=1 // pred_region
      _
    $region21: #{model_mode0.9} parent=1 // pred_fallthru
      _
    // Predicated region
    $region22: #{model_mode0.9} parent=1 // pred_check
      _
    $region23: #{model_mode0.9} parent=1 // pred_check_branch
      %23 = sbr.rel (0) target = $region25
    $region24: #{model_mode0.9} parent=1 // pred_region
      _
    $region25: #{model_mode0.9} parent=1 // pred_fallthru
      _
    %v25 = vld [vmem:[%s0] sm:$0x3]
    %v26 = vld [vmem:[%s1] sm:$0xf]
    %v27 = vld [vmem:[%s1 + $0x4] sm:$0xf]
    %v28 = vld [vmem:[%s1 + $0x8] sm:$0xf]
    %v29 = vld [vmem:[%s1 + $0xc] sm:$0xf]
    %v30 = vld [vmem:[%s1 + $0x10] sm:$0xf]
    %v31 = vld [vmem:[%s1 + $0x14] sm:$0xf]
    %v32 = vld [vmem:[%s1 + $0x18] sm:$0xf]
    %v33 = vld [vmem:[%s1 + $0x1c] sm:$0xf]
    %v34 = vld [vmem:[%s1 + $0x20] sm:$0xf]
    %v35 = vld [vmem:[%s1 + $0x24] sm:$0xf]
    %v36 = vld [vmem:[%s1 + $0x28] sm:$0xf]
    %v37 = vld [vmem:[%s1 + $0x2c] sm:$0xf]
    %v38 = vld [vmem:[%s1 + $0x30] sm:$0xf]
    %v39 = vld [vmem:[%s1 + $0x34] sm:$0xf]
    %v40 = vld [vmem:[%s1 + $0x38] sm:$0xf]
    %v41 = vld [vmem:[%s1 + $0x3c] sm:$0xf]
    %v42 = vpack.c.bf16 %v25, %v25
    %v43 = vld [vmem:[%s2] sm:$0x1]
    %v45 = vlaneseq
    %v46 = vshrl.u32 %v45, 7
    %v47 = vsub.s32 0, %v46
    %v48 = vrot.slane %v43, %v47
    %v66 = vunpack.c.l.b16 %v26
    %v67 = vunpack.c.l.b16 %v27
    %v68 = vunpack.c.l.b16 %v28
    %v69 = vunpack.c.l.b16 %v29
    %v70 = vunpack.c.l.b16 %v30
    %v71 = vunpack.c.l.b16 %v31
    %v72 = vunpack.c.l.b16 %v32
    %v73 = vunpack.c.l.b16 %v33
    %v74 = vunpack.c.l.b16 %v34
    %v75 = vunpack.c.l.b16 %v35
    %v76 = vunpack.c.l.b16 %v36
    %v77 = vunpack.c.l.b16 %v37
    %v78 = vunpack.c.l.b16 %v38
    %v79 = vunpack.c.l.b16 %v39
    %v80 = vunpack.c.l.b16 %v40
    %v81 = vunpack.c.l.b16 %v41
    %v82 = vpack.c.b16 %v67, %v66
    %v83 = vpack.c.b16 %v69, %v68
    %v84 = vpack.c.b16 %v71, %v70
    %v85 = vpack.c.b16 %v73, %v72
    %v86 = vpack.c.b16 %v75, %v74
    %v87 = vpack.c.b16 %v77, %v76
    %v88 = vpack.c.b16 %v79, %v78
    %v89 = vpack.c.b16 %v81, %v80
    %98 = vmatprep.subr.bf16.mxu0 0
    %99 = vmatpush1.bf16.msra.mxu0 %v82
    %100 = vmatprep.subr.bf16.mxu0 0
    %101 = vmatpush1.bf16.msra.mxu0 %v83
    %102 = vmatprep.subr.bf16.mxu0 0
    %103 = vmatpush1.bf16.msra.mxu0 %v84
    %104 = vmatprep.subr.bf16.mxu0 0
    %105 = vmatpush1.bf16.msra.mxu0 %v85
    %106 = vmatprep.subr.bf16.mxu0 0
    %107 = vmatpush1.bf16.msra.mxu0 %v86
    %108 = vmatprep.subr.bf16.mxu0 0
    %109 = vmatpush1.bf16.msra.mxu0 %v87
    %110 = vmatprep.subr.bf16.mxu0 0
    %111 = vmatpush1.bf16.msra.mxu0 %v88
    %112 = vmatprep.subr.bf16.mxu0 0
    %113 = vmatpush1.bf16.msra.mxu0 %v89
    %114 = vmatprep.subr.bf16.mxu0 0
    %115 = vmatpush1.bf16.msra.mxu0 0
    %116 = vmatprep.subr.bf16.mxu0 0
    %117 = vmatpush1.bf16.msra.mxu0 0
    %118 = vmatprep.subr.bf16.mxu0 0
    %119 = vmatpush1.bf16.msra.mxu0 0
    %120 = vmatprep.subr.bf16.mxu0 0
    %121 = vmatpush1.bf16.msra.mxu0 0
    %122 = vmatprep.subr.bf16.mxu0 0
    %123 = vmatpush1.bf16.msra.mxu0 0
    %124 = vmatprep.subr.bf16.mxu0 0
    %125 = vmatpush1.bf16.msra.mxu0 0
    %126 = vmatprep.subr.bf16.mxu0 0
    %127 = vmatpush1.bf16.msra.mxu0 0
    %128 = vmatprep.subr.bf16.mxu0 0
    %129 = vmatpush1.bf16.msra.mxu0 0
    %130 = vmatprep.mubr.bf16.mxu0 0
    %131 = vmatmul.mubr.bf16.gmra.mrb[0].mxu0 %v42
    %v132 = vpop.f32.mrb[0].mxu0
    %v133 = vadd.f32 %v48, %v132
    %v134 = vpop.f32.mrb[0].mxu0
    %v135 = vpop.f32.mrb[0].mxu0
    %v136 = vpop.f32.mrb[0].mxu0
    %137 = vdwg.mxu0
    %v138 = vld [vmem:[%s3] sm:$0x3]
    %vm139 = vcmask 1041408
    %v140 = vsel %vm139, %v133, 0.0
    %141 = vadd.xlane.f32.xlu0 %v140
    %v142 = vpop.xlane.xlu0 %141
    %v143 = vrcp.pop 128.0
    %v144 = vmul.f32 %v142, %v143
    %v145 = vsub.f32 %v133, %v144
    %v146 = vmul.f32 %v145, %v145
    %v147 = vsel %vm139, %v146, 0.0
    %148 = vadd.xlane.f32.xlu0 %v147
    %v149 = vpop.xlane.xlu0 %148
    %v150 = vmul.f32 %v149, %v143
    %v151 = vadd.f32 %v150, 1e-05
    %v152 = vrsqrt.pop %v151
    %v153 = vmul.f32 %v145, %v152
    %v154 = vlaneseq
    %v155 = vshrl.u32 %v154, 7
    %v156 = vsub.s32 0, %v155
    %v157 = vrot.slane %v138, %v156
    %v158 = vmul.f32 %v153, %v157
    %v159 = vlaneseq
    %v160 = vshrl.u32 %v159, 7
    %v161 = vsub.s32 1, %v160
    %v162 = vrot.slane %v138, %v161
    %v163 = vadd.f32 %v158, %v162
    %v164 = vmul.f32 %v163, 0.5
    %v165 = vmul.f32 %v163, 0.044715
    %v166 = vmul.f32 %v165, %v163
    %v167 = vmul.f32 %v166, %v163
    %v168 = vadd.f32 %v163, %v167
    %v169 = vmul.f32 %v168, 0.7978846
    %v170 = vtanh.pop %v169
    %v171 = vadd.f32 %v170, 1.0
    %v172 = vmul.f32 %v164, %v171
    %v173 = vld [vmem:[%s4] sm:$0xf]
    %v174 = vld [vmem:[%s4 + $0x4] sm:$0xf]
    %v175 = vld [vmem:[%s4 + $0x8] sm:$0xf]
    %v176 = vld [vmem:[%s4 + $0xc] sm:$0xf]
    %v177 = vld [vmem:[%s4 + $0x10] sm:$0xf]
    %v178 = vld [vmem:[%s4 + $0x14] sm:$0xf]
    %v179 = vld [vmem:[%s4 + $0x18] sm:$0xf]
    %v180 = vld [vmem:[%s4 + $0x1c] sm:$0xf]
    %v181 = vld [vmem:[%s4 + $0x20] sm:$0xf]
    %v182 = vld [vmem:[%s4 + $0x24] sm:$0xf]
    %v183 = vld [vmem:[%s4 + $0x28] sm:$0xf]
    %v184 = vld [vmem:[%s4 + $0x2c] sm:$0xf]
    %v185 = vld [vmem:[%s4 + $0x30] sm:$0xf]
    %v186 = vld [vmem:[%s4 + $0x34] sm:$0xf]
    %v187 = vld [vmem:[%s4 + $0x38] sm:$0xf]
    %v188 = vld [vmem:[%s4 + $0x3c] sm:$0xf]
    %v189 = vpack.c.bf16 %v172, %v172
    %v190 = vld [vmem:[%s5] sm:$0x1]
    %v192 = vlaneseq
    %v193 = vshrl.u32 %v192, 7
    %v194 = vsub.s32 0, %v193
    %v195 = vrot.slane %v190, %v194
    %v213 = vunpack.c.l.b16 %v173
    %v214 = vunpack.c.l.b16 %v174
    %v215 = vunpack.c.l.b16 %v175
    %v216 = vunpack.c.l.b16 %v176
    %v217 = vunpack.c.l.b16 %v177
    %v218 = vunpack.c.l.b16 %v178
    %v219 = vunpack.c.l.b16 %v179
    %v220 = vunpack.c.l.b16 %v180
    %v221 = vunpack.c.l.b16 %v181
    %v222 = vunpack.c.l.b16 %v182
    %v223 = vunpack.c.l.b16 %v183
    %v224 = vunpack.c.l.b16 %v184
    %v225 = vunpack.c.l.b16 %v185
    %v226 = vunpack.c.l.b16 %v186
    %v227 = vunpack.c.l.b16 %v187
    %v228 = vunpack.c.l.b16 %v188
    %v229 = vpack.c.b16 %v214, %v213
    %v230 = vpack.c.b16 %v216, %v215
    %v231 = vpack.c.b16 %v218, %v217
    %v232 = vpack.c.b16 %v220, %v219
    %v233 = vpack.c.b16 %v222, %v221
    %v234 = vpack.c.b16 %v224, %v223
    %v235 = vpack.c.b16 %v226, %v225
    %v236 = vpack.c.b16 %v228, %v227
    %245 = vmatprep.subr.bf16.mxu0 0
    %246 = vmatpush1.bf16.msra.mxu0 %v229
    %247 = vmatprep.subr.bf16.mxu0 0
    %248 = vmatpush1.bf16.msra.mxu0 %v230
    %249 = vmatprep.subr.bf16.mxu0 0
    %250 = vmatpush1.bf16.msra.mxu0 %v231
    %251 = vmatprep.subr.bf16.mxu0 0
    %252 = vmatpush1.bf16.msra.mxu0 %v232
    %253 = vmatprep.subr.bf16.mxu0 0
    %254 = vmatpush1.bf16.msra.mxu0 %v233
    %255 = vmatprep.subr.bf16.mxu0 0
    %256 = vmatpush1.bf16.msra.mxu0 %v234
    %257 = vmatprep.subr.bf16.mxu0 0
    %258 = vmatpush1.bf16.msra.mxu0 %v235
    %259 = vmatprep.subr.bf16.mxu0 0
    %260 = vmatpush1.bf16.msra.mxu0 %v236
    %261 = vmatprep.subr.bf16.mxu0 0
    %262 = vmatpush1.bf16.msra.mxu0 0
    %263 = vmatprep.subr.bf16.mxu0 0
    %264 = vmatpush1.bf16.msra.mxu0 0
    %265 = vmatprep.subr.bf16.mxu0 0
    %266 = vmatpush1.bf16.msra.mxu0 0
    %267 = vmatprep.subr.bf16.mxu0 0
    %268 = vmatpush1.bf16.msra.mxu0 0
    %269 = vmatprep.subr.bf16.mxu0 0
    %270 = vmatpush1.bf16.msra.mxu0 0
    %271 = vmatprep.subr.bf16.mxu0 0
    %272 = vmatpush1.bf16.msra.mxu0 0
    %273 = vmatprep.subr.bf16.mxu0 0
    %274 = vmatpush1.bf16.msra.mxu0 0
    %275 = vmatprep.subr.bf16.mxu0 0
    %276 = vmatpush1.bf16.msra.mxu0 0
    %277 = vmatprep.mubr.bf16.mxu0 0
    %278 = vmatmul.mubr.bf16.gmra.mrb[0].mxu0 %v189
    %v279 = vpop.f32.mrb[0].mxu0
    %v280 = vadd.f32 %v195, %v279
    %v281 = vpop.f32.mrb[0].mxu0
    %v282 = vpop.f32.mrb[0].mxu0
    %v283 = vpop.f32.mrb[0].mxu0
    %284 = vdwg.mxu0
    %v285 = vsel %vm139, %v280, -inf
    %286 = vmax.xlane.f32.xlu0 %v285
    %v287 = vpop.xlane.xlu0 %286
    %v288 = vsub.f32 %v280, %v287
    %v289 = vmul.f32 %v288, 1.442695
    %v290 = vpow.pop %v289
    %v291 = vsel %vm139, %v290, 0.0
    %292 = vadd.xlane.f32.xlu0 %v291
    %v293 = vpop.xlane.xlu0 %292
    %v294 = vlog2.pop %v293
    %v295 = vmul.f32 %v294, 0.6931472
    %v296 = vsub.f32 %v288, %v295
    %297 = vst [vmem:[#allocation2] sm:$0x3] %v296
    // Predicated region
    $region26: #{model_mode0.9} parent=1 // pred_check
      _
    $region27: #{model_mode0.9} parent=1 // pred_check_branch
      %299 = sbr.rel (0) target = $region29
    $region28: #{model_mode0.9} parent=1 // pred_region
      %s301 = ssub.s32 32, 32
      %302 = vsyncadd [#allocation3], %s301
      %s304 = sshll.u32 [#allocation2], 4
      %s305 = int_to_ptr.vmem [resolvable:$true] %s304
      %307 = dma.vmem_to_hbm [thread:$0]  %s305, 32, %s6, [#allocation3]
    $region29: #{model_mode0.9} parent=1 // pred_fallthru
      _
    // Predicated region
    $region30: #{model_mode0.9} parent=1 // pred_check
      _
    $region31: #{model_mode0.9} parent=1 // pred_check_branch
      %309 = sbr.rel (0) target = $region33
    $region32: #{model_mode0.9} parent=1 // pred_region
      %310 = dma.done [#allocation3], 32
    $region33: #{model_mode0.9} parent=1 // pred_fallthru
      _
    %311 = vsyncpa [#allocation3], 1

// kernel: model_mode0.5
$region0: #{model_mode0.5}
  #allocation0 [shape = 'u32[]', space=smem, size = 0x4, offset = 0x4, fixed_abs, tag = 'smem constant byte address 0x4 - core index']
  #allocation1 [shape = 'u32[144,128]{1,0:T(1,128)}', space=vmem, size = 0x12000, scoped, tag = 'internal scratch']
  %s0 = inlined_call_operand.vmem [shape: f32[16,128], index: 0, kind: input, shape index: {}]
  %s1 = inlined_call_operand.vmem [shape: f32[2,1,8], index: 1, kind: input, shape index: {}]
  %s2 = inlined_call_operand.vmem [shape: f32[2,128], index: 2, kind: input, shape index: {}]
  %s3 = inlined_call_operand.vmem [shape: bf16[2,128,384], index: 3, kind: input, shape index: {}]
  %s4 = inlined_call_operand.vmem [shape: f32[2,1,384], index: 4, kind: input, shape index: {}]
  %s5 = inlined_call_operand.vmem [shape: bf16[2,128,128], index: 5, kind: input, shape index: {}]
  %s6 = inlined_call_operand.vmem [shape: f32[2,1,128], index: 6, kind: input, shape index: {}]
  %s7 = inlined_call_operand.vmem [shape: f32[2,2,128], index: 7, kind: input, shape index: {}]
  %s8 = inlined_call_operand.vmem [shape: f32[2,2,128], index: 8, kind: input, shape index: {}]
  %s9 = inlined_call_operand.vmem [shape: bf16[2,128,256], index: 9, kind: input, shape index: {}]
  %s10 = inlined_call_operand.vmem [shape: f32[2,1,256], index: 10, kind: input, shape index: {}]
  %s11 = inlined_call_operand.vmem [shape: bf16[2,256,128], index: 11, kind: input, shape index: {}]
  %s12 = inlined_call_operand.vmem [shape: f32[2,1,128], index: 12, kind: input, shape index: {}]
  %s13 = inlined_call_operand.vmem [shape: f32[16,128], index: 13, kind: output, shape index: {}]
  %s14 = sld [smem:[#allocation0]]
  $region89: #{model_mode0.5} parent=0
    _
  %s16 = ssub.s32 1, %s14
  %s17 = scalar_select 0, %s16, %s14
  loop: start=0, step=1, limit=4
  $region2: #{model_mode0.5} parent=0 // loop_pre_header
    _
  $region3: #{model_mode0.5} parent=0 // loop_header
    %s19 = sphi 0, %s23
    %p20 = scmp.ge.s32.totalorder %s19, 4
    %s27 = sphi 0, %s27
    %s29 = sphi 0, %s27
    %s30 = sphi 0, %s29
    %s44 = sphi 0, %s30
    %s48 = sphi 0, %s48
    %s50 = sphi 0, %s48
    %s51 = sphi 0, %s50
    %s65 = sphi 0, %s51
    %s69 = sphi 0, %s69
    %s71 = sphi 0, %s69
    %s72 = sphi 0, %s71
    %s86 = sphi 0, %s72
    %s92 = sphi 0, %s94
    %s95 = sphi 0, %s92
    %s96 = sphi 0, %s95
    %s112 = sphi 0, %s96
    %s118 = sphi 0, %s120
    %s121 = sphi 0, %s118
    %s122 = sphi 0, %s121
    %s138 = sphi 0, %s122
    %s144 = sphi 0, %s146
    %s147 = sphi 0, %s144
    %s148 = sphi 0, %s147
    %s164 = sphi 0, %s148
    %s170 = sphi 0, %s172
    %s173 = sphi 0, %s170
    %s174 = sphi 0, %s173
    %s190 = sphi 0, %s174
    %s196 = sphi 0, %s198
    %s199 = sphi 0, %s196
    %s200 = sphi 0, %s199
    %s216 = sphi 0, %s200
    %s222 = sphi 0, %s224
    %s225 = sphi 0, %s222
    %s226 = sphi 0, %s225
    %s242 = sphi 0, %s226
    %s248 = sphi 0, %s250
    %s251 = sphi 0, %s248
    %s252 = sphi 0, %s251
    %s268 = sphi 0, %s252
    %s274 = sphi 0, %s276
    %s277 = sphi 0, %s274
    %s278 = sphi 0, %s277
    %s294 = sphi 0, %s278
    %s300 = sphi 0, %s302
    %s303 = sphi 0, %s300
    %s304 = sphi 0, %s303
    %s320 = sphi 0, %s304
    %s326 = sphi 0, %s328
    %s329 = sphi 0, %s326
    %s330 = sphi 0, %s329
    %s346 = sphi 0, %s330
    %s350 = sphi 0, %s350
    %s352 = sphi 0, %s350
    %s353 = sphi 0, %s352
    %s367 = sphi 0, %s353
  $region4: #{model_mode0.5} parent=0 // loop_header_branch
    %22 = sbr.rel (%p20) target = $region8
  $region5: #{model_mode0.5} parent=0 // loop_body
    %s24 = ssub.s32 %s19, 1
    %s25 = ssub.s32 %s19, 2
    %s26 = sadd.s32 %s19, 1
    %s28 = sadd.s32 %s27, 1
    %p31 = scmp.eq.s32.totalorder %s19, 1
    %p32 = scmp.ne.s32.totalorder %s27, %s29
    %p33 = scmp.eq.s32.totalorder %s19, 0
    %p34 = por %p32, %p33
    %p35 = scmp.ne.s32.totalorder %s27, %s29
    %p36 = scmp.eq.s32.totalorder %s24, 1
    %p37 = por %p35, %p36
    %p38 = scmp.ne.s32.totalorder %s29, %s30
    %p39 = scmp.eq.s32.totalorder %s24, 0
    %p40 = por %p38, %p39
    %p41 = scmp.ne.s32.totalorder %s29, %s30
    %p42 = scmp.eq.s32.totalorder %s25, 1
    %p43 = por %p41, %p42
    %p45 = scmp.ne.s32.totalorder %s30, %s44
    %p46 = scmp.eq.s32.totalorder %s25, 0
    %p47 = por %p45, %p46
    %s49 = sadd.s32 %s48, 1
    %p52 = scmp.eq.s32.totalorder %s19, 1
    %p53 = scmp.ne.s32.totalorder %s48, %s50
    %p54 = scmp.eq.s32.totalorder %s19, 0
    %p55 = por %p53, %p54
    %p56 = scmp.ne.s32.totalorder %s48, %s50
    %p57 = scmp.eq.s32.totalorder %s24, 1
    %p58 = por %p56, %p57
    %p59 = scmp.ne.s32.totalorder %s50, %s51
    %p60 = scmp.eq.s32.totalorder %s24, 0
    %p61 = por %p59, %p60
    %p62 = scmp.ne.s32.totalorder %s50, %s51
    %p63 = scmp.eq.s32.totalorder %s25, 1
    %p64 = por %p62, %p63
    %p66 = scmp.ne.s32.totalorder %s51, %s65
    %p67 = scmp.eq.s32.totalorder %s25, 0
    %p68 = por %p66, %p67
    %s70 = sadd.s32 %s69, 1
    %p73 = scmp.eq.s32.totalorder %s19, 1
    %p74 = scmp.ne.s32.totalorder %s69, %s71
    %p75 = scmp.eq.s32.totalorder %s19, 0
    %p76 = por %p74, %p75
    %p77 = scmp.ne.s32.totalorder %s69, %s71
    %p78 = scmp.eq.s32.totalorder %s24, 1
    %p79 = por %p77, %p78
    %p80 = scmp.ne.s32.totalorder %s71, %s72
    %p81 = scmp.eq.s32.totalorder %s24, 0
    %p82 = por %p80, %p81
    %p83 = scmp.ne.s32.totalorder %s71, %s72
    %p84 = scmp.eq.s32.totalorder %s25, 1
    %p85 = por %p83, %p84
    %p87 = scmp.ne.s32.totalorder %s72, %s86
    %p88 = scmp.eq.s32.totalorder %s25, 0
    %p89 = por %p87, %p88
    %s90 = ssub.s32 %s19, %s26
    %p91 = scmp.eq.s32.totalorder %s90, 0
    %s93 = sadd.s32 %s92, 1
    %s94 = scalar_select %p91, %s92, %s93
    %p97 = pneg %p91
    %p98 = scmp.eq.s32.totalorder %s19, 1
    %p99 = por %p97, %p98
    %p100 = scmp.ne.s32.totalorder %s92, %s95
    %p101 = scmp.eq.s32.totalorder %s19, 0
    %p102 = por %p100, %p101
    %p103 = scmp.ne.s32.totalorder %s92, %s95
    %p104 = scmp.eq.s32.totalorder %s24, 1
    %p105 = por %p103, %p104
    %p106 = scmp.ne.s32.totalorder %s95, %s96
    %p107 = scmp.eq.s32.totalorder %s24, 0
    %p108 = por %p106, %p107
    %p109 = scmp.ne.s32.totalorder %s95, %s96
    %p110 = scmp.eq.s32.totalorder %s25, 1
    %p111 = por %p109, %p110
    %p113 = scmp.ne.s32.totalorder %s96, %s112
    %p114 = scmp.eq.s32.totalorder %s25, 0
    %p115 = por %p113, %p114
    %s116 = ssub.s32 %s19, %s26
    %p117 = scmp.eq.s32.totalorder %s116, 0
    %s119 = sadd.s32 %s118, 1
    %s120 = scalar_select %p117, %s118, %s119
    %p123 = pneg %p117
    %p124 = scmp.eq.s32.totalorder %s19, 1
    %p125 = por %p123, %p124
    %p126 = scmp.ne.s32.totalorder %s118, %s121
    %p127 = scmp.eq.s32.totalorder %s19, 0
    %p128 = por %p126, %p127
    %p129 = scmp.ne.s32.totalorder %s118, %s121
    %p130 = scmp.eq.s32.totalorder %s24, 1
    %p131 = por %p129, %p130
    %p132 = scmp.ne.s32.totalorder %s121, %s122
    %p133 = scmp.eq.s32.totalorder %s24, 0
    %p134 = por %p132, %p133
    %p135 = scmp.ne.s32.totalorder %s121, %s122
    %p136 = scmp.eq.s32.totalorder %s25, 1
    %p137 = por %p135, %p136
    %p139 = scmp.ne.s32.totalorder %s122, %s138
    %p140 = scmp.eq.s32.totalorder %s25, 0
    %p141 = por %p139, %p140
    %s142 = ssub.s32 %s19, %s26
    %p143 = scmp.eq.s32.totalorder %s142, 0
    %s145 = sadd.s32 %s144, 1
    %s146 = scalar_select %p143, %s144, %s145
    %p149 = pneg %p143
    %p150 = scmp.eq.s32.totalorder %s19, 1
    %p151 = por %p149, %p150
    %p152 = scmp.ne.s32.totalorder %s144, %s147
    %p153 = scmp.eq.s32.totalorder %s19, 0
    %p154 = por %p152, %p153
    %p155 = scmp.ne.s32.totalorder %s144, %s147
    %p156 = scmp.eq.s32.totalorder %s24, 1
    %p157 = por %p155, %p156
    %p158 = scmp.ne.s32.totalorder %s147, %s148
    %p159 = scmp.eq.s32.totalorder %s24, 0
    %p160 = por %p158, %p159
    %p161 = scmp.ne.s32.totalorder %s147, %s148
    %p162 = scmp.eq.s32.totalorder %s25, 1
    %p163 = por %p161, %p162
    %p165 = scmp.ne.s32.totalorder %s148, %s164
    %p166 = scmp.eq.s32.totalorder %s25, 0
    %p167 = por %p165, %p166
    %s168 = ssub.s32 %s19, %s26
    %p169 = scmp.eq.s32.totalorder %s168, 0
    %s171 = sadd.s32 %s170, 1
    %s172 = scalar_select %p169, %s170, %s171
    %p175 = pneg %p169
    %p176 = scmp.eq.s32.totalorder %s19, 1
    %p177 = por %p175, %p176
    %p178 = scmp.ne.s32.totalorder %s170, %s173
    %p179 = scmp.eq.s32.totalorder %s19, 0
    %p180 = por %p178, %p179
    %p181 = scmp.ne.s32.totalorder %s170, %s173
    %p182 = scmp.eq.s32.totalorder %s24, 1
    %p183 = por %p181, %p182
    %p184 = scmp.ne.s32.totalorder %s173, %s174
    %p185 = scmp.eq.s32.totalorder %s24, 0
    %p186 = por %p184, %p185
    %p187 = scmp.ne.s32.totalorder %s173, %s174
    %p188 = scmp.eq.s32.totalorder %s25, 1
    %p189 = por %p187, %p188
    %p191 = scmp.ne.s32.totalorder %s174, %s190
    %p192 = scmp.eq.s32.totalorder %s25, 0
    %p193 = por %p191, %p192
    %s194 = ssub.s32 %s19, %s26
    %p195 = scmp.eq.s32.totalorder %s194, 0
    %s197 = sadd.s32 %s196, 1
    %s198 = scalar_select %p195, %s196, %s197
    %p201 = pneg %p195
    %p202 = scmp.eq.s32.totalorder %s19, 1
    %p203 = por %p201, %p202
    %p204 = scmp.ne.s32.totalorder %s196, %s199
    %p205 = scmp.eq.s32.totalorder %s19, 0
    %p206 = por %p204, %p205
    %p207 = scmp.ne.s32.totalorder %s196, %s199
    %p208 = scmp.eq.s32.totalorder %s24, 1
    %p209 = por %p207, %p208
    %p210 = scmp.ne.s32.totalorder %s199, %s200
    %p211 = scmp.eq.s32.totalorder %s24, 0
    %p212 = por %p210, %p211
    %p213 = scmp.ne.s32.totalorder %s199, %s200
    %p214 = scmp.eq.s32.totalorder %s25, 1
    %p215 = por %p213, %p214
    %p217 = scmp.ne.s32.totalorder %s200, %s216
    %p218 = scmp.eq.s32.totalorder %s25, 0
    %p219 = por %p217, %p218
    %s220 = ssub.s32 %s19, %s26
    %p221 = scmp.eq.s32.totalorder %s220, 0
    %s223 = sadd.s32 %s222, 1
    %s224 = scalar_select %p221, %s222, %s223
    %p227 = pneg %p221
    %p228 = scmp.eq.s32.totalorder %s19, 1
    %p229 = por %p227, %p228
    %p230 = scmp.ne.s32.totalorder %s222, %s225
    %p231 = scmp.eq.s32.totalorder %s19, 0
    %p232 = por %p230, %p231
    %p233 = scmp.ne.s32.totalorder %s222, %s225
    %p234 = scmp.eq.s32.totalorder %s24, 1
    %p235 = por %p233, %p234
    %p236 = scmp.ne.s32.totalorder %s225, %s226
    %p237 = scmp.eq.s32.totalorder %s24, 0
    %p238 = por %p236, %p237
    %p239 = scmp.ne.s32.totalorder %s225, %s226
    %p240 = scmp.eq.s32.totalorder %s25, 1
    %p241 = por %p239, %p240
    %p243 = scmp.ne.s32.totalorder %s226, %s242
    %p244 = scmp.eq.s32.totalorder %s25, 0
    %p245 = por %p243, %p244
    %s246 = ssub.s32 %s19, %s26
    %p247 = scmp.eq.s32.totalorder %s246, 0
    %s249 = sadd.s32 %s248, 1
    %s250 = scalar_select %p247, %s248, %s249
    %p253 = pneg %p247
    %p254 = scmp.eq.s32.totalorder %s19, 1
    %p255 = por %p253, %p254
    %p256 = scmp.ne.s32.totalorder %s248, %s251
    %p257 = scmp.eq.s32.totalorder %s19, 0
    %p258 = por %p256, %p257
    %p259 = scmp.ne.s32.totalorder %s248, %s251
    %p260 = scmp.eq.s32.totalorder %s24, 1
    %p261 = por %p259, %p260
    %p262 = scmp.ne.s32.totalorder %s251, %s252
    %p263 = scmp.eq.s32.totalorder %s24, 0
    %p264 = por %p262, %p263
    %p265 = scmp.ne.s32.totalorder %s251, %s252
    %p266 = scmp.eq.s32.totalorder %s25, 1
    %p267 = por %p265, %p266
    %p269 = scmp.ne.s32.totalorder %s252, %s268
    %p270 = scmp.eq.s32.totalorder %s25, 0
    %p271 = por %p269, %p270
    %s272 = ssub.s32 %s19, %s26
    %p273 = scmp.eq.s32.totalorder %s272, 0
    %s275 = sadd.s32 %s274, 1
    %s276 = scalar_select %p273, %s274, %s275
    %p279 = pneg %p273
    %p280 = scmp.eq.s32.totalorder %s19, 1
    %p281 = por %p279, %p280
    %p282 = scmp.ne.s32.totalorder %s274, %s277
    %p283 = scmp.eq.s32.totalorder %s19, 0
    %p284 = por %p282, %p283
    %p285 = scmp.ne.s32.totalorder %s274, %s277
    %p286 = scmp.eq.s32.totalorder %s24, 1
    %p287 = por %p285, %p286
    %p288 = scmp.ne.s32.totalorder %s277, %s278
    %p289 = scmp.eq.s32.totalorder %s24, 0
    %p290 = por %p288, %p289
    %p291 = scmp.ne.s32.totalorder %s277, %s278
    %p292 = scmp.eq.s32.totalorder %s25, 1
    %p293 = por %p291, %p292
    %p295 = scmp.ne.s32.totalorder %s278, %s294
    %p296 = scmp.eq.s32.totalorder %s25, 0
    %p297 = por %p295, %p296
    %s298 = ssub.s32 %s19, %s26
    %p299 = scmp.eq.s32.totalorder %s298, 0
    %s301 = sadd.s32 %s300, 1
    %s302 = scalar_select %p299, %s300, %s301
    %p305 = pneg %p299
    %p306 = scmp.eq.s32.totalorder %s19, 1
    %p307 = por %p305, %p306
    %p308 = scmp.ne.s32.totalorder %s300, %s303
    %p309 = scmp.eq.s32.totalorder %s19, 0
    %p310 = por %p308, %p309
    %p311 = scmp.ne.s32.totalorder %s300, %s303
    %p312 = scmp.eq.s32.totalorder %s24, 1
    %p313 = por %p311, %p312
    %p314 = scmp.ne.s32.totalorder %s303, %s304
    %p315 = scmp.eq.s32.totalorder %s24, 0
    %p316 = por %p314, %p315
    %p317 = scmp.ne.s32.totalorder %s303, %s304
    %p318 = scmp.eq.s32.totalorder %s25, 1
    %p319 = por %p317, %p318
    %p321 = scmp.ne.s32.totalorder %s304, %s320
    %p322 = scmp.eq.s32.totalorder %s25, 0
    %p323 = por %p321, %p322
    %s324 = ssub.s32 %s19, %s26
    %p325 = scmp.eq.s32.totalorder %s324, 0
    %s327 = sadd.s32 %s326, 1
    %s328 = scalar_select %p325, %s326, %s327
    %p331 = pneg %p325
    %p332 = scmp.eq.s32.totalorder %s19, 1
    %p333 = por %p331, %p332
    %p334 = scmp.ne.s32.totalorder %s326, %s329
    %p335 = scmp.eq.s32.totalorder %s19, 0
    %p336 = por %p334, %p335
    %p337 = scmp.ne.s32.totalorder %s326, %s329
    %p338 = scmp.eq.s32.totalorder %s24, 1
    %p339 = por %p337, %p338
    %p340 = scmp.ne.s32.totalorder %s329, %s330
    %p341 = scmp.eq.s32.totalorder %s24, 0
    %p342 = por %p340, %p341
    %p343 = scmp.ne.s32.totalorder %s329, %s330
    %p344 = scmp.eq.s32.totalorder %s25, 1
    %p345 = por %p343, %p344
    %p347 = scmp.ne.s32.totalorder %s330, %s346
    %p348 = scmp.eq.s32.totalorder %s25, 0
    %p349 = por %p347, %p348
    %s351 = sadd.s32 %s350, 1
    %p354 = scmp.eq.s32.totalorder %s19, 1
    %p355 = scmp.ne.s32.totalorder %s350, %s352
    %p356 = scmp.eq.s32.totalorder %s19, 0
    %p357 = por %p355, %p356
    %p358 = scmp.ne.s32.totalorder %s350, %s352
    %p359 = scmp.eq.s32.totalorder %s24, 1
    %p360 = por %p358, %p359
    %p361 = scmp.ne.s32.totalorder %s352, %s353
    %p362 = scmp.eq.s32.totalorder %s24, 0
    %p363 = por %p361, %p362
    %p364 = scmp.ne.s32.totalorder %s352, %s353
    %p365 = scmp.eq.s32.totalorder %s25, 1
    %p366 = por %p364, %p365
    %p368 = scmp.ne.s32.totalorder %s353, %s367
    %p369 = scmp.eq.s32.totalorder %s25, 0
    %p370 = por %p368, %p369
    %p371 = scmp.le.s32.totalorder 1, %s19
    %p372 = scmp.lt.s32.totalorder %s19, 3
    %p373 = pnand %p371, %p372
    %p374 = pneg %p373
    // Predicated region
    $region9: #{model_mode0.5} parent=5 // pred_check
      _
    $region10: #{model_mode0.5} parent=5 // pred_check_branch
      %376 = sbr.rel (%p373) target = $region12
    $region11: #{model_mode0.5} parent=5 // pred_region
      %s377 = ssub.s32 %s19, 1
      // Predicated region
      $region13: #{model_mode0.5} parent=11 // pred_check
        %p378 = pneg %p40
      $region14: #{model_mode0.5} parent=11 // pred_check_branch
        %380 = sbr.rel (%p378) target = $region16
      $region15: #{model_mode0.5} parent=11 // pred_region
        _
      $region16: #{model_mode0.5} parent=11 // pred_fallthru
        _
      // Predicated region
      $region17: #{model_mode0.5} parent=11 // pred_check
        %p381 = pneg %p61
      $region18: #{model_mode0.5} parent=11 // pred_check_branch
        %383 = sbr.rel (%p381) target = $region20
      $region19: #{model_mode0.5} parent=11 // pred_region
        _
      $region20: #{model_mode0.5} parent=11 // pred_fallthru
        _
      // Predicated region
      $region21: #{model_mode0.5} parent=11 // pred_check
        %p384 = pneg %p82
      $region22: #{model_mode0.5} parent=11 // pred_check_branch
        %386 = sbr.rel (%p384) target = $region24
      $region23: #{model_mode0.5} parent=11 // pred_region
        _
      $region24: #{model_mode0.5} parent=11 // pred_fallthru
        _
    $region12: #{model_mode0.5} parent=5 // pred_fallthru
      _
    %p387 = scmp.lt.s32.totalorder %s19, 2
    // Predicated region
    $region25: #{model_mode0.5} parent=5 // pred_check
      %p388 = pneg %p387
    $region26: #{model_mode0.5} parent=5 // pred_check_branch
      %390 = sbr.rel (%p388) target = $region28
    $region27: #{model_mode0.5} parent=5 // pred_region
      // Predicated region
      $region29: #{model_mode0.5} parent=27 // pred_check
        %p391 = pneg %p102
      $region30: #{model_mode0.5} parent=27 // pred_check_branch
        %393 = sbr.rel (%p391) target = $region32
      $region31: #{model_mode0.5} parent=27 // pred_region
        %p394 = scmp.lt.s32.totalorder %s19, 1
        %s395 = scalar_select %p394, %s19, 1
        %s396 = smul.addr %s395, 48
        %s397 = smul.addr %s396, 4
        %s398 = scalar_lea.vmem %s3, %s397
      $region32: #{model_mode0.5} parent=27 // pred_fallthru
        _
      // Predicated region
      $region33: #{model_mode0.5} parent=27 // pred_check
        %p399 = pneg %p128
      $region34: #{model_mode0.5} parent=27 // pred_check_branch
        %401 = sbr.rel (%p399) target = $region36
      $region35: #{model_mode0.5} parent=27 // pred_region
        %p402 = scmp.lt.s32.totalorder %s19, 1
        %s403 = scalar_select %p402, %s19, 1
        %s404 = smul.addr %s403, 3
        %s405 = scalar_lea.vmem %s4, %s404
      $region36: #{model_mode0.5} parent=27 // pred_fallthru
        _
      // Predicated region
      $region37: #{model_mode0.5} parent=27 // pred_check
        %p406 = pneg %p154
      $region38: #{model_mode0.5} parent=27 // pred_check_branch
        %408 = sbr.rel (%p406) target = $region40
      $region39: #{model_mode0.5} parent=27 // pred_region
        %p409 = scmp.lt.s32.totalorder %s19, 1
        %s410 = scalar_select %p409, %s19, 1
        %s411 = smul.addr %s410, 16
        %s412 = smul.addr %s411, 4
        %s413 = scalar_lea.vmem %s5, %s412
      $region40: #{model_mode0.5} parent=27 // pred_fallthru
        _
      // Predicated region
      $region41: #{model_mode0.5} parent=27 // pred_check
        %p414 = pneg %p180
      $region42: #{model_mode0.5} parent=27 // pred_check_branch
        %416 = sbr.rel (%p414) target = $region44
      $region43: #{model_mode0.5} parent=27 // pred_region
        %p417 = scmp.lt.s32.totalorder %s19, 1
        %s418 = scalar_select %p417, %s19, 1
        %s419 = scalar_lea.vmem %s6, %s418
      $region44: #{model_mode0.5} parent=27 // pred_fallthru
        _
      // Predicated region
      $region45: #{model_mode0.5} parent=27 // pred_check
        %p420 = pneg %p206
      $region46: #{model_mode0.5} parent=27 // pred_check_branch
        %422 = sbr.rel (%p420) target = $region48
      $region47: #{model_mode0.5} parent=27 // pred_region
        %p423 = scmp.lt.s32.totalorder %s19, 1
        %s424 = scalar_select %p423, %s19, 1
        %s425 = smul.addr %s424, 2
        %s426 = scalar_lea.vmem %s7, %s425
      $region48: #{model_mode0.5} parent=27 // pred_fallthru
        _
      // Predicated region
      $region49: #{model_mode0.5} parent=27 // pred_check
        %p427 = pneg %p232
      $region50: #{model_mode0.5} parent=27 // pred_check_branch
        %429 = sbr.rel (%p427) target = $region52
      $region51: #{model_mode0.5} parent=27 // pred_region
        %p430 = scmp.lt.s32.totalorder %s19, 1
        %s431 = scalar_select %p430, %s19, 1
        %s432 = smul.addr %s431, 2
        %s433 = scalar_lea.vmem %s8, %s432
      $region52: #{model_mode0.5} parent=27 // pred_fallthru
        _
      // Predicated region
      $region53: #{model_mode0.5} parent=27 // pred_check
        %p434 = pneg %p258
      $region54: #{model_mode0.5} parent=27 // pred_check_branch
        %436 = sbr.rel (%p434) target = $region56
      $region55: #{model_mode0.5} parent=27 // pred_region
        %p437 = scmp.lt.s32.totalorder %s19, 1
        %s438 = scalar_select %p437, %s19, 1
        %s439 = smul.addr %s438, 32
        %s440 = smul.addr %s439, 4
        %s441 = scalar_lea.vmem %s9, %s440
      $region56: #{model_mode0.5} parent=27 // pred_fallthru
        _
      // Predicated region
      $region57: #{model_mode0.5} parent=27 // pred_check
        %p442 = pneg %p284
      $region58: #{model_mode0.5} parent=27 // pred_check_branch
        %444 = sbr.rel (%p442) target = $region60
      $region59: #{model_mode0.5} parent=27 // pred_region
        %p445 = scmp.lt.s32.totalorder %s19, 1
        %s446 = scalar_select %p445, %s19, 1
        %s447 = smul.addr %s446, 2
        %s448 = scalar_lea.vmem %s10, %s447
      $region60: #{model_mode0.5} parent=27 // pred_fallthru
        _
      // Predicated region
      $region61: #{model_mode0.5} parent=27 // pred_check
        %p449 = pneg %p310
      $region62: #{model_mode0.5} parent=27 // pred_check_branch
        %451 = sbr.rel (%p449) target = $region64
      $region63: #{model_mode0.5} parent=27 // pred_region
        %p452 = scmp.lt.s32.totalorder %s19, 1
        %s453 = scalar_select %p452, %s19, 1
        %s454 = smul.addr %s453, 32
        %s455 = smul.addr %s454, 4
        %s456 = scalar_lea.vmem %s11, %s455
      $region64: #{model_mode0.5} parent=27 // pred_fallthru
        _
      // Predicated region
      $region65: #{model_mode0.5} parent=27 // pred_check
        %p457 = pneg %p336
      $region66: #{model_mode0.5} parent=27 // pred_check_branch
        %459 = sbr.rel (%p457) target = $region68
      $region67: #{model_mode0.5} parent=27 // pred_region
        %p460 = scmp.lt.s32.totalorder %s19, 1
        %s461 = scalar_select %p460, %s19, 1
        %s462 = scalar_lea.vmem %s12, %s461
      $region68: #{model_mode0.5} parent=27 // pred_fallthru
        _
    $region28: #{model_mode0.5} parent=5 // pred_fallthru
      _
    %p463 = scmp.le.s32.totalorder 1, %s19
    %p464 = scmp.lt.s32.totalorder %s19, 3
    %p465 = pnand %p463, %p464
    %p466 = pneg %p465
    // Predicated region
    $region69: #{model_mode0.5} parent=5 // pred_check
      _
    $region70: #{model_mode0.5} parent=5 // pred_check_branch
      %468 = sbr.rel (%p465) target = $region72
    $region71: #{model_mode0.5} parent=5 // pred_region
      %s469 = ssub.s32 %s19, 1
      %p470 = pneg %p40
      %p471 = pneg %p37
      %p472 = pneg %p61
      %p473 = pneg %p58
      %p474 = pneg %p82
      %p475 = pneg %p79
      %p476 = scmp.lt.s32.totalorder %s24, 1
      %s477 = scalar_select %p476, %s24, 1
      %s478 = smul.addr %s477, 48
      %s479 = smul.addr %s478, 4
      %s480 = scalar_lea.vmem %s3, %s479
      %p481 = pneg %p108
      %p482 = pneg %p105
      %p483 = scmp.lt.s32.totalorder %s24, 1
      %s484 = scalar_select %p483, %s24, 1
      %s485 = smul.addr %s484, 3
      %s486 = scalar_lea.vmem %s4, %s485
      %p487 = pneg %p134
      %p488 = pneg %p131
      %p489 = scmp.lt.s32.totalorder %s24, 1
      %s490 = scalar_select %p489, %s24, 1
      %s491 = smul.addr %s490, 16
      %s492 = smul.addr %s491, 4
      %s493 = scalar_lea.vmem %s5, %s492
      %p494 = pneg %p160
      %p495 = pneg %p157
      %p496 = scmp.lt.s32.totalorder %s24, 1
      %s497 = scalar_select %p496, %s24, 1
      %s498 = scalar_lea.vmem %s6, %s497
      %p499 = pneg %p186
      %p500 = pneg %p183
      %p501 = scmp.lt.s32.totalorder %s24, 1
      %s502 = scalar_select %p501, %s24, 1
      %s503 = smul.addr %s502, 2
      %s504 = scalar_lea.vmem %s7, %s503
      %p505 = pneg %p212
      %p506 = pneg %p209
      %p507 = scmp.lt.s32.totalorder %s24, 1
      %s508 = scalar_select %p507, %s24, 1
      %s509 = smul.addr %s508, 2
      %s510 = scalar_lea.vmem %s8, %s509
      %p511 = pneg %p238
      %p512 = pneg %p235
      %p513 = scmp.lt.s32.totalorder %s24, 1
      %s514 = scalar_select %p513, %s24, 1
      %s515 = smul.addr %s514, 32
      %s516 = smul.addr %s515, 4
      %s517 = scalar_lea.vmem %s9, %s516
      %p518 = pneg %p264
      %p519 = pneg %p261
      %p520 = scmp.lt.s32.totalorder %s24, 1
      %s521 = scalar_select %p520, %s24, 1
      %s522 = smul.addr %s521, 2
      %s523 = scalar_lea.vmem %s10, %s522
      %p524 = pneg %p290
      %p525 = pneg %p287
      %p526 = scmp.lt.s32.totalorder %s24, 1
      %s527 = scalar_select %p526, %s24, 1
      %s528 = smul.addr %s527, 32
      %s529 = smul.addr %s528, 4
      %s530 = scalar_lea.vmem %s11, %s529
      %p531 = pneg %p316
      %p532 = pneg %p313
      %p533 = scmp.lt.s32.totalorder %s24, 1
      %s534 = scalar_select %p533, %s24, 1
      %s535 = scalar_lea.vmem %s12, %s534
      %p536 = pneg %p342
      %p537 = pneg %p339
      %p538 = pneg %p363
      %p539 = pneg %p360
      %p540 = scmp.lt.s32.totalorder %s24, 1
      %s541 = scalar_select %p540, %s24, 1
      %s542 = smul.addr %s541, 48
      %s543 = smul.addr %s542, 4
      %s544 = scalar_lea.vmem %s3, %s543
      %p545 = scmp.lt.s32.totalorder %s24, 1
      %s546 = scalar_select %p545, %s24, 1
      %s547 = smul.addr %s546, 3
      %s548 = scalar_lea.vmem %s4, %s547
      %p549 = scmp.lt.s32.totalorder %s24, 1
      %s550 = scalar_select %p549, %s24, 1
      %s551 = smul.addr %s550, 16
      %s552 = smul.addr %s551, 4
      %s553 = scalar_lea.vmem %s5, %s552
      %p554 = scmp.lt.s32.totalorder %s24, 1
      %s555 = scalar_select %p554, %s24, 1
      %s556 = scalar_lea.vmem %s6, %s555
      %p557 = scmp.lt.s32.totalorder %s24, 1
      %s558 = scalar_select %p557, %s24, 1
      %s559 = smul.addr %s558, 2
      %s560 = scalar_lea.vmem %s7, %s559
      %p561 = scmp.lt.s32.totalorder %s24, 1
      %s562 = scalar_select %p561, %s24, 1
      %s563 = smul.addr %s562, 2
      %s564 = scalar_lea.vmem %s8, %s563
      %p565 = scmp.lt.s32.totalorder %s24, 1
      %s566 = scalar_select %p565, %s24, 1
      %s567 = smul.addr %s566, 32
      %s568 = smul.addr %s567, 4
      %s569 = scalar_lea.vmem %s9, %s568
      %p570 = scmp.lt.s32.totalorder %s24, 1
      %s571 = scalar_select %p570, %s24, 1
      %s572 = smul.addr %s571, 2
      %s573 = scalar_lea.vmem %s10, %s572
      %p574 = scmp.lt.s32.totalorder %s24, 1
      %s575 = scalar_select %p574, %s24, 1
      %s576 = smul.addr %s575, 32
      %s577 = smul.addr %s576, 4
      %s578 = scalar_lea.vmem %s11, %s577
      %p579 = scmp.lt.s32.totalorder %s24, 1
      %s580 = scalar_select %p579, %s24, 1
      %s581 = scalar_lea.vmem %s12, %s580
      %p583 = scmp.eq.s32.totalorder %s24, 0
      // Predicated region
      $region73: #{model_mode0.5} parent=71 // pred_check
        %p584 = pneg %p583
      $region74: #{model_mode0.5} parent=71 // pred_check_branch
        %586 = sbr.rel (%p584) target = $region76
      $region75: #{model_mode0.5} parent=71 // pred_region
        %v587 = vld [vmem:[%s0] sm:$0xff]
        %v588 = vld [vmem:[%s0 + $0x8] sm:$0xff]
        %v589 = vld [vmem:[%s2] sm:$0x3]
        %590 = vadd.xlane.f32.xlu0 %v587
        %v591 = vpop.xlane.xlu0 %590
        %592 = vadd.xlane.f32.xlu0 %v588
        %v593 = vpop.xlane.xlu0 %592
        %v594 = vrcp.pop 128.0
        %v595 = vmul.f32 %v591, %v594
        %v596 = vmul.f32 %v593, %v594
        %v597 = vsub.f32 %v587, %v595
        %v598 = vsub.f32 %v588, %v596
        %v599 = vmul.f32 %v597, %v597
        %v600 = vmul.f32 %v598, %v598
        %601 = vadd.xlane.f32.xlu0 %v599
        %v602 = vpop.xlane.xlu0 %601
        %603 = vadd.xlane.f32.xlu0 %v600
        %v604 = vpop.xlane.xlu0 %603
        %v605 = vmul.f32 %v602, %v594
        %v606 = vmul.f32 %v604, %v594
        %v607 = vadd.f32 %v605, 1e-05
        %v608 = vadd.f32 %v606, 1e-05
        %v609 = vrsqrt.pop %v607
        %v610 = vrsqrt.pop %v608
        %v611 = vmul.f32 %v597, %v609
        %v612 = vmul.f32 %v598, %v610
        %v613 = vlaneseq
        %v614 = vshrl.u32 %v613, 7
        %v615 = vsub.s32 0, %v614
        %v616 = vrot.slane %v589, %v615
        %v617 = vmul.f32 %v611, %v616
        %v618 = vmul.f32 %v612, %v616
        %v619 = vlaneseq
        %v620 = vshrl.u32 %v619, 7
        %v621 = vsub.s32 1, %v620
        %v622 = vrot.slane %v589, %v621
        %v623 = vadd.f32 %v617, %v622
        %v624 = vadd.f32 %v618, %v622
        %625 = vst [vmem:[%s13] sm:$0xff] %v623
        %626 = vst [vmem:[%s13 + $0x8] sm:$0xff] %v624
      $region76: #{model_mode0.5} parent=71 // pred_fallthru
        _
      %v627 = vld [vmem:[%s13] sm:$0xff]
      %v628 = vld [vmem:[%s13 + $0x8] sm:$0xff]
      %v629 = vld [vmem:[%s1] sm:$0x1]
      %v630 = vld [vmem:[%s1 + $0x1] sm:$0x1]
      %v631 = vld [vmem:[%s544] sm:$0xff]
      %v632 = vld [vmem:[%s544 + $0x8] sm:$0xf]
      %v633 = vld [vmem:[%s544 + $0xc] sm:$0xff]
      %v634 = vld [vmem:[%s544 + $0x14] sm:$0xf]
      %v635 = vld [vmem:[%s544 + $0x18] sm:$0xff]
      %v636 = vld [vmem:[%s544 + $0x20] sm:$0xf]
      %v637 = vld [vmem:[%s544 + $0x24] sm:$0xff]
      %v638 = vld [vmem:[%s544 + $0x2c] sm:$0xf]
      %v639 = vld [vmem:[%s544 + $0x30] sm:$0xff]
      %v640 = vld [vmem:[%s544 + $0x38] sm:$0xf]
      %v641 = vld [vmem:[%s544 + $0x3c] sm:$0xff]
      %v642 = vld [vmem:[%s544 + $0x44] sm:$0xf]
      %v643 = vld [vmem:[%s544 + $0x48] sm:$0xff]
      %v644 = vld [vmem:[%s544 + $0x50] sm:$0xf]
      %v645 = vld [vmem:[%s544 + $0x54] sm:$0xff]
      %v646 = vld [vmem:[%s544 + $0x5c] sm:$0xf]
      %v647 = vld [vmem:[%s544 + $0x60] sm:$0xff]
      %v648 = vld [vmem:[%s544 + $0x68] sm:$0xf]
      %v649 = vld [vmem:[%s544 + $0x6c] sm:$0xff]
      %v650 = vld [vmem:[%s544 + $0x74] sm:$0xf]
      %v651 = vld [vmem:[%s544 + $0x78] sm:$0xff]
      %v652 = vld [vmem:[%s544 + $0x80] sm:$0xf]
      %v653 = vld [vmem:[%s544 + $0x84] sm:$0xff]
      %v654 = vld [vmem:[%s544 + $0x8c] sm:$0xf]
      %v655 = vld [vmem:[%s544 + $0x90] sm:$0xff]
      %v656 = vld [vmem:[%s544 + $0x98] sm:$0xf]
      %v657 = vld [vmem:[%s544 + $0x9c] sm:$0xff]
      %v658 = vld [vmem:[%s544 + $0xa4] sm:$0xf]
      %v659 = vld [vmem:[%s544 + $0xa8] sm:$0xff]
      %v660 = vld [vmem:[%s544 + $0xb0] sm:$0xf]
      %v661 = vld [vmem:[%s544 + $0xb4] sm:$0xff]
      %v662 = vld [vmem:[%s544 + $0xbc] sm:$0xf]
      %v663 = vld [vmem:[%s548] sm:$0x7]
      %v664 = vld [vmem:[%s553] sm:$0xf]
      %v665 = vld [vmem:[%s553 + $0x4] sm:$0xf]
      %v666 = vld [vmem:[%s553 + $0x8] sm:$0xf]
      %v667 = vld [vmem:[%s553 + $0xc] sm:$0xf]
      %v668 = vld [vmem:[%s553 + $0x10] sm:$0xf]
      %v669 = vld [vmem:[%s553 + $0x14] sm:$0xf]
      %v670 = vld [vmem:[%s553 + $0x18] sm:$0xf]
      %v671 = vld [vmem:[%s553 + $0x1c] sm:$0xf]
      %v672 = vld [vmem:[%s553 + $0x20] sm:$0xf]
      %v673 = vld [vmem:[%s553 + $0x24] sm:$0xf]
      %v674 = vld [vmem:[%s553 + $0x28] sm:$0xf]
      %v675 = vld [vmem:[%s553 + $0x2c] sm:$0xf]
      %v676 = vld [vmem:[%s553 + $0x30] sm:$0xf]
      %v677 = vld [vmem:[%s553 + $0x34] sm:$0xf]
      %v678 = vld [vmem:[%s553 + $0x38] sm:$0xf]
      %v679 = vld [vmem:[%s553 + $0x3c] sm:$0xf]
      %v680 = vld [vmem:[%s556] sm:$0x1]
      %v681 = vld [vmem:[%s560] sm:$0x3]
      %v682 = vld [vmem:[%s564] sm:$0x3]
      %v683 = vld [vmem:[%s569] sm:$0xff]
      %v684 = vld [vmem:[%s569 + $0x8] sm:$0xff]
      %v685 = vld [vmem:[%s569 + $0x10] sm:$0xff]
      %v686 = vld [vmem:[%s569 + $0x18] sm:$0xff]
      %v687 = vld [vmem:[%s569 + $0x20] sm:$0xff]
      %v688 = vld [vmem:[%s569 + $0x28] sm:$0xff]
      %v689 = vld [vmem:[%s569 + $0x30] sm:$0xff]
      %v690 = vld [vmem:[%s569 + $0x38] sm:$0xff]
      %v691 = vld [vmem:[%s569 + $0x40] sm:$0xff]
      %v692 = vld [vmem:[%s569 + $0x48] sm:$0xff]
      %v693 = vld [vmem:[%s569 + $0x50] sm:$0xff]
      %v694 = vld [vmem:[%s569 + $0x58] sm:$0xff]
      %v695 = vld [vmem:[%s569 + $0x60] sm:$0xff]
      %v696 = vld [vmem:[%s569 + $0x68] sm:$0xff]
      %v697 = vld [vmem:[%s569 + $0x70] sm:$0xff]
      %v698 = vld [vmem:[%s569 + $0x78] sm:$0xff]
      %v699 = vld [vmem:[%s573] sm:$0x3]
      %v700 = vld [vmem:[%s578] sm:$0xf]
      %v701 = vld [vmem:[%s578 + $0x4] sm:$0xf]
      %v702 = vld [vmem:[%s578 + $0x8] sm:$0xf]
      %v703 = vld [vmem:[%s578 + $0xc] sm:$0xf]
      %v704 = vld [vmem:[%s578 + $0x10] sm:$0xf]
      %v705 = vld [vmem:[%s578 + $0x14] sm:$0xf]
      %v706 = vld [vmem:[%s578 + $0x18] sm:$0xf]
      %v707 = vld [vmem:[%s578 + $0x1c] sm:$0xf]
      %v708 = vld [vmem:[%s578 + $0x20] sm:$0xf]
      %v709 = vld [vmem:[%s578 + $0x24] sm:$0xf]
      %v710 = vld [vmem:[%s578 + $0x28] sm:$0xf]
      %v711 = vld [vmem:[%s578 + $0x2c] sm:$0xf]
      %v712 = vld [vmem:[%s578 + $0x30] sm:$0xf]
      %v713 = vld [vmem:[%s578 + $0x34] sm:$0xf]
      %v714 = vld [vmem:[%s578 + $0x38] sm:$0xf]
      %v715 = vld [vmem:[%s578 + $0x3c] sm:$0xf]
      %v716 = vld [vmem:[%s578 + $0x40] sm:$0xf]
      %v717 = vld [vmem:[%s578 + $0x44] sm:$0xf]
      %v718 = vld [vmem:[%s578 + $0x48] sm:$0xf]
      %v719 = vld [vmem:[%s578 + $0x4c] sm:$0xf]
      %v720 = vld [vmem:[%s578 + $0x50] sm:$0xf]
      %v721 = vld [vmem:[%s578 + $0x54] sm:$0xf]
      %v722 = vld [vmem:[%s578 + $0x58] sm:$0xf]
      %v723 = vld [vmem:[%s578 + $0x5c] sm:$0xf]
      %v724 = vld [vmem:[%s578 + $0x60] sm:$0xf]
      %v725 = vld [vmem:[%s578 + $0x64] sm:$0xf]
      %v726 = vld [vmem:[%s578 + $0x68] sm:$0xf]
      %v727 = vld [vmem:[%s578 + $0x6c] sm:$0xf]
      %v728 = vld [vmem:[%s578 + $0x70] sm:$0xf]
      %v729 = vld [vmem:[%s578 + $0x74] sm:$0xf]
      %v730 = vld [vmem:[%s578 + $0x78] sm:$0xf]
      %v731 = vld [vmem:[%s578 + $0x7c] sm:$0xf]
      %v732 = vld [vmem:[%s581] sm:$0x1]
      %v733 = vpack.c.bf16 %v628, %v627
      %v735 = vlaneseq
      %v736 = vshrl.u32 %v735, 7
      %v737 = vsub.s32 0, %v736
      %v738 = vrot.slane %v663, %v737
      %v739 = vlaneseq
      %v740 = vshrl.u32 %v739, 7
      %v741 = vsub.s32 1, %v740
      %v742 = vrot.slane %v663, %v741
      %v743 = vlaneseq
      %v744 = vshrl.u32 %v743, 7
      %v745 = vsub.s32 2, %v744
      %v746 = vrot.slane %v663, %v745
      %v782 = vunpack.c.l.b16 %v631
      %v783 = vunpack.c.h.b16 %v631
      %v784 = vunpack.c.l.b16 %v632
      %v785 = vunpack.c.l.b16 %v633
      %v786 = vunpack.c.h.b16 %v633
      %v787 = vunpack.c.l.b16 %v634
      %v788 = vunpack.c.l.b16 %v635
      %v789 = vunpack.c.h.b16 %v635
      %v790 = vunpack.c.l.b16 %v636
      %v791 = vunpack.c.l.b16 %v637
      %v792 = vunpack.c.h.b16 %v637
      %v793 = vunpack.c.l.b16 %v638
      %v794 = vunpack.c.l.b16 %v639
      %v795 = vunpack.c.h.b16 %v639
      %v796 = vunpack.c.l.b16 %v640
      %v797 = vunpack.c.l.b16 %v641
      %v798 = vunpack.c.h.b16 %v641
      %v799 = vunpack.c.l.b16 %v642
      %v800 = vunpack.c.l.b16 %v643
      %v801 = vunpack.c.h.b16 %v643
      %v802 = vunpack.c.l.b16 %v644
      %v803 = vunpack.c.l.b16 %v645
      %v804 = vunpack.c.h.b16 %v645
      %v805 = vunpack.c.l.b16 %v646
      %v806 = vunpack.c.l.b16 %v647
      %v807 = vunpack.c.h.b16 %v647
      %v808 = vunpack.c.l.b16 %v648
      %v809 = vunpack.c.l.b16 %v649
      %v810 = vunpack.c.h.b16 %v649
      %v811 = vunpack.c.l.b16 %v650
      %v812 = vunpack.c.l.b16 %v651
      %v813 = vunpack.c.h.b16 %v651
      %v814 = vunpack.c.l.b16 %v652
      %v815 = vunpack.c.l.b16 %v653
      %v816 = vunpack.c.h.b16 %v653
      %v817 = vunpack.c.l.b16 %v654
      %v818 = vunpack.c.l.b16 %v655
      %v819 = vunpack.c.h.b16 %v655
      %v820 = vunpack.c.l.b16 %v656
      %v821 = vunpack.c.l.b16 %v657
      %v822 = vunpack.c.h.b16 %v657
      %v823 = vunpack.c.l.b16 %v658
      %v824 = vunpack.c.l.b16 %v659
      %v825 = vunpack.c.h.b16 %v659
      %v826 = vunpack.c.l.b16 %v660
      %v827 = vunpack.c.l.b16 %v661
      %v828 = vunpack.c.h.b16 %v661
      %v829 = vunpack.c.l.b16 %v662
      %v830 = vpack.c.b16 %v785, %v782
      %v831 = vpack.c.b16 %v786, %v783
      %v832 = vpack.c.b16 %v787, %v784
      %v833 = vpack.c.b16 %v791, %v788
      %v834 = vpack.c.b16 %v792, %v789
      %v835 = vpack.c.b16 %v793, %v790
      %v836 = vpack.c.b16 %v797, %v794
      %v837 = vpack.c.b16 %v798, %v795
      %v838 = vpack.c.b16 %v799, %v796
      %v839 = vpack.c.b16 %v803, %v800
      %v840 = vpack.c.b16 %v804, %v801
      %v841 = vpack.c.b16 %v805, %v802
      %v842 = vpack.c.b16 %v809, %v806
      %v843 = vpack.c.b16 %v810, %v807
      %v844 = vpack.c.b16 %v811, %v808
      %v845 = vpack.c.b16 %v815, %v812
      %v846 = vpack.c.b16 %v816, %v813
      %v847 = vpack.c.b16 %v817, %v814
      %v848 = vpack.c.b16 %v821, %v818
      %v849 = vpack.c.b16 %v822, %v819
      %v850 = vpack.c.b16 %v823, %v820
      %v851 = vpack.c.b16 %v827, %v824
      %v852 = vpack.c.b16 %v828, %v825
      %v853 = vpack.c.b16 %v829, %v826
      %878 = vmatprep.subr.bf16.mxu0 %v831
      %879 = vmatpush1.bf16.msra.mxu0 %v830
      %880 = vmatprep.subr.bf16.mxu0 %v834
      %881 = vmatpush1.bf16.msra.mxu0 %v833
      %882 = vmatprep.subr.bf16.mxu0 %v837
      %883 = vmatpush1.bf16.msra.mxu0 %v836
      %884 = vmatprep.subr.bf16.mxu0 %v840
      %885 = vmatpush1.bf16.msra.mxu0 %v839
      %886 = vmatprep.subr.bf16.mxu0 %v843
      %887 = vmatpush1.bf16.msra.mxu0 %v842
      %888 = vmatprep.subr.bf16.mxu0 %v846
      %889 = vmatpush1.bf16.msra.mxu0 %v845
      %890 = vmatprep.subr.bf16.mxu0 %v849
      %891 = vmatpush1.bf16.msra.mxu0 %v848
      %892 = vmatprep.subr.bf16.mxu0 %v852
      %893 = vmatpush1.bf16.msra.mxu0 %v851
      %894 = vmatprep.subr.bf16.mxu0 0
      %895 = vmatpush1.bf16.msra.mxu0 0
      %896 = vmatprep.subr.bf16.mxu0 0
      %897 = vmatpush1.bf16.msra.mxu0 0
      %898 = vmatprep.subr.bf16.mxu0 0
      %899 = vmatpush1.bf16.msra.mxu0 0
      %900 = vmatprep.subr.bf16.mxu0 0
      %901 = vmatpush1.bf16.msra.mxu0 0
      %902 = vmatprep.subr.bf16.mxu0 0
      %903 = vmatpush1.bf16.msra.mxu0 0
      %904 = vmatprep.subr.bf16.mxu0 0
      %905 = vmatpush1.bf16.msra.mxu0 0
      %906 = vmatprep.subr.bf16.mxu0 0
      %907 = vmatpush1.bf16.msra.mxu0 0
      %908 = vmatprep.subr.bf16.mxu0 0
      %909 = vmatpush1.bf16.msra.mxu0 0
      %910 = vmatprep.mubr.bf16.mxu0 0
      %911 = vmatmul.mubr.bf16.gmra.mrb[0].mxu0 %v733
      %v912 = vpop.f32.mrb[0].mxu0
      %v913 = vadd.f32 %v738, %v912
      %v914 = vpop.f32.mrb[0].mxu0
      %v915 = vadd.f32 %v742, %v914
      %v916 = vpop.f32.mrb[0].mxu0
      %v917 = vadd.f32 %v738, %v916
      %v918 = vpop.f32.mrb[0].mxu0
      %v919 = vadd.f32 %v742, %v918
      %920 = vdwg.mxu0
      %921 = vmatprep.subr.bf16.mxu0 0
      %922 = vmatpush1.bf16.msra.mxu0 %v832
      %923 = vmatprep.subr.bf16.mxu0 0
      %924 = vmatpush1.bf16.msra.mxu0 %v835
      %925 = vmatprep.subr.bf16.mxu0 0
      %926 = vmatpush1.bf16.msra.mxu0 %v838
      %927 = vmatprep.subr.bf16.mxu0 0
      %928 = vmatpush1.bf16.msra.mxu0 %v841
      %929 = vmatprep.subr.bf16.mxu0 0
      %930 = vmatpush1.bf16.msra.mxu0 %v844
      %931 = vmatprep.subr.bf16.mxu0 0
      %932 = vmatpush1.bf16.msra.mxu0 %v847
      %933 = vmatprep.subr.bf16.mxu0 0
      %934 = vmatpush1.bf16.msra.mxu0 %v850
      %935 = vmatprep.subr.bf16.mxu0 0
      %936 = vmatpush1.bf16.msra.mxu0 %v853
      %937 = vmatprep.subr.bf16.mxu0 0
      %938 = vmatpush1.bf16.msra.mxu0 0
      %939 = vmatprep.subr.bf16.mxu0 0
      %940 = vmatpush1.bf16.msra.mxu0 0
      %941 = vmatprep.subr.bf16.mxu0 0
      %942 = vmatpush1.bf16.msra.mxu0 0
      %943 = vmatprep.subr.bf16.mxu0 0
      %944 = vmatpush1.bf16.msra.mxu0 0
      %945 = vmatprep.subr.bf16.mxu0 0
      %946 = vmatpush1.bf16.msra.mxu0 0
      %947 = vmatprep.subr.bf16.mxu0 0
      %948 = vmatpush1.bf16.msra.mxu0 0
      %949 = vmatprep.subr.bf16.mxu0 0
      %950 = vmatpush1.bf16.msra.mxu0 0
      %951 = vmatprep.subr.bf16.mxu0 0
      %952 = vmatpush1.bf16.msra.mxu0 0
      %953 = vmatprep.mubr.bf16.mxu0 0
      %954 = vmatmul.mubr.bf16.gmra.mrb[0].mxu0 %v733
      %v955 = vpop.f32.mrb[0].mxu0
      %v956 = vadd.f32 %v746, %v955
      %v957 = vpop.f32.mrb[0].mxu0
      %v958 = vpop.f32.mrb[0].mxu0
      %v959 = vadd.f32 %v746, %v958
      %v960 = vpop.f32.mrb[0].mxu0
      %961 = vdwg.mxu0
      %v962 = vpack.c.bf16 %v913, %v913
      %v963 = vpack.c.bf16 %v917, %v917
      %v964 = vpack.c.bf16 %v915, %v915
      %v965 = vpack.c.bf16 %v919, %v919
      %v966 = vpack.c.bf16 %v956, %v956
      %v967 = vpack.c.bf16 %v959, %v959
      %vm968 = vcmask 261120
      %v970 = vsel %vm968, %v962, 0
      %v973 = vsel %vm968, %v964, 0
      %975 = vmatprep.subr.bf16.mxu0 0
      %976 = vmatpush1.bf16.xpose.msra.mxu0 %v973
      %977 = vmatprep.subr.bf16.mxu0 0
      %978 = vmatpush1.bf16.xpose.msra.mxu0 0
      %979 = vmatprep.subr.bf16.mxu0 0
      %980 = vmatpush1.bf16.xpose.msra.mxu0 0
      %981 = vmatprep.subr.bf16.mxu0 0
      %982 = vmatpush1.bf16.xpose.msra.mxu0 0
      %983 = vmatprep.subr.bf16.mxu0 0
      %984 = vmatpush1.bf16.xpose.msra.mxu0 0
      %985 = vmatprep.subr.bf16.mxu0 0
      %986 = vmatpush1.bf16.xpose.msra.mxu0 0
      %987 = vmatprep.subr.bf16.mxu0 0
      %988 = vmatpush1.bf16.xpose.msra.mxu0 0
      %989 = vmatprep.subr.bf16.mxu0 0
      %990 = vmatpush1.bf16.xpose.msra.mxu0 0
      %991 = vmatprep.subr.bf16.mxu0 0
      %992 = vmatpush1.bf16.xpose.msra.mxu0 0
      %993 = vmatprep.subr.bf16.mxu0 0
      %994 = vmatpush1.bf16.xpose.msra.mxu0 0
      %995 = vmatprep.subr.bf16.mxu0 0
      %996 = vmatpush1.bf16.xpose.msra.mxu0 0
      %997 = vmatprep.subr.bf16.mxu0 0
      %998 = vmatpush1.bf16.xpose.msra.mxu0 0
      %999 = vmatprep.subr.bf16.mxu0 0
      %1000 = vmatpush1.bf16.xpose.msra.mxu0 0
      %1001 = vmatprep.subr.bf16.mxu0 0
      %1002 = vmatpush1.bf16.xpose.msra.mxu0 0
      %1003 = vmatprep.subr.bf16.mxu0 0
      %1004 = vmatpush1.bf16.xpose.msra.mxu0 0
      %1005 = vmatprep.subr.bf16.mxu0 0
      %1006 = vmatpush1.bf16.xpose.msra.mxu0 0
      %1007 = vmatprep.mubr.bf16.mxu0 0
      %1008 = vmatmul.mubr.bf16.gmra.mrb[0].mxu0 %v970
      %v1009 = vpop.f32.mrb[0].mxu0
      %v1010 = vadd.f32 0.0, %v1009
      %v1011 = vpop.f32.mrb[0].mxu0
      %v1012 = vpop.f32.mrb[0].mxu0
      %v1013 = vpop.f32.mrb[0].mxu0
      %1014 = vdwg.mxu0
      %v1016 = vsel %vm968, %v963, 0
      %v1019 = vsel %vm968, %v965, 0
      %1021 = vmatprep.subr.bf16.mxu0 0
      %1022 = vmatpush1.bf16.xpose.msra.mxu0 %v1019
      %1023 = vmatprep.subr.bf16.mxu0 0
      %1024 = vmatpush1.bf16.xpose.msra.mxu0 0
      %1025 = vmatprep.subr.bf16.mxu0 0
      %1026 = vmatpush1.bf16.xpose.msra.mxu0 0
      %1027 = vmatprep.subr.bf16.mxu0 0
      %1028 = vmatpush1.bf16.xpose.msra.mxu0 0
      %1029 = vmatprep.subr.bf16.mxu0 0
      %1030 = vmatpush1.bf16.xpose.msra.mxu0 0
      %1031 = vmatprep.subr.bf16.mxu0 0
      %1032 = vmatpush1.bf16.xpose.msra.mxu0 0
      %1033 = vmatprep.subr.bf16.mxu0 0
      %1034 = vmatpush1.bf16.xpose.msra.mxu0 0
      %1035 = vmatprep.subr.bf16.mxu0 0
      %1036 = vmatpush1.bf16.xpose.msra.mxu0 0
      %1037 = vmatprep.subr.bf16.mxu0 0
      %1038 = vmatpush1.bf16.xpose.msra.mxu0 0
      %1039 = vmatprep.subr.bf16.mxu0 0
      %1040 = vmatpush1.bf16.xpose.msra.mxu0 0
      %1041 = vmatprep.subr.bf16.mxu0 0
      %1042 = vmatpush1.bf16.xpose.msra.mxu0 0
      %1043 = vmatprep.subr.bf16.mxu0 0
      %1044 = vmatpush1.bf16.xpose.msra.mxu0 0
      %1045 = vmatprep.subr.bf16.mxu0 0
      %1046 = vmatpush1.bf16.xpose.msra.mxu0 0
      %1047 = vmatprep.subr.bf16.mxu0 0
      %1048 = vmatpush1.bf16.xpose.msra.mxu0 0
      %1049 = vmatprep.subr.bf16.mxu0 0
      %1050 = vmatpush1.bf16.xpose.msra.mxu0 0
      %1051 = vmatprep.subr.bf16.mxu0 0
      %1052 = vmatpush1.bf16.xpose.msra.mxu0 0
      %1053 = vmatprep.mubr.bf16.mxu0 0
      %1054 = vmatmul.mubr.bf16.gmra.mrb[0].mxu0 %v1016
      %v1055 = vpop.f32.mrb[0].mxu0
      %v1056 = vadd.f32 0.0, %v1055
      %v1057 = vpop.f32.mrb[0].mxu0
      %v1058 = vpop.f32.mrb[0].mxu0
      %v1059 = vpop.f32.mrb[0].mxu0
      %1060 = vdwg.mxu0
      %v1061 = vmul.f32 %v1010, 0.17677669
      %v1062 = vmul.f32 %v1056, 0.17677669
      %v1065 = vlaneseq
      %v1066 = vshrl.u32 %v1065, 7
      %v1067 = vsub.s32 0, %v1066
      %v1068 = vrot.slane %v629, %v1067
      %v1069 = vlaneseq
      %v1070 = vshrl.u32 %v1069, 7
      %v1071 = vsub.s32 0, %v1070
      %v1072 = vrot.slane %v630, %v1071
      %v1075 = vadd.f32 %v1061, %v1068
      %v1076 = vadd.f32 %v1062, %v1072
      %vm1077 = vcmask 64512
      %v1078 = vsel %vm1077, %v1075, -inf
      %1079 = vmax.xlane.f32.xlu0 %v1078
      %v1080 = vpop.xlane.xlu0 %1079
      %v1081 = vsel %vm1077, %v1076, -inf
      %1082 = vmax.xlane.f32.xlu0 %v1081
      %v1083 = vpop.xlane.xlu0 %1082
      %v1084 = vsub.f32 %v1075, %v1080
      %v1085 = vsub.f32 %v1076, %v1083
      %v1086 = vmul.f32 %v1084, 1.442695
      %v1087 = vpow.pop %v1086
      %v1088 = vmul.f32 %v1085, 1.442695
      %v1089 = vpow.pop %v1088
      %v1090 = vsel %vm1077, %v1087, 0.0
      %1091 = vadd.xlane.f32.xlu0 %v1090
      %v1092 = vpop.xlane.xlu0 %1091
      %v1093 = vsel %vm1077, %v1089, 0.0
      %1094 = vadd.xlane.f32.xlu0 %v1093
      %v1095 = vpop.xlane.xlu0 %1094
      %v1096 = vrcp.pop %v1092
      %v1097 = vrcp.pop %v1095
      %v1098 = vmul.f32 %v1087, %v1096
      %v1099 = vmul.f32 %v1089, %v1097
      %v1100 = vpack.c.bf16 %v1098, %v1098
      %v1101 = vpack.c.bf16 %v1099, %v1099
      %v1103 = vsel %vm1077, %v1100, 0
      %vm1105 = vcmask 1043456
      %v1107 = vsel %vm1105, %v966, 0
      %1109 = vmatprep.subr.bf16.mxu0 0
      %1110 = vmatpush1.bf16.msra.mxu0 %v1107
      %1111 = vmatprep.subr.bf16.mxu0 0
      %1112 = vmatpush1.bf16.msra.mxu0 0
      %1113 = vmatprep.subr.bf16.mxu0 0
      %1114 = vmatpush1.bf16.msra.mxu0 0
      %1115 = vmatprep.subr.bf16.mxu0 0
      %1116 = vmatpush1.bf16.msra.mxu0 0
      %1117 = vmatprep.subr.bf16.mxu0 0
      %1118 = vmatpush1.bf16.msra.mxu0 0
      %1119 = vmatprep.subr.bf16.mxu0 0
      %1120 = vmatpush1.bf16.msra.mxu0 0
      %1121 = vmatprep.subr.bf16.mxu0 0
      %1122 = vmatpush1.bf16.msra.mxu0 0
      %1123 = vmatprep.subr.bf16.mxu0 0
      %1124 = vmatpush1.bf16.msra.mxu0 0
      %1125 = vmatprep.subr.bf16.mxu0 0
      %1126 = vmatpush1.bf16.msra.mxu0 0
      %1127 = vmatprep.subr.bf16.mxu0 0
      %1128 = vmatpush1.bf16.msra.mxu0 0
      %1129 = vmatprep.subr.bf16.mxu0 0
      %1130 = vmatpush1.bf16.msra.mxu0 0
      %1131 = vmatprep.subr.bf16.mxu0 0
      %1132 = vmatpush1.bf16.msra.mxu0 0
      %1133 = vmatprep.subr.bf16.mxu0 0
      %1134 = vmatpush1.bf16.msra.mxu0 0
      %1135 = vmatprep.subr.bf16.mxu0 0
      %1136 = vmatpush1.bf16.msra.mxu0 0
      %1137 = vmatprep.subr.bf16.mxu0 0
      %1138 = vmatpush1.bf16.msra.mxu0 0
      %1139 = vmatprep.subr.bf16.mxu0 0
      %1140 = vmatpush1.bf16.msra.mxu0 0
      %1141 = vmatprep.mubr.bf16.mxu0 0
      %1142 = vmatmul.mubr.bf16.gmra.mrb[0].mxu0 %v1103
      %v1143 = vpop.f32.mrb[0].mxu0
      %v1144 = vadd.f32 0.0, %v1143
      %v1145 = vpop.f32.mrb[0].mxu0
      %v1146 = vpop.f32.mrb[0].mxu0
      %v1147 = vpop.f32.mrb[0].mxu0
      %1148 = vdwg.mxu0
      %v1150 = vsel %vm1077, %v1101, 0
      %v1153 = vsel %vm1105, %v967, 0
      %1155 = vmatprep.subr.bf16.mxu0 0
      %1156 = vmatpush1.bf16.msra.mxu0 %v1153
      %1157 = vmatprep.subr.bf16.mxu0 0
      %1158 = vmatpush1.bf16.msra.mxu0 0
      %1159 = vmatprep.subr.bf16.mxu0 0
      %1160 = vmatpush1.bf16.msra.mxu0 0
      %1161 = vmatprep.subr.bf16.mxu0 0
      %1162 = vmatpush1.bf16.msra.mxu0 0
      %1163 = vmatprep.subr.bf16.mxu0 0
      %1164 = vmatpush1.bf16.msra.mxu0 0
      %1165 = vmatprep.subr.bf16.mxu0 0
      %1166 = vmatpush1.bf16.msra.mxu0 0
      %1167 = vmatprep.subr.bf16.mxu0 0
      %1168 = vmatpush1.bf16.msra.mxu0 0
      %1169 = vmatprep.subr.bf16.mxu0 0
      %1170 = vmatpush1.bf16.msra.mxu0 0
      %1171 = vmatprep.subr.bf16.mxu0 0
      %1172 = vmatpush1.bf16.msra.mxu0 0
      %1173 = vmatprep.subr.bf16.mxu0 0
      %1174 = vmatpush1.bf16.msra.mxu0 0
      %1175 = vmatprep.subr.bf16.mxu0 0
      %1176 = vmatpush1.bf16.msra.mxu0 0
      %1177 = vmatprep.subr.bf16.mxu0 0
      %1178 = vmatpush1.bf16.msra.mxu0 0
      %1179 = vmatprep.subr.bf16.mxu0 0
      %1180 = vmatpush1.bf16.msra.mxu0 0
      %1181 = vmatprep.subr.bf16.mxu0 0
      %1182 = vmatpush1.bf16.msra.mxu0 0
      %1183 = vmatprep.subr.bf16.mxu0 0
      %1184 = vmatpush1.bf16.msra.mxu0 0
      %1185 = vmatprep.subr.bf16.mxu0 0
      %1186 = vmatpush1.bf16.msra.mxu0 0
      %1187 = vmatprep.mubr.bf16.mxu0 0
      %1188 = vmatmul.mubr.bf16.gmra.mrb[0].mxu0 %v1150
      %v1189 = vpop.f32.mrb[0].mxu0
      %v1190 = vadd.f32 0.0, %v1189
      %v1191 = vpop.f32.mrb[0].mxu0
      %v1192 = vpop.f32.mrb[0].mxu0
      %v1193 = vpop.f32.mrb[0].mxu0
      %1194 = vdwg.mxu0
      %1196 = vrot.lane.b32.xlu0 %v962, 96
      %v1197 = vpop.permute.xlu0 %1196
      %1199 = vrot.lane.b32.xlu0 %v964, 96
      %v1200 = vpop.permute.xlu0 %1199
      %v1202 = vsel %vm968, %v1197, 0
      %v1205 = vsel %vm968, %v1200, 0
      %1207 = vmatprep.subr.bf16.mxu0 0
      %1208 = vmatpush1.bf16.xpose.msra.mxu0 %v1205
      %1209 = vmatprep.subr.bf16.mxu0 0
      %1210 = vmatpush1.bf16.xpose.msra.mxu0 0
      %1211 = vmatprep.subr.bf16.mxu0 0
      %1212 = vmatpush1.bf16.xpose.msra.mxu0 0
      %1213 = vmatprep.subr.bf16.mxu0 0
      %1214 = vmatpush1.bf16.xpose.msra.mxu0 0
      %1215 = vmatprep.subr.bf16.mxu0 0
      %1216 = vmatpush1.bf16.xpose.msra.mxu0 0
      %1217 = vmatprep.subr.bf16.mxu0 0
      %1218 = vmatpush1.bf16.xpose.msra.mxu0 0
      %1219 = vmatprep.subr.bf16.mxu0 0
      %1220 = vmatpush1.bf16.xpose.msra.mxu0 0
      %1221 = vmatprep.subr.bf16.mxu0 0
      %1222 = vmatpush1.bf16.xpose.msra.mxu0 0
      %1223 = vmatprep.subr.bf16.mxu0 0
      %1224 = vmatpush1.bf16.xpose.msra.mxu0 0
      %1225 = vmatprep.subr.bf16.mxu0 0
      %1226 = vmatpush1.bf16.xpose.msra.mxu0 0
      %1227 = vmatprep.subr.bf16.mxu0 0
      %1228 = vmatpush1.bf16.xpose.msra.mxu0 0
      %1229 = vmatprep.subr.bf16.mxu0 0
      %1230 = vmatpush1.bf16.xpose.msra.mxu0 0
      %1231 = vmatprep.subr.bf16.mxu0 0
      %1232 = vmatpush1.bf16.xpose.msra.mxu0 0
      %1233 = vmatprep.subr.bf16.mxu0 0
      %1234 = vmatpush1.bf16.xpose.msra.mxu0 0
      %1235 = vmatprep.subr.bf16.mxu0 0
      %1236 = vmatpush1.bf16.xpose.msra.mxu0 0
      %1237 = vmatprep.subr.bf16.mxu0 0
      %1238 = vmatpush1.bf16.xpose.msra.mxu0 0
      %1239 = vmatprep.mubr.bf16.mxu0 0
      %1240 = vmatmul.mubr.bf16.gmra.mrb[0].mxu0 %v1202
      %v1241 = vpop.f32.mrb[0].mxu0
      %v1242 = vadd.f32 0.0, %v1241
      %v1243 = vpop.f32.mrb[0].mxu0
      %v1244 = vpop.f32.mrb[0].mxu0
      %v1245 = vpop.f32.mrb[0].mxu0
      %1246 = vdwg.mxu0
      %1248 = vrot.lane.b32.xlu0 %v963, 96
      %v1249 = vpop.permute.xlu0 %1248
      %1251 = vrot.lane.b32.xlu0 %v965, 96
      %v1252 = vpop.permute.xlu0 %1251
      %v1254 = vsel %vm968, %v1249, 0
      %v1257 = vsel %vm968, %v1252, 0
      %1259 = vmatprep.subr.bf16.mxu0 0
      %1260 = vmatpush1.bf16.xpose.msra.mxu0 %v1257
      %1261 = vmatprep.subr.bf16.mxu0 0
      %1262 = vmatpush1.bf16.xpose.msra.mxu0 0
      %1263 = vmatprep.subr.bf16.mxu0 0
      %1264 = vmatpush1.bf16.xpose.msra.mxu0 0
      %1265 = vmatprep.subr.bf16.mxu0 0
      %1266 = vmatpush1.bf16.xpose.msra.mxu0 0
      %1267 = vmatprep.subr.bf16.mxu0 0
      %1268 = vmatpush1.bf16.xpose.msra.mxu0 0
      %1269 = vmatprep.subr.bf16.mxu0 0
      %1270 = vmatpush1.bf16.xpose.msra.mxu0 0
      %1271 = vmatprep.subr.bf16.mxu0 0
      %1272 = vmatpush1.bf16.xpose.msra.mxu0 0
      %1273 = vmatprep.subr.bf16.mxu0 0
      %1274 = vmatpush1.bf16.xpose.msra.mxu0 0
      %1275 = vmatprep.subr.bf16.mxu0 0
      %1276 = vmatpush1.bf16.xpose.msra.mxu0 0
      %1277 = vmatprep.subr.bf16.mxu0 0
      %1278 = vmatpush1.bf16.xpose.msra.mxu0 0
      %1279 = vmatprep.subr.bf16.mxu0 0
      %1280 = vmatpush1.bf16.xpose.msra.mxu0 0
      %1281 = vmatprep.subr.bf16.mxu0 0
      %1282 = vmatpush1.bf16.xpose.msra.mxu0 0
      %1283 = vmatprep.subr.bf16.mxu0 0
      %1284 = vmatpush1.bf16.xpose.msra.mxu0 0
      %1285 = vmatprep.subr.bf16.mxu0 0
      %1286 = vmatpush1.bf16.xpose.msra.mxu0 0
      %1287 = vmatprep.subr.bf16.mxu0 0
      %1288 = vmatpush1.bf16.xpose.msra.mxu0 0
      %1289 = vmatprep.subr.bf16.mxu0 0
      %1290 = vmatpush1.bf16.xpose.msra.mxu0 0
      %1291 = vmatprep.mubr.bf16.mxu0 0
      %1292 = vmatmul.mubr.bf16.gmra.mrb[0].mxu0 %v1254
      %v1293 = vpop.f32.mrb[0].mxu0
      %v1294 = vadd.f32 0.0, %v1293
      %v1295 = vpop.f32.mrb[0].mxu0
      %v1296 = vpop.f32.mrb[0].mxu0
      %v1297 = vpop.f32.mrb[0].mxu0
      %1298 = vdwg.mxu0
      %v1299 = vmul.f32 %v1242, 0.17677669
      %v1300 = vmul.f32 %v1294, 0.17677669
      %v1301 = vadd.f32 %v1299, %v1068
      %v1302 = vadd.f32 %v1300, %v1072
      %v1303 = vsel %vm1077, %v1301, -inf
      %1304 = vmax.xlane.f32.xlu0 %v1303
      %v1305 = vpop.xlane.xlu0 %1304
      %v1306 = vsel %vm1077, %v1302, -inf
      %1307 = vmax.xlane.f32.xlu0 %v1306
      %v1308 = vpop.xlane.xlu0 %1307
      %v1309 = vsub.f32 %v1301, %v1305
      %v1310 = vsub.f32 %v1302, %v1308
      %v1311 = vmul.f32 %v1309, 1.442695
      %v1312 = vpow.pop %v1311
      %v1313 = vmul.f32 %v1310, 1.442695
      %v1314 = vpow.pop %v1313
      %v1315 = vsel %vm1077, %v1312, 0.0
      %1316 = vadd.xlane.f32.xlu0 %v1315
      %v1317 = vpop.xlane.xlu0 %1316
      %v1318 = vsel %vm1077, %v1314, 0.0
      %1319 = vadd.xlane.f32.xlu0 %v1318
      %v1320 = vpop.xlane.xlu0 %1319
      %v1321 = vrcp.pop %v1317
      %v1322 = vrcp.pop %v1320
      %v1323 = vmul.f32 %v1312, %v1321
      %v1324 = vmul.f32 %v1314, %v1322
      %v1325 = vpack.c.bf16 %v1323, %v1323
      %v1326 = vpack.c.bf16 %v1324, %v1324
      %1328 = vrot.lane.b32.xlu0 %v966, 96
      %v1329 = vpop.permute.xlu0 %1328
      %v1331 = vsel %vm1077, %v1325, 0
      %v1334 = vsel %vm1105, %v1329, 0
      %1336 = vmatprep.subr.bf16.mxu0 0
      %1337 = vmatpush1.bf16.msra.mxu0 %v1334
      %1338 = vmatprep.subr.bf16.mxu0 0
      %1339 = vmatpush1.bf16.msra.mxu0 0
      %1340 = vmatprep.subr.bf16.mxu0 0
      %1341 = vmatpush1.bf16.msra.mxu0 0
      %1342 = vmatprep.subr.bf16.mxu0 0
      %1343 = vmatpush1.bf16.msra.mxu0 0
      %1344 = vmatprep.subr.bf16.mxu0 0
      %1345 = vmatpush1.bf16.msra.mxu0 0
      %1346 = vmatprep.subr.bf16.mxu0 0
      %1347 = vmatpush1.bf16.msra.mxu0 0
      %1348 = vmatprep.subr.bf16.mxu0 0
      %1349 = vmatpush1.bf16.msra.mxu0 0
      %1350 = vmatprep.subr.bf16.mxu0 0
      %1351 = vmatpush1.bf16.msra.mxu0 0
      %1352 = vmatprep.subr.bf16.mxu0 0
      %1353 = vmatpush1.bf16.msra.mxu0 0
      %1354 = vmatprep.subr.bf16.mxu0 0
      %1355 = vmatpush1.bf16.msra.mxu0 0
      %1356 = vmatprep.subr.bf16.mxu0 0
      %1357 = vmatpush1.bf16.msra.mxu0 0
      %1358 = vmatprep.subr.bf16.mxu0 0
      %1359 = vmatpush1.bf16.msra.mxu0 0
      %1360 = vmatprep.subr.bf16.mxu0 0
      %1361 = vmatpush1.bf16.msra.mxu0 0
      %1362 = vmatprep.subr.bf16.mxu0 0
      %1363 = vmatpush1.bf16.msra.mxu0 0
      %1364 = vmatprep.subr.bf16.mxu0 0
      %1365 = vmatpush1.bf16.msra.mxu0 0
      %1366 = vmatprep.subr.bf16.mxu0 0
      %1367 = vmatpush1.bf16.msra.mxu0 0
      %1368 = vmatprep.mubr.bf16.mxu0 0
      %1369 = vmatmul.mubr.bf16.gmra.mrb[0].mxu0 %v1331
      %v1370 = vpop.f32.mrb[0].mxu0
      %v1371 = vadd.f32 0.0, %v1370
      %v1372 = vpop.f32.mrb[0].mxu0
      %v1373 = vpop.f32.mrb[0].mxu0
      %v1374 = vpop.f32.mrb[0].mxu0
      %1375 = vdwg.mxu0
      %1377 = vrot.lane.b32.xlu0 %v967, 96
      %v1378 = vpop.permute.xlu0 %1377
      %v1380 = vsel %vm1077, %v1326, 0
      %v1383 = vsel %vm1105, %v1378, 0
      %1385 = vmatprep.subr.bf16.mxu0 0
      %1386 = vmatpush1.bf16.msra.mxu0 %v1383
      %1387 = vmatprep.subr.bf16.mxu0 0
      %1388 = vmatpush1.bf16.msra.mxu0 0
      %1389 = vmatprep.subr.bf16.mxu0 0
      %1390 = vmatpush1.bf16.msra.mxu0 0
      %1391 = vmatprep.subr.bf16.mxu0 0
      %1392 = vmatpush1.bf16.msra.mxu0 0
      %1393 = vmatprep.subr.bf16.mxu0 0
      %1394 = vmatpush1.bf16.msra.mxu0 0
      %1395 = vmatprep.subr.bf16.mxu0 0
      %1396 = vmatpush1.bf16.msra.mxu0 0
      %1397 = vmatprep.subr.bf16.mxu0 0
      %1398 = vmatpush1.bf16.msra.mxu0 0
      %1399 = vmatprep.subr.bf16.mxu0 0
      %1400 = vmatpush1.bf16.msra.mxu0 0
      %1401 = vmatprep.subr.bf16.mxu0 0
      %1402 = vmatpush1.bf16.msra.mxu0 0
      %1403 = vmatprep.subr.bf16.mxu0 0
      %1404 = vmatpush1.bf16.msra.mxu0 0
      %1405 = vmatprep.subr.bf16.mxu0 0
      %1406 = vmatpush1.bf16.msra.mxu0 0
      %1407 = vmatprep.subr.bf16.mxu0 0
      %1408 = vmatpush1.bf16.msra.mxu0 0
      %1409 = vmatprep.subr.bf16.mxu0 0
      %1410 = vmatpush1.bf16.msra.mxu0 0
      %1411 = vmatprep.subr.bf16.mxu0 0
      %1412 = vmatpush1.bf16.msra.mxu0 0
      %1413 = vmatprep.subr.bf16.mxu0 0
      %1414 = vmatpush1.bf16.msra.mxu0 0
      %1415 = vmatprep.subr.bf16.mxu0 0
      %1416 = vmatpush1.bf16.msra.mxu0 0
      %1417 = vmatprep.mubr.bf16.mxu0 0
      %1418 = vmatmul.mubr.bf16.gmra.mrb[0].mxu0 %v1380
      %v1419 = vpop.f32.mrb[0].mxu0
      %v1420 = vadd.f32 0.0, %v1419
      %v1421 = vpop.f32.mrb[0].mxu0
      %v1422 = vpop.f32.mrb[0].mxu0
      %v1423 = vpop.f32.mrb[0].mxu0
      %1424 = vdwg.mxu0
      %1425 = vrot.lane.b32.xlu0 %v962, 64
      %v1426 = vpop.permute.xlu0 %1425
      %1427 = vrot.lane.b32.xlu0 %v964, 64
      %v1428 = vpop.permute.xlu0 %1427
      %v1430 = vsel %vm968, %v1426, 0
      %v1433 = vsel %vm968, %v1428, 0
      %1435 = vmatprep.subr.bf16.mxu0 0
      %1436 = vmatpush1.bf16.xpose.msra.mxu0 %v1433
      %1437 = vmatprep.subr.bf16.mxu0 0
      %1438 = vmatpush1.bf16.xpose.msra.mxu0 0
      %1439 = vmatprep.subr.bf16.mxu0 0
      %1440 = vmatpush1.bf16.xpose.msra.mxu0 0
      %1441 = vmatprep.subr.bf16.mxu0 0
      %1442 = vmatpush1.bf16.xpose.msra.mxu0 0
      %1443 = vmatprep.subr.bf16.mxu0 0
      %1444 = vmatpush1.bf16.xpose.msra.mxu0 0
      %1445 = vmatprep.subr.bf16.mxu0 0
      %1446 = vmatpush1.bf16.xpose.msra.mxu0 0
      %1447 = vmatprep.subr.bf16.mxu0 0
      %1448 = vmatpush1.bf16.xpose.msra.mxu0 0
      %1449 = vmatprep.subr.bf16.mxu0 0
      %1450 = vmatpush1.bf16.xpose.msra.mxu0 0
      %1451 = vmatprep.subr.bf16.mxu0 0
      %1452 = vmatpush1.bf16.xpose.msra.mxu0 0
      %1453 = vmatprep.subr.bf16.mxu0 0
      %1454 = vmatpush1.bf16.xpose.msra.mxu0 0
      %1455 = vmatprep.subr.bf16.mxu0 0
      %1456 = vmatpush1.bf16.xpose.msra.mxu0 0
      %1457 = vmatprep.subr.bf16.mxu0 0
      %1458 = vmatpush1.bf16.xpose.msra.mxu0 0
      %1459 = vmatprep.subr.bf16.mxu0 0
      %1460 = vmatpush1.bf16.xpose.msra.mxu0 0
      %1461 = vmatprep.subr.bf16.mxu0 0
      %1462 = vmatpush1.bf16.xpose.msra.mxu0 0
      %1463 = vmatprep.subr.bf16.mxu0 0
      %1464 = vmatpush1.bf16.xpose.msra.mxu0 0
      %1465 = vmatprep.subr.bf16.mxu0 0
      %1466 = vmatpush1.bf16.xpose.msra.mxu0 0
      %1467 = vmatprep.mubr.bf16.mxu0 0
      %1468 = vmatmul.mubr.bf16.gmra.mrb[0].mxu0 %v1430
      %v1469 = vpop.f32.mrb[0].mxu0
      %v1470 = vadd.f32 0.0, %v1469
      %v1471 = vpop.f32.mrb[0].mxu0
      %v1472 = vpop.f32.mrb[0].mxu0
      %v1473 = vpop.f32.mrb[0].mxu0
      %1474 = vdwg.mxu0
      %1475 = vrot.lane.b32.xlu0 %v963, 64
      %v1476 = vpop.permute.xlu0 %1475
      %1477 = vrot.lane.b32.xlu0 %v965, 64
      %v1478 = vpop.permute.xlu0 %1477
      %v1480 = vsel %vm968, %v1476, 0
      %v1483 = vsel %vm968, %v1478, 0
      %1485 = vmatprep.subr.bf16.mxu0 0
      %1486 = vmatpush1.bf16.xpose.msra.mxu0 %v1483
      %1487 = vmatprep.subr.bf16.mxu0 0
      %1488 = vmatpush1.bf16.xpose.msra.mxu0 0
      %1489 = vmatprep.subr.bf16.mxu0 0
      %1490 = vmatpush1.bf16.xpose.msra.mxu0 0
      %1491 = vmatprep.subr.bf16.mxu0 0
      %1492 = vmatpush1.bf16.xpose.msra.mxu0 0
      %1493 = vmatprep.subr.bf16.mxu0 0
      %1494 = vmatpush1.bf16.xpose.msra.mxu0 0
      %1495 = vmatprep.subr.bf16.mxu0 0
      %1496 = vmatpush1.bf16.xpose.msra.mxu0 0
      %1497 = vmatprep.subr.bf16.mxu0 0
      %1498 = vmatpush1.bf16.xpose.msra.mxu0 0
      %1499 = vmatprep.subr.bf16.mxu0 0
      %1500 = vmatpush1.bf16.xpose.msra.mxu0 0
      %1501 = vmatprep.subr.bf16.mxu0 0
      %1502 = vmatpush1.bf16.xpose.msra.mxu0 0
      %1503 = vmatprep.subr.bf16.mxu0 0
      %1504 = vmatpush1.bf16.xpose.msra.mxu0 0
      %1505 = vmatprep.subr.bf16.mxu0 0
      %1506 = vmatpush1.bf16.xpose.msra.mxu0 0
      %1507 = vmatprep.subr.bf16.mxu0 0
      %1508 = vmatpush1.bf16.xpose.msra.mxu0 0
      %1509 = vmatprep.subr.bf16.mxu0 0
      %1510 = vmatpush1.bf16.xpose.msra.mxu0 0
      %1511 = vmatprep.subr.bf16.mxu0 0
      %1512 = vmatpush1.bf16.xpose.msra.mxu0 0
      %1513 = vmatprep.subr.bf16.mxu0 0
      %1514 = vmatpush1.bf16.xpose.msra.mxu0 0
      %1515 = vmatprep.subr.bf16.mxu0 0
      %1516 = vmatpush1.bf16.xpose.msra.mxu0 0
      %1517 = vmatprep.mubr.bf16.mxu0 0
      %1518 = vmatmul.mubr.bf16.gmra.mrb[0].mxu0 %v1480
      %v1519 = vpop.f32.mrb[0].mxu0
      %v1520 = vadd.f32 0.0, %v1519
      %v1521 = vpop.f32.mrb[0].mxu0
      %v1522 = vpop.f32.mrb[0].mxu0
      %v1523 = vpop.f32.mrb[0].mxu0
      %1524 = vdwg.mxu0
      %v1525 = vmul.f32 %v1470, 0.17677669
      %v1526 = vmul.f32 %v1520, 0.17677669
      %v1527 = vadd.f32 %v1525, %v1068
      %v1528 = vadd.f32 %v1526, %v1072
      %v1529 = vsel %vm1077, %v1527, -inf
      %1530 = vmax.xlane.f32.xlu0 %v1529
      %v1531 = vpop.xlane.xlu0 %1530
      %v1532 = vsel %vm1077, %v1528, -inf
      %1533 = vmax.xlane.f32.xlu0 %v1532
      %v1534 = vpop.xlane.xlu0 %1533
      %v1535 = vsub.f32 %v1527, %v1531
      %v1536 = vsub.f32 %v1528, %v1534
      %v1537 = vmul.f32 %v1535, 1.442695
      %v1538 = vpow.pop %v1537
      %v1539 = vmul.f32 %v1536, 1.442695
      %v1540 = vpow.pop %v1539
      %v1541 = vsel %vm1077, %v1538, 0.0
      %1542 = vadd.xlane.f32.xlu0 %v1541
      %v1543 = vpop.xlane.xlu0 %1542
      %v1544 = vsel %vm1077, %v1540, 0.0
      %1545 = vadd.xlane.f32.xlu0 %v1544
      %v1546 = vpop.xlane.xlu0 %1545
      %v1547 = vrcp.pop %v1543
      %v1548 = vrcp.pop %v1546
      %v1549 = vmul.f32 %v1538, %v1547
      %v1550 = vmul.f32 %v1540, %v1548
      %v1551 = vpack.c.bf16 %v1549, %v1549
      %v1552 = vpack.c.bf16 %v1550, %v1550
      %1553 = vrot.lane.b32.xlu0 %v966, 64
      %v1554 = vpop.permute.xlu0 %1553
      %v1556 = vsel %vm1077, %v1551, 0
      %v1559 = vsel %vm1105, %v1554, 0
      %1561 = vmatprep.subr.bf16.mxu0 0
      %1562 = vmatpush1.bf16.msra.mxu0 %v1559
      %1563 = vmatprep.subr.bf16.mxu0 0
      %1564 = vmatpush1.bf16.msra.mxu0 0
      %1565 = vmatprep.subr.bf16.mxu0 0
      %1566 = vmatpush1.bf16.msra.mxu0 0
      %1567 = vmatprep.subr.bf16.mxu0 0
      %1568 = vmatpush1.bf16.msra.mxu0 0
      %1569 = vmatprep.subr.bf16.mxu0 0
      %1570 = vmatpush1.bf16.msra.mxu0 0
      %1571 = vmatprep.subr.bf16.mxu0 0
      %1572 = vmatpush1.bf16.msra.mxu0 0
      %1573 = vmatprep.subr.bf16.mxu0 0
      %1574 = vmatpush1.bf16.msra.mxu0 0
      %1575 = vmatprep.subr.bf16.mxu0 0
      %1576 = vmatpush1.bf16.msra.mxu0 0
      %1577 = vmatprep.subr.bf16.mxu0 0
      %1578 = vmatpush1.bf16.msra.mxu0 0
      %1579 = vmatprep.subr.bf16.mxu0 0
      %1580 = vmatpush1.bf16.msra.mxu0 0
      %1581 = vmatprep.subr.bf16.mxu0 0
      %1582 = vmatpush1.bf16.msra.mxu0 0
      %1583 = vmatprep.subr.bf16.mxu0 0
      %1584 = vmatpush1.bf16.msra.mxu0 0
      %1585 = vmatprep.subr.bf16.mxu0 0
      %1586 = vmatpush1.bf16.msra.mxu0 0
      %1587 = vmatprep.subr.bf16.mxu0 0
      %1588 = vmatpush1.bf16.msra.mxu0 0
      %1589 = vmatprep.subr.bf16.mxu0 0
      %1590 = vmatpush1.bf16.msra.mxu0 0
      %1591 = vmatprep.subr.bf16.mxu0 0
      %1592 = vmatpush1.bf16.msra.mxu0 0
      %1593 = vmatprep.mubr.bf16.mxu0 0
      %1594 = vmatmul.mubr.bf16.gmra.mrb[0].mxu0 %v1556
      %v1595 = vpop.f32.mrb[0].mxu0
      %v1596 = vadd.f32 0.0, %v1595
      %v1597 = vpop.f32.mrb[0].mxu0
      %v1598 = vpop.f32.mrb[0].mxu0
      %v1599 = vpop.f32.mrb[0].mxu0
      %1600 = vdwg.mxu0
      %1601 = vrot.lane.b32.xlu0 %v967, 64
      %v1602 = vpop.permute.xlu0 %1601
      %v1604 = vsel %vm1077, %v1552, 0
      %v1607 = vsel %vm1105, %v1602, 0
      %1609 = vmatprep.subr.bf16.mxu0 0
      %1610 = vmatpush1.bf16.msra.mxu0 %v1607
      %1611 = vmatprep.subr.bf16.mxu0 0
      %1612 = vmatpush1.bf16.msra.mxu0 0
      %1613 = vmatprep.subr.bf16.mxu0 0
      %1614 = vmatpush1.bf16.msra.mxu0 0
      %1615 = vmatprep.subr.bf16.mxu0 0
      %1616 = vmatpush1.bf16.msra.mxu0 0
      %1617 = vmatprep.subr.bf16.mxu0 0
      %1618 = vmatpush1.bf16.msra.mxu0 0
      %1619 = vmatprep.subr.bf16.mxu0 0
      %1620 = vmatpush1.bf16.msra.mxu0 0
      %1621 = vmatprep.subr.bf16.mxu0 0
      %1622 = vmatpush1.bf16.msra.mxu0 0
      %1623 = vmatprep.subr.bf16.mxu0 0
      %1624 = vmatpush1.bf16.msra.mxu0 0
      %1625 = vmatprep.subr.bf16.mxu0 0
      %1626 = vmatpush1.bf16.msra.mxu0 0
      %1627 = vmatprep.subr.bf16.mxu0 0
      %1628 = vmatpush1.bf16.msra.mxu0 0
      %1629 = vmatprep.subr.bf16.mxu0 0
      %1630 = vmatpush1.bf16.msra.mxu0 0
      %1631 = vmatprep.subr.bf16.mxu0 0
      %1632 = vmatpush1.bf16.msra.mxu0 0
      %1633 = vmatprep.subr.bf16.mxu0 0
      %1634 = vmatpush1.bf16.msra.mxu0 0
      %1635 = vmatprep.subr.bf16.mxu0 0
      %1636 = vmatpush1.bf16.msra.mxu0 0
      %1637 = vmatprep.subr.bf16.mxu0 0
      %1638 = vmatpush1.bf16.msra.mxu0 0
      %1639 = vmatprep.subr.bf16.mxu0 0
      %1640 = vmatpush1.bf16.msra.mxu0 0
      %1641 = vmatprep.mubr.bf16.mxu0 0
      %1642 = vmatmul.mubr.bf16.gmra.mrb[0].mxu0 %v1604
      %v1643 = vpop.f32.mrb[0].mxu0
      %v1644 = vadd.f32 0.0, %v1643
      %v1645 = vpop.f32.mrb[0].mxu0
      %v1646 = vpop.f32.mrb[0].mxu0
      %v1647 = vpop.f32.mrb[0].mxu0
      %1648 = vdwg.mxu0
      %1649 = vrot.lane.b32.xlu0 %v962, 32
      %v1650 = vpop.permute.xlu0 %1649
      %1651 = vrot.lane.b32.xlu0 %v964, 32
      %v1652 = vpop.permute.xlu0 %1651
      %v1654 = vsel %vm968, %v1650, 0
      %v1657 = vsel %vm968, %v1652, 0
      %1659 = vmatprep.subr.bf16.mxu0 0
      %1660 = vmatpush1.bf16.xpose.msra.mxu0 %v1657
      %1661 = vmatprep.subr.bf16.mxu0 0
      %1662 = vmatpush1.bf16.xpose.msra.mxu0 0
      %1663 = vmatprep.subr.bf16.mxu0 0
      %1664 = vmatpush1.bf16.xpose.msra.mxu0 0
      %1665 = vmatprep.subr.bf16.mxu0 0
      %1666 = vmatpush1.bf16.xpose.msra.mxu0 0
      %1667 = vmatprep.subr.bf16.mxu0 0
      %1668 = vmatpush1.bf16.xpose.msra.mxu0 0
      %1669 = vmatprep.subr.bf16.mxu0 0
      %1670 = vmatpush1.bf16.xpose.msra.mxu0 0
      %1671 = vmatprep.subr.bf16.mxu0 0
      %1672 = vmatpush1.bf16.xpose.msra.mxu0 0
      %1673 = vmatprep.subr.bf16.mxu0 0
      %1674 = vmatpush1.bf16.xpose.msra.mxu0 0
      %1675 = vmatprep.subr.bf16.mxu0 0
      %1676 = vmatpush1.bf16.xpose.msra.mxu0 0
      %1677 = vmatprep.subr.bf16.mxu0 0
      %1678 = vmatpush1.bf16.xpose.msra.mxu0 0
      %1679 = vmatprep.subr.bf16.mxu0 0
      %1680 = vmatpush1.bf16.xpose.msra.mxu0 0
      %1681 = vmatprep.subr.bf16.mxu0 0
      %1682 = vmatpush1.bf16.xpose.msra.mxu0 0
      %1683 = vmatprep.subr.bf16.mxu0 0
      %1684 = vmatpush1.bf16.xpose.msra.mxu0 0
      %1685 = vmatprep.subr.bf16.mxu0 0
      %1686 = vmatpush1.bf16.xpose.msra.mxu0 0
      %1687 = vmatprep.subr.bf16.mxu0 0
      %1688 = vmatpush1.bf16.xpose.msra.mxu0 0
      %1689 = vmatprep.subr.bf16.mxu0 0
      %1690 = vmatpush1.bf16.xpose.msra.mxu0 0
      %1691 = vmatprep.mubr.bf16.mxu0 0
      %1692 = vmatmul.mubr.bf16.gmra.mrb[0].mxu0 %v1654
      %v1693 = vpop.f32.mrb[0].mxu0
      %v1694 = vadd.f32 0.0, %v1693
      %v1695 = vpop.f32.mrb[0].mxu0
      %v1696 = vpop.f32.mrb[0].mxu0
      %v1697 = vpop.f32.mrb[0].mxu0
      %1698 = vdwg.mxu0
      %1699 = vrot.lane.b32.xlu0 %v963, 32
      %v1700 = vpop.permute.xlu0 %1699
      %1701 = vrot.lane.b32.xlu0 %v965, 32
      %v1702 = vpop.permute.xlu0 %1701
      %v1704 = vsel %vm968, %v1700, 0
      %v1707 = vsel %vm968, %v1702, 0
      %1709 = vmatprep.subr.bf16.mxu0 0
      %1710 = vmatpush1.bf16.xpose.msra.mxu0 %v1707
      %1711 = vmatprep.subr.bf16.mxu0 0
      %1712 = vmatpush1.bf16.xpose.msra.mxu0 0
      %1713 = vmatprep.subr.bf16.mxu0 0
      %1714 = vmatpush1.bf16.xpose.msra.mxu0 0
      %1715 = vmatprep.subr.bf16.mxu0 0
      %1716 = vmatpush1.bf16.xpose.msra.mxu0 0
      %1717 = vmatprep.subr.bf16.mxu0 0
      %1718 = vmatpush1.bf16.xpose.msra.mxu0 0
      %1719 = vmatprep.subr.bf16.mxu0 0
      %1720 = vmatpush1.bf16.xpose.msra.mxu0 0
      %1721 = vmatprep.subr.bf16.mxu0 0
      %1722 = vmatpush1.bf16.xpose.msra.mxu0 0
      %1723 = vmatprep.subr.bf16.mxu0 0
      %1724 = vmatpush1.bf16.xpose.msra.mxu0 0
      %1725 = vmatprep.subr.bf16.mxu0 0
      %1726 = vmatpush1.bf16.xpose.msra.mxu0 0
      %1727 = vmatprep.subr.bf16.mxu0 0
      %1728 = vmatpush1.bf16.xpose.msra.mxu0 0
      %1729 = vmatprep.subr.bf16.mxu0 0
      %1730 = vmatpush1.bf16.xpose.msra.mxu0 0
      %1731 = vmatprep.subr.bf16.mxu0 0
      %1732 = vmatpush1.bf16.xpose.msra.mxu0 0
      %1733 = vmatprep.subr.bf16.mxu0 0
      %1734 = vmatpush1.bf16.xpose.msra.mxu0 0
      %1735 = vmatprep.subr.bf16.mxu0 0
      %1736 = vmatpush1.bf16.xpose.msra.mxu0 0
      %1737 = vmatprep.subr.bf16.mxu0 0
      %1738 = vmatpush1.bf16.xpose.msra.mxu0 0
      %1739 = vmatprep.subr.bf16.mxu0 0
      %1740 = vmatpush1.bf16.xpose.msra.mxu0 0
      %1741 = vmatprep.mubr.bf16.mxu0 0
      %1742 = vmatmul.mubr.bf16.gmra.mrb[0].mxu0 %v1704
      %v1743 = vpop.f32.mrb[0].mxu0
      %v1744 = vadd.f32 0.0, %v1743
      %v1745 = vpop.f32.mrb[0].mxu0
      %v1746 = vpop.f32.mrb[0].mxu0
      %v1747 = vpop.f32.mrb[0].mxu0
      %1748 = vdwg.mxu0
      %v1749 = vmul.f32 %v1694, 0.17677669
      %v1750 = vmul.f32 %v1744, 0.17677669
      %v1751 = vadd.f32 %v1749, %v1068
      %v1752 = vadd.f32 %v1750, %v1072
      %v1753 = vsel %vm1077, %v1751, -inf
      %1754 = vmax.xlane.f32.xlu0 %v1753
      %v1755 = vpop.xlane.xlu0 %1754
      %v1756 = vsel %vm1077, %v1752, -inf
      %1757 = vmax.xlane.f32.xlu0 %v1756
      %v1758 = vpop.xlane.xlu0 %1757
      %v1759 = vsub.f32 %v1751, %v1755
      %v1760 = vsub.f32 %v1752, %v1758
      %v1761 = vmul.f32 %v1759, 1.442695
      %v1762 = vpow.pop %v1761
      %v1763 = vmul.f32 %v1760, 1.442695
      %v1764 = vpow.pop %v1763
      %v1765 = vsel %vm1077, %v1762, 0.0
      %1766 = vadd.xlane.f32.xlu0 %v1765
      %v1767 = vpop.xlane.xlu0 %1766
      %v1768 = vsel %vm1077, %v1764, 0.0
      %1769 = vadd.xlane.f32.xlu0 %v1768
      %v1770 = vpop.xlane.xlu0 %1769
      %v1771 = vrcp.pop %v1767
      %v1772 = vrcp.pop %v1770
      %v1773 = vmul.f32 %v1762, %v1771
      %v1774 = vmul.f32 %v1764, %v1772
      %v1775 = vpack.c.bf16 %v1773, %v1773
      %v1776 = vpack.c.bf16 %v1774, %v1774
      %1777 = vrot.lane.b32.xlu0 %v966, 32
      %v1778 = vpop.permute.xlu0 %1777
      %v1780 = vsel %vm1077, %v1775, 0
      %v1783 = vsel %vm1105, %v1778, 0
      %1785 = vmatprep.subr.bf16.mxu0 0
      %1786 = vmatpush1.bf16.msra.mxu0 %v1783
      %1787 = vmatprep.subr.bf16.mxu0 0
      %1788 = vmatpush1.bf16.msra.mxu0 0
      %1789 = vmatprep.subr.bf16.mxu0 0
      %1790 = vmatpush1.bf16.msra.mxu0 0
      %1791 = vmatprep.subr.bf16.mxu0 0
      %1792 = vmatpush1.bf16.msra.mxu0 0
      %1793 = vmatprep.subr.bf16.mxu0 0
      %1794 = vmatpush1.bf16.msra.mxu0 0
      %1795 = vmatprep.subr.bf16.mxu0 0
      %1796 = vmatpush1.bf16.msra.mxu0 0
      %1797 = vmatprep.subr.bf16.mxu0 0
      %1798 = vmatpush1.bf16.msra.mxu0 0
      %1799 = vmatprep.subr.bf16.mxu0 0
      %1800 = vmatpush1.bf16.msra.mxu0 0
      %1801 = vmatprep.subr.bf16.mxu0 0
      %1802 = vmatpush1.bf16.msra.mxu0 0
      %1803 = vmatprep.subr.bf16.mxu0 0
      %1804 = vmatpush1.bf16.msra.mxu0 0
      %1805 = vmatprep.subr.bf16.mxu0 0
      %1806 = vmatpush1.bf16.msra.mxu0 0
      %1807 = vmatprep.subr.bf16.mxu0 0
      %1808 = vmatpush1.bf16.msra.mxu0 0
      %1809 = vmatprep.subr.bf16.mxu0 0
      %1810 = vmatpush1.bf16.msra.mxu0 0
      %1811 = vmatprep.subr.bf16.mxu0 0
      %1812 = vmatpush1.bf16.msra.mxu0 0
      %1813 = vmatprep.subr.bf16.mxu0 0
      %1814 = vmatpush1.bf16.msra.mxu0 0
      %1815 = vmatprep.subr.bf16.mxu0 0
      %1816 = vmatpush1.bf16.msra.mxu0 0
      %1817 = vmatprep.mubr.bf16.mxu0 0
      %1818 = vmatmul.mubr.bf16.gmra.mrb[0].mxu0 %v1780
      %v1819 = vpop.f32.mrb[0].mxu0
      %v1820 = vadd.f32 0.0, %v1819
      %v1821 = vpop.f32.mrb[0].mxu0
      %v1822 = vpop.f32.mrb[0].mxu0
      %v1823 = vpop.f32.mrb[0].mxu0
      %1824 = vdwg.mxu0
      %1825 = vrot.lane.b32.xlu0 %v967, 32
      %v1826 = vpop.permute.xlu0 %1825
      %v1828 = vsel %vm1077, %v1776, 0
      %v1831 = vsel %vm1105, %v1826, 0
      %1833 = vmatprep.subr.bf16.mxu0 0
      %1834 = vmatpush1.bf16.msra.mxu0 %v1831
      %1835 = vmatprep.subr.bf16.mxu0 0
      %1836 = vmatpush1.bf16.msra.mxu0 0
      %1837 = vmatprep.subr.bf16.mxu0 0
      %1838 = vmatpush1.bf16.msra.mxu0 0
      %1839 = vmatprep.subr.bf16.mxu0 0
      %1840 = vmatpush1.bf16.msra.mxu0 0
      %1841 = vmatprep.subr.bf16.mxu0 0
      %1842 = vmatpush1.bf16.msra.mxu0 0
      %1843 = vmatprep.subr.bf16.mxu0 0
      %1844 = vmatpush1.bf16.msra.mxu0 0
      %1845 = vmatprep.subr.bf16.mxu0 0
      %1846 = vmatpush1.bf16.msra.mxu0 0
      %1847 = vmatprep.subr.bf16.mxu0 0
      %1848 = vmatpush1.bf16.msra.mxu0 0
      %1849 = vmatprep.subr.bf16.mxu0 0
      %1850 = vmatpush1.bf16.msra.mxu0 0
      %1851 = vmatprep.subr.bf16.mxu0 0
      %1852 = vmatpush1.bf16.msra.mxu0 0
      %1853 = vmatprep.subr.bf16.mxu0 0
      %1854 = vmatpush1.bf16.msra.mxu0 0
      %1855 = vmatprep.subr.bf16.mxu0 0
      %1856 = vmatpush1.bf16.msra.mxu0 0
      %1857 = vmatprep.subr.bf16.mxu0 0
      %1858 = vmatpush1.bf16.msra.mxu0 0
      %1859 = vmatprep.subr.bf16.mxu0 0
      %1860 = vmatpush1.bf16.msra.mxu0 0
      %1861 = vmatprep.subr.bf16.mxu0 0
      %1862 = vmatpush1.bf16.msra.mxu0 0
      %1863 = vmatprep.subr.bf16.mxu0 0
      %1864 = vmatpush1.bf16.msra.mxu0 0
      %1865 = vmatprep.mubr.bf16.mxu0 0
      %1866 = vmatmul.mubr.bf16.gmra.mrb[0].mxu0 %v1828
      %v1867 = vpop.f32.mrb[0].mxu0
      %v1868 = vadd.f32 0.0, %v1867
      %v1869 = vpop.f32.mrb[0].mxu0
      %v1870 = vpop.f32.mrb[0].mxu0
      %v1871 = vpop.f32.mrb[0].mxu0
      %1872 = vdwg.mxu0
      %1875 = vrot.lane.b32.xlu0 %v1371, 32
      %v1876 = vpop.permute.xlu0 %1875
      %1877 = vrot.lane.b32.xlu0 %v1420, 32
      %v1878 = vpop.permute.xlu0 %1877
      %1883 = vrot.lane.b32.xlu0 %v1596, 64
      %v1884 = vpop.permute.xlu0 %1883
      %1885 = vrot.lane.b32.xlu0 %v1644, 64
      %v1886 = vpop.permute.xlu0 %1885
      %1891 = vrot.lane.b32.xlu0 %v1820, 96
      %v1892 = vpop.permute.xlu0 %1891
      %1893 = vrot.lane.b32.xlu0 %v1868, 96
      %v1894 = vpop.permute.xlu0 %1893
      %v1897 = vsel %vm968, %v1144, %v1876
      %v1898 = vsel %vm968, %v1190, %v1878
      %vm1899 = vcmask 523264
      %v1900 = vsel %vm1899, %v1897, %v1884
      %v1901 = vsel %vm1899, %v1898, %v1886
      %vm1902 = vcmask 785408
      %v1903 = vsel %vm1902, %v1900, %v1892
      %v1904 = vsel %vm1902, %v1901, %v1894
      %v1905 = vpack.c.bf16 %v1904, %v1903
      %v1907 = vlaneseq
      %v1908 = vshrl.u32 %v1907, 7
      %v1909 = vsub.s32 0, %v1908
      %v1910 = vrot.slane %v680, %v1909
      %v1928 = vunpack.c.l.b16 %v664
      %v1929 = vunpack.c.l.b16 %v665
      %v1930 = vunpack.c.l.b16 %v666
      %v1931 = vunpack.c.l.b16 %v667
      %v1932 = vunpack.c.l.b16 %v668
      %v1933 = vunpack.c.l.b16 %v669
      %v1934 = vunpack.c.l.b16 %v670
      %v1935 = vunpack.c.l.b16 %v671
      %v1936 = vunpack.c.l.b16 %v672
      %v1937 = vunpack.c.l.b16 %v673
      %v1938 = vunpack.c.l.b16 %v674
      %v1939 = vunpack.c.l.b16 %v675
      %v1940 = vunpack.c.l.b16 %v676
      %v1941 = vunpack.c.l.b16 %v677
      %v1942 = vunpack.c.l.b16 %v678
      %v1943 = vunpack.c.l.b16 %v679
      %v1944 = vpack.c.b16 %v1929, %v1928
      %v1945 = vpack.c.b16 %v1931, %v1930
      %v1946 = vpack.c.b16 %v1933, %v1932
      %v1947 = vpack.c.b16 %v1935, %v1934
      %v1948 = vpack.c.b16 %v1937, %v1936
      %v1949 = vpack.c.b16 %v1939, %v1938
      %v1950 = vpack.c.b16 %v1941, %v1940
      %v1951 = vpack.c.b16 %v1943, %v1942
      %1960 = vmatprep.subr.bf16.mxu0 0
      %1961 = vmatpush1.bf16.msra.mxu0 %v1944
      %1962 = vmatprep.subr.bf16.mxu0 0
      %1963 = vmatpush1.bf16.msra.mxu0 %v1945
      %1964 = vmatprep.subr.bf16.mxu0 0
      %1965 = vmatpush1.bf16.msra.mxu0 %v1946
      %1966 = vmatprep.subr.bf16.mxu0 0
      %1967 = vmatpush1.bf16.msra.mxu0 %v1947
      %1968 = vmatprep.subr.bf16.mxu0 0
      %1969 = vmatpush1.bf16.msra.mxu0 %v1948
      %1970 = vmatprep.subr.bf16.mxu0 0
      %1971 = vmatpush1.bf16.msra.mxu0 %v1949
      %1972 = vmatprep.subr.bf16.mxu0 0
      %1973 = vmatpush1.bf16.msra.mxu0 %v1950
      %1974 = vmatprep.subr.bf16.mxu0 0
      %1975 = vmatpush1.bf16.msra.mxu0 %v1951
      %1976 = vmatprep.subr.bf16.mxu0 0
      %1977 = vmatpush1.bf16.msra.mxu0 0
      %1978 = vmatprep.subr.bf16.mxu0 0
      %1979 = vmatpush1.bf16.msra.mxu0 0
      %1980 = vmatprep.subr.bf16.mxu0 0
      %1981 = vmatpush1.bf16.msra.mxu0 0
      %1982 = vmatprep.subr.bf16.mxu0 0
      %1983 = vmatpush1.bf16.msra.mxu0 0
      %1984 = vmatprep.subr.bf16.mxu0 0
      %1985 = vmatpush1.bf16.msra.mxu0 0
      %1986 = vmatprep.subr.bf16.mxu0 0
      %1987 = vmatpush1.bf16.msra.mxu0 0
      %1988 = vmatprep.subr.bf16.mxu0 0
      %1989 = vmatpush1.bf16.msra.mxu0 0
      %1990 = vmatprep.subr.bf16.mxu0 0
      %1991 = vmatpush1.bf16.msra.mxu0 0
      %1992 = vmatprep.mubr.bf16.mxu0 0
      %1993 = vmatmul.mubr.bf16.gmra.mrb[0].mxu0 %v1905
      %v1994 = vpop.f32.mrb[0].mxu0
      %v1995 = vadd.f32 %v1910, %v1994
      %v1996 = vpop.f32.mrb[0].mxu0
      %v1997 = vpop.f32.mrb[0].mxu0
      %v1998 = vadd.f32 %v1910, %v1997
      %v1999 = vpop.f32.mrb[0].mxu0
      %2000 = vdwg.mxu0
      %v2001 = vadd.f32 %v627, %v1995
      %v2002 = vadd.f32 %v628, %v1998
      %2003 = vadd.xlane.f32.xlu0 %v2001
      %v2004 = vpop.xlane.xlu0 %2003
      %2005 = vadd.xlane.f32.xlu0 %v2002
      %v2006 = vpop.xlane.xlu0 %2005
      %v2007 = vrcp.pop 128.0
      %v2008 = vmul.f32 %v2004, %v2007
      %v2009 = vmul.f32 %v2006, %v2007
      %v2010 = vsub.f32 %v2001, %v2008
      %v2011 = vsub.f32 %v2002, %v2009
      %v2012 = vmul.f32 %v2010, %v2010
      %v2013 = vmul.f32 %v2011, %v2011
      %2014 = vadd.xlane.f32.xlu0 %v2012
      %v2015 = vpop.xlane.xlu0 %2014
      %2016 = vadd.xlane.f32.xlu0 %v2013
      %v2017 = vpop.xlane.xlu0 %2016
      %v2018 = vmul.f32 %v2015, %v2007
      %v2019 = vmul.f32 %v2017, %v2007
      %v2020 = vadd.f32 %v2018, 1e-05
      %v2021 = vadd.f32 %v2019, 1e-05
      %v2022 = vrsqrt.pop %v2020
      %v2023 = vrsqrt.pop %v2021
      %v2024 = vmul.f32 %v2010, %v2022
      %v2025 = vmul.f32 %v2011, %v2023
      %v2026 = vlaneseq
      %v2027 = vshrl.u32 %v2026, 7
      %v2028 = vsub.s32 0, %v2027
      %v2029 = vrot.slane %v681, %v2028
      %v2030 = vmul.f32 %v2024, %v2029
      %v2031 = vmul.f32 %v2025, %v2029
      %v2032 = vlaneseq
      %v2033 = vshrl.u32 %v2032, 7
      %v2034 = vsub.s32 1, %v2033
      %v2035 = vrot.slane %v681, %v2034
      %v2036 = vadd.f32 %v2030, %v2035
      %v2037 = vadd.f32 %v2031, %v2035
      %v2038 = vpack.c.bf16 %v2037, %v2036
      %v2040 = vlaneseq
      %v2041 = vshrl.u32 %v2040, 7
      %v2042 = vsub.s32 0, %v2041
      %v2043 = vrot.slane %v699, %v2042
      %v2044 = vlaneseq
      %v2045 = vshrl.u32 %v2044, 7
      %v2046 = vsub.s32 1, %v2045
      %v2047 = vrot.slane %v699, %v2046
      %v2066 = vunpack.c.l.b16 %v683
      %v2067 = vunpack.c.h.b16 %v683
      %v2068 = vunpack.c.l.b16 %v684
      %v2069 = vunpack.c.h.b16 %v684
      %v2070 = vunpack.c.l.b16 %v685
      %v2071 = vunpack.c.h.b16 %v685
      %v2072 = vunpack.c.l.b16 %v686
      %v2073 = vunpack.c.h.b16 %v686
      %v2074 = vunpack.c.l.b16 %v687
      %v2075 = vunpack.c.h.b16 %v687
      %v2076 = vunpack.c.l.b16 %v688
      %v2077 = vunpack.c.h.b16 %v688
      %v2078 = vunpack.c.l.b16 %v689
      %v2079 = vunpack.c.h.b16 %v689
      %v2080 = vunpack.c.l.b16 %v690
      %v2081 = vunpack.c.h.b16 %v690
      %v2082 = vunpack.c.l.b16 %v691
      %v2083 = vunpack.c.h.b16 %v691
      %v2084 = vunpack.c.l.b16 %v692
      %v2085 = vunpack.c.h.b16 %v692
      %v2086 = vunpack.c.l.b16 %v693
      %v2087 = vunpack.c.h.b16 %v693
      %v2088 = vunpack.c.l.b16 %v694
      %v2089 = vunpack.c.h.b16 %v694
      %v2090 = vunpack.c.l.b16 %v695
      %v2091 = vunpack.c.h.b16 %v695
      %v2092 = vunpack.c.l.b16 %v696
      %v2093 = vunpack.c.h.b16 %v696
      %v2094 = vunpack.c.l.b16 %v697
      %v2095 = vunpack.c.h.b16 %v697
      %v2096 = vunpack.c.l.b16 %v698
      %v2097 = vunpack.c.h.b16 %v698
      %v2098 = vpack.c.b16 %v2068, %v2066
      %v2099 = vpack.c.b16 %v2069, %v2067
      %v2100 = vpack.c.b16 %v2072, %v2070
      %v2101 = vpack.c.b16 %v2073, %v2071
      %v2102 = vpack.c.b16 %v2076, %v2074
      %v2103 = vpack.c.b16 %v2077, %v2075
      %v2104 = vpack.c.b16 %v2080, %v2078
      %v2105 = vpack.c.b16 %v2081, %v2079
      %v2106 = vpack.c.b16 %v2084, %v2082
      %v2107 = vpack.c.b16 %v2085, %v2083
      %v2108 = vpack.c.b16 %v2088, %v2086
      %v2109 = vpack.c.b16 %v2089, %v2087
      %v2110 = vpack.c.b16 %v2092, %v2090
      %v2111 = vpack.c.b16 %v2093, %v2091
      %v2112 = vpack.c.b16 %v2096, %v2094
      %v2113 = vpack.c.b16 %v2097, %v2095
      %2130 = vmatprep.subr.bf16.mxu0 %v2099
      %2131 = vmatpush1.bf16.msra.mxu0 %v2098
      %2132 = vmatprep.subr.bf16.mxu0 %v2101
      %2133 = vmatpush1.bf16.msra.mxu0 %v2100
      %2134 = vmatprep.subr.bf16.mxu0 %v2103
      %2135 = vmatpush1.bf16.msra.mxu0 %v2102
      %2136 = vmatprep.subr.bf16.mxu0 %v2105
      %2137 = vmatpush1.bf16.msra.mxu0 %v2104
      %2138 = vmatprep.subr.bf16.mxu0 %v2107
      %2139 = vmatpush1.bf16.msra.mxu0 %v2106
      %2140 = vmatprep.subr.bf16.mxu0 %v2109
      %2141 = vmatpush1.bf16.msra.mxu0 %v2108
      %2142 = vmatprep.subr.bf16.mxu0 %v2111
      %2143 = vmatpush1.bf16.msra.mxu0 %v2110
      %2144 = vmatprep.subr.bf16.mxu0 %v2113
      %2145 = vmatpush1.bf16.msra.mxu0 %v2112
      %2146 = vmatprep.subr.bf16.mxu0 0
      %2147 = vmatpush1.bf16.msra.mxu0 0
      %2148 = vmatprep.subr.bf16.mxu0 0
      %2149 = vmatpush1.bf16.msra.mxu0 0
      %2150 = vmatprep.subr.bf16.mxu0 0
      %2151 = vmatpush1.bf16.msra.mxu0 0
      %2152 = vmatprep.subr.bf16.mxu0 0
      %2153 = vmatpush1.bf16.msra.mxu0 0
      %2154 = vmatprep.subr.bf16.mxu0 0
      %2155 = vmatpush1.bf16.msra.mxu0 0
      %2156 = vmatprep.subr.bf16.mxu0 0
      %2157 = vmatpush1.bf16.msra.mxu0 0
      %2158 = vmatprep.subr.bf16.mxu0 0
      %2159 = vmatpush1.bf16.msra.mxu0 0
      %2160 = vmatprep.subr.bf16.mxu0 0
      %2161 = vmatpush1.bf16.msra.mxu0 0
      %2162 = vmatprep.mubr.bf16.mxu0 0
      %2163 = vmatmul.mubr.bf16.gmra.mrb[0].mxu0 %v2038
      %v2164 = vpop.f32.mrb[0].mxu0
      %v2165 = vadd.f32 %v2043, %v2164
      %v2166 = vpop.f32.mrb[0].mxu0
      %v2167 = vadd.f32 %v2047, %v2166
      %v2168 = vpop.f32.mrb[0].mxu0
      %v2169 = vadd.f32 %v2043, %v2168
      %v2170 = vpop.f32.mrb[0].mxu0
      %v2171 = vadd.f32 %v2047, %v2170
      %2172 = vdwg.mxu0
      %v2173 = vmul.f32 %v2165, 0.5
      %v2174 = vmul.f32 %v2167, 0.5
      %v2175 = vmul.f32 %v2169, 0.5
      %v2176 = vmul.f32 %v2171, 0.5
      %v2177 = vmul.f32 %v2165, 0.044715
      %v2178 = vmul.f32 %v2167, 0.044715
      %v2179 = vmul.f32 %v2169, 0.044715
      %v2180 = vmul.f32 %v2171, 0.044715
      %v2181 = vmul.f32 %v2177, %v2165
      %v2182 = vmul.f32 %v2178, %v2167
      %v2183 = vmul.f32 %v2179, %v2169
      %v2184 = vmul.f32 %v2180, %v2171
      %v2185 = vmul.f32 %v2181, %v2165
      %v2186 = vmul.f32 %v2182, %v2167
      %v2187 = vmul.f32 %v2183, %v2169
      %v2188 = vmul.f32 %v2184, %v2171
      %v2189 = vadd.f32 %v2165, %v2185
      %v2190 = vadd.f32 %v2167, %v2186
      %v2191 = vadd.f32 %v2169, %v2187
      %v2192 = vadd.f32 %v2171, %v2188
      %v2193 = vmul.f32 %v2189, 0.7978846
      %v2194 = vmul.f32 %v2190, 0.7978846
      %v2195 = vmul.f32 %v2191, 0.7978846
      %v2196 = vmul.f32 %v2192, 0.7978846
      %v2197 = vtanh.pop %v2193
      %v2198 = vtanh.pop %v2194
      %v2199 = vtanh.pop %v2195
      %v2200 = vtanh.pop %v2196
      %v2201 = vadd.f32 %v2197, 1.0
      %v2202 = vadd.f32 %v2198, 1.0
      %v2203 = vadd.f32 %v2199, 1.0
      %v2204 = vadd.f32 %v2200, 1.0
      %v2205 = vmul.f32 %v2173, %v2201
      %v2206 = vmul.f32 %v2174, %v2202
      %v2207 = vmul.f32 %v2175, %v2203
      %v2208 = vmul.f32 %v2176, %v2204
      %v2209 = vpack.c.bf16 %v2207, %v2205
      %v2210 = vpack.c.bf16 %v2208, %v2206
      %v2212 = vlaneseq
      %v2213 = vshrl.u32 %v2212, 7
      %v2214 = vsub.s32 0, %v2213
      %v2215 = vrot.slane %v732, %v2214
      %v2249 = vunpack.c.l.b16 %v700
      %v2250 = vunpack.c.l.b16 %v701
      %v2251 = vunpack.c.l.b16 %v702
      %v2252 = vunpack.c.l.b16 %v703
      %v2253 = vunpack.c.l.b16 %v704
      %v2254 = vunpack.c.l.b16 %v705
      %v2255 = vunpack.c.l.b16 %v706
      %v2256 = vunpack.c.l.b16 %v707
      %v2257 = vunpack.c.l.b16 %v708
      %v2258 = vunpack.c.l.b16 %v709
      %v2259 = vunpack.c.l.b16 %v710
      %v2260 = vunpack.c.l.b16 %v711
      %v2261 = vunpack.c.l.b16 %v712
      %v2262 = vunpack.c.l.b16 %v713
      %v2263 = vunpack.c.l.b16 %v714
      %v2264 = vunpack.c.l.b16 %v715
      %v2265 = vunpack.c.l.b16 %v716
      %v2266 = vunpack.c.l.b16 %v717
      %v2267 = vunpack.c.l.b16 %v718
      %v2268 = vunpack.c.l.b16 %v719
      %v2269 = vunpack.c.l.b16 %v720
      %v2270 = vunpack.c.l.b16 %v721
      %v2271 = vunpack.c.l.b16 %v722
      %v2272 = vunpack.c.l.b16 %v723
      %v2273 = vunpack.c.l.b16 %v724
      %v2274 = vunpack.c.l.b16 %v725
      %v2275 = vunpack.c.l.b16 %v726
      %v2276 = vunpack.c.l.b16 %v727
      %v2277 = vunpack.c.l.b16 %v728
      %v2278 = vunpack.c.l.b16 %v729
      %v2279 = vunpack.c.l.b16 %v730
      %v2280 = vunpack.c.l.b16 %v731
      %v2281 = vpack.c.b16 %v2250, %v2249
      %v2282 = vpack.c.b16 %v2252, %v2251
      %v2283 = vpack.c.b16 %v2254, %v2253
      %v2284 = vpack.c.b16 %v2256, %v2255
      %v2285 = vpack.c.b16 %v2258, %v2257
      %v2286 = vpack.c.b16 %v2260, %v2259
      %v2287 = vpack.c.b16 %v2262, %v2261
      %v2288 = vpack.c.b16 %v2264, %v2263
      %v2289 = vpack.c.b16 %v2266, %v2265
      %v2290 = vpack.c.b16 %v2268, %v2267
      %v2291 = vpack.c.b16 %v2270, %v2269
      %v2292 = vpack.c.b16 %v2272, %v2271
      %v2293 = vpack.c.b16 %v2274, %v2273
      %v2294 = vpack.c.b16 %v2276, %v2275
      %v2295 = vpack.c.b16 %v2278, %v2277
      %v2296 = vpack.c.b16 %v2280, %v2279
      %2313 = vmatprep.subr.bf16.mxu0 0
      %2314 = vmatpush1.bf16.msra.mxu0 %v2281
      %2315 = vmatprep.subr.bf16.mxu0 0
      %2316 = vmatpush1.bf16.msra.mxu0 %v2282
      %2317 = vmatprep.subr.bf16.mxu0 0
      %2318 = vmatpush1.bf16.msra.mxu0 %v2283
      %2319 = vmatprep.subr.bf16.mxu0 0
      %2320 = vmatpush1.bf16.msra.mxu0 %v2284
      %2321 = vmatprep.subr.bf16.mxu0 0
      %2322 = vmatpush1.bf16.msra.mxu0 %v2285
      %2323 = vmatprep.subr.bf16.mxu0 0
      %2324 = vmatpush1.bf16.msra.mxu0 %v2286
      %2325 = vmatprep.subr.bf16.mxu0 0
      %2326 = vmatpush1.bf16.msra.mxu0 %v2287
      %2327 = vmatprep.subr.bf16.mxu0 0
      %2328 = vmatpush1.bf16.msra.mxu0 %v2288
      %2329 = vmatprep.subr.bf16.mxu0 0
      %2330 = vmatpush1.bf16.msra.mxu0 %v2289
      %2331 = vmatprep.subr.bf16.mxu0 0
      %2332 = vmatpush1.bf16.msra.mxu0 %v2290
      %2333 = vmatprep.subr.bf16.mxu0 0
      %2334 = vmatpush1.bf16.msra.mxu0 %v2291
      %2335 = vmatprep.subr.bf16.mxu0 0
      %2336 = vmatpush1.bf16.msra.mxu0 %v2292
      %2337 = vmatprep.subr.bf16.mxu0 0
      %2338 = vmatpush1.bf16.msra.mxu0 %v2293
      %2339 = vmatprep.subr.bf16.mxu0 0
      %2340 = vmatpush1.bf16.msra.mxu0 %v2294
      %2341 = vmatprep.subr.bf16.mxu0 0
      %2342 = vmatpush1.bf16.msra.mxu0 %v2295
      %2343 = vmatprep.subr.bf16.mxu0 0
      %2344 = vmatpush1.bf16.msra.mxu0 %v2296
      %2345 = vmatprep.mubr.bf16.mxu0 %v2210
      %2346 = vmatmul.mubr.bf16.gmra.mrb[0].mxu0 %v2209
      %v2347 = vpop.f32.mrb[0].mxu0
      %v2348 = vadd.f32 %v2215, %v2347
      %v2349 = vpop.f32.mrb[0].mxu0
      %v2350 = vpop.f32.mrb[0].mxu0
      %v2351 = vadd.f32 %v2215, %v2350
      %v2352 = vpop.f32.mrb[0].mxu0
      %2353 = vdwg.mxu0
      %v2354 = vadd.f32 %v2036, %v2348
      %v2355 = vadd.f32 %v2037, %v2351
      %2356 = vadd.xlane.f32.xlu0 %v2354
      %v2357 = vpop.xlane.xlu0 %2356
      %2358 = vadd.xlane.f32.xlu0 %v2355
      %v2359 = vpop.xlane.xlu0 %2358
      %v2360 = vmul.f32 %v2357, %v2007
      %v2361 = vmul.f32 %v2359, %v2007
      %v2362 = vsub.f32 %v2354, %v2360
      %v2363 = vsub.f32 %v2355, %v2361
      %v2364 = vmul.f32 %v2362, %v2362
      %v2365 = vmul.f32 %v2363, %v2363
      %2366 = vadd.xlane.f32.xlu0 %v2364
      %v2367 = vpop.xlane.xlu0 %2366
      %2368 = vadd.xlane.f32.xlu0 %v2365
      %v2369 = vpop.xlane.xlu0 %2368
      %v2370 = vmul.f32 %v2367, %v2007
      %v2371 = vmul.f32 %v2369, %v2007
      %v2372 = vadd.f32 %v2370, 1e-05
      %v2373 = vadd.f32 %v2371, 1e-05
      %v2374 = vrsqrt.pop %v2372
      %v2375 = vrsqrt.pop %v2373
      %v2376 = vmul.f32 %v2362, %v2374
      %v2377 = vmul.f32 %v2363, %v2375
      %v2378 = vlaneseq
      %v2379 = vshrl.u32 %v2378, 7
      %v2380 = vsub.s32 0, %v2379
      %v2381 = vrot.slane %v682, %v2380
      %v2382 = vmul.f32 %v2376, %v2381
      %v2383 = vmul.f32 %v2377, %v2381
      %v2384 = vlaneseq
      %v2385 = vshrl.u32 %v2384, 7
      %v2386 = vsub.s32 1, %v2385
      %v2387 = vrot.slane %v682, %v2386
      %v2388 = vadd.f32 %v2382, %v2387
      %v2389 = vadd.f32 %v2383, %v2387
      %2390 = vst [vmem:[%s13] sm:$0xff] %v2388
      %2391 = vst [vmem:[%s13 + $0x8] sm:$0xff] %v2389
      // Predicated region
      $region77: #{model_mode0.5} parent=71 // pred_check
        %p2392 = pneg %p360
      $region78: #{model_mode0.5} parent=71 // pred_check_branch
        %2394 = sbr.rel (%p2392) target = $region80
      $region79: #{model_mode0.5} parent=71 // pred_region
        _
      $region80: #{model_mode0.5} parent=71 // pred_fallthru
        _
      // Predicated region
      $region81: #{model_mode0.5} parent=71 // pred_check
        %p2395 = pneg %p360
      $region82: #{model_mode0.5} parent=71 // pred_check_branch
        %2397 = sbr.rel (%p2395) target = $region84
      $region83: #{model_mode0.5} parent=71 // pred_region
        _
      $region84: #{model_mode0.5} parent=71 // pred_fallthru
        _
    $region72: #{model_mode0.5} parent=5 // pred_fallthru
      _
    %p2398 = scmp.le.s32.totalorder 2, %s19
    // Predicated region
    $region85: #{model_mode0.5} parent=5 // pred_check
      %p2399 = pneg %p2398
    $region86: #{model_mode0.5} parent=5 // pred_check_branch
      %2401 = sbr.rel (%p2399) target = $region88
    $region87: #{model_mode0.5} parent=5 // pred_region
      %s2402 = ssub.s32 %s19, 2
    $region88: #{model_mode0.5} parent=5 // pred_fallthru
      _
  $region6: #{model_mode0.5} parent=0 // loop_footer
    %s23 = sadd.s32 1, %s19
  $region7: #{model_mode0.5} parent=0 // loop_footer_branch
    %18 = sbr.rel target = $region3
  $region8: #{model_mode0.5} parent=0 // loop_exit
    _

// kernel: model_mode0.8
$region0: #{model_mode0.8}
  #allocation0 [shape = 'u32[]', space=smem, size = 0x4, offset = 0x4, fixed_abs, tag = 'smem constant byte address 0x4 - core index']
  #allocation1 [shape = 'u32[144,128]{1,0:T(1,128)}', space=vmem, size = 0x12000, scoped, tag = 'internal scratch']
  %s0 = inlined_call_operand.vmem [shape: f32[28,128], index: 0, kind: input, shape index: {}]
  %s1 = inlined_call_operand.vmem [shape: f32[2,1,14], index: 1, kind: input, shape index: {}]
  %s2 = inlined_call_operand.vmem [shape: f32[2,128], index: 2, kind: input, shape index: {}]
  %s3 = inlined_call_operand.vmem [shape: bf16[3,128,384], index: 3, kind: input, shape index: {}]
  %s4 = inlined_call_operand.vmem [shape: f32[3,1,384], index: 4, kind: input, shape index: {}]
  %s5 = inlined_call_operand.vmem [shape: bf16[3,128,128], index: 5, kind: input, shape index: {}]
  %s6 = inlined_call_operand.vmem [shape: f32[3,1,128], index: 6, kind: input, shape index: {}]
  %s7 = inlined_call_operand.vmem [shape: f32[3,2,128], index: 7, kind: input, shape index: {}]
  %s8 = inlined_call_operand.vmem [shape: f32[3,2,128], index: 8, kind: input, shape index: {}]
  %s9 = inlined_call_operand.vmem [shape: bf16[3,128,256], index: 9, kind: input, shape index: {}]
  %s10 = inlined_call_operand.vmem [shape: f32[3,1,256], index: 10, kind: input, shape index: {}]
  %s11 = inlined_call_operand.vmem [shape: bf16[3,256,128], index: 11, kind: input, shape index: {}]
  %s12 = inlined_call_operand.vmem [shape: f32[3,1,128], index: 12, kind: input, shape index: {}]
  %s13 = inlined_call_operand.vmem [shape: f32[28,128], index: 13, kind: output, shape index: {}]
  %s14 = sld [smem:[#allocation0]]
  $region89: #{model_mode0.8} parent=0
    _
  %s16 = ssub.s32 1, %s14
  %s17 = scalar_select 0, %s16, %s14
  loop: start=0, step=1, limit=5
  $region2: #{model_mode0.8} parent=0 // loop_pre_header
    _
  $region3: #{model_mode0.8} parent=0 // loop_header
    %s19 = sphi 0, %s23
    %p20 = scmp.ge.s32.totalorder %s19, 5
    %s27 = sphi 0, %s27
    %s29 = sphi 0, %s27
    %s30 = sphi 0, %s29
    %s44 = sphi 0, %s30
    %s48 = sphi 0, %s48
    %s50 = sphi 0, %s48
    %s51 = sphi 0, %s50
    %s65 = sphi 0, %s51
    %s69 = sphi 0, %s69
    %s71 = sphi 0, %s69
    %s72 = sphi 0, %s71
    %s86 = sphi 0, %s72
    %s92 = sphi 0, %s94
    %s95 = sphi 0, %s92
    %s96 = sphi 0, %s95
    %s112 = sphi 0, %s96
    %s118 = sphi 0, %s120
    %s121 = sphi 0, %s118
    %s122 = sphi 0, %s121
    %s138 = sphi 0, %s122
    %s144 = sphi 0, %s146
    %s147 = sphi 0, %s144
    %s148 = sphi 0, %s147
    %s164 = sphi 0, %s148
    %s170 = sphi 0, %s172
    %s173 = sphi 0, %s170
    %s174 = sphi 0, %s173
    %s190 = sphi 0, %s174
    %s196 = sphi 0, %s198
    %s199 = sphi 0, %s196
    %s200 = sphi 0, %s199
    %s216 = sphi 0, %s200
    %s222 = sphi 0, %s224
    %s225 = sphi 0, %s222
    %s226 = sphi 0, %s225
    %s242 = sphi 0, %s226
    %s248 = sphi 0, %s250
    %s251 = sphi 0, %s248
    %s252 = sphi 0, %s251
    %s268 = sphi 0, %s252
    %s274 = sphi 0, %s276
    %s277 = sphi 0, %s274
    %s278 = sphi 0, %s277
    %s294 = sphi 0, %s278
    %s300 = sphi 0, %s302
    %s303 = sphi 0, %s300
    %s304 = sphi 0, %s303
    %s320 = sphi 0, %s304
    %s326 = sphi 0, %s328
    %s329 = sphi 0, %s326
    %s330 = sphi 0, %s329
    %s346 = sphi 0, %s330
    %s350 = sphi 0, %s350
    %s352 = sphi 0, %s350
    %s353 = sphi 0, %s352
    %s367 = sphi 0, %s353
  $region4: #{model_mode0.8} parent=0 // loop_header_branch
    %22 = sbr.rel (%p20) target = $region8
  $region5: #{model_mode0.8} parent=0 // loop_body
    %s24 = ssub.s32 %s19, 1
    %s25 = ssub.s32 %s19, 2
    %s26 = sadd.s32 %s19, 1
    %s28 = sadd.s32 %s27, 1
    %p31 = scmp.eq.s32.totalorder %s19, 2
    %p32 = scmp.ne.s32.totalorder %s27, %s29
    %p33 = scmp.eq.s32.totalorder %s19, 0
    %p34 = por %p32, %p33
    %p35 = scmp.ne.s32.totalorder %s27, %s29
    %p36 = scmp.eq.s32.totalorder %s24, 2
    %p37 = por %p35, %p36
    %p38 = scmp.ne.s32.totalorder %s29, %s30
    %p39 = scmp.eq.s32.totalorder %s24, 0
    %p40 = por %p38, %p39
    %p41 = scmp.ne.s32.totalorder %s29, %s30
    %p42 = scmp.eq.s32.totalorder %s25, 2
    %p43 = por %p41, %p42
    %p45 = scmp.ne.s32.totalorder %s30, %s44
    %p46 = scmp.eq.s32.totalorder %s25, 0
    %p47 = por %p45, %p46
    %s49 = sadd.s32 %s48, 1
    %p52 = scmp.eq.s32.totalorder %s19, 2
    %p53 = scmp.ne.s32.totalorder %s48, %s50
    %p54 = scmp.eq.s32.totalorder %s19, 0
    %p55 = por %p53, %p54
    %p56 = scmp.ne.s32.totalorder %s48, %s50
    %p57 = scmp.eq.s32.totalorder %s24, 2
    %p58 = por %p56, %p57
    %p59 = scmp.ne.s32.totalorder %s50, %s51
    %p60 = scmp.eq.s32.totalorder %s24, 0
    %p61 = por %p59, %p60
    %p62 = scmp.ne.s32.totalorder %s50, %s51
    %p63 = scmp.eq.s32.totalorder %s25, 2
    %p64 = por %p62, %p63
    %p66 = scmp.ne.s32.totalorder %s51, %s65
    %p67 = scmp.eq.s32.totalorder %s25, 0
    %p68 = por %p66, %p67
    %s70 = sadd.s32 %s69, 1
    %p73 = scmp.eq.s32.totalorder %s19, 2
    %p74 = scmp.ne.s32.totalorder %s69, %s71
    %p75 = scmp.eq.s32.totalorder %s19, 0
    %p76 = por %p74, %p75
    %p77 = scmp.ne.s32.totalorder %s69, %s71
    %p78 = scmp.eq.s32.totalorder %s24, 2
    %p79 = por %p77, %p78
    %p80 = scmp.ne.s32.totalorder %s71, %s72
    %p81 = scmp.eq.s32.totalorder %s24, 0
    %p82 = por %p80, %p81
    %p83 = scmp.ne.s32.totalorder %s71, %s72
    %p84 = scmp.eq.s32.totalorder %s25, 2
    %p85 = por %p83, %p84
    %p87 = scmp.ne.s32.totalorder %s72, %s86
    %p88 = scmp.eq.s32.totalorder %s25, 0
    %p89 = por %p87, %p88
    %s90 = ssub.s32 %s19, %s26
    %p91 = scmp.eq.s32.totalorder %s90, 0
    %s93 = sadd.s32 %s92, 1
    %s94 = scalar_select %p91, %s92, %s93
    %p97 = pneg %p91
    %p98 = scmp.eq.s32.totalorder %s19, 2
    %p99 = por %p97, %p98
    %p100 = scmp.ne.s32.totalorder %s92, %s95
    %p101 = scmp.eq.s32.totalorder %s19, 0
    %p102 = por %p100, %p101
    %p103 = scmp.ne.s32.totalorder %s92, %s95
    %p104 = scmp.eq.s32.totalorder %s24, 2
    %p105 = por %p103, %p104
    %p106 = scmp.ne.s32.totalorder %s95, %s96
    %p107 = scmp.eq.s32.totalorder %s24, 0
    %p108 = por %p106, %p107
    %p109 = scmp.ne.s32.totalorder %s95, %s96
    %p110 = scmp.eq.s32.totalorder %s25, 2
    %p111 = por %p109, %p110
    %p113 = scmp.ne.s32.totalorder %s96, %s112
    %p114 = scmp.eq.s32.totalorder %s25, 0
    %p115 = por %p113, %p114
    %s116 = ssub.s32 %s19, %s26
    %p117 = scmp.eq.s32.totalorder %s116, 0
    %s119 = sadd.s32 %s118, 1
    %s120 = scalar_select %p117, %s118, %s119
    %p123 = pneg %p117
    %p124 = scmp.eq.s32.totalorder %s19, 2
    %p125 = por %p123, %p124
    %p126 = scmp.ne.s32.totalorder %s118, %s121
    %p127 = scmp.eq.s32.totalorder %s19, 0
    %p128 = por %p126, %p127
    %p129 = scmp.ne.s32.totalorder %s118, %s121
    %p130 = scmp.eq.s32.totalorder %s24, 2
    %p131 = por %p129, %p130
    %p132 = scmp.ne.s32.totalorder %s121, %s122
    %p133 = scmp.eq.s32.totalorder %s24, 0
    %p134 = por %p132, %p133
    %p135 = scmp.ne.s32.totalorder %s121, %s122
    %p136 = scmp.eq.s32.totalorder %s25, 2
    %p137 = por %p135, %p136
    %p139 = scmp.ne.s32.totalorder %s122, %s138
    %p140 = scmp.eq.s32.totalorder %s25, 0
    %p141 = por %p139, %p140
    %s142 = ssub.s32 %s19, %s26
    %p143 = scmp.eq.s32.totalorder %s142, 0
    %s145 = sadd.s32 %s144, 1
    %s146 = scalar_select %p143, %s144, %s145
    %p149 = pneg %p143
    %p150 = scmp.eq.s32.totalorder %s19, 2
    %p151 = por %p149, %p150
    %p152 = scmp.ne.s32.totalorder %s144, %s147
    %p153 = scmp.eq.s32.totalorder %s19, 0
    %p154 = por %p152, %p153
    %p155 = scmp.ne.s32.totalorder %s144, %s147
    %p156 = scmp.eq.s32.totalorder %s24, 2
    %p157 = por %p155, %p156
    %p158 = scmp.ne.s32.totalorder %s147, %s148
    %p159 = scmp.eq.s32.totalorder %s24, 0
    %p160 = por %p158, %p159
    %p161 = scmp.ne.s32.totalorder %s147, %s148
    %p162 = scmp.eq.s32.totalorder %s25, 2
    %p163 = por %p161, %p162
    %p165 = scmp.ne.s32.totalorder %s148, %s164
    %p166 = scmp.eq.s32.totalorder %s25, 0
    %p167 = por %p165, %p166
    %s168 = ssub.s32 %s19, %s26
    %p169 = scmp.eq.s32.totalorder %s168, 0
    %s171 = sadd.s32 %s170, 1
    %s172 = scalar_select %p169, %s170, %s171
    %p175 = pneg %p169
    %p176 = scmp.eq.s32.totalorder %s19, 2
    %p177 = por %p175, %p176
    %p178 = scmp.ne.s32.totalorder %s170, %s173
    %p179 = scmp.eq.s32.totalorder %s19, 0
    %p180 = por %p178, %p179
    %p181 = scmp.ne.s32.totalorder %s170, %s173
    %p182 = scmp.eq.s32.totalorder %s24, 2
    %p183 = por %p181, %p182
    %p184 = scmp.ne.s32.totalorder %s173, %s174
    %p185 = scmp.eq.s32.totalorder %s24, 0
    %p186 = por %p184, %p185
    %p187 = scmp.ne.s32.totalorder %s173, %s174
    %p188 = scmp.eq.s32.totalorder %s25, 2
    %p189 = por %p187, %p188
    %p191 = scmp.ne.s32.totalorder %s174, %s190
    %p192 = scmp.eq.s32.totalorder %s25, 0
    %p193 = por %p191, %p192
    %s194 = ssub.s32 %s19, %s26
    %p195 = scmp.eq.s32.totalorder %s194, 0
    %s197 = sadd.s32 %s196, 1
    %s198 = scalar_select %p195, %s196, %s197
    %p201 = pneg %p195
    %p202 = scmp.eq.s32.totalorder %s19, 2
    %p203 = por %p201, %p202
    %p204 = scmp.ne.s32.totalorder %s196, %s199
    %p205 = scmp.eq.s32.totalorder %s19, 0
    %p206 = por %p204, %p205
    %p207 = scmp.ne.s32.totalorder %s196, %s199
    %p208 = scmp.eq.s32.totalorder %s24, 2
    %p209 = por %p207, %p208
    %p210 = scmp.ne.s32.totalorder %s199, %s200
    %p211 = scmp.eq.s32.totalorder %s24, 0
    %p212 = por %p210, %p211
    %p213 = scmp.ne.s32.totalorder %s199, %s200
    %p214 = scmp.eq.s32.totalorder %s25, 2
    %p215 = por %p213, %p214
    %p217 = scmp.ne.s32.totalorder %s200, %s216
    %p218 = scmp.eq.s32.totalorder %s25, 0
    %p219 = por %p217, %p218
    %s220 = ssub.s32 %s19, %s26
    %p221 = scmp.eq.s32.totalorder %s220, 0
    %s223 = sadd.s32 %s222, 1
    %s224 = scalar_select %p221, %s222, %s223
    %p227 = pneg %p221
    %p228 = scmp.eq.s32.totalorder %s19, 2
    %p229 = por %p227, %p228
    %p230 = scmp.ne.s32.totalorder %s222, %s225
    %p231 = scmp.eq.s32.totalorder %s19, 0
    %p232 = por %p230, %p231
    %p233 = scmp.ne.s32.totalorder %s222, %s225
    %p234 = scmp.eq.s32.totalorder %s24, 2
    %p235 = por %p233, %p234
    %p236 = scmp.ne.s32.totalorder %s225, %s226
    %p237 = scmp.eq.s32.totalorder %s24, 0
    %p238 = por %p236, %p237
    %p239 = scmp.ne.s32.totalorder %s225, %s226
    %p240 = scmp.eq.s32.totalorder %s25, 2
    %p241 = por %p239, %p240
    %p243 = scmp.ne.s32.totalorder %s226, %s242
    %p244 = scmp.eq.s32.totalorder %s25, 0
    %p245 = por %p243, %p244
    %s246 = ssub.s32 %s19, %s26
    %p247 = scmp.eq.s32.totalorder %s246, 0
    %s249 = sadd.s32 %s248, 1
    %s250 = scalar_select %p247, %s248, %s249
    %p253 = pneg %p247
    %p254 = scmp.eq.s32.totalorder %s19, 2
    %p255 = por %p253, %p254
    %p256 = scmp.ne.s32.totalorder %s248, %s251
    %p257 = scmp.eq.s32.totalorder %s19, 0
    %p258 = por %p256, %p257
    %p259 = scmp.ne.s32.totalorder %s248, %s251
    %p260 = scmp.eq.s32.totalorder %s24, 2
    %p261 = por %p259, %p260
    %p262 = scmp.ne.s32.totalorder %s251, %s252
    %p263 = scmp.eq.s32.totalorder %s24, 0
    %p264 = por %p262, %p263
    %p265 = scmp.ne.s32.totalorder %s251, %s252
    %p266 = scmp.eq.s32.totalorder %s25, 2
    %p267 = por %p265, %p266
    %p269 = scmp.ne.s32.totalorder %s252, %s268
    %p270 = scmp.eq.s32.totalorder %s25, 0
    %p271 = por %p269, %p270
    %s272 = ssub.s32 %s19, %s26
    %p273 = scmp.eq.s32.totalorder %s272, 0
    %s275 = sadd.s32 %s274, 1
    %s276 = scalar_select %p273, %s274, %s275
    %p279 = pneg %p273
    %p280 = scmp.eq.s32.totalorder %s19, 2
    %p281 = por %p279, %p280
    %p282 = scmp.ne.s32.totalorder %s274, %s277
    %p283 = scmp.eq.s32.totalorder %s19, 0
    %p284 = por %p282, %p283
    %p285 = scmp.ne.s32.totalorder %s274, %s277
    %p286 = scmp.eq.s32.totalorder %s24, 2
    %p287 = por %p285, %p286
    %p288 = scmp.ne.s32.totalorder %s277, %s278
    %p289 = scmp.eq.s32.totalorder %s24, 0
    %p290 = por %p288, %p289
    %p291 = scmp.ne.s32.totalorder %s277, %s278
    %p292 = scmp.eq.s32.totalorder %s25, 2
    %p293 = por %p291, %p292
    %p295 = scmp.ne.s32.totalorder %s278, %s294
    %p296 = scmp.eq.s32.totalorder %s25, 0
    %p297 = por %p295, %p296
    %s298 = ssub.s32 %s19, %s26
    %p299 = scmp.eq.s32.totalorder %s298, 0
    %s301 = sadd.s32 %s300, 1
    %s302 = scalar_select %p299, %s300, %s301
    %p305 = pneg %p299
    %p306 = scmp.eq.s32.totalorder %s19, 2
    %p307 = por %p305, %p306
    %p308 = scmp.ne.s32.totalorder %s300, %s303
    %p309 = scmp.eq.s32.totalorder %s19, 0
    %p310 = por %p308, %p309
    %p311 = scmp.ne.s32.totalorder %s300, %s303
    %p312 = scmp.eq.s32.totalorder %s24, 2
    %p313 = por %p311, %p312
    %p314 = scmp.ne.s32.totalorder %s303, %s304
    %p315 = scmp.eq.s32.totalorder %s24, 0
    %p316 = por %p314, %p315
    %p317 = scmp.ne.s32.totalorder %s303, %s304
    %p318 = scmp.eq.s32.totalorder %s25, 2
    %p319 = por %p317, %p318
    %p321 = scmp.ne.s32.totalorder %s304, %s320
    %p322 = scmp.eq.s32.totalorder %s25, 0
    %p323 = por %p321, %p322
    %s324 = ssub.s32 %s19, %s26
    %p325 = scmp.eq.s32.totalorder %s324, 0
    %s327 = sadd.s32 %s326, 1
    %s328 = scalar_select %p325, %s326, %s327
    %p331 = pneg %p325
    %p332 = scmp.eq.s32.totalorder %s19, 2
    %p333 = por %p331, %p332
    %p334 = scmp.ne.s32.totalorder %s326, %s329
    %p335 = scmp.eq.s32.totalorder %s19, 0
    %p336 = por %p334, %p335
    %p337 = scmp.ne.s32.totalorder %s326, %s329
    %p338 = scmp.eq.s32.totalorder %s24, 2
    %p339 = por %p337, %p338
    %p340 = scmp.ne.s32.totalorder %s329, %s330
    %p341 = scmp.eq.s32.totalorder %s24, 0
    %p342 = por %p340, %p341
    %p343 = scmp.ne.s32.totalorder %s329, %s330
    %p344 = scmp.eq.s32.totalorder %s25, 2
    %p345 = por %p343, %p344
    %p347 = scmp.ne.s32.totalorder %s330, %s346
    %p348 = scmp.eq.s32.totalorder %s25, 0
    %p349 = por %p347, %p348
    %s351 = sadd.s32 %s350, 1
    %p354 = scmp.eq.s32.totalorder %s19, 2
    %p355 = scmp.ne.s32.totalorder %s350, %s352
    %p356 = scmp.eq.s32.totalorder %s19, 0
    %p357 = por %p355, %p356
    %p358 = scmp.ne.s32.totalorder %s350, %s352
    %p359 = scmp.eq.s32.totalorder %s24, 2
    %p360 = por %p358, %p359
    %p361 = scmp.ne.s32.totalorder %s352, %s353
    %p362 = scmp.eq.s32.totalorder %s24, 0
    %p363 = por %p361, %p362
    %p364 = scmp.ne.s32.totalorder %s352, %s353
    %p365 = scmp.eq.s32.totalorder %s25, 2
    %p366 = por %p364, %p365
    %p368 = scmp.ne.s32.totalorder %s353, %s367
    %p369 = scmp.eq.s32.totalorder %s25, 0
    %p370 = por %p368, %p369
    %p371 = scmp.le.s32.totalorder 1, %s19
    %p372 = scmp.lt.s32.totalorder %s19, 4
    %p373 = pnand %p371, %p372
    %p374 = pneg %p373
    // Predicated region
    $region9: #{model_mode0.8} parent=5 // pred_check
      _
    $region10: #{model_mode0.8} parent=5 // pred_check_branch
      %376 = sbr.rel (%p373) target = $region12
    $region11: #{model_mode0.8} parent=5 // pred_region
      %s377 = ssub.s32 %s19, 1
      // Predicated region
      $region13: #{model_mode0.8} parent=11 // pred_check
        %p378 = pneg %p40
      $region14: #{model_mode0.8} parent=11 // pred_check_branch
        %380 = sbr.rel (%p378) target = $region16
      $region15: #{model_mode0.8} parent=11 // pred_region
        _
      $region16: #{model_mode0.8} parent=11 // pred_fallthru
        _
      // Predicated region
      $region17: #{model_mode0.8} parent=11 // pred_check
        %p381 = pneg %p61
      $region18: #{model_mode0.8} parent=11 // pred_check_branch
        %383 = sbr.rel (%p381) target = $region20
      $region19: #{model_mode0.8} parent=11 // pred_region
        _
      $region20: #{model_mode0.8} parent=11 // pred_fallthru
        _
      // Predicated region
      $region21: #{model_mode0.8} parent=11 // pred_check
        %p384 = pneg %p82
      $region22: #{model_mode0.8} parent=11 // pred_check_branch
        %386 = sbr.rel (%p384) target = $region24
      $region23: #{model_mode0.8} parent=11 // pred_region
        _
      $region24: #{model_mode0.8} parent=11 // pred_fallthru
        _
    $region12: #{model_mode0.8} parent=5 // pred_fallthru
      _
    %p387 = scmp.lt.s32.totalorder %s19, 3
    // Predicated region
    $region25: #{model_mode0.8} parent=5 // pred_check
      %p388 = pneg %p387
    $region26: #{model_mode0.8} parent=5 // pred_check_branch
      %390 = sbr.rel (%p388) target = $region28
    $region27: #{model_mode0.8} parent=5 // pred_region
      // Predicated region
      $region29: #{model_mode0.8} parent=27 // pred_check
        %p391 = pneg %p102
      $region30: #{model_mode0.8} parent=27 // pred_check_branch
        %393 = sbr.rel (%p391) target = $region32
      $region31: #{model_mode0.8} parent=27 // pred_region
        %p394 = scmp.lt.s32.totalorder %s19, 2
        %s395 = scalar_select %p394, %s19, 2
        %s396 = smul.addr %s395, 48
        %s397 = smul.addr %s396, 4
        %s398 = scalar_lea.vmem %s3, %s397
      $region32: #{model_mode0.8} parent=27 // pred_fallthru
        _
      // Predicated region
      $region33: #{model_mode0.8} parent=27 // pred_check
        %p399 = pneg %p128
      $region34: #{model_mode0.8} parent=27 // pred_check_branch
        %401 = sbr.rel (%p399) target = $region36
      $region35: #{model_mode0.8} parent=27 // pred_region
        %p402 = scmp.lt.s32.totalorder %s19, 2
        %s403 = scalar_select %p402, %s19, 2
        %s404 = smul.addr %s403, 3
        %s405 = scalar_lea.vmem %s4, %s404
      $region36: #{model_mode0.8} parent=27 // pred_fallthru
        _
      // Predicated region
      $region37: #{model_mode0.8} parent=27 // pred_check
        %p406 = pneg %p154
      $region38: #{model_mode0.8} parent=27 // pred_check_branch
        %408 = sbr.rel (%p406) target = $region40
      $region39: #{model_mode0.8} parent=27 // pred_region
        %p409 = scmp.lt.s32.totalorder %s19, 2
        %s410 = scalar_select %p409, %s19, 2
        %s411 = smul.addr %s410, 16
        %s412 = smul.addr %s411, 4
        %s413 = scalar_lea.vmem %s5, %s412
      $region40: #{model_mode0.8} parent=27 // pred_fallthru
        _
      // Predicated region
      $region41: #{model_mode0.8} parent=27 // pred_check
        %p414 = pneg %p180
      $region42: #{model_mode0.8} parent=27 // pred_check_branch
        %416 = sbr.rel (%p414) target = $region44
      $region43: #{model_mode0.8} parent=27 // pred_region
        %p417 = scmp.lt.s32.totalorder %s19, 2
        %s418 = scalar_select %p417, %s19, 2
        %s419 = scalar_lea.vmem %s6, %s418
      $region44: #{model_mode0.8} parent=27 // pred_fallthru
        _
      // Predicated region
      $region45: #{model_mode0.8} parent=27 // pred_check
        %p420 = pneg %p206
      $region46: #{model_mode0.8} parent=27 // pred_check_branch
        %422 = sbr.rel (%p420) target = $region48
      $region47: #{model_mode0.8} parent=27 // pred_region
        %p423 = scmp.lt.s32.totalorder %s19, 2
        %s424 = scalar_select %p423, %s19, 2
        %s425 = smul.addr %s424, 2
        %s426 = scalar_lea.vmem %s7, %s425
      $region48: #{model_mode0.8} parent=27 // pred_fallthru
        _
      // Predicated region
      $region49: #{model_mode0.8} parent=27 // pred_check
        %p427 = pneg %p232
      $region50: #{model_mode0.8} parent=27 // pred_check_branch
        %429 = sbr.rel (%p427) target = $region52
      $region51: #{model_mode0.8} parent=27 // pred_region
        %p430 = scmp.lt.s32.totalorder %s19, 2
        %s431 = scalar_select %p430, %s19, 2
        %s432 = smul.addr %s431, 2
        %s433 = scalar_lea.vmem %s8, %s432
      $region52: #{model_mode0.8} parent=27 // pred_fallthru
        _
      // Predicated region
      $region53: #{model_mode0.8} parent=27 // pred_check
        %p434 = pneg %p258
      $region54: #{model_mode0.8} parent=27 // pred_check_branch
        %436 = sbr.rel (%p434) target = $region56
      $region55: #{model_mode0.8} parent=27 // pred_region
        %p437 = scmp.lt.s32.totalorder %s19, 2
        %s438 = scalar_select %p437, %s19, 2
        %s439 = smul.addr %s438, 32
        %s440 = smul.addr %s439, 4
        %s441 = scalar_lea.vmem %s9, %s440
      $region56: #{model_mode0.8} parent=27 // pred_fallthru
        _
      // Predicated region
      $region57: #{model_mode0.8} parent=27 // pred_check
        %p442 = pneg %p284
      $region58: #{model_mode0.8} parent=27 // pred_check_branch
        %444 = sbr.rel (%p442) target = $region60
      $region59: #{model_mode0.8} parent=27 // pred_region
        %p445 = scmp.lt.s32.totalorder %s19, 2
        %s446 = scalar_select %p445, %s19, 2
        %s447 = smul.addr %s446, 2
        %s448 = scalar_lea.vmem %s10, %s447
      $region60: #{model_mode0.8} parent=27 // pred_fallthru
        _
      // Predicated region
      $region61: #{model_mode0.8} parent=27 // pred_check
        %p449 = pneg %p310
      $region62: #{model_mode0.8} parent=27 // pred_check_branch
        %451 = sbr.rel (%p449) target = $region64
      $region63: #{model_mode0.8} parent=27 // pred_region
        %p452 = scmp.lt.s32.totalorder %s19, 2
        %s453 = scalar_select %p452, %s19, 2
        %s454 = smul.addr %s453, 32
        %s455 = smul.addr %s454, 4
        %s456 = scalar_lea.vmem %s11, %s455
      $region64: #{model_mode0.8} parent=27 // pred_fallthru
        _
      // Predicated region
      $region65: #{model_mode0.8} parent=27 // pred_check
        %p457 = pneg %p336
      $region66: #{model_mode0.8} parent=27 // pred_check_branch
        %459 = sbr.rel (%p457) target = $region68
      $region67: #{model_mode0.8} parent=27 // pred_region
        %p460 = scmp.lt.s32.totalorder %s19, 2
        %s461 = scalar_select %p460, %s19, 2
        %s462 = scalar_lea.vmem %s12, %s461
      $region68: #{model_mode0.8} parent=27 // pred_fallthru
        _
    $region28: #{model_mode0.8} parent=5 // pred_fallthru
      _
    %p463 = scmp.le.s32.totalorder 1, %s19
    %p464 = scmp.lt.s32.totalorder %s19, 4
    %p465 = pnand %p463, %p464
    %p466 = pneg %p465
    // Predicated region
    $region69: #{model_mode0.8} parent=5 // pred_check
      _
    $region70: #{model_mode0.8} parent=5 // pred_check_branch
      %468 = sbr.rel (%p465) target = $region72
    $region71: #{model_mode0.8} parent=5 // pred_region
      %s469 = ssub.s32 %s19, 1
      %p470 = pneg %p40
      %p471 = pneg %p37
      %p472 = pneg %p61
      %p473 = pneg %p58
      %p474 = pneg %p82
      %p475 = pneg %p79
      %p476 = scmp.lt.s32.totalorder %s24, 2
      %s477 = scalar_select %p476, %s24, 2
      %s478 = smul.addr %s477, 48
      %s479 = smul.addr %s478, 4
      %s480 = scalar_lea.vmem %s3, %s479
      %p481 = pneg %p108
      %p482 = pneg %p105
      %p483 = scmp.lt.s32.totalorder %s24, 2
      %s484 = scalar_select %p483, %s24, 2
      %s485 = smul.addr %s484, 3
      %s486 = scalar_lea.vmem %s4, %s485
      %p487 = pneg %p134
      %p488 = pneg %p131
      %p489 = scmp.lt.s32.totalorder %s24, 2
      %s490 = scalar_select %p489, %s24, 2
      %s491 = smul.addr %s490, 16
      %s492 = smul.addr %s491, 4
      %s493 = scalar_lea.vmem %s5, %s492
      %p494 = pneg %p160
      %p495 = pneg %p157
      %p496 = scmp.lt.s32.totalorder %s24, 2
      %s497 = scalar_select %p496, %s24, 2
      %s498 = scalar_lea.vmem %s6, %s497
      %p499 = pneg %p186
      %p500 = pneg %p183
      %p501 = scmp.lt.s32.totalorder %s24, 2
      %s502 = scalar_select %p501, %s24, 2
      %s503 = smul.addr %s502, 2
      %s504 = scalar_lea.vmem %s7, %s503
      %p505 = pneg %p212
      %p506 = pneg %p209
      %p507 = scmp.lt.s32.totalorder %s24, 2
      %s508 = scalar_select %p507, %s24, 2
      %s509 = smul.addr %s508, 2
      %s510 = scalar_lea.vmem %s8, %s509
      %p511 = pneg %p238
      %p512 = pneg %p235
      %p513 = scmp.lt.s32.totalorder %s24, 2
      %s514 = scalar_select %p513, %s24, 2
      %s515 = smul.addr %s514, 32
      %s516 = smul.addr %s515, 4
      %s517 = scalar_lea.vmem %s9, %s516
      %p518 = pneg %p264
      %p519 = pneg %p261
      %p520 = scmp.lt.s32.totalorder %s24, 2
      %s521 = scalar_select %p520, %s24, 2
      %s522 = smul.addr %s521, 2
      %s523 = scalar_lea.vmem %s10, %s522
      %p524 = pneg %p290
      %p525 = pneg %p287
      %p526 = scmp.lt.s32.totalorder %s24, 2
      %s527 = scalar_select %p526, %s24, 2
      %s528 = smul.addr %s527, 32
      %s529 = smul.addr %s528, 4
      %s530 = scalar_lea.vmem %s11, %s529
      %p531 = pneg %p316
      %p532 = pneg %p313
      %p533 = scmp.lt.s32.totalorder %s24, 2
      %s534 = scalar_select %p533, %s24, 2
      %s535 = scalar_lea.vmem %s12, %s534
      %p536 = pneg %p342
      %p537 = pneg %p339
      %p538 = pneg %p363
      %p539 = pneg %p360
      %p540 = scmp.lt.s32.totalorder %s24, 2
      %s541 = scalar_select %p540, %s24, 2
      %s542 = smul.addr %s541, 48
      %s543 = smul.addr %s542, 4
      %s544 = scalar_lea.vmem %s3, %s543
      %p545 = scmp.lt.s32.totalorder %s24, 2
      %s546 = scalar_select %p545, %s24, 2
      %s547 = smul.addr %s546, 3
      %s548 = scalar_lea.vmem %s4, %s547
      %p549 = scmp.lt.s32.totalorder %s24, 2
      %s550 = scalar_select %p549, %s24, 2
      %s551 = smul.addr %s550, 16
      %s552 = smul.addr %s551, 4
      %s553 = scalar_lea.vmem %s5, %s552
      %p554 = scmp.lt.s32.totalorder %s24, 2
      %s555 = scalar_select %p554, %s24, 2
      %s556 = scalar_lea.vmem %s6, %s555
      %p557 = scmp.lt.s32.totalorder %s24, 2
      %s558 = scalar_select %p557, %s24, 2
      %s559 = smul.addr %s558, 2
      %s560 = scalar_lea.vmem %s7, %s559
      %p561 = scmp.lt.s32.totalorder %s24, 2
      %s562 = scalar_select %p561, %s24, 2
      %s563 = smul.addr %s562, 2
      %s564 = scalar_lea.vmem %s8, %s563
      %p565 = scmp.lt.s32.totalorder %s24, 2
      %s566 = scalar_select %p565, %s24, 2
      %s567 = smul.addr %s566, 32
      %s568 = smul.addr %s567, 4
      %s569 = scalar_lea.vmem %s9, %s568
      %p570 = scmp.lt.s32.totalorder %s24, 2
      %s571 = scalar_select %p570, %s24, 2
      %s572 = smul.addr %s571, 2
      %s573 = scalar_lea.vmem %s10, %s572
      %p574 = scmp.lt.s32.totalorder %s24, 2
      %s575 = scalar_select %p574, %s24, 2
      %s576 = smul.addr %s575, 32
      %s577 = smul.addr %s576, 4
      %s578 = scalar_lea.vmem %s11, %s577
      %p579 = scmp.lt.s32.totalorder %s24, 2
      %s580 = scalar_select %p579, %s24, 2
      %s581 = scalar_lea.vmem %s12, %s580
      %p583 = scmp.eq.s32.totalorder %s24, 0
      // Predicated region
      $region73: #{model_mode0.8} parent=71 // pred_check
        %p584 = pneg %p583
      $region74: #{model_mode0.8} parent=71 // pred_check_branch
        %586 = sbr.rel (%p584) target = $region76
      $region75: #{model_mode0.8} parent=71 // pred_region
        %v587 = vld [vmem:[%s0] sm:$0xff]
        %v588 = vld [vmem:[%s0 + $0x8] sm:$0xff]
        %v589 = vld [vmem:[%s0 + $0x10] sm:$0xff]
        %v590 = vld [vmem:[%s0 + $0x18] sm:$0xf]
        %591 = vst [vmem:[%s13] sm:$0xff] %v587
        %592 = vst [vmem:[%s13 + $0x8] sm:$0xff] %v588
        %593 = vst [vmem:[%s13 + $0x10] sm:$0xff] %v589
        %594 = vst [vmem:[%s13 + $0x18] sm:$0xf] %v590
      $region76: #{model_mode0.8} parent=71 // pred_fallthru
        _
      %v595 = vld [vmem:[%s13] sm:$0xff]
      %v596 = vld [vmem:[%s13 + $0x8] sm:$0xff]
      %v597 = vld [vmem:[%s13 + $0x10] sm:$0xff]
      %v598 = vld [vmem:[%s13 + $0x18] sm:$0xf]
      %v599 = vld [vmem:[%s1] sm:$0x1]
      %v600 = vld [vmem:[%s1 + $0x1] sm:$0x1]
      %v601 = vld [vmem:[%s544] sm:$0xff]
      %v602 = vld [vmem:[%s544 + $0x8] sm:$0xf]
      %v603 = vld [vmem:[%s544 + $0xc] sm:$0xff]
      %v604 = vld [vmem:[%s544 + $0x14] sm:$0xf]
      %v605 = vld [vmem:[%s544 + $0x18] sm:$0xff]
      %v606 = vld [vmem:[%s544 + $0x20] sm:$0xf]
      %v607 = vld [vmem:[%s544 + $0x24] sm:$0xff]
      %v608 = vld [vmem:[%s544 + $0x2c] sm:$0xf]
      %v609 = vld [vmem:[%s544 + $0x30] sm:$0xff]
      %v610 = vld [vmem:[%s544 + $0x38] sm:$0xf]
      %v611 = vld [vmem:[%s544 + $0x3c] sm:$0xff]
      %v612 = vld [vmem:[%s544 + $0x44] sm:$0xf]
      %v613 = vld [vmem:[%s544 + $0x48] sm:$0xff]
      %v614 = vld [vmem:[%s544 + $0x50] sm:$0xf]
      %v615 = vld [vmem:[%s544 + $0x54] sm:$0xff]
      %v616 = vld [vmem:[%s544 + $0x5c] sm:$0xf]
      %v617 = vld [vmem:[%s544 + $0x60] sm:$0xff]
      %v618 = vld [vmem:[%s544 + $0x68] sm:$0xf]
      %v619 = vld [vmem:[%s544 + $0x6c] sm:$0xff]
      %v620 = vld [vmem:[%s544 + $0x74] sm:$0xf]
      %v621 = vld [vmem:[%s544 + $0x78] sm:$0xff]
      %v622 = vld [vmem:[%s544 + $0x80] sm:$0xf]
      %v623 = vld [vmem:[%s544 + $0x84] sm:$0xff]
      %v624 = vld [vmem:[%s544 + $0x8c] sm:$0xf]
      %v625 = vld [vmem:[%s544 + $0x90] sm:$0xff]
      %v626 = vld [vmem:[%s544 + $0x98] sm:$0xf]
      %v627 = vld [vmem:[%s544 + $0x9c] sm:$0xff]
      %v628 = vld [vmem:[%s544 + $0xa4] sm:$0xf]
      %v629 = vld [vmem:[%s544 + $0xa8] sm:$0xff]
      %v630 = vld [vmem:[%s544 + $0xb0] sm:$0xf]
      %v631 = vld [vmem:[%s544 + $0xb4] sm:$0xff]
      %v632 = vld [vmem:[%s544 + $0xbc] sm:$0xf]
      %v633 = vld [vmem:[%s548] sm:$0x7]
      %v634 = vld [vmem:[%s553] sm:$0xf]
      %v635 = vld [vmem:[%s553 + $0x4] sm:$0xf]
      %v636 = vld [vmem:[%s553 + $0x8] sm:$0xf]
      %v637 = vld [vmem:[%s553 + $0xc] sm:$0xf]
      %v638 = vld [vmem:[%s553 + $0x10] sm:$0xf]
      %v639 = vld [vmem:[%s553 + $0x14] sm:$0xf]
      %v640 = vld [vmem:[%s553 + $0x18] sm:$0xf]
      %v641 = vld [vmem:[%s553 + $0x1c] sm:$0xf]
      %v642 = vld [vmem:[%s553 + $0x20] sm:$0xf]
      %v643 = vld [vmem:[%s553 + $0x24] sm:$0xf]
      %v644 = vld [vmem:[%s553 + $0x28] sm:$0xf]
      %v645 = vld [vmem:[%s553 + $0x2c] sm:$0xf]
      %v646 = vld [vmem:[%s553 + $0x30] sm:$0xf]
      %v647 = vld [vmem:[%s553 + $0x34] sm:$0xf]
      %v648 = vld [vmem:[%s553 + $0x38] sm:$0xf]
      %v649 = vld [vmem:[%s553 + $0x3c] sm:$0xf]
      %v650 = vld [vmem:[%s556] sm:$0x1]
      %v651 = vld [vmem:[%s560] sm:$0x3]
      %v652 = vld [vmem:[%s564] sm:$0x3]
      %v653 = vld [vmem:[%s569] sm:$0xff]
      %v654 = vld [vmem:[%s569 + $0x8] sm:$0xff]
      %v655 = vld [vmem:[%s569 + $0x10] sm:$0xff]
      %v656 = vld [vmem:[%s569 + $0x18] sm:$0xff]
      %v657 = vld [vmem:[%s569 + $0x20] sm:$0xff]
      %v658 = vld [vmem:[%s569 + $0x28] sm:$0xff]
      %v659 = vld [vmem:[%s569 + $0x30] sm:$0xff]
      %v660 = vld [vmem:[%s569 + $0x38] sm:$0xff]
      %v661 = vld [vmem:[%s569 + $0x40] sm:$0xff]
      %v662 = vld [vmem:[%s569 + $0x48] sm:$0xff]
      %v663 = vld [vmem:[%s569 + $0x50] sm:$0xff]
      %v664 = vld [vmem:[%s569 + $0x58] sm:$0xff]
      %v665 = vld [vmem:[%s569 + $0x60] sm:$0xff]
      %v666 = vld [vmem:[%s569 + $0x68] sm:$0xff]
      %v667 = vld [vmem:[%s569 + $0x70] sm:$0xff]
      %v668 = vld [vmem:[%s569 + $0x78] sm:$0xff]
      %v669 = vld [vmem:[%s573] sm:$0x3]
      %v670 = vld [vmem:[%s578] sm:$0xf]
      %v671 = vld [vmem:[%s578 + $0x4] sm:$0xf]
      %v672 = vld [vmem:[%s578 + $0x8] sm:$0xf]
      %v673 = vld [vmem:[%s578 + $0xc] sm:$0xf]
      %v674 = vld [vmem:[%s578 + $0x10] sm:$0xf]
      %v675 = vld [vmem:[%s578 + $0x14] sm:$0xf]
      %v676 = vld [vmem:[%s578 + $0x18] sm:$0xf]
      %v677 = vld [vmem:[%s578 + $0x1c] sm:$0xf]
      %v678 = vld [vmem:[%s578 + $0x20] sm:$0xf]
      %v679 = vld [vmem:[%s578 + $0x24] sm:$0xf]
      %v680 = vld [vmem:[%s578 + $0x28] sm:$0xf]
      %v681 = vld [vmem:[%s578 + $0x2c] sm:$0xf]
      %v682 = vld [vmem:[%s578 + $0x30] sm:$0xf]
      %v683 = vld [vmem:[%s578 + $0x34] sm:$0xf]
      %v684 = vld [vmem:[%s578 + $0x38] sm:$0xf]
      %v685 = vld [vmem:[%s578 + $0x3c] sm:$0xf]
      %v686 = vld [vmem:[%s578 + $0x40] sm:$0xf]
      %v687 = vld [vmem:[%s578 + $0x44] sm:$0xf]
      %v688 = vld [vmem:[%s578 + $0x48] sm:$0xf]
      %v689 = vld [vmem:[%s578 + $0x4c] sm:$0xf]
      %v690 = vld [vmem:[%s578 + $0x50] sm:$0xf]
      %v691 = vld [vmem:[%s578 + $0x54] sm:$0xf]
      %v692 = vld [vmem:[%s578 + $0x58] sm:$0xf]
      %v693 = vld [vmem:[%s578 + $0x5c] sm:$0xf]
      %v694 = vld [vmem:[%s578 + $0x60] sm:$0xf]
      %v695 = vld [vmem:[%s578 + $0x64] sm:$0xf]
      %v696 = vld [vmem:[%s578 + $0x68] sm:$0xf]
      %v697 = vld [vmem:[%s578 + $0x6c] sm:$0xf]
      %v698 = vld [vmem:[%s578 + $0x70] sm:$0xf]
      %v699 = vld [vmem:[%s578 + $0x74] sm:$0xf]
      %v700 = vld [vmem:[%s578 + $0x78] sm:$0xf]
      %v701 = vld [vmem:[%s578 + $0x7c] sm:$0xf]
      %v702 = vld [vmem:[%s581] sm:$0x1]
      %703 = vadd.xlane.f32.xlu0 %v595
      %v704 = vpop.xlane.xlu0 %703
      %705 = vadd.xlane.f32.xlu0 %v596
      %v706 = vpop.xlane.xlu0 %705
      %707 = vadd.xlane.f32.xlu0 %v597
      %v708 = vpop.xlane.xlu0 %707
      %vm709 = vcmask 1043456
      %v710 = vsel %vm709, %v598, 0.0
      %711 = vadd.xlane.f32.xlu0 %v710
      %v712 = vpop.xlane.xlu0 %711
      %v713 = vrcp.pop 128.0
      %v714 = vmul.f32 %v704, %v713
      %v715 = vmul.f32 %v706, %v713
      %v716 = vmul.f32 %v708, %v713
      %v717 = vmul.f32 %v712, %v713
      %v718 = vsub.f32 %v595, %v714
      %v719 = vsub.f32 %v596, %v715
      %v720 = vsub.f32 %v597, %v716
      %v721 = vsub.f32 %v598, %v717
      %v722 = vmul.f32 %v718, %v718
      %v723 = vmul.f32 %v719, %v719
      %v724 = vmul.f32 %v720, %v720
      %v725 = vmul.f32 %v721, %v721
      %726 = vadd.xlane.f32.xlu0 %v722
      %v727 = vpop.xlane.xlu0 %726
      %728 = vadd.xlane.f32.xlu0 %v723
      %v729 = vpop.xlane.xlu0 %728
      %730 = vadd.xlane.f32.xlu0 %v724
      %v731 = vpop.xlane.xlu0 %730
      %v732 = vsel %vm709, %v725, 0.0
      %733 = vadd.xlane.f32.xlu0 %v732
      %v734 = vpop.xlane.xlu0 %733
      %v735 = vmul.f32 %v727, %v713
      %v736 = vmul.f32 %v729, %v713
      %v737 = vmul.f32 %v731, %v713
      %v738 = vmul.f32 %v734, %v713
      %v739 = vadd.f32 %v735, 1e-05
      %v740 = vadd.f32 %v736, 1e-05
      %v741 = vadd.f32 %v737, 1e-05
      %v742 = vadd.f32 %v738, 1e-05
      %v743 = vrsqrt.pop %v739
      %v744 = vrsqrt.pop %v740
      %v745 = vrsqrt.pop %v741
      %v746 = vrsqrt.pop %v742
      %v747 = vmul.f32 %v718, %v743
      %v748 = vmul.f32 %v719, %v744
      %v749 = vmul.f32 %v720, %v745
      %v750 = vmul.f32 %v721, %v746
      %v751 = vlaneseq
      %v752 = vshrl.u32 %v751, 7
      %v753 = vsub.s32 0, %v752
      %v754 = vrot.slane %v651, %v753
      %v755 = vmul.f32 %v747, %v754
      %v756 = vmul.f32 %v748, %v754
      %v757 = vmul.f32 %v749, %v754
      %v758 = vmul.f32 %v750, %v754
      %v759 = vlaneseq
      %v760 = vshrl.u32 %v759, 7
      %v761 = vsub.s32 1, %v760
      %v762 = vrot.slane %v651, %v761
      %v763 = vadd.f32 %v755, %v762
      %v764 = vadd.f32 %v756, %v762
      %v765 = vadd.f32 %v757, %v762
      %v766 = vadd.f32 %v758, %v762
      %v767 = vpack.c.bf16 %v764, %v763
      %v768 = vpack.c.bf16 %v766, %v765
      %v770 = vlaneseq
      %v771 = vshrl.u32 %v770, 7
      %v772 = vsub.s32 0, %v771
      %v773 = vrot.slane %v633, %v772
      %v774 = vlaneseq
      %v775 = vshrl.u32 %v774, 7
      %v776 = vsub.s32 1, %v775
      %v777 = vrot.slane %v633, %v776
      %v778 = vlaneseq
      %v779 = vshrl.u32 %v778, 7
      %v780 = vsub.s32 2, %v779
      %v781 = vrot.slane %v633, %v780
      %v817 = vunpack.c.l.b16 %v601
      %v818 = vunpack.c.h.b16 %v601
      %v819 = vunpack.c.l.b16 %v602
      %v820 = vunpack.c.l.b16 %v603
      %v821 = vunpack.c.h.b16 %v603
      %v822 = vunpack.c.l.b16 %v604
      %v823 = vunpack.c.l.b16 %v605
      %v824 = vunpack.c.h.b16 %v605
      %v825 = vunpack.c.l.b16 %v606
      %v826 = vunpack.c.l.b16 %v607
      %v827 = vunpack.c.h.b16 %v607
      %v828 = vunpack.c.l.b16 %v608
      %v829 = vunpack.c.l.b16 %v609
      %v830 = vunpack.c.h.b16 %v609
      %v831 = vunpack.c.l.b16 %v610
      %v832 = vunpack.c.l.b16 %v611
      %v833 = vunpack.c.h.b16 %v611
      %v834 = vunpack.c.l.b16 %v612
      %v835 = vunpack.c.l.b16 %v613
      %v836 = vunpack.c.h.b16 %v613
      %v837 = vunpack.c.l.b16 %v614
      %v838 = vunpack.c.l.b16 %v615
      %v839 = vunpack.c.h.b16 %v615
      %v840 = vunpack.c.l.b16 %v616
      %v841 = vunpack.c.l.b16 %v617
      %v842 = vunpack.c.h.b16 %v617
      %v843 = vunpack.c.l.b16 %v618
      %v844 = vunpack.c.l.b16 %v619
      %v845 = vunpack.c.h.b16 %v619
      %v846 = vunpack.c.l.b16 %v620
      %v847 = vunpack.c.l.b16 %v621
      %v848 = vunpack.c.h.b16 %v621
      %v849 = vunpack.c.l.b16 %v622
      %v850 = vunpack.c.l.b16 %v623
      %v851 = vunpack.c.h.b16 %v623
      %v852 = vunpack.c.l.b16 %v624
      %v853 = vunpack.c.l.b16 %v625
      %v854 = vunpack.c.h.b16 %v625
      %v855 = vunpack.c.l.b16 %v626
      %v856 = vunpack.c.l.b16 %v627
      %v857 = vunpack.c.h.b16 %v627
      %v858 = vunpack.c.l.b16 %v628
      %v859 = vunpack.c.l.b16 %v629
      %v860 = vunpack.c.h.b16 %v629
      %v861 = vunpack.c.l.b16 %v630
      %v862 = vunpack.c.l.b16 %v631
      %v863 = vunpack.c.h.b16 %v631
      %v864 = vunpack.c.l.b16 %v632
      %v865 = vpack.c.b16 %v820, %v817
      %v866 = vpack.c.b16 %v821, %v818
      %v867 = vpack.c.b16 %v822, %v819
      %v868 = vpack.c.b16 %v826, %v823
      %v869 = vpack.c.b16 %v827, %v824
      %v870 = vpack.c.b16 %v828, %v825
      %v871 = vpack.c.b16 %v832, %v829
      %v872 = vpack.c.b16 %v833, %v830
      %v873 = vpack.c.b16 %v834, %v831
      %v874 = vpack.c.b16 %v838, %v835
      %v875 = vpack.c.b16 %v839, %v836
      %v876 = vpack.c.b16 %v840, %v837
      %v877 = vpack.c.b16 %v844, %v841
      %v878 = vpack.c.b16 %v845, %v842
      %v879 = vpack.c.b16 %v846, %v843
      %v880 = vpack.c.b16 %v850, %v847
      %v881 = vpack.c.b16 %v851, %v848
      %v882 = vpack.c.b16 %v852, %v849
      %v883 = vpack.c.b16 %v856, %v853
      %v884 = vpack.c.b16 %v857, %v854
      %v885 = vpack.c.b16 %v858, %v855
      %v886 = vpack.c.b16 %v862, %v859
      %v887 = vpack.c.b16 %v863, %v860
      %v888 = vpack.c.b16 %v864, %v861
      %913 = vmatprep.subr.bf16.mxu0 %v866
      %914 = vmatpush1.bf16.msra.mxu0 %v865
      %915 = vmatprep.subr.bf16.mxu0 %v869
      %916 = vmatpush1.bf16.msra.mxu0 %v868
      %917 = vmatprep.subr.bf16.mxu0 %v872
      %918 = vmatpush1.bf16.msra.mxu0 %v871
      %919 = vmatprep.subr.bf16.mxu0 %v875
      %920 = vmatpush1.bf16.msra.mxu0 %v874
      %921 = vmatprep.subr.bf16.mxu0 %v878
      %922 = vmatpush1.bf16.msra.mxu0 %v877
      %923 = vmatprep.subr.bf16.mxu0 %v881
      %924 = vmatpush1.bf16.msra.mxu0 %v880
      %925 = vmatprep.subr.bf16.mxu0 %v884
      %926 = vmatpush1.bf16.msra.mxu0 %v883
      %927 = vmatprep.subr.bf16.mxu0 %v887
      %928 = vmatpush1.bf16.msra.mxu0 %v886
      %929 = vmatprep.subr.bf16.mxu0 0
      %930 = vmatpush1.bf16.msra.mxu0 0
      %931 = vmatprep.subr.bf16.mxu0 0
      %932 = vmatpush1.bf16.msra.mxu0 0
      %933 = vmatprep.subr.bf16.mxu0 0
      %934 = vmatpush1.bf16.msra.mxu0 0
      %935 = vmatprep.subr.bf16.mxu0 0
      %936 = vmatpush1.bf16.msra.mxu0 0
      %937 = vmatprep.subr.bf16.mxu0 0
      %938 = vmatpush1.bf16.msra.mxu0 0
      %939 = vmatprep.subr.bf16.mxu0 0
      %940 = vmatpush1.bf16.msra.mxu0 0
      %941 = vmatprep.subr.bf16.mxu0 0
      %942 = vmatpush1.bf16.msra.mxu0 0
      %943 = vmatprep.subr.bf16.mxu0 0
      %944 = vmatpush1.bf16.msra.mxu0 0
      %945 = vmatprep.mubr.bf16.mxu0 0
      %946 = vmatmul.mubr.bf16.gmra.mrb[0].mxu0 %v767
      %v947 = vpop.f32.mrb[0].mxu0
      %v948 = vadd.f32 %v773, %v947
      %v949 = vpop.f32.mrb[0].mxu0
      %v950 = vadd.f32 %v777, %v949
      %v951 = vpop.f32.mrb[0].mxu0
      %v952 = vadd.f32 %v773, %v951
      %v953 = vpop.f32.mrb[0].mxu0
      %v954 = vadd.f32 %v777, %v953
      %955 = vmatprep.mubr.bf16.mxu0 0
      %956 = vmatmul.mubr.bf16.gmra.mrb[0].mxu0 %v768
      %v957 = vpop.f32.mrb[0].mxu0
      %v958 = vadd.f32 %v773, %v957
      %v959 = vpop.f32.mrb[0].mxu0
      %v960 = vadd.f32 %v777, %v959
      %v961 = vpop.f32.mrb[0].mxu0
      %v962 = vadd.f32 %v773, %v961
      %v963 = vpop.f32.mrb[0].mxu0
      %v964 = vadd.f32 %v777, %v963
      %965 = vdwg.mxu0
      %966 = vmatprep.subr.bf16.mxu0 0
      %967 = vmatpush1.bf16.msra.mxu0 %v867
      %968 = vmatprep.subr.bf16.mxu0 0
      %969 = vmatpush1.bf16.msra.mxu0 %v870
      %970 = vmatprep.subr.bf16.mxu0 0
      %971 = vmatpush1.bf16.msra.mxu0 %v873
      %972 = vmatprep.subr.bf16.mxu0 0
      %973 = vmatpush1.bf16.msra.mxu0 %v876
      %974 = vmatprep.subr.bf16.mxu0 0
      %975 = vmatpush1.bf16.msra.mxu0 %v879
      %976 = vmatprep.subr.bf16.mxu0 0
      %977 = vmatpush1.bf16.msra.mxu0 %v882
      %978 = vmatprep.subr.bf16.mxu0 0
      %979 = vmatpush1.bf16.msra.mxu0 %v885
      %980 = vmatprep.subr.bf16.mxu0 0
      %981 = vmatpush1.bf16.msra.mxu0 %v888
      %982 = vmatprep.subr.bf16.mxu0 0
      %983 = vmatpush1.bf16.msra.mxu0 0
      %984 = vmatprep.subr.bf16.mxu0 0
      %985 = vmatpush1.bf16.msra.mxu0 0
      %986 = vmatprep.subr.bf16.mxu0 0
      %987 = vmatpush1.bf16.msra.mxu0 0
      %988 = vmatprep.subr.bf16.mxu0 0
      %989 = vmatpush1.bf16.msra.mxu0 0
      %990 = vmatprep.subr.bf16.mxu0 0
      %991 = vmatpush1.bf16.msra.mxu0 0
      %992 = vmatprep.subr.bf16.mxu0 0
      %993 = vmatpush1.bf16.msra.mxu0 0
      %994 = vmatprep.subr.bf16.mxu0 0
      %995 = vmatpush1.bf16.msra.mxu0 0
      %996 = vmatprep.subr.bf16.mxu0 0
      %997 = vmatpush1.bf16.msra.mxu0 0
      %998 = vmatprep.mubr.bf16.mxu0 0
      %999 = vmatmul.mubr.bf16.gmra.mrb[0].mxu0 %v767
      %v1000 = vpop.f32.mrb[0].mxu0
      %v1001 = vadd.f32 %v781, %v1000
      %v1002 = vpop.f32.mrb[0].mxu0
      %v1003 = vpop.f32.mrb[0].mxu0
      %v1004 = vadd.f32 %v781, %v1003
      %v1005 = vpop.f32.mrb[0].mxu0
      %1006 = vmatprep.mubr.bf16.mxu0 0
      %1007 = vmatmul.mubr.bf16.gmra.mrb[0].mxu0 %v768
      %v1008 = vpop.f32.mrb[0].mxu0
      %v1009 = vadd.f32 %v781, %v1008
      %v1010 = vpop.f32.mrb[0].mxu0
      %v1011 = vpop.f32.mrb[0].mxu0
      %v1012 = vadd.f32 %v781, %v1011
      %v1013 = vpop.f32.mrb[0].mxu0
      %1014 = vdwg.mxu0
      %v1019 = vcombine.high %v948, %v948
      %v1021 = vunpack.c.l.s4 1983009808
      %v1022 = vunpack.c.0.s8 %v1021
      %v1023 = vlaneseq
      %v1024 = vshrl.u32 %v1023, 7
      %v1025 = vsub.s32 %v1022, %v1024
      %v1026 = vrot.slane %v948, %v1025
      %v1028 = vunpack.c.l.s4 1983009808
      %v1029 = vunpack.c.0.s8 %v1028
      %v1030 = vlaneseq
      %v1031 = vshrl.u32 %v1030, 7
      %v1032 = vsub.s32 %v1029, %v1031
      %v1033 = vrot.slane %v1019, %v1032
      %v1034 = vcombine.high %v1026, %v1026
      %v1035 = vcombine.high %v1033, %v1033
      %v1036 = vcombine.high %v952, %v952
      %v1038 = vunpack.c.l.s4 1983009808
      %v1039 = vunpack.c.0.s8 %v1038
      %v1040 = vlaneseq
      %v1041 = vshrl.u32 %v1040, 7
      %v1042 = vsub.s32 %v1039, %v1041
      %v1043 = vrot.slane %v952, %v1042
      %v1045 = vunpack.c.l.s4 1983009808
      %v1046 = vunpack.c.0.s8 %v1045
      %v1047 = vlaneseq
      %v1048 = vshrl.u32 %v1047, 7
      %v1049 = vsub.s32 %v1046, %v1048
      %v1050 = vrot.slane %v1036, %v1049
      %v1051 = vcombine.high %v1043, %v1043
      %v1052 = vcombine.high %v1050, %v1050
      %v1053 = vcombine.high %v958, %v958
      %v1055 = vunpack.c.l.s4 1983009808
      %v1056 = vunpack.c.0.s8 %v1055
      %v1057 = vlaneseq
      %v1058 = vshrl.u32 %v1057, 7
      %v1059 = vsub.s32 %v1056, %v1058
      %v1060 = vrot.slane %v958, %v1059
      %v1062 = vunpack.c.l.s4 1983009808
      %v1063 = vunpack.c.0.s8 %v1062
      %v1064 = vlaneseq
      %v1065 = vshrl.u32 %v1064, 7
      %v1066 = vsub.s32 %v1063, %v1065
      %v1067 = vrot.slane %v1053, %v1066
      %v1068 = vcombine.high %v1060, %v1060
      %v1069 = vcombine.high %v1067, %v1067
      %v1071 = vunpack.c.l.s4 1983009808
      %v1072 = vunpack.c.0.s8 %v1071
      %v1073 = vlaneseq
      %v1074 = vshrl.u32 %v1073, 7
      %v1075 = vsub.s32 %v1072, %v1074
      %v1076 = vrot.slane %v962, %v1075
      %v1077 = vcombine.high %v1076, %v1076
      %v1078 = vcombine.low %v1026, %v1034
      %v1079 = vcombine.low %v1033, %v1035
      %v1081 = vunpack.c.l.s4 1983009808
      %v1082 = vunpack.c.0.s8 %v1081
      %v1083 = vlaneseq
      %v1084 = vshrl.u32 %v1083, 7
      %v1085 = vsub.s32 %v1082, %v1084
      %v1086 = vrot.slane %v1078, %v1085
      %v1088 = vunpack.c.l.s4 1983009808
      %v1089 = vunpack.c.0.s8 %v1088
      %v1090 = vlaneseq
      %v1091 = vshrl.u32 %v1090, 7
      %v1092 = vsub.s32 %v1089, %v1091
      %v1093 = vrot.slane %v1079, %v1092
      %v1094 = vcombine.low %v1086, %v1093
      %v1095 = vcombine.low %v1043, %v1051
      %v1097 = vunpack.c.l.s4 1983009808
      %v1098 = vunpack.c.0.s8 %v1097
      %v1099 = vlaneseq
      %v1100 = vshrl.u32 %v1099, 7
      %v1101 = vsub.s32 %v1098, %v1100
      %v1102 = vrot.slane %v1095, %v1101
      %v1104 = vunpack.c.l.s4 1983009808
      %v1105 = vunpack.c.0.s8 %v1104
      %v1106 = vlaneseq
      %v1107 = vshrl.u32 %v1106, 7
      %v1108 = vsub.s32 %v1105, %v1107
      %v1109 = vrot.slane %v1050, %v1108
      %v1110 = vcombine.low %v1102, %v1109
      %v1111 = vcombine.low %v1052, %v1060
      %v1112 = vcombine.low %v1068, %v1067
      %v1114 = vunpack.c.l.s4 1983009808
      %v1115 = vunpack.c.0.s8 %v1114
      %v1116 = vlaneseq
      %v1117 = vshrl.u32 %v1116, 7
      %v1118 = vsub.s32 %v1115, %v1117
      %v1119 = vrot.slane %v1111, %v1118
      %v1121 = vunpack.c.l.s4 1983009808
      %v1122 = vunpack.c.0.s8 %v1121
      %v1123 = vlaneseq
      %v1124 = vshrl.u32 %v1123, 7
      %v1125 = vsub.s32 %v1122, %v1124
      %v1126 = vrot.slane %v1112, %v1125
      %v1127 = vcombine.low %v1119, %v1126
      %v1128 = vcombine.low %v1069, %v1076
      %v1130 = vunpack.c.l.s4 1983009808
      %v1131 = vunpack.c.0.s8 %v1130
      %v1132 = vlaneseq
      %v1133 = vshrl.u32 %v1132, 7
      %v1134 = vsub.s32 %v1131, %v1133
      %v1135 = vrot.slane %v1128, %v1134
      %v1137 = vunpack.c.l.s4 1983009808
      %v1138 = vunpack.c.0.s8 %v1137
      %v1139 = vlaneseq
      %v1140 = vshrl.u32 %v1139, 7
      %v1141 = vsub.s32 %v1138, %v1140
      %v1142 = vrot.slane %v1077, %v1141
      %v1143 = vcombine.low %v1135, %v1142
      %v1148 = vpack.c.bf16 %v1110, %v1094
      %v1149 = vpack.c.bf16 %v1143, %v1127
      %v1154 = vcombine.high %v950, %v950
      %v1156 = vunpack.c.l.s4 1983009808
      %v1157 = vunpack.c.0.s8 %v1156
      %v1158 = vlaneseq
      %v1159 = vshrl.u32 %v1158, 7
      %v1160 = vsub.s32 %v1157, %v1159
      %v1161 = vrot.slane %v950, %v1160
      %v1163 = vunpack.c.l.s4 1983009808
      %v1164 = vunpack.c.0.s8 %v1163
      %v1165 = vlaneseq
      %v1166 = vshrl.u32 %v1165, 7
      %v1167 = vsub.s32 %v1164, %v1166
      %v1168 = vrot.slane %v1154, %v1167
      %v1169 = vcombine.high %v1161, %v1161
      %v1170 = vcombine.high %v1168, %v1168
      %v1171 = vcombine.high %v954, %v954
      %v1173 = vunpack.c.l.s4 1983009808
      %v1174 = vunpack.c.0.s8 %v1173
      %v1175 = vlaneseq
      %v1176 = vshrl.u32 %v1175, 7
      %v1177 = vsub.s32 %v1174, %v1176
      %v1178 = vrot.slane %v954, %v1177
      %v1180 = vunpack.c.l.s4 1983009808
      %v1181 = vunpack.c.0.s8 %v1180
      %v1182 = vlaneseq
      %v1183 = vshrl.u32 %v1182, 7
      %v1184 = vsub.s32 %v1181, %v1183
      %v1185 = vrot.slane %v1171, %v1184
      %v1186 = vcombine.high %v1178, %v1178
      %v1187 = vcombine.high %v1185, %v1185
      %v1188 = vcombine.high %v960, %v960
      %v1190 = vunpack.c.l.s4 1983009808
      %v1191 = vunpack.c.0.s8 %v1190
      %v1192 = vlaneseq
      %v1193 = vshrl.u32 %v1192, 7
      %v1194 = vsub.s32 %v1191, %v1193
      %v1195 = vrot.slane %v960, %v1194
      %v1197 = vunpack.c.l.s4 1983009808
      %v1198 = vunpack.c.0.s8 %v1197
      %v1199 = vlaneseq
      %v1200 = vshrl.u32 %v1199, 7
      %v1201 = vsub.s32 %v1198, %v1200
      %v1202 = vrot.slane %v1188, %v1201
      %v1203 = vcombine.high %v1195, %v1195
      %v1204 = vcombine.high %v1202, %v1202
      %v1206 = vunpack.c.l.s4 1983009808
      %v1207 = vunpack.c.0.s8 %v1206
      %v1208 = vlaneseq
      %v1209 = vshrl.u32 %v1208, 7
      %v1210 = vsub.s32 %v1207, %v1209
      %v1211 = vrot.slane %v964, %v1210
      %v1212 = vcombine.high %v1211, %v1211
      %v1213 = vcombine.low %v1161, %v1169
      %v1214 = vcombine.low %v1168, %v1170
      %v1216 = vunpack.c.l.s4 1983009808
      %v1217 = vunpack.c.0.s8 %v1216
      %v1218 = vlaneseq
      %v1219 = vshrl.u32 %v1218, 7
      %v1220 = vsub.s32 %v1217, %v1219
      %v1221 = vrot.slane %v1213, %v1220
      %v1223 = vunpack.c.l.s4 1983009808
      %v1224 = vunpack.c.0.s8 %v1223
      %v1225 = vlaneseq
      %v1226 = vshrl.u32 %v1225, 7
      %v1227 = vsub.s32 %v1224, %v1226
      %v1228 = vrot.slane %v1214, %v1227
      %v1229 = vcombine.low %v1221, %v1228
      %v1230 = vcombine.low %v1178, %v1186
      %v1232 = vunpack.c.l.s4 1983009808
      %v1233 = vunpack.c.0.s8 %v1232
      %v1234 = vlaneseq
      %v1235 = vshrl.u32 %v1234, 7
      %v1236 = vsub.s32 %v1233, %v1235
      %v1237 = vrot.slane %v1230, %v1236
      %v1239 = vunpack.c.l.s4 1983009808
      %v1240 = vunpack.c.0.s8 %v1239
      %v1241 = vlaneseq
      %v1242 = vshrl.u32 %v1241, 7
      %v1243 = vsub.s32 %v1240, %v1242
      %v1244 = vrot.slane %v1185, %v1243
      %v1245 = vcombine.low %v1237, %v1244
      %v1246 = vcombine.low %v1187, %v1195
      %v1247 = vcombine.low %v1203, %v1202
      %v1249 = vunpack.c.l.s4 1983009808
      %v1250 = vunpack.c.0.s8 %v1249
      %v1251 = vlaneseq
      %v1252 = vshrl.u32 %v1251, 7
      %v1253 = vsub.s32 %v1250, %v1252
      %v1254 = vrot.slane %v1246, %v1253
      %v1256 = vunpack.c.l.s4 1983009808
      %v1257 = vunpack.c.0.s8 %v1256
      %v1258 = vlaneseq
      %v1259 = vshrl.u32 %v1258, 7
      %v1260 = vsub.s32 %v1257, %v1259
      %v1261 = vrot.slane %v1247, %v1260
      %v1262 = vcombine.low %v1254, %v1261
      %v1263 = vcombine.low %v1204, %v1211
      %v1265 = vunpack.c.l.s4 1983009808
      %v1266 = vunpack.c.0.s8 %v1265
      %v1267 = vlaneseq
      %v1268 = vshrl.u32 %v1267, 7
      %v1269 = vsub.s32 %v1266, %v1268
      %v1270 = vrot.slane %v1263, %v1269
      %v1272 = vunpack.c.l.s4 1983009808
      %v1273 = vunpack.c.0.s8 %v1272
      %v1274 = vlaneseq
      %v1275 = vshrl.u32 %v1274, 7
      %v1276 = vsub.s32 %v1273, %v1275
      %v1277 = vrot.slane %v1212, %v1276
      %v1278 = vcombine.low %v1270, %v1277
      %v1283 = vpack.c.bf16 %v1245, %v1229
      %v1284 = vpack.c.bf16 %v1278, %v1262
      %v1289 = vcombine.high %v1001, %v1001
      %v1291 = vunpack.c.l.s4 1983009808
      %v1292 = vunpack.c.0.s8 %v1291
      %v1293 = vlaneseq
      %v1294 = vshrl.u32 %v1293, 7
      %v1295 = vsub.s32 %v1292, %v1294
      %v1296 = vrot.slane %v1001, %v1295
      %v1298 = vunpack.c.l.s4 1983009808
      %v1299 = vunpack.c.0.s8 %v1298
      %v1300 = vlaneseq
      %v1301 = vshrl.u32 %v1300, 7
      %v1302 = vsub.s32 %v1299, %v1301
      %v1303 = vrot.slane %v1289, %v1302
      %v1304 = vcombine.high %v1296, %v1296
      %v1305 = vcombine.high %v1303, %v1303
      %v1306 = vcombine.high %v1004, %v1004
      %v1308 = vunpack.c.l.s4 1983009808
      %v1309 = vunpack.c.0.s8 %v1308
      %v1310 = vlaneseq
      %v1311 = vshrl.u32 %v1310, 7
      %v1312 = vsub.s32 %v1309, %v1311
      %v1313 = vrot.slane %v1004, %v1312
      %v1315 = vunpack.c.l.s4 1983009808
      %v1316 = vunpack.c.0.s8 %v1315
      %v1317 = vlaneseq
      %v1318 = vshrl.u32 %v1317, 7
      %v1319 = vsub.s32 %v1316, %v1318
      %v1320 = vrot.slane %v1306, %v1319
      %v1321 = vcombine.high %v1313, %v1313
      %v1322 = vcombine.high %v1320, %v1320
      %v1323 = vcombine.high %v1009, %v1009
      %v1325 = vunpack.c.l.s4 1983009808
      %v1326 = vunpack.c.0.s8 %v1325
      %v1327 = vlaneseq
      %v1328 = vshrl.u32 %v1327, 7
      %v1329 = vsub.s32 %v1326, %v1328
      %v1330 = vrot.slane %v1009, %v1329
      %v1332 = vunpack.c.l.s4 1983009808
      %v1333 = vunpack.c.0.s8 %v1332
      %v1334 = vlaneseq
      %v1335 = vshrl.u32 %v1334, 7
      %v1336 = vsub.s32 %v1333, %v1335
      %v1337 = vrot.slane %v1323, %v1336
      %v1338 = vcombine.high %v1330, %v1330
      %v1339 = vcombine.high %v1337, %v1337
      %v1341 = vunpack.c.l.s4 1983009808
      %v1342 = vunpack.c.0.s8 %v1341
      %v1343 = vlaneseq
      %v1344 = vshrl.u32 %v1343, 7
      %v1345 = vsub.s32 %v1342, %v1344
      %v1346 = vrot.slane %v1012, %v1345
      %v1347 = vcombine.high %v1346, %v1346
      %v1348 = vcombine.low %v1296, %v1304
      %v1349 = vcombine.low %v1303, %v1305
      %v1351 = vunpack.c.l.s4 1983009808
      %v1352 = vunpack.c.0.s8 %v1351
      %v1353 = vlaneseq
      %v1354 = vshrl.u32 %v1353, 7
      %v1355 = vsub.s32 %v1352, %v1354
      %v1356 = vrot.slane %v1348, %v1355
      %v1358 = vunpack.c.l.s4 1983009808
      %v1359 = vunpack.c.0.s8 %v1358
      %v1360 = vlaneseq
      %v1361 = vshrl.u32 %v1360, 7
      %v1362 = vsub.s32 %v1359, %v1361
      %v1363 = vrot.slane %v1349, %v1362
      %v1364 = vcombine.low %v1356, %v1363
      %v1365 = vcombine.low %v1313, %v1321
      %v1367 = vunpack.c.l.s4 1983009808
      %v1368 = vunpack.c.0.s8 %v1367
      %v1369 = vlaneseq
      %v1370 = vshrl.u32 %v1369, 7
      %v1371 = vsub.s32 %v1368, %v1370
      %v1372 = vrot.slane %v1365, %v1371
      %v1374 = vunpack.c.l.s4 1983009808
      %v1375 = vunpack.c.0.s8 %v1374
      %v1376 = vlaneseq
      %v1377 = vshrl.u32 %v1376, 7
      %v1378 = vsub.s32 %v1375, %v1377
      %v1379 = vrot.slane %v1320, %v1378
      %v1380 = vcombine.low %v1372, %v1379
      %v1381 = vcombine.low %v1322, %v1330
      %v1382 = vcombine.low %v1338, %v1337
      %v1384 = vunpack.c.l.s4 1983009808
      %v1385 = vunpack.c.0.s8 %v1384
      %v1386 = vlaneseq
      %v1387 = vshrl.u32 %v1386, 7
      %v1388 = vsub.s32 %v1385, %v1387
      %v1389 = vrot.slane %v1381, %v1388
      %v1391 = vunpack.c.l.s4 1983009808
      %v1392 = vunpack.c.0.s8 %v1391
      %v1393 = vlaneseq
      %v1394 = vshrl.u32 %v1393, 7
      %v1395 = vsub.s32 %v1392, %v1394
      %v1396 = vrot.slane %v1382, %v1395
      %v1397 = vcombine.low %v1389, %v1396
      %v1398 = vcombine.low %v1339, %v1346
      %v1400 = vunpack.c.l.s4 1983009808
      %v1401 = vunpack.c.0.s8 %v1400
      %v1402 = vlaneseq
      %v1403 = vshrl.u32 %v1402, 7
      %v1404 = vsub.s32 %v1401, %v1403
      %v1405 = vrot.slane %v1398, %v1404
      %v1407 = vunpack.c.l.s4 1983009808
      %v1408 = vunpack.c.0.s8 %v1407
      %v1409 = vlaneseq
      %v1410 = vshrl.u32 %v1409, 7
      %v1411 = vsub.s32 %v1408, %v1410
      %v1412 = vrot.slane %v1347, %v1411
      %v1413 = vcombine.low %v1405, %v1412
      %v1418 = vpack.c.bf16 %v1380, %v1364
      %v1419 = vpack.c.bf16 %v1413, %v1397
      %vm1420 = vcmask 261120
      %v1422 = vsel %vm1420, %v1148, 0
      %v1425 = vsel %vm1420, %v1283, 0
      %1427 = vmatprep.subr.bf16.mxu0 0
      %1428 = vmatpush1.bf16.xpose.msra.mxu0 %v1425
      %1429 = vmatprep.subr.bf16.mxu0 0
      %1430 = vmatpush1.bf16.xpose.msra.mxu0 0
      %1431 = vmatprep.subr.bf16.mxu0 0
      %1432 = vmatpush1.bf16.xpose.msra.mxu0 0
      %1433 = vmatprep.subr.bf16.mxu0 0
      %1434 = vmatpush1.bf16.xpose.msra.mxu0 0
      %1435 = vmatprep.subr.bf16.mxu0 0
      %1436 = vmatpush1.bf16.xpose.msra.mxu0 0
      %1437 = vmatprep.subr.bf16.mxu0 0
      %1438 = vmatpush1.bf16.xpose.msra.mxu0 0
      %1439 = vmatprep.subr.bf16.mxu0 0
      %1440 = vmatpush1.bf16.xpose.msra.mxu0 0
      %1441 = vmatprep.subr.bf16.mxu0 0
      %1442 = vmatpush1.bf16.xpose.msra.mxu0 0
      %1443 = vmatprep.subr.bf16.mxu0 0
      %1444 = vmatpush1.bf16.xpose.msra.mxu0 0
      %1445 = vmatprep.subr.bf16.mxu0 0
      %1446 = vmatpush1.bf16.xpose.msra.mxu0 0
      %1447 = vmatprep.subr.bf16.mxu0 0
      %1448 = vmatpush1.bf16.xpose.msra.mxu0 0
      %1449 = vmatprep.subr.bf16.mxu0 0
      %1450 = vmatpush1.bf16.xpose.msra.mxu0 0
      %1451 = vmatprep.subr.bf16.mxu0 0
      %1452 = vmatpush1.bf16.xpose.msra.mxu0 0
      %1453 = vmatprep.subr.bf16.mxu0 0
      %1454 = vmatpush1.bf16.xpose.msra.mxu0 0
      %1455 = vmatprep.subr.bf16.mxu0 0
      %1456 = vmatpush1.bf16.xpose.msra.mxu0 0
      %1457 = vmatprep.subr.bf16.mxu0 0
      %1458 = vmatpush1.bf16.xpose.msra.mxu0 0
      %1459 = vmatprep.mubr.bf16.mxu0 0
      %1460 = vmatmul.mubr.bf16.gmra.mrb[0].mxu0 %v1422
      %v1461 = vpop.f32.mrb[0].mxu0
      %v1462 = vadd.f32 0.0, %v1461
      %v1463 = vpop.f32.mrb[0].mxu0
      %v1464 = vpop.f32.mrb[0].mxu0
      %v1465 = vadd.f32 0.0, %v1464
      %v1466 = vpop.f32.mrb[0].mxu0
      %1467 = vdwg.mxu0
      %v1469 = vsel %vm1420, %v1149, 0
      %v1472 = vsel %vm1420, %v1284, 0
      %1474 = vmatprep.subr.bf16.mxu0 0
      %1475 = vmatpush1.bf16.xpose.msra.mxu0 %v1472
      %1476 = vmatprep.subr.bf16.mxu0 0
      %1477 = vmatpush1.bf16.xpose.msra.mxu0 0
      %1478 = vmatprep.subr.bf16.mxu0 0
      %1479 = vmatpush1.bf16.xpose.msra.mxu0 0
      %1480 = vmatprep.subr.bf16.mxu0 0
      %1481 = vmatpush1.bf16.xpose.msra.mxu0 0
      %1482 = vmatprep.subr.bf16.mxu0 0
      %1483 = vmatpush1.bf16.xpose.msra.mxu0 0
      %1484 = vmatprep.subr.bf16.mxu0 0
      %1485 = vmatpush1.bf16.xpose.msra.mxu0 0
      %1486 = vmatprep.subr.bf16.mxu0 0
      %1487 = vmatpush1.bf16.xpose.msra.mxu0 0
      %1488 = vmatprep.subr.bf16.mxu0 0
      %1489 = vmatpush1.bf16.xpose.msra.mxu0 0
      %1490 = vmatprep.subr.bf16.mxu0 0
      %1491 = vmatpush1.bf16.xpose.msra.mxu0 0
      %1492 = vmatprep.subr.bf16.mxu0 0
      %1493 = vmatpush1.bf16.xpose.msra.mxu0 0
      %1494 = vmatprep.subr.bf16.mxu0 0
      %1495 = vmatpush1.bf16.xpose.msra.mxu0 0
      %1496 = vmatprep.subr.bf16.mxu0 0
      %1497 = vmatpush1.bf16.xpose.msra.mxu0 0
      %1498 = vmatprep.subr.bf16.mxu0 0
      %1499 = vmatpush1.bf16.xpose.msra.mxu0 0
      %1500 = vmatprep.subr.bf16.mxu0 0
      %1501 = vmatpush1.bf16.xpose.msra.mxu0 0
      %1502 = vmatprep.subr.bf16.mxu0 0
      %1503 = vmatpush1.bf16.xpose.msra.mxu0 0
      %1504 = vmatprep.subr.bf16.mxu0 0
      %1505 = vmatpush1.bf16.xpose.msra.mxu0 0
      %1506 = vmatprep.mubr.bf16.mxu0 0
      %1507 = vmatmul.mubr.bf16.gmra.mrb[0].mxu0 %v1469
      %v1508 = vpop.f32.mrb[0].mxu0
      %v1509 = vadd.f32 0.0, %v1508
      %v1510 = vpop.f32.mrb[0].mxu0
      %v1511 = vpop.f32.mrb[0].mxu0
      %v1512 = vadd.f32 0.0, %v1511
      %v1513 = vpop.f32.mrb[0].mxu0
      %1514 = vdwg.mxu0
      %v1515 = vmul.f32 %v1462, 0.17677669
      %v1516 = vmul.f32 %v1465, 0.17677669
      %v1517 = vmul.f32 %v1509, 0.17677669
      %v1518 = vmul.f32 %v1512, 0.17677669
      %v1521 = vlaneseq
      %v1522 = vshrl.u32 %v1521, 7
      %v1523 = vsub.s32 0, %v1522
      %v1524 = vrot.slane %v599, %v1523
      %v1525 = vlaneseq
      %v1526 = vshrl.u32 %v1525, 7
      %v1527 = vsub.s32 0, %v1526
      %v1528 = vrot.slane %v600, %v1527
      %v1531 = vadd.f32 %v1515, %v1524
      %v1532 = vadd.f32 %v1516, %v1524
      %v1533 = vadd.f32 %v1517, %v1528
      %v1534 = vadd.f32 %v1518, %v1528
      %vm1535 = vcmask 113664
      %v1536 = vsel %vm1535, %v1531, -inf
      %1537 = vmax.xlane.f32.xlu0 %v1536
      %v1538 = vpop.xlane.xlu0 %1537
      %vm1539 = vcmask 111616
      %v1540 = vsel %vm1539, %v1532, -inf
      %1541 = vmax.xlane.f32.xlu0 %v1540
      %v1542 = vpop.xlane.xlu0 %1541
      %v1543 = vsel %vm1535, %v1533, -inf
      %1544 = vmax.xlane.f32.xlu0 %v1543
      %v1545 = vpop.xlane.xlu0 %1544
      %v1546 = vsel %vm1539, %v1534, -inf
      %1547 = vmax.xlane.f32.xlu0 %v1546
      %v1548 = vpop.xlane.xlu0 %1547
      %v1549 = vsub.f32 %v1531, %v1538
      %v1550 = vsub.f32 %v1532, %v1542
      %v1551 = vsub.f32 %v1533, %v1545
      %v1552 = vsub.f32 %v1534, %v1548
      %v1553 = vmul.f32 %v1549, 1.442695
      %v1554 = vpow.pop %v1553
      %v1555 = vmul.f32 %v1550, 1.442695
      %v1556 = vpow.pop %v1555
      %v1557 = vmul.f32 %v1551, 1.442695
      %v1558 = vpow.pop %v1557
      %v1559 = vmul.f32 %v1552, 1.442695
      %v1560 = vpow.pop %v1559
      %v1561 = vsel %vm1535, %v1554, 0.0
      %1562 = vadd.xlane.f32.xlu0 %v1561
      %v1563 = vpop.xlane.xlu0 %1562
      %v1564 = vsel %vm1539, %v1556, 0.0
      %1565 = vadd.xlane.f32.xlu0 %v1564
      %v1566 = vpop.xlane.xlu0 %1565
      %v1567 = vsel %vm1535, %v1558, 0.0
      %1568 = vadd.xlane.f32.xlu0 %v1567
      %v1569 = vpop.xlane.xlu0 %1568
      %v1570 = vsel %vm1539, %v1560, 0.0
      %1571 = vadd.xlane.f32.xlu0 %v1570
      %v1572 = vpop.xlane.xlu0 %1571
      %v1573 = vrcp.pop %v1563
      %v1574 = vrcp.pop %v1566
      %v1575 = vrcp.pop %v1569
      %v1576 = vrcp.pop %v1572
      %v1577 = vmul.f32 %v1554, %v1573
      %v1578 = vmul.f32 %v1556, %v1574
      %v1579 = vmul.f32 %v1558, %v1575
      %v1580 = vmul.f32 %v1560, %v1576
      %v1581 = vpack.c.bf16 %v1578, %v1577
      %v1582 = vpack.c.bf16 %v1580, %v1579
      %v1584 = vsel %vm1535, %v1581, 0
      %vm1586 = vcmask 1046528
      %v1588 = vsel %vm1586, %v1418, 0
      %1590 = vmatprep.subr.bf16.mxu0 0
      %1591 = vmatpush1.bf16.msra.mxu0 %v1588
      %1592 = vmatprep.subr.bf16.mxu0 0
      %1593 = vmatpush1.bf16.msra.mxu0 0
      %1594 = vmatprep.subr.bf16.mxu0 0
      %1595 = vmatpush1.bf16.msra.mxu0 0
      %1596 = vmatprep.subr.bf16.mxu0 0
      %1597 = vmatpush1.bf16.msra.mxu0 0
      %1598 = vmatprep.subr.bf16.mxu0 0
      %1599 = vmatpush1.bf16.msra.mxu0 0
      %1600 = vmatprep.subr.bf16.mxu0 0
      %1601 = vmatpush1.bf16.msra.mxu0 0
      %1602 = vmatprep.subr.bf16.mxu0 0
      %1603 = vmatpush1.bf16.msra.mxu0 0
      %1604 = vmatprep.subr.bf16.mxu0 0
      %1605 = vmatpush1.bf16.msra.mxu0 0
      %1606 = vmatprep.subr.bf16.mxu0 0
      %1607 = vmatpush1.bf16.msra.mxu0 0
      %1608 = vmatprep.subr.bf16.mxu0 0
      %1609 = vmatpush1.bf16.msra.mxu0 0
      %1610 = vmatprep.subr.bf16.mxu0 0
      %1611 = vmatpush1.bf16.msra.mxu0 0
      %1612 = vmatprep.subr.bf16.mxu0 0
      %1613 = vmatpush1.bf16.msra.mxu0 0
      %1614 = vmatprep.subr.bf16.mxu0 0
      %1615 = vmatpush1.bf16.msra.mxu0 0
      %1616 = vmatprep.subr.bf16.mxu0 0
      %1617 = vmatpush1.bf16.msra.mxu0 0
      %1618 = vmatprep.subr.bf16.mxu0 0
      %1619 = vmatpush1.bf16.msra.mxu0 0
      %1620 = vmatprep.subr.bf16.mxu0 0
      %1621 = vmatpush1.bf16.msra.mxu0 0
      %1622 = vmatprep.mubr.bf16.mxu0 0
      %1623 = vmatmul.mubr.bf16.gmra.mrb[0].mxu0 %v1584
      %v1624 = vpop.f32.mrb[0].mxu0
      %v1625 = vadd.f32 0.0, %v1624
      %v1626 = vpop.f32.mrb[0].mxu0
      %v1627 = vpop.f32.mrb[0].mxu0
      %v1628 = vadd.f32 0.0, %v1627
      %v1629 = vpop.f32.mrb[0].mxu0
      %1630 = vdwg.mxu0
      %v1632 = vsel %vm1535, %v1582, 0
      %v1635 = vsel %vm1586, %v1419, 0
      %1637 = vmatprep.subr.bf16.mxu0 0
      %1638 = vmatpush1.bf16.msra.mxu0 %v1635
      %1639 = vmatprep.subr.bf16.mxu0 0
      %1640 = vmatpush1.bf16.msra.mxu0 0
      %1641 = vmatprep.subr.bf16.mxu0 0
      %1642 = vmatpush1.bf16.msra.mxu0 0
      %1643 = vmatprep.subr.bf16.mxu0 0
      %1644 = vmatpush1.bf16.msra.mxu0 0
      %1645 = vmatprep.subr.bf16.mxu0 0
      %1646 = vmatpush1.bf16.msra.mxu0 0
      %1647 = vmatprep.subr.bf16.mxu0 0
      %1648 = vmatpush1.bf16.msra.mxu0 0
      %1649 = vmatprep.subr.bf16.mxu0 0
      %1650 = vmatpush1.bf16.msra.mxu0 0
      %1651 = vmatprep.subr.bf16.mxu0 0
      %1652 = vmatpush1.bf16.msra.mxu0 0
      %1653 = vmatprep.subr.bf16.mxu0 0
      %1654 = vmatpush1.bf16.msra.mxu0 0
      %1655 = vmatprep.subr.bf16.mxu0 0
      %1656 = vmatpush1.bf16.msra.mxu0 0
      %1657 = vmatprep.subr.bf16.mxu0 0
      %1658 = vmatpush1.bf16.msra.mxu0 0
      %1659 = vmatprep.subr.bf16.mxu0 0
      %1660 = vmatpush1.bf16.msra.mxu0 0
      %1661 = vmatprep.subr.bf16.mxu0 0
      %1662 = vmatpush1.bf16.msra.mxu0 0
      %1663 = vmatprep.subr.bf16.mxu0 0
      %1664 = vmatpush1.bf16.msra.mxu0 0
      %1665 = vmatprep.subr.bf16.mxu0 0
      %1666 = vmatpush1.bf16.msra.mxu0 0
      %1667 = vmatprep.subr.bf16.mxu0 0
      %1668 = vmatpush1.bf16.msra.mxu0 0
      %1669 = vmatprep.mubr.bf16.mxu0 0
      %1670 = vmatmul.mubr.bf16.gmra.mrb[0].mxu0 %v1632
      %v1671 = vpop.f32.mrb[0].mxu0
      %v1672 = vadd.f32 0.0, %v1671
      %v1673 = vpop.f32.mrb[0].mxu0
      %v1674 = vpop.f32.mrb[0].mxu0
      %v1675 = vadd.f32 0.0, %v1674
      %v1676 = vpop.f32.mrb[0].mxu0
      %1677 = vdwg.mxu0
      %v1682 = vcombine.high %v1625, %v1625
      %v1684 = vunpack.c.l.s4 1983009808
      %v1685 = vunpack.c.0.s8 %v1684
      %v1686 = vlaneseq
      %v1687 = vshrl.u32 %v1686, 7
      %v1688 = vsub.s32 %v1685, %v1687
      %v1689 = vrot.slane %v1625, %v1688
      %v1691 = vunpack.c.l.s4 1983009808
      %v1692 = vunpack.c.0.s8 %v1691
      %v1693 = vlaneseq
      %v1694 = vshrl.u32 %v1693, 7
      %v1695 = vsub.s32 %v1692, %v1694
      %v1696 = vrot.slane %v1682, %v1695
      %v1697 = vcombine.high %v1689, %v1689
      %v1698 = vcombine.high %v1696, %v1696
      %v1699 = vcombine.high %v1628, %v1628
      %v1701 = vunpack.c.l.s4 1983009808
      %v1702 = vunpack.c.0.s8 %v1701
      %v1703 = vlaneseq
      %v1704 = vshrl.u32 %v1703, 7
      %v1705 = vsub.s32 %v1702, %v1704
      %v1706 = vrot.slane %v1628, %v1705
      %v1708 = vunpack.c.l.s4 1983009808
      %v1709 = vunpack.c.0.s8 %v1708
      %v1710 = vlaneseq
      %v1711 = vshrl.u32 %v1710, 7
      %v1712 = vsub.s32 %v1709, %v1711
      %v1713 = vrot.slane %v1699, %v1712
      %v1714 = vcombine.high %v1706, %v1706
      %v1715 = vcombine.high %v1672, %v1672
      %v1717 = vunpack.c.l.s4 1983009808
      %v1718 = vunpack.c.0.s8 %v1717
      %v1719 = vlaneseq
      %v1720 = vshrl.u32 %v1719, 7
      %v1721 = vsub.s32 %v1718, %v1720
      %v1722 = vrot.slane %v1672, %v1721
      %v1724 = vunpack.c.l.s4 1983009808
      %v1725 = vunpack.c.0.s8 %v1724
      %v1726 = vlaneseq
      %v1727 = vshrl.u32 %v1726, 7
      %v1728 = vsub.s32 %v1725, %v1727
      %v1729 = vrot.slane %v1715, %v1728
      %v1730 = vcombine.high %v1722, %v1722
      %v1731 = vcombine.high %v1729, %v1729
      %v1732 = vcombine.high %v1675, %v1675
      %v1734 = vunpack.c.l.s4 1983009808
      %v1735 = vunpack.c.0.s8 %v1734
      %v1736 = vlaneseq
      %v1737 = vshrl.u32 %v1736, 7
      %v1738 = vsub.s32 %v1735, %v1737
      %v1739 = vrot.slane %v1675, %v1738
      %v1741 = vunpack.c.l.s4 1983009808
      %v1742 = vunpack.c.0.s8 %v1741
      %v1743 = vlaneseq
      %v1744 = vshrl.u32 %v1743, 7
      %v1745 = vsub.s32 %v1742, %v1744
      %v1746 = vrot.slane %v1732, %v1745
      %v1747 = vcombine.high %v1739, %v1739
      %1749 = vrot.lane.b32.xlu0 %v1148, 96
      %v1750 = vpop.permute.xlu0 %1749
      %1752 = vrot.lane.b32.xlu0 %v1283, 96
      %v1753 = vpop.permute.xlu0 %1752
      %v1755 = vsel %vm1420, %v1750, 0
      %v1758 = vsel %vm1420, %v1753, 0
      %1760 = vmatprep.subr.bf16.mxu0 0
      %1761 = vmatpush1.bf16.xpose.msra.mxu0 %v1758
      %1762 = vmatprep.subr.bf16.mxu0 0
      %1763 = vmatpush1.bf16.xpose.msra.mxu0 0
      %1764 = vmatprep.subr.bf16.mxu0 0
      %1765 = vmatpush1.bf16.xpose.msra.mxu0 0
      %1766 = vmatprep.subr.bf16.mxu0 0
      %1767 = vmatpush1.bf16.xpose.msra.mxu0 0
      %1768 = vmatprep.subr.bf16.mxu0 0
      %1769 = vmatpush1.bf16.xpose.msra.mxu0 0
      %1770 = vmatprep.subr.bf16.mxu0 0
      %1771 = vmatpush1.bf16.xpose.msra.mxu0 0
      %1772 = vmatprep.subr.bf16.mxu0 0
      %1773 = vmatpush1.bf16.xpose.msra.mxu0 0
      %1774 = vmatprep.subr.bf16.mxu0 0
      %1775 = vmatpush1.bf16.xpose.msra.mxu0 0
      %1776 = vmatprep.subr.bf16.mxu0 0
      %1777 = vmatpush1.bf16.xpose.msra.mxu0 0
      %1778 = vmatprep.subr.bf16.mxu0 0
      %1779 = vmatpush1.bf16.xpose.msra.mxu0 0
      %1780 = vmatprep.subr.bf16.mxu0 0
      %1781 = vmatpush1.bf16.xpose.msra.mxu0 0
      %1782 = vmatprep.subr.bf16.mxu0 0
      %1783 = vmatpush1.bf16.xpose.msra.mxu0 0
      %1784 = vmatprep.subr.bf16.mxu0 0
      %1785 = vmatpush1.bf16.xpose.msra.mxu0 0
      %1786 = vmatprep.subr.bf16.mxu0 0
      %1787 = vmatpush1.bf16.xpose.msra.mxu0 0
      %1788 = vmatprep.subr.bf16.mxu0 0
      %1789 = vmatpush1.bf16.xpose.msra.mxu0 0
      %1790 = vmatprep.subr.bf16.mxu0 0
      %1791 = vmatpush1.bf16.xpose.msra.mxu0 0
      %1792 = vmatprep.mubr.bf16.mxu0 0
      %1793 = vmatmul.mubr.bf16.gmra.mrb[0].mxu0 %v1755
      %v1794 = vpop.f32.mrb[0].mxu0
      %v1795 = vadd.f32 0.0, %v1794
      %v1796 = vpop.f32.mrb[0].mxu0
      %v1797 = vpop.f32.mrb[0].mxu0
      %v1798 = vadd.f32 0.0, %v1797
      %v1799 = vpop.f32.mrb[0].mxu0
      %1800 = vdwg.mxu0
      %1802 = vrot.lane.b32.xlu0 %v1149, 96
      %v1803 = vpop.permute.xlu0 %1802
      %1805 = vrot.lane.b32.xlu0 %v1284, 96
      %v1806 = vpop.permute.xlu0 %1805
      %v1808 = vsel %vm1420, %v1803, 0
      %v1811 = vsel %vm1420, %v1806, 0
      %1813 = vmatprep.subr.bf16.mxu0 0
      %1814 = vmatpush1.bf16.xpose.msra.mxu0 %v1811
      %1815 = vmatprep.subr.bf16.mxu0 0
      %1816 = vmatpush1.bf16.xpose.msra.mxu0 0
      %1817 = vmatprep.subr.bf16.mxu0 0
      %1818 = vmatpush1.bf16.xpose.msra.mxu0 0
      %1819 = vmatprep.subr.bf16.mxu0 0
      %1820 = vmatpush1.bf16.xpose.msra.mxu0 0
      %1821 = vmatprep.subr.bf16.mxu0 0
      %1822 = vmatpush1.bf16.xpose.msra.mxu0 0
      %1823 = vmatprep.subr.bf16.mxu0 0
      %1824 = vmatpush1.bf16.xpose.msra.mxu0 0
      %1825 = vmatprep.subr.bf16.mxu0 0
      %1826 = vmatpush1.bf16.xpose.msra.mxu0 0
      %1827 = vmatprep.subr.bf16.mxu0 0
      %1828 = vmatpush1.bf16.xpose.msra.mxu0 0
      %1829 = vmatprep.subr.bf16.mxu0 0
      %1830 = vmatpush1.bf16.xpose.msra.mxu0 0
      %1831 = vmatprep.subr.bf16.mxu0 0
      %1832 = vmatpush1.bf16.xpose.msra.mxu0 0
      %1833 = vmatprep.subr.bf16.mxu0 0
      %1834 = vmatpush1.bf16.xpose.msra.mxu0 0
      %1835 = vmatprep.subr.bf16.mxu0 0
      %1836 = vmatpush1.bf16.xpose.msra.mxu0 0
      %1837 = vmatprep.subr.bf16.mxu0 0
      %1838 = vmatpush1.bf16.xpose.msra.mxu0 0
      %1839 = vmatprep.subr.bf16.mxu0 0
      %1840 = vmatpush1.bf16.xpose.msra.mxu0 0
      %1841 = vmatprep.subr.bf16.mxu0 0
      %1842 = vmatpush1.bf16.xpose.msra.mxu0 0
      %1843 = vmatprep.subr.bf16.mxu0 0
      %1844 = vmatpush1.bf16.xpose.msra.mxu0 0
      %1845 = vmatprep.mubr.bf16.mxu0 0
      %1846 = vmatmul.mubr.bf16.gmra.mrb[0].mxu0 %v1808
      %v1847 = vpop.f32.mrb[0].mxu0
      %v1848 = vadd.f32 0.0, %v1847
      %v1849 = vpop.f32.mrb[0].mxu0
      %v1850 = vpop.f32.mrb[0].mxu0
      %v1851 = vadd.f32 0.0, %v1850
      %v1852 = vpop.f32.mrb[0].mxu0
      %1853 = vdwg.mxu0
      %v1854 = vmul.f32 %v1795, 0.17677669
      %v1855 = vmul.f32 %v1798, 0.17677669
      %v1856 = vmul.f32 %v1848, 0.17677669
      %v1857 = vmul.f32 %v1851, 0.17677669
      %v1858 = vadd.f32 %v1854, %v1524
      %v1859 = vadd.f32 %v1855, %v1524
      %v1860 = vadd.f32 %v1856, %v1528
      %v1861 = vadd.f32 %v1857, %v1528
      %v1862 = vsel %vm1535, %v1858, -inf
      %1863 = vmax.xlane.f32.xlu0 %v1862
      %v1864 = vpop.xlane.xlu0 %1863
      %v1865 = vsel %vm1539, %v1859, -inf
      %1866 = vmax.xlane.f32.xlu0 %v1865
      %v1867 = vpop.xlane.xlu0 %1866
      %v1868 = vsel %vm1535, %v1860, -inf
      %1869 = vmax.xlane.f32.xlu0 %v1868
      %v1870 = vpop.xlane.xlu0 %1869
      %v1871 = vsel %vm1539, %v1861, -inf
      %1872 = vmax.xlane.f32.xlu0 %v1871
      %v1873 = vpop.xlane.xlu0 %1872
      %v1874 = vsub.f32 %v1858, %v1864
      %v1875 = vsub.f32 %v1859, %v1867
      %v1876 = vsub.f32 %v1860, %v1870
      %v1877 = vsub.f32 %v1861, %v1873
      %v1878 = vmul.f32 %v1874, 1.442695
      %v1879 = vpow.pop %v1878
      %v1880 = vmul.f32 %v1875, 1.442695
      %v1881 = vpow.pop %v1880
      %v1882 = vmul.f32 %v1876, 1.442695
      %v1883 = vpow.pop %v1882
      %v1884 = vmul.f32 %v1877, 1.442695
      %v1885 = vpow.pop %v1884
      %v1886 = vsel %vm1535, %v1879, 0.0
      %1887 = vadd.xlane.f32.xlu0 %v1886
      %v1888 = vpop.xlane.xlu0 %1887
      %v1889 = vsel %vm1539, %v1881, 0.0
      %1890 = vadd.xlane.f32.xlu0 %v1889
      %v1891 = vpop.xlane.xlu0 %1890
      %v1892 = vsel %vm1535, %v1883, 0.0
      %1893 = vadd.xlane.f32.xlu0 %v1892
      %v1894 = vpop.xlane.xlu0 %1893
      %v1895 = vsel %vm1539, %v1885, 0.0
      %1896 = vadd.xlane.f32.xlu0 %v1895
      %v1897 = vpop.xlane.xlu0 %1896
      %v1898 = vrcp.pop %v1888
      %v1899 = vrcp.pop %v1891
      %v1900 = vrcp.pop %v1894
      %v1901 = vrcp.pop %v1897
      %v1902 = vmul.f32 %v1879, %v1898
      %v1903 = vmul.f32 %v1881, %v1899
      %v1904 = vmul.f32 %v1883, %v1900
      %v1905 = vmul.f32 %v1885, %v1901
      %v1906 = vpack.c.bf16 %v1903, %v1902
      %v1907 = vpack.c.bf16 %v1905, %v1904
      %1909 = vrot.lane.b32.xlu0 %v1418, 96
      %v1910 = vpop.permute.xlu0 %1909
      %v1912 = vsel %vm1535, %v1906, 0
      %v1915 = vsel %vm1586, %v1910, 0
      %1917 = vmatprep.subr.bf16.mxu0 0
      %1918 = vmatpush1.bf16.msra.mxu0 %v1915
      %1919 = vmatprep.subr.bf16.mxu0 0
      %1920 = vmatpush1.bf16.msra.mxu0 0
      %1921 = vmatprep.subr.bf16.mxu0 0
      %1922 = vmatpush1.bf16.msra.mxu0 0
      %1923 = vmatprep.subr.bf16.mxu0 0
      %1924 = vmatpush1.bf16.msra.mxu0 0
      %1925 = vmatprep.subr.bf16.mxu0 0
      %1926 = vmatpush1.bf16.msra.mxu0 0
      %1927 = vmatprep.subr.bf16.mxu0 0
      %1928 = vmatpush1.bf16.msra.mxu0 0
      %1929 = vmatprep.subr.bf16.mxu0 0
      %1930 = vmatpush1.bf16.msra.mxu0 0
      %1931 = vmatprep.subr.bf16.mxu0 0
      %1932 = vmatpush1.bf16.msra.mxu0 0
      %1933 = vmatprep.subr.bf16.mxu0 0
      %1934 = vmatpush1.bf16.msra.mxu0 0
      %1935 = vmatprep.subr.bf16.mxu0 0
      %1936 = vmatpush1.bf16.msra.mxu0 0
      %1937 = vmatprep.subr.bf16.mxu0 0
      %1938 = vmatpush1.bf16.msra.mxu0 0
      %1939 = vmatprep.subr.bf16.mxu0 0
      %1940 = vmatpush1.bf16.msra.mxu0 0
      %1941 = vmatprep.subr.bf16.mxu0 0
      %1942 = vmatpush1.bf16.msra.mxu0 0
      %1943 = vmatprep.subr.bf16.mxu0 0
      %1944 = vmatpush1.bf16.msra.mxu0 0
      %1945 = vmatprep.subr.bf16.mxu0 0
      %1946 = vmatpush1.bf16.msra.mxu0 0
      %1947 = vmatprep.subr.bf16.mxu0 0
      %1948 = vmatpush1.bf16.msra.mxu0 0
      %1949 = vmatprep.mubr.bf16.mxu0 0
      %1950 = vmatmul.mubr.bf16.gmra.mrb[0].mxu0 %v1912
      %v1951 = vpop.f32.mrb[0].mxu0
      %v1952 = vadd.f32 0.0, %v1951
      %v1953 = vpop.f32.mrb[0].mxu0
      %v1954 = vpop.f32.mrb[0].mxu0
      %v1955 = vadd.f32 0.0, %v1954
      %v1956 = vpop.f32.mrb[0].mxu0
      %1957 = vdwg.mxu0
      %1959 = vrot.lane.b32.xlu0 %v1419, 96
      %v1960 = vpop.permute.xlu0 %1959
      %v1962 = vsel %vm1535, %v1907, 0
      %v1965 = vsel %vm1586, %v1960, 0
      %1967 = vmatprep.subr.bf16.mxu0 0
      %1968 = vmatpush1.bf16.msra.mxu0 %v1965
      %1969 = vmatprep.subr.bf16.mxu0 0
      %1970 = vmatpush1.bf16.msra.mxu0 0
      %1971 = vmatprep.subr.bf16.mxu0 0
      %1972 = vmatpush1.bf16.msra.mxu0 0
      %1973 = vmatprep.subr.bf16.mxu0 0
      %1974 = vmatpush1.bf16.msra.mxu0 0
      %1975 = vmatprep.subr.bf16.mxu0 0
      %1976 = vmatpush1.bf16.msra.mxu0 0
      %1977 = vmatprep.subr.bf16.mxu0 0
      %1978 = vmatpush1.bf16.msra.mxu0 0
      %1979 = vmatprep.subr.bf16.mxu0 0
      %1980 = vmatpush1.bf16.msra.mxu0 0
      %1981 = vmatprep.subr.bf16.mxu0 0
      %1982 = vmatpush1.bf16.msra.mxu0 0
      %1983 = vmatprep.subr.bf16.mxu0 0
      %1984 = vmatpush1.bf16.msra.mxu0 0
      %1985 = vmatprep.subr.bf16.mxu0 0
      %1986 = vmatpush1.bf16.msra.mxu0 0
      %1987 = vmatprep.subr.bf16.mxu0 0
      %1988 = vmatpush1.bf16.msra.mxu0 0
      %1989 = vmatprep.subr.bf16.mxu0 0
      %1990 = vmatpush1.bf16.msra.mxu0 0
      %1991 = vmatprep.subr.bf16.mxu0 0
      %1992 = vmatpush1.bf16.msra.mxu0 0
      %1993 = vmatprep.subr.bf16.mxu0 0
      %1994 = vmatpush1.bf16.msra.mxu0 0
      %1995 = vmatprep.subr.bf16.mxu0 0
      %1996 = vmatpush1.bf16.msra.mxu0 0
      %1997 = vmatprep.subr.bf16.mxu0 0
      %1998 = vmatpush1.bf16.msra.mxu0 0
      %1999 = vmatprep.mubr.bf16.mxu0 0
      %2000 = vmatmul.mubr.bf16.gmra.mrb[0].mxu0 %v1962
      %v2001 = vpop.f32.mrb[0].mxu0
      %v2002 = vadd.f32 0.0, %v2001
      %v2003 = vpop.f32.mrb[0].mxu0
      %v2004 = vpop.f32.mrb[0].mxu0
      %v2005 = vadd.f32 0.0, %v2004
      %v2006 = vpop.f32.mrb[0].mxu0
      %2007 = vdwg.mxu0
      %v2012 = vcombine.high %v1952, %v1952
      %v2014 = vunpack.c.l.s4 1983009808
      %v2015 = vunpack.c.0.s8 %v2014
      %v2016 = vlaneseq
      %v2017 = vshrl.u32 %v2016, 7
      %v2018 = vsub.s32 %v2015, %v2017
      %v2019 = vrot.slane %v1952, %v2018
      %v2021 = vunpack.c.l.s4 1983009808
      %v2022 = vunpack.c.0.s8 %v2021
      %v2023 = vlaneseq
      %v2024 = vshrl.u32 %v2023, 7
      %v2025 = vsub.s32 %v2022, %v2024
      %v2026 = vrot.slane %v2012, %v2025
      %v2027 = vcombine.high %v2019, %v2019
      %v2028 = vcombine.high %v2026, %v2026
      %v2029 = vcombine.high %v1955, %v1955
      %v2031 = vunpack.c.l.s4 1983009808
      %v2032 = vunpack.c.0.s8 %v2031
      %v2033 = vlaneseq
      %v2034 = vshrl.u32 %v2033, 7
      %v2035 = vsub.s32 %v2032, %v2034
      %v2036 = vrot.slane %v1955, %v2035
      %v2038 = vunpack.c.l.s4 1983009808
      %v2039 = vunpack.c.0.s8 %v2038
      %v2040 = vlaneseq
      %v2041 = vshrl.u32 %v2040, 7
      %v2042 = vsub.s32 %v2039, %v2041
      %v2043 = vrot.slane %v2029, %v2042
      %v2044 = vcombine.high %v2036, %v2036
      %v2045 = vcombine.high %v2002, %v2002
      %v2047 = vunpack.c.l.s4 1983009808
      %v2048 = vunpack.c.0.s8 %v2047
      %v2049 = vlaneseq
      %v2050 = vshrl.u32 %v2049, 7
      %v2051 = vsub.s32 %v2048, %v2050
      %v2052 = vrot.slane %v2002, %v2051
      %v2054 = vunpack.c.l.s4 1983009808
      %v2055 = vunpack.c.0.s8 %v2054
      %v2056 = vlaneseq
      %v2057 = vshrl.u32 %v2056, 7
      %v2058 = vsub.s32 %v2055, %v2057
      %v2059 = vrot.slane %v2045, %v2058
      %v2060 = vcombine.high %v2052, %v2052
      %v2061 = vcombine.high %v2059, %v2059
      %v2062 = vcombine.high %v2005, %v2005
      %v2064 = vunpack.c.l.s4 1983009808
      %v2065 = vunpack.c.0.s8 %v2064
      %v2066 = vlaneseq
      %v2067 = vshrl.u32 %v2066, 7
      %v2068 = vsub.s32 %v2065, %v2067
      %v2069 = vrot.slane %v2005, %v2068
      %v2071 = vunpack.c.l.s4 1983009808
      %v2072 = vunpack.c.0.s8 %v2071
      %v2073 = vlaneseq
      %v2074 = vshrl.u32 %v2073, 7
      %v2075 = vsub.s32 %v2072, %v2074
      %v2076 = vrot.slane %v2062, %v2075
      %v2077 = vcombine.high %v2069, %v2069
      %2078 = vrot.lane.b32.xlu0 %v1148, 64
      %v2079 = vpop.permute.xlu0 %2078
      %2080 = vrot.lane.b32.xlu0 %v1283, 64
      %v2081 = vpop.permute.xlu0 %2080
      %v2083 = vsel %vm1420, %v2079, 0
      %v2086 = vsel %vm1420, %v2081, 0
      %2088 = vmatprep.subr.bf16.mxu0 0
      %2089 = vmatpush1.bf16.xpose.msra.mxu0 %v2086
      %2090 = vmatprep.subr.bf16.mxu0 0
      %2091 = vmatpush1.bf16.xpose.msra.mxu0 0
      %2092 = vmatprep.subr.bf16.mxu0 0
      %2093 = vmatpush1.bf16.xpose.msra.mxu0 0
      %2094 = vmatprep.subr.bf16.mxu0 0
      %2095 = vmatpush1.bf16.xpose.msra.mxu0 0
      %2096 = vmatprep.subr.bf16.mxu0 0
      %2097 = vmatpush1.bf16.xpose.msra.mxu0 0
      %2098 = vmatprep.subr.bf16.mxu0 0
      %2099 = vmatpush1.bf16.xpose.msra.mxu0 0
      %2100 = vmatprep.subr.bf16.mxu0 0
      %2101 = vmatpush1.bf16.xpose.msra.mxu0 0
      %2102 = vmatprep.subr.bf16.mxu0 0
      %2103 = vmatpush1.bf16.xpose.msra.mxu0 0
      %2104 = vmatprep.subr.bf16.mxu0 0
      %2105 = vmatpush1.bf16.xpose.msra.mxu0 0
      %2106 = vmatprep.subr.bf16.mxu0 0
      %2107 = vmatpush1.bf16.xpose.msra.mxu0 0
      %2108 = vmatprep.subr.bf16.mxu0 0
      %2109 = vmatpush1.bf16.xpose.msra.mxu0 0
      %2110 = vmatprep.subr.bf16.mxu0 0
      %2111 = vmatpush1.bf16.xpose.msra.mxu0 0
      %2112 = vmatprep.subr.bf16.mxu0 0
      %2113 = vmatpush1.bf16.xpose.msra.mxu0 0
      %2114 = vmatprep.subr.bf16.mxu0 0
      %2115 = vmatpush1.bf16.xpose.msra.mxu0 0
      %2116 = vmatprep.subr.bf16.mxu0 0
      %2117 = vmatpush1.bf16.xpose.msra.mxu0 0
      %2118 = vmatprep.subr.bf16.mxu0 0
      %2119 = vmatpush1.bf16.xpose.msra.mxu0 0
      %2120 = vmatprep.mubr.bf16.mxu0 0
      %2121 = vmatmul.mubr.bf16.gmra.mrb[0].mxu0 %v2083
      %v2122 = vpop.f32.mrb[0].mxu0
      %v2123 = vadd.f32 0.0, %v2122
      %v2124 = vpop.f32.mrb[0].mxu0
      %v2125 = vpop.f32.mrb[0].mxu0
      %v2126 = vadd.f32 0.0, %v2125
      %v2127 = vpop.f32.mrb[0].mxu0
      %2128 = vdwg.mxu0
      %2129 = vrot.lane.b32.xlu0 %v1149, 64
      %v2130 = vpop.permute.xlu0 %2129
      %2131 = vrot.lane.b32.xlu0 %v1284, 64
      %v2132 = vpop.permute.xlu0 %2131
      %v2134 = vsel %vm1420, %v2130, 0
      %v2137 = vsel %vm1420, %v2132, 0
      %2139 = vmatprep.subr.bf16.mxu0 0
      %2140 = vmatpush1.bf16.xpose.msra.mxu0 %v2137
      %2141 = vmatprep.subr.bf16.mxu0 0
      %2142 = vmatpush1.bf16.xpose.msra.mxu0 0
      %2143 = vmatprep.subr.bf16.mxu0 0
      %2144 = vmatpush1.bf16.xpose.msra.mxu0 0
      %2145 = vmatprep.subr.bf16.mxu0 0
      %2146 = vmatpush1.bf16.xpose.msra.mxu0 0
      %2147 = vmatprep.subr.bf16.mxu0 0
      %2148 = vmatpush1.bf16.xpose.msra.mxu0 0
      %2149 = vmatprep.subr.bf16.mxu0 0
      %2150 = vmatpush1.bf16.xpose.msra.mxu0 0
      %2151 = vmatprep.subr.bf16.mxu0 0
      %2152 = vmatpush1.bf16.xpose.msra.mxu0 0
      %2153 = vmatprep.subr.bf16.mxu0 0
      %2154 = vmatpush1.bf16.xpose.msra.mxu0 0
      %2155 = vmatprep.subr.bf16.mxu0 0
      %2156 = vmatpush1.bf16.xpose.msra.mxu0 0
      %2157 = vmatprep.subr.bf16.mxu0 0
      %2158 = vmatpush1.bf16.xpose.msra.mxu0 0
      %2159 = vmatprep.subr.bf16.mxu0 0
      %2160 = vmatpush1.bf16.xpose.msra.mxu0 0
      %2161 = vmatprep.subr.bf16.mxu0 0
      %2162 = vmatpush1.bf16.xpose.msra.mxu0 0
      %2163 = vmatprep.subr.bf16.mxu0 0
      %2164 = vmatpush1.bf16.xpose.msra.mxu0 0
      %2165 = vmatprep.subr.bf16.mxu0 0
      %2166 = vmatpush1.bf16.xpose.msra.mxu0 0
      %2167 = vmatprep.subr.bf16.mxu0 0
      %2168 = vmatpush1.bf16.xpose.msra.mxu0 0
      %2169 = vmatprep.subr.bf16.mxu0 0
      %2170 = vmatpush1.bf16.xpose.msra.mxu0 0
      %2171 = vmatprep.mubr.bf16.mxu0 0
      %2172 = vmatmul.mubr.bf16.gmra.mrb[0].mxu0 %v2134
      %v2173 = vpop.f32.mrb[0].mxu0
      %v2174 = vadd.f32 0.0, %v2173
      %v2175 = vpop.f32.mrb[0].mxu0
      %v2176 = vpop.f32.mrb[0].mxu0
      %v2177 = vadd.f32 0.0, %v2176
      %v2178 = vpop.f32.mrb[0].mxu0
      %2179 = vdwg.mxu0
      %v2180 = vmul.f32 %v2123, 0.17677669
      %v2181 = vmul.f32 %v2126, 0.17677669
      %v2182 = vmul.f32 %v2174, 0.17677669
      %v2183 = vmul.f32 %v2177, 0.17677669
      %v2184 = vadd.f32 %v2180, %v1524
      %v2185 = vadd.f32 %v2181, %v1524
      %v2186 = vadd.f32 %v2182, %v1528
      %v2187 = vadd.f32 %v2183, %v1528
      %v2188 = vsel %vm1535, %v2184, -inf
      %2189 = vmax.xlane.f32.xlu0 %v2188
      %v2190 = vpop.xlane.xlu0 %2189
      %v2191 = vsel %vm1539, %v2185, -inf
      %2192 = vmax.xlane.f32.xlu0 %v2191
      %v2193 = vpop.xlane.xlu0 %2192
      %v2194 = vsel %vm1535, %v2186, -inf
      %2195 = vmax.xlane.f32.xlu0 %v2194
      %v2196 = vpop.xlane.xlu0 %2195
      %v2197 = vsel %vm1539, %v2187, -inf
      %2198 = vmax.xlane.f32.xlu0 %v2197
      %v2199 = vpop.xlane.xlu0 %2198
      %v2200 = vsub.f32 %v2184, %v2190
      %v2201 = vsub.f32 %v2185, %v2193
      %v2202 = vsub.f32 %v2186, %v2196
      %v2203 = vsub.f32 %v2187, %v2199
      %v2204 = vmul.f32 %v2200, 1.442695
      %v2205 = vpow.pop %v2204
      %v2206 = vmul.f32 %v2201, 1.442695
      %v2207 = vpow.pop %v2206
      %v2208 = vmul.f32 %v2202, 1.442695
      %v2209 = vpow.pop %v2208
      %v2210 = vmul.f32 %v2203, 1.442695
      %v2211 = vpow.pop %v2210
      %v2212 = vsel %vm1535, %v2205, 0.0
      %2213 = vadd.xlane.f32.xlu0 %v2212
      %v2214 = vpop.xlane.xlu0 %2213
      %v2215 = vsel %vm1539, %v2207, 0.0
      %2216 = vadd.xlane.f32.xlu0 %v2215
      %v2217 = vpop.xlane.xlu0 %2216
      %v2218 = vsel %vm1535, %v2209, 0.0
      %2219 = vadd.xlane.f32.xlu0 %v2218
      %v2220 = vpop.xlane.xlu0 %2219
      %v2221 = vsel %vm1539, %v2211, 0.0
      %2222 = vadd.xlane.f32.xlu0 %v2221
      %v2223 = vpop.xlane.xlu0 %2222
      %v2224 = vrcp.pop %v2214
      %v2225 = vrcp.pop %v2217
      %v2226 = vrcp.pop %v2220
      %v2227 = vrcp.pop %v2223
      %v2228 = vmul.f32 %v2205, %v2224
      %v2229 = vmul.f32 %v2207, %v2225
      %v2230 = vmul.f32 %v2209, %v2226
      %v2231 = vmul.f32 %v2211, %v2227
      %v2232 = vpack.c.bf16 %v2229, %v2228
      %v2233 = vpack.c.bf16 %v2231, %v2230
      %2234 = vrot.lane.b32.xlu0 %v1418, 64
      %v2235 = vpop.permute.xlu0 %2234
      %v2237 = vsel %vm1535, %v2232, 0
      %v2240 = vsel %vm1586, %v2235, 0
      %2242 = vmatprep.subr.bf16.mxu0 0
      %2243 = vmatpush1.bf16.msra.mxu0 %v2240
      %2244 = vmatprep.subr.bf16.mxu0 0
      %2245 = vmatpush1.bf16.msra.mxu0 0
      %2246 = vmatprep.subr.bf16.mxu0 0
      %2247 = vmatpush1.bf16.msra.mxu0 0
      %2248 = vmatprep.subr.bf16.mxu0 0
      %2249 = vmatpush1.bf16.msra.mxu0 0
      %2250 = vmatprep.subr.bf16.mxu0 0
      %2251 = vmatpush1.bf16.msra.mxu0 0
      %2252 = vmatprep.subr.bf16.mxu0 0
      %2253 = vmatpush1.bf16.msra.mxu0 0
      %2254 = vmatprep.subr.bf16.mxu0 0
      %2255 = vmatpush1.bf16.msra.mxu0 0
      %2256 = vmatprep.subr.bf16.mxu0 0
      %2257 = vmatpush1.bf16.msra.mxu0 0
      %2258 = vmatprep.subr.bf16.mxu0 0
      %2259 = vmatpush1.bf16.msra.mxu0 0
      %2260 = vmatprep.subr.bf16.mxu0 0
      %2261 = vmatpush1.bf16.msra.mxu0 0
      %2262 = vmatprep.subr.bf16.mxu0 0
      %2263 = vmatpush1.bf16.msra.mxu0 0
      %2264 = vmatprep.subr.bf16.mxu0 0
      %2265 = vmatpush1.bf16.msra.mxu0 0
      %2266 = vmatprep.subr.bf16.mxu0 0
      %2267 = vmatpush1.bf16.msra.mxu0 0
      %2268 = vmatprep.subr.bf16.mxu0 0
      %2269 = vmatpush1.bf16.msra.mxu0 0
      %2270 = vmatprep.subr.bf16.mxu0 0
      %2271 = vmatpush1.bf16.msra.mxu0 0
      %2272 = vmatprep.subr.bf16.mxu0 0
      %2273 = vmatpush1.bf16.msra.mxu0 0
      %2274 = vmatprep.mubr.bf16.mxu0 0
      %2275 = vmatmul.mubr.bf16.gmra.mrb[0].mxu0 %v2237
      %v2276 = vpop.f32.mrb[0].mxu0
      %v2277 = vadd.f32 0.0, %v2276
      %v2278 = vpop.f32.mrb[0].mxu0
      %v2279 = vpop.f32.mrb[0].mxu0
      %v2280 = vadd.f32 0.0, %v2279
      %v2281 = vpop.f32.mrb[0].mxu0
      %2282 = vdwg.mxu0
      %2283 = vrot.lane.b32.xlu0 %v1419, 64
      %v2284 = vpop.permute.xlu0 %2283
      %v2286 = vsel %vm1535, %v2233, 0
      %v2289 = vsel %vm1586, %v2284, 0
      %2291 = vmatprep.subr.bf16.mxu0 0
      %2292 = vmatpush1.bf16.msra.mxu0 %v2289
      %2293 = vmatprep.subr.bf16.mxu0 0
      %2294 = vmatpush1.bf16.msra.mxu0 0
      %2295 = vmatprep.subr.bf16.mxu0 0
      %2296 = vmatpush1.bf16.msra.mxu0 0
      %2297 = vmatprep.subr.bf16.mxu0 0
      %2298 = vmatpush1.bf16.msra.mxu0 0
      %2299 = vmatprep.subr.bf16.mxu0 0
      %2300 = vmatpush1.bf16.msra.mxu0 0
      %2301 = vmatprep.subr.bf16.mxu0 0
      %2302 = vmatpush1.bf16.msra.mxu0 0
      %2303 = vmatprep.subr.bf16.mxu0 0
      %2304 = vmatpush1.bf16.msra.mxu0 0
      %2305 = vmatprep.subr.bf16.mxu0 0
      %2306 = vmatpush1.bf16.msra.mxu0 0
      %2307 = vmatprep.subr.bf16.mxu0 0
      %2308 = vmatpush1.bf16.msra.mxu0 0
      %2309 = vmatprep.subr.bf16.mxu0 0
      %2310 = vmatpush1.bf16.msra.mxu0 0
      %2311 = vmatprep.subr.bf16.mxu0 0
      %2312 = vmatpush1.bf16.msra.mxu0 0
      %2313 = vmatprep.subr.bf16.mxu0 0
      %2314 = vmatpush1.bf16.msra.mxu0 0
      %2315 = vmatprep.subr.bf16.mxu0 0
      %2316 = vmatpush1.bf16.msra.mxu0 0
      %2317 = vmatprep.subr.bf16.mxu0 0
      %2318 = vmatpush1.bf16.msra.mxu0 0
      %2319 = vmatprep.subr.bf16.mxu0 0
      %2320 = vmatpush1.bf16.msra.mxu0 0
      %2321 = vmatprep.subr.bf16.mxu0 0
      %2322 = vmatpush1.bf16.msra.mxu0 0
      %2323 = vmatprep.mubr.bf16.mxu0 0
      %2324 = vmatmul.mubr.bf16.gmra.mrb[0].mxu0 %v2286
      %v2325 = vpop.f32.mrb[0].mxu0
      %v2326 = vadd.f32 0.0, %v2325
      %v2327 = vpop.f32.mrb[0].mxu0
      %v2328 = vpop.f32.mrb[0].mxu0
      %v2329 = vadd.f32 0.0, %v2328
      %v2330 = vpop.f32.mrb[0].mxu0
      %2331 = vdwg.mxu0
      %v2336 = vcombine.high %v2277, %v2277
      %v2338 = vunpack.c.l.s4 1983009808
      %v2339 = vunpack.c.0.s8 %v2338
      %v2340 = vlaneseq
      %v2341 = vshrl.u32 %v2340, 7
      %v2342 = vsub.s32 %v2339, %v2341
      %v2343 = vrot.slane %v2277, %v2342
      %v2345 = vunpack.c.l.s4 1983009808
      %v2346 = vunpack.c.0.s8 %v2345
      %v2347 = vlaneseq
      %v2348 = vshrl.u32 %v2347, 7
      %v2349 = vsub.s32 %v2346, %v2348
      %v2350 = vrot.slane %v2336, %v2349
      %v2351 = vcombine.high %v2343, %v2343
      %v2352 = vcombine.high %v2350, %v2350
      %v2353 = vcombine.high %v2280, %v2280
      %v2355 = vunpack.c.l.s4 1983009808
      %v2356 = vunpack.c.0.s8 %v2355
      %v2357 = vlaneseq
      %v2358 = vshrl.u32 %v2357, 7
      %v2359 = vsub.s32 %v2356, %v2358
      %v2360 = vrot.slane %v2280, %v2359
      %v2362 = vunpack.c.l.s4 1983009808
      %v2363 = vunpack.c.0.s8 %v2362
      %v2364 = vlaneseq
      %v2365 = vshrl.u32 %v2364, 7
      %v2366 = vsub.s32 %v2363, %v2365
      %v2367 = vrot.slane %v2353, %v2366
      %v2368 = vcombine.high %v2360, %v2360
      %v2369 = vcombine.high %v2326, %v2326
      %v2371 = vunpack.c.l.s4 1983009808
      %v2372 = vunpack.c.0.s8 %v2371
      %v2373 = vlaneseq
      %v2374 = vshrl.u32 %v2373, 7
      %v2375 = vsub.s32 %v2372, %v2374
      %v2376 = vrot.slane %v2326, %v2375
      %v2378 = vunpack.c.l.s4 1983009808
      %v2379 = vunpack.c.0.s8 %v2378
      %v2380 = vlaneseq
      %v2381 = vshrl.u32 %v2380, 7
      %v2382 = vsub.s32 %v2379, %v2381
      %v2383 = vrot.slane %v2369, %v2382
      %v2384 = vcombine.high %v2376, %v2376
      %v2385 = vcombine.high %v2383, %v2383
      %v2386 = vcombine.high %v2329, %v2329
      %v2388 = vunpack.c.l.s4 1983009808
      %v2389 = vunpack.c.0.s8 %v2388
      %v2390 = vlaneseq
      %v2391 = vshrl.u32 %v2390, 7
      %v2392 = vsub.s32 %v2389, %v2391
      %v2393 = vrot.slane %v2329, %v2392
      %v2395 = vunpack.c.l.s4 1983009808
      %v2396 = vunpack.c.0.s8 %v2395
      %v2397 = vlaneseq
      %v2398 = vshrl.u32 %v2397, 7
      %v2399 = vsub.s32 %v2396, %v2398
      %v2400 = vrot.slane %v2386, %v2399
      %v2401 = vcombine.high %v2393, %v2393
      %2402 = vrot.lane.b32.xlu0 %v1148, 32
      %v2403 = vpop.permute.xlu0 %2402
      %2404 = vrot.lane.b32.xlu0 %v1283, 32
      %v2405 = vpop.permute.xlu0 %2404
      %v2407 = vsel %vm1420, %v2403, 0
      %v2410 = vsel %vm1420, %v2405, 0
      %2412 = vmatprep.subr.bf16.mxu0 0
      %2413 = vmatpush1.bf16.xpose.msra.mxu0 %v2410
      %2414 = vmatprep.subr.bf16.mxu0 0
      %2415 = vmatpush1.bf16.xpose.msra.mxu0 0
      %2416 = vmatprep.subr.bf16.mxu0 0
      %2417 = vmatpush1.bf16.xpose.msra.mxu0 0
      %2418 = vmatprep.subr.bf16.mxu0 0
      %2419 = vmatpush1.bf16.xpose.msra.mxu0 0
      %2420 = vmatprep.subr.bf16.mxu0 0
      %2421 = vmatpush1.bf16.xpose.msra.mxu0 0
      %2422 = vmatprep.subr.bf16.mxu0 0
      %2423 = vmatpush1.bf16.xpose.msra.mxu0 0
      %2424 = vmatprep.subr.bf16.mxu0 0
      %2425 = vmatpush1.bf16.xpose.msra.mxu0 0
      %2426 = vmatprep.subr.bf16.mxu0 0
      %2427 = vmatpush1.bf16.xpose.msra.mxu0 0
      %2428 = vmatprep.subr.bf16.mxu0 0
      %2429 = vmatpush1.bf16.xpose.msra.mxu0 0
      %2430 = vmatprep.subr.bf16.mxu0 0
      %2431 = vmatpush1.bf16.xpose.msra.mxu0 0
      %2432 = vmatprep.subr.bf16.mxu0 0
      %2433 = vmatpush1.bf16.xpose.msra.mxu0 0
      %2434 = vmatprep.subr.bf16.mxu0 0
      %2435 = vmatpush1.bf16.xpose.msra.mxu0 0
      %2436 = vmatprep.subr.bf16.mxu0 0
      %2437 = vmatpush1.bf16.xpose.msra.mxu0 0
      %2438 = vmatprep.subr.bf16.mxu0 0
      %2439 = vmatpush1.bf16.xpose.msra.mxu0 0
      %2440 = vmatprep.subr.bf16.mxu0 0
      %2441 = vmatpush1.bf16.xpose.msra.mxu0 0
      %2442 = vmatprep.subr.bf16.mxu0 0
      %2443 = vmatpush1.bf16.xpose.msra.mxu0 0
      %2444 = vmatprep.mubr.bf16.mxu0 0
      %2445 = vmatmul.mubr.bf16.gmra.mrb[0].mxu0 %v2407
      %v2446 = vpop.f32.mrb[0].mxu0
      %v2447 = vadd.f32 0.0, %v2446
      %v2448 = vpop.f32.mrb[0].mxu0
      %v2449 = vpop.f32.mrb[0].mxu0
      %v2450 = vadd.f32 0.0, %v2449
      %v2451 = vpop.f32.mrb[0].mxu0
      %2452 = vdwg.mxu0
      %2453 = vrot.lane.b32.xlu0 %v1149, 32
      %v2454 = vpop.permute.xlu0 %2453
      %2455 = vrot.lane.b32.xlu0 %v1284, 32
      %v2456 = vpop.permute.xlu0 %2455
      %v2458 = vsel %vm1420, %v2454, 0
      %v2461 = vsel %vm1420, %v2456, 0
      %2463 = vmatprep.subr.bf16.mxu0 0
      %2464 = vmatpush1.bf16.xpose.msra.mxu0 %v2461
      %2465 = vmatprep.subr.bf16.mxu0 0
      %2466 = vmatpush1.bf16.xpose.msra.mxu0 0
      %2467 = vmatprep.subr.bf16.mxu0 0
      %2468 = vmatpush1.bf16.xpose.msra.mxu0 0
      %2469 = vmatprep.subr.bf16.mxu0 0
      %2470 = vmatpush1.bf16.xpose.msra.mxu0 0
      %2471 = vmatprep.subr.bf16.mxu0 0
      %2472 = vmatpush1.bf16.xpose.msra.mxu0 0
      %2473 = vmatprep.subr.bf16.mxu0 0
      %2474 = vmatpush1.bf16.xpose.msra.mxu0 0
      %2475 = vmatprep.subr.bf16.mxu0 0
      %2476 = vmatpush1.bf16.xpose.msra.mxu0 0
      %2477 = vmatprep.subr.bf16.mxu0 0
      %2478 = vmatpush1.bf16.xpose.msra.mxu0 0
      %2479 = vmatprep.subr.bf16.mxu0 0
      %2480 = vmatpush1.bf16.xpose.msra.mxu0 0
      %2481 = vmatprep.subr.bf16.mxu0 0
      %2482 = vmatpush1.bf16.xpose.msra.mxu0 0
      %2483 = vmatprep.subr.bf16.mxu0 0
      %2484 = vmatpush1.bf16.xpose.msra.mxu0 0
      %2485 = vmatprep.subr.bf16.mxu0 0
      %2486 = vmatpush1.bf16.xpose.msra.mxu0 0
      %2487 = vmatprep.subr.bf16.mxu0 0
      %2488 = vmatpush1.bf16.xpose.msra.mxu0 0
      %2489 = vmatprep.subr.bf16.mxu0 0
      %2490 = vmatpush1.bf16.xpose.msra.mxu0 0
      %2491 = vmatprep.subr.bf16.mxu0 0
      %2492 = vmatpush1.bf16.xpose.msra.mxu0 0
      %2493 = vmatprep.subr.bf16.mxu0 0
      %2494 = vmatpush1.bf16.xpose.msra.mxu0 0
      %2495 = vmatprep.mubr.bf16.mxu0 0
      %2496 = vmatmul.mubr.bf16.gmra.mrb[0].mxu0 %v2458
      %v2497 = vpop.f32.mrb[0].mxu0
      %v2498 = vadd.f32 0.0, %v2497
      %v2499 = vpop.f32.mrb[0].mxu0
      %v2500 = vpop.f32.mrb[0].mxu0
      %v2501 = vadd.f32 0.0, %v2500
      %v2502 = vpop.f32.mrb[0].mxu0
      %2503 = vdwg.mxu0
      %v2504 = vmul.f32 %v2447, 0.17677669
      %v2505 = vmul.f32 %v2450, 0.17677669
      %v2506 = vmul.f32 %v2498, 0.17677669
      %v2507 = vmul.f32 %v2501, 0.17677669
      %v2508 = vadd.f32 %v2504, %v1524
      %v2509 = vadd.f32 %v2505, %v1524
      %v2510 = vadd.f32 %v2506, %v1528
      %v2511 = vadd.f32 %v2507, %v1528
      %v2512 = vsel %vm1535, %v2508, -inf
      %2513 = vmax.xlane.f32.xlu0 %v2512
      %v2514 = vpop.xlane.xlu0 %2513
      %v2515 = vsel %vm1539, %v2509, -inf
      %2516 = vmax.xlane.f32.xlu0 %v2515
      %v2517 = vpop.xlane.xlu0 %2516
      %v2518 = vsel %vm1535, %v2510, -inf
      %2519 = vmax.xlane.f32.xlu0 %v2518
      %v2520 = vpop.xlane.xlu0 %2519
      %v2521 = vsel %vm1539, %v2511, -inf
      %2522 = vmax.xlane.f32.xlu0 %v2521
      %v2523 = vpop.xlane.xlu0 %2522
      %v2524 = vsub.f32 %v2508, %v2514
      %v2525 = vsub.f32 %v2509, %v2517
      %v2526 = vsub.f32 %v2510, %v2520
      %v2527 = vsub.f32 %v2511, %v2523
      %v2528 = vmul.f32 %v2524, 1.442695
      %v2529 = vpow.pop %v2528
      %v2530 = vmul.f32 %v2525, 1.442695
      %v2531 = vpow.pop %v2530
      %v2532 = vmul.f32 %v2526, 1.442695
      %v2533 = vpow.pop %v2532
      %v2534 = vmul.f32 %v2527, 1.442695
      %v2535 = vpow.pop %v2534
      %v2536 = vsel %vm1535, %v2529, 0.0
      %2537 = vadd.xlane.f32.xlu0 %v2536
      %v2538 = vpop.xlane.xlu0 %2537
      %v2539 = vsel %vm1539, %v2531, 0.0
      %2540 = vadd.xlane.f32.xlu0 %v2539
      %v2541 = vpop.xlane.xlu0 %2540
      %v2542 = vsel %vm1535, %v2533, 0.0
      %2543 = vadd.xlane.f32.xlu0 %v2542
      %v2544 = vpop.xlane.xlu0 %2543
      %v2545 = vsel %vm1539, %v2535, 0.0
      %2546 = vadd.xlane.f32.xlu0 %v2545
      %v2547 = vpop.xlane.xlu0 %2546
      %v2548 = vrcp.pop %v2538
      %v2549 = vrcp.pop %v2541
      %v2550 = vrcp.pop %v2544
      %v2551 = vrcp.pop %v2547
      %v2552 = vmul.f32 %v2529, %v2548
      %v2553 = vmul.f32 %v2531, %v2549
      %v2554 = vmul.f32 %v2533, %v2550
      %v2555 = vmul.f32 %v2535, %v2551
      %v2556 = vpack.c.bf16 %v2553, %v2552
      %v2557 = vpack.c.bf16 %v2555, %v2554
      %2558 = vrot.lane.b32.xlu0 %v1418, 32
      %v2559 = vpop.permute.xlu0 %2558
      %v2561 = vsel %vm1535, %v2556, 0
      %v2564 = vsel %vm1586, %v2559, 0
      %2566 = vmatprep.subr.bf16.mxu0 0
      %2567 = vmatpush1.bf16.msra.mxu0 %v2564
      %2568 = vmatprep.subr.bf16.mxu0 0
      %2569 = vmatpush1.bf16.msra.mxu0 0
      %2570 = vmatprep.subr.bf16.mxu0 0
      %2571 = vmatpush1.bf16.msra.mxu0 0
      %2572 = vmatprep.subr.bf16.mxu0 0
      %2573 = vmatpush1.bf16.msra.mxu0 0
      %2574 = vmatprep.subr.bf16.mxu0 0
      %2575 = vmatpush1.bf16.msra.mxu0 0
      %2576 = vmatprep.subr.bf16.mxu0 0
      %2577 = vmatpush1.bf16.msra.mxu0 0
      %2578 = vmatprep.subr.bf16.mxu0 0
      %2579 = vmatpush1.bf16.msra.mxu0 0
      %2580 = vmatprep.subr.bf16.mxu0 0
      %2581 = vmatpush1.bf16.msra.mxu0 0
      %2582 = vmatprep.subr.bf16.mxu0 0
      %2583 = vmatpush1.bf16.msra.mxu0 0
      %2584 = vmatprep.subr.bf16.mxu0 0
      %2585 = vmatpush1.bf16.msra.mxu0 0
      %2586 = vmatprep.subr.bf16.mxu0 0
      %2587 = vmatpush1.bf16.msra.mxu0 0
      %2588 = vmatprep.subr.bf16.mxu0 0
      %2589 = vmatpush1.bf16.msra.mxu0 0
      %2590 = vmatprep.subr.bf16.mxu0 0
      %2591 = vmatpush1.bf16.msra.mxu0 0
      %2592 = vmatprep.subr.bf16.mxu0 0
      %2593 = vmatpush1.bf16.msra.mxu0 0
      %2594 = vmatprep.subr.bf16.mxu0 0
      %2595 = vmatpush1.bf16.msra.mxu0 0
      %2596 = vmatprep.subr.bf16.mxu0 0
      %2597 = vmatpush1.bf16.msra.mxu0 0
      %2598 = vmatprep.mubr.bf16.mxu0 0
      %2599 = vmatmul.mubr.bf16.gmra.mrb[0].mxu0 %v2561
      %v2600 = vpop.f32.mrb[0].mxu0
      %v2601 = vadd.f32 0.0, %v2600
      %v2602 = vpop.f32.mrb[0].mxu0
      %v2603 = vpop.f32.mrb[0].mxu0
      %v2604 = vadd.f32 0.0, %v2603
      %v2605 = vpop.f32.mrb[0].mxu0
      %2606 = vdwg.mxu0
      %2607 = vrot.lane.b32.xlu0 %v1419, 32
      %v2608 = vpop.permute.xlu0 %2607
      %v2610 = vsel %vm1535, %v2557, 0
      %v2613 = vsel %vm1586, %v2608, 0
      %2615 = vmatprep.subr.bf16.mxu0 0
      %2616 = vmatpush1.bf16.msra.mxu0 %v2613
      %2617 = vmatprep.subr.bf16.mxu0 0
      %2618 = vmatpush1.bf16.msra.mxu0 0
      %2619 = vmatprep.subr.bf16.mxu0 0
      %2620 = vmatpush1.bf16.msra.mxu0 0
      %2621 = vmatprep.subr.bf16.mxu0 0
      %2622 = vmatpush1.bf16.msra.mxu0 0
      %2623 = vmatprep.subr.bf16.mxu0 0
      %2624 = vmatpush1.bf16.msra.mxu0 0
      %2625 = vmatprep.subr.bf16.mxu0 0
      %2626 = vmatpush1.bf16.msra.mxu0 0
      %2627 = vmatprep.subr.bf16.mxu0 0
      %2628 = vmatpush1.bf16.msra.mxu0 0
      %2629 = vmatprep.subr.bf16.mxu0 0
      %2630 = vmatpush1.bf16.msra.mxu0 0
      %2631 = vmatprep.subr.bf16.mxu0 0
      %2632 = vmatpush1.bf16.msra.mxu0 0
      %2633 = vmatprep.subr.bf16.mxu0 0
      %2634 = vmatpush1.bf16.msra.mxu0 0
      %2635 = vmatprep.subr.bf16.mxu0 0
      %2636 = vmatpush1.bf16.msra.mxu0 0
      %2637 = vmatprep.subr.bf16.mxu0 0
      %2638 = vmatpush1.bf16.msra.mxu0 0
      %2639 = vmatprep.subr.bf16.mxu0 0
      %2640 = vmatpush1.bf16.msra.mxu0 0
      %2641 = vmatprep.subr.bf16.mxu0 0
      %2642 = vmatpush1.bf16.msra.mxu0 0
      %2643 = vmatprep.subr.bf16.mxu0 0
      %2644 = vmatpush1.bf16.msra.mxu0 0
      %2645 = vmatprep.subr.bf16.mxu0 0
      %2646 = vmatpush1.bf16.msra.mxu0 0
      %2647 = vmatprep.mubr.bf16.mxu0 0
      %2648 = vmatmul.mubr.bf16.gmra.mrb[0].mxu0 %v2610
      %v2649 = vpop.f32.mrb[0].mxu0
      %v2650 = vadd.f32 0.0, %v2649
      %v2651 = vpop.f32.mrb[0].mxu0
      %v2652 = vpop.f32.mrb[0].mxu0
      %v2653 = vadd.f32 0.0, %v2652
      %v2654 = vpop.f32.mrb[0].mxu0
      %2655 = vdwg.mxu0
      %v2660 = vcombine.high %v2601, %v2601
      %v2662 = vunpack.c.l.s4 1983009808
      %v2663 = vunpack.c.0.s8 %v2662
      %v2664 = vlaneseq
      %v2665 = vshrl.u32 %v2664, 7
      %v2666 = vsub.s32 %v2663, %v2665
      %v2667 = vrot.slane %v2601, %v2666
      %v2669 = vunpack.c.l.s4 1983009808
      %v2670 = vunpack.c.0.s8 %v2669
      %v2671 = vlaneseq
      %v2672 = vshrl.u32 %v2671, 7
      %v2673 = vsub.s32 %v2670, %v2672
      %v2674 = vrot.slane %v2660, %v2673
      %v2675 = vcombine.high %v2667, %v2667
      %v2676 = vcombine.high %v2674, %v2674
      %v2677 = vcombine.high %v2604, %v2604
      %v2679 = vunpack.c.l.s4 1983009808
      %v2680 = vunpack.c.0.s8 %v2679
      %v2681 = vlaneseq
      %v2682 = vshrl.u32 %v2681, 7
      %v2683 = vsub.s32 %v2680, %v2682
      %v2684 = vrot.slane %v2604, %v2683
      %v2686 = vunpack.c.l.s4 1983009808
      %v2687 = vunpack.c.0.s8 %v2686
      %v2688 = vlaneseq
      %v2689 = vshrl.u32 %v2688, 7
      %v2690 = vsub.s32 %v2687, %v2689
      %v2691 = vrot.slane %v2677, %v2690
      %v2692 = vcombine.high %v2684, %v2684
      %v2693 = vcombine.high %v2650, %v2650
      %v2695 = vunpack.c.l.s4 1983009808
      %v2696 = vunpack.c.0.s8 %v2695
      %v2697 = vlaneseq
      %v2698 = vshrl.u32 %v2697, 7
      %v2699 = vsub.s32 %v2696, %v2698
      %v2700 = vrot.slane %v2650, %v2699
      %v2702 = vunpack.c.l.s4 1983009808
      %v2703 = vunpack.c.0.s8 %v2702
      %v2704 = vlaneseq
      %v2705 = vshrl.u32 %v2704, 7
      %v2706 = vsub.s32 %v2703, %v2705
      %v2707 = vrot.slane %v2693, %v2706
      %v2708 = vcombine.high %v2700, %v2700
      %v2709 = vcombine.high %v2707, %v2707
      %v2710 = vcombine.high %v2653, %v2653
      %v2712 = vunpack.c.l.s4 1983009808
      %v2713 = vunpack.c.0.s8 %v2712
      %v2714 = vlaneseq
      %v2715 = vshrl.u32 %v2714, 7
      %v2716 = vsub.s32 %v2713, %v2715
      %v2717 = vrot.slane %v2653, %v2716
      %v2719 = vunpack.c.l.s4 1983009808
      %v2720 = vunpack.c.0.s8 %v2719
      %v2721 = vlaneseq
      %v2722 = vshrl.u32 %v2721, 7
      %v2723 = vsub.s32 %v2720, %v2722
      %v2724 = vrot.slane %v2710, %v2723
      %v2725 = vcombine.high %v2717, %v2717
      %v2726 = vcombine.low %v1689, %v1697
      %v2727 = vcombine.low %v1696, %v1698
      %v2729 = vunpack.c.l.s4 1983009808
      %v2730 = vunpack.c.0.s8 %v2729
      %v2731 = vlaneseq
      %v2732 = vshrl.u32 %v2731, 7
      %v2733 = vsub.s32 %v2730, %v2732
      %v2734 = vrot.slane %v2726, %v2733
      %v2736 = vunpack.c.l.s4 1983009808
      %v2737 = vunpack.c.0.s8 %v2736
      %v2738 = vlaneseq
      %v2739 = vshrl.u32 %v2738, 7
      %v2740 = vsub.s32 %v2737, %v2739
      %v2741 = vrot.slane %v2727, %v2740
      %v2742 = vcombine.low %v2734, %v2741
      %v2743 = vcombine.low %v1706, %v1714
      %v2744 = vcombine.low %v1713, %v1722
      %v2746 = vunpack.c.l.s4 1983009808
      %v2747 = vunpack.c.0.s8 %v2746
      %v2748 = vlaneseq
      %v2749 = vshrl.u32 %v2748, 7
      %v2750 = vsub.s32 %v2747, %v2749
      %v2751 = vrot.slane %v2743, %v2750
      %v2753 = vunpack.c.l.s4 1983009808
      %v2754 = vunpack.c.0.s8 %v2753
      %v2755 = vlaneseq
      %v2756 = vshrl.u32 %v2755, 7
      %v2757 = vsub.s32 %v2754, %v2756
      %v2758 = vrot.slane %v2744, %v2757
      %v2759 = vcombine.low %v2751, %v2758
      %v2760 = vcombine.low %v1730, %v1729
      %v2761 = vcombine.low %v1731, %v1739
      %v2763 = vunpack.c.l.s4 1983009808
      %v2764 = vunpack.c.0.s8 %v2763
      %v2765 = vlaneseq
      %v2766 = vshrl.u32 %v2765, 7
      %v2767 = vsub.s32 %v2764, %v2766
      %v2768 = vrot.slane %v2760, %v2767
      %v2770 = vunpack.c.l.s4 1983009808
      %v2771 = vunpack.c.0.s8 %v2770
      %v2772 = vlaneseq
      %v2773 = vshrl.u32 %v2772, 7
      %v2774 = vsub.s32 %v2771, %v2773
      %v2775 = vrot.slane %v2761, %v2774
      %v2776 = vcombine.low %v2768, %v2775
      %v2777 = vcombine.low %v1747, %v1746
      %v2779 = vunpack.c.l.s4 1983009808
      %v2780 = vunpack.c.0.s8 %v2779
      %v2781 = vlaneseq
      %v2782 = vshrl.u32 %v2781, 7
      %v2783 = vsub.s32 %v2780, %v2782
      %v2784 = vrot.slane %v2777, %v2783
      %v2789 = vcombine.low %v2019, %v2027
      %v2790 = vcombine.low %v2026, %v2028
      %v2792 = vunpack.c.l.s4 1983009808
      %v2793 = vunpack.c.0.s8 %v2792
      %v2794 = vlaneseq
      %v2795 = vshrl.u32 %v2794, 7
      %v2796 = vsub.s32 %v2793, %v2795
      %v2797 = vrot.slane %v2789, %v2796
      %v2799 = vunpack.c.l.s4 1983009808
      %v2800 = vunpack.c.0.s8 %v2799
      %v2801 = vlaneseq
      %v2802 = vshrl.u32 %v2801, 7
      %v2803 = vsub.s32 %v2800, %v2802
      %v2804 = vrot.slane %v2790, %v2803
      %v2805 = vcombine.low %v2797, %v2804
      %v2806 = vcombine.low %v2036, %v2044
      %v2807 = vcombine.low %v2043, %v2052
      %v2809 = vunpack.c.l.s4 1983009808
      %v2810 = vunpack.c.0.s8 %v2809
      %v2811 = vlaneseq
      %v2812 = vshrl.u32 %v2811, 7
      %v2813 = vsub.s32 %v2810, %v2812
      %v2814 = vrot.slane %v2806, %v2813
      %v2816 = vunpack.c.l.s4 1983009808
      %v2817 = vunpack.c.0.s8 %v2816
      %v2818 = vlaneseq
      %v2819 = vshrl.u32 %v2818, 7
      %v2820 = vsub.s32 %v2817, %v2819
      %v2821 = vrot.slane %v2807, %v2820
      %v2822 = vcombine.low %v2814, %v2821
      %v2823 = vcombine.low %v2060, %v2059
      %v2824 = vcombine.low %v2061, %v2069
      %v2826 = vunpack.c.l.s4 1983009808
      %v2827 = vunpack.c.0.s8 %v2826
      %v2828 = vlaneseq
      %v2829 = vshrl.u32 %v2828, 7
      %v2830 = vsub.s32 %v2827, %v2829
      %v2831 = vrot.slane %v2823, %v2830
      %v2833 = vunpack.c.l.s4 1983009808
      %v2834 = vunpack.c.0.s8 %v2833
      %v2835 = vlaneseq
      %v2836 = vshrl.u32 %v2835, 7
      %v2837 = vsub.s32 %v2834, %v2836
      %v2838 = vrot.slane %v2824, %v2837
      %v2839 = vcombine.low %v2831, %v2838
      %v2840 = vcombine.low %v2077, %v2076
      %v2842 = vunpack.c.l.s4 1983009808
      %v2843 = vunpack.c.0.s8 %v2842
      %v2844 = vlaneseq
      %v2845 = vshrl.u32 %v2844, 7
      %v2846 = vsub.s32 %v2843, %v2845
      %v2847 = vrot.slane %v2840, %v2846
      %2848 = vrot.lane.b32.xlu0 %v2805, 32
      %v2849 = vpop.permute.xlu0 %2848
      %2850 = vrot.lane.b32.xlu0 %v2822, 32
      %v2851 = vpop.permute.xlu0 %2850
      %2852 = vrot.lane.b32.xlu0 %v2839, 32
      %v2853 = vpop.permute.xlu0 %2852
      %2854 = vrot.lane.b32.xlu0 %v2847, 32
      %v2855 = vpop.permute.xlu0 %2854
      %v2860 = vcombine.low %v2343, %v2351
      %v2861 = vcombine.low %v2350, %v2352
      %v2863 = vunpack.c.l.s4 1983009808
      %v2864 = vunpack.c.0.s8 %v2863
      %v2865 = vlaneseq
      %v2866 = vshrl.u32 %v2865, 7
      %v2867 = vsub.s32 %v2864, %v2866
      %v2868 = vrot.slane %v2860, %v2867
      %v2870 = vunpack.c.l.s4 1983009808
      %v2871 = vunpack.c.0.s8 %v2870
      %v2872 = vlaneseq
      %v2873 = vshrl.u32 %v2872, 7
      %v2874 = vsub.s32 %v2871, %v2873
      %v2875 = vrot.slane %v2861, %v2874
      %v2876 = vcombine.low %v2868, %v2875
      %v2877 = vcombine.low %v2360, %v2368
      %v2878 = vcombine.low %v2367, %v2376
      %v2880 = vunpack.c.l.s4 1983009808
      %v2881 = vunpack.c.0.s8 %v2880
      %v2882 = vlaneseq
      %v2883 = vshrl.u32 %v2882, 7
      %v2884 = vsub.s32 %v2881, %v2883
      %v2885 = vrot.slane %v2877, %v2884
      %v2887 = vunpack.c.l.s4 1983009808
      %v2888 = vunpack.c.0.s8 %v2887
      %v2889 = vlaneseq
      %v2890 = vshrl.u32 %v2889, 7
      %v2891 = vsub.s32 %v2888, %v2890
      %v2892 = vrot.slane %v2878, %v2891
      %v2893 = vcombine.low %v2885, %v2892
      %v2894 = vcombine.low %v2384, %v2383
      %v2895 = vcombine.low %v2385, %v2393
      %v2897 = vunpack.c.l.s4 1983009808
      %v2898 = vunpack.c.0.s8 %v2897
      %v2899 = vlaneseq
      %v2900 = vshrl.u32 %v2899, 7
      %v2901 = vsub.s32 %v2898, %v2900
      %v2902 = vrot.slane %v2894, %v2901
      %v2904 = vunpack.c.l.s4 1983009808
      %v2905 = vunpack.c.0.s8 %v2904
      %v2906 = vlaneseq
      %v2907 = vshrl.u32 %v2906, 7
      %v2908 = vsub.s32 %v2905, %v2907
      %v2909 = vrot.slane %v2895, %v2908
      %v2910 = vcombine.low %v2902, %v2909
      %v2911 = vcombine.low %v2401, %v2400
      %v2913 = vunpack.c.l.s4 1983009808
      %v2914 = vunpack.c.0.s8 %v2913
      %v2915 = vlaneseq
      %v2916 = vshrl.u32 %v2915, 7
      %v2917 = vsub.s32 %v2914, %v2916
      %v2918 = vrot.slane %v2911, %v2917
      %2919 = vrot.lane.b32.xlu0 %v2876, 64
      %v2920 = vpop.permute.xlu0 %2919
      %2921 = vrot.lane.b32.xlu0 %v2893, 64
      %v2922 = vpop.permute.xlu0 %2921
      %2923 = vrot.lane.b32.xlu0 %v2910, 64
      %v2924 = vpop.permute.xlu0 %2923
      %2925 = vrot.lane.b32.xlu0 %v2918, 64
      %v2926 = vpop.permute.xlu0 %2925
      %v2931 = vcombine.low %v2667, %v2675
      %v2932 = vcombine.low %v2674, %v2676
      %v2934 = vunpack.c.l.s4 1983009808
      %v2935 = vunpack.c.0.s8 %v2934
      %v2936 = vlaneseq
      %v2937 = vshrl.u32 %v2936, 7
      %v2938 = vsub.s32 %v2935, %v2937
      %v2939 = vrot.slane %v2931, %v2938
      %v2941 = vunpack.c.l.s4 1983009808
      %v2942 = vunpack.c.0.s8 %v2941
      %v2943 = vlaneseq
      %v2944 = vshrl.u32 %v2943, 7
      %v2945 = vsub.s32 %v2942, %v2944
      %v2946 = vrot.slane %v2932, %v2945
      %v2947 = vcombine.low %v2939, %v2946
      %v2948 = vcombine.low %v2684, %v2692
      %v2949 = vcombine.low %v2691, %v2700
      %v2951 = vunpack.c.l.s4 1983009808
      %v2952 = vunpack.c.0.s8 %v2951
      %v2953 = vlaneseq
      %v2954 = vshrl.u32 %v2953, 7
      %v2955 = vsub.s32 %v2952, %v2954
      %v2956 = vrot.slane %v2948, %v2955
      %v2958 = vunpack.c.l.s4 1983009808
      %v2959 = vunpack.c.0.s8 %v2958
      %v2960 = vlaneseq
      %v2961 = vshrl.u32 %v2960, 7
      %v2962 = vsub.s32 %v2959, %v2961
      %v2963 = vrot.slane %v2949, %v2962
      %v2964 = vcombine.low %v2956, %v2963
      %v2965 = vcombine.low %v2708, %v2707
      %v2966 = vcombine.low %v2709, %v2717
      %v2968 = vunpack.c.l.s4 1983009808
      %v2969 = vunpack.c.0.s8 %v2968
      %v2970 = vlaneseq
      %v2971 = vshrl.u32 %v2970, 7
      %v2972 = vsub.s32 %v2969, %v2971
      %v2973 = vrot.slane %v2965, %v2972
      %v2975 = vunpack.c.l.s4 1983009808
      %v2976 = vunpack.c.0.s8 %v2975
      %v2977 = vlaneseq
      %v2978 = vshrl.u32 %v2977, 7
      %v2979 = vsub.s32 %v2976, %v2978
      %v2980 = vrot.slane %v2966, %v2979
      %v2981 = vcombine.low %v2973, %v2980
      %v2982 = vcombine.low %v2725, %v2724
      %v2984 = vunpack.c.l.s4 1983009808
      %v2985 = vunpack.c.0.s8 %v2984
      %v2986 = vlaneseq
      %v2987 = vshrl.u32 %v2986, 7
      %v2988 = vsub.s32 %v2985, %v2987
      %v2989 = vrot.slane %v2982, %v2988
      %2990 = vrot.lane.b32.xlu0 %v2947, 96
      %v2991 = vpop.permute.xlu0 %2990
      %2992 = vrot.lane.b32.xlu0 %v2964, 96
      %v2993 = vpop.permute.xlu0 %2992
      %2994 = vrot.lane.b32.xlu0 %v2981, 96
      %v2995 = vpop.permute.xlu0 %2994
      %2996 = vrot.lane.b32.xlu0 %v2989, 96
      %v2997 = vpop.permute.xlu0 %2996
      %v3002 = vsel %vm1420, %v2742, %v2849
      %v3003 = vsel %vm1420, %v2759, %v2851
      %v3004 = vsel %vm1420, %v2776, %v2853
      %v3005 = vsel %vm1420, %v2784, %v2855
      %vm3006 = vcmask 523264
      %v3007 = vsel %vm3006, %v3002, %v2920
      %v3008 = vsel %vm3006, %v3003, %v2922
      %v3009 = vsel %vm3006, %v3004, %v2924
      %v3010 = vsel %vm3006, %v3005, %v2926
      %vm3011 = vcmask 785408
      %v3012 = vsel %vm3011, %v3007, %v2991
      %v3013 = vsel %vm3011, %v3008, %v2993
      %v3014 = vsel %vm3011, %v3009, %v2995
      %v3015 = vsel %vm3011, %v3010, %v2997
      %v3016 = vpack.c.bf16 %v3013, %v3012
      %v3017 = vpack.c.bf16 %v3015, %v3014
      %v3019 = vlaneseq
      %v3020 = vshrl.u32 %v3019, 7
      %v3021 = vsub.s32 0, %v3020
      %v3022 = vrot.slane %v650, %v3021
      %v3040 = vunpack.c.l.b16 %v634
      %v3041 = vunpack.c.l.b16 %v635
      %v3042 = vunpack.c.l.b16 %v636
      %v3043 = vunpack.c.l.b16 %v637
      %v3044 = vunpack.c.l.b16 %v638
      %v3045 = vunpack.c.l.b16 %v639
      %v3046 = vunpack.c.l.b16 %v640
      %v3047 = vunpack.c.l.b16 %v641
      %v3048 = vunpack.c.l.b16 %v642
      %v3049 = vunpack.c.l.b16 %v643
      %v3050 = vunpack.c.l.b16 %v644
      %v3051 = vunpack.c.l.b16 %v645
      %v3052 = vunpack.c.l.b16 %v646
      %v3053 = vunpack.c.l.b16 %v647
      %v3054 = vunpack.c.l.b16 %v648
      %v3055 = vunpack.c.l.b16 %v649
      %v3056 = vpack.c.b16 %v3041, %v3040
      %v3057 = vpack.c.b16 %v3043, %v3042
      %v3058 = vpack.c.b16 %v3045, %v3044
      %v3059 = vpack.c.b16 %v3047, %v3046
      %v3060 = vpack.c.b16 %v3049, %v3048
      %v3061 = vpack.c.b16 %v3051, %v3050
      %v3062 = vpack.c.b16 %v3053, %v3052
      %v3063 = vpack.c.b16 %v3055, %v3054
      %3072 = vmatprep.subr.bf16.mxu0 0
      %3073 = vmatpush1.bf16.msra.mxu0 %v3056
      %3074 = vmatprep.subr.bf16.mxu0 0
      %3075 = vmatpush1.bf16.msra.mxu0 %v3057
      %3076 = vmatprep.subr.bf16.mxu0 0
      %3077 = vmatpush1.bf16.msra.mxu0 %v3058
      %3078 = vmatprep.subr.bf16.mxu0 0
      %3079 = vmatpush1.bf16.msra.mxu0 %v3059
      %3080 = vmatprep.subr.bf16.mxu0 0
      %3081 = vmatpush1.bf16.msra.mxu0 %v3060
      %3082 = vmatprep.subr.bf16.mxu0 0
      %3083 = vmatpush1.bf16.msra.mxu0 %v3061
      %3084 = vmatprep.subr.bf16.mxu0 0
      %3085 = vmatpush1.bf16.msra.mxu0 %v3062
      %3086 = vmatprep.subr.bf16.mxu0 0
      %3087 = vmatpush1.bf16.msra.mxu0 %v3063
      %3088 = vmatprep.subr.bf16.mxu0 0
      %3089 = vmatpush1.bf16.msra.mxu0 0
      %3090 = vmatprep.subr.bf16.mxu0 0
      %3091 = vmatpush1.bf16.msra.mxu0 0
      %3092 = vmatprep.subr.bf16.mxu0 0
      %3093 = vmatpush1.bf16.msra.mxu0 0
      %3094 = vmatprep.subr.bf16.mxu0 0
      %3095 = vmatpush1.bf16.msra.mxu0 0
      %3096 = vmatprep.subr.bf16.mxu0 0
      %3097 = vmatpush1.bf16.msra.mxu0 0
      %3098 = vmatprep.subr.bf16.mxu0 0
      %3099 = vmatpush1.bf16.msra.mxu0 0
      %3100 = vmatprep.subr.bf16.mxu0 0
      %3101 = vmatpush1.bf16.msra.mxu0 0
      %3102 = vmatprep.subr.bf16.mxu0 0
      %3103 = vmatpush1.bf16.msra.mxu0 0
      %3104 = vmatprep.mubr.bf16.mxu0 0
      %3105 = vmatmul.mubr.bf16.gmra.mrb[0].mxu0 %v3016
      %v3106 = vpop.f32.mrb[0].mxu0
      %v3107 = vadd.f32 %v3022, %v3106
      %v3108 = vpop.f32.mrb[0].mxu0
      %v3109 = vpop.f32.mrb[0].mxu0
      %v3110 = vadd.f32 %v3022, %v3109
      %v3111 = vpop.f32.mrb[0].mxu0
      %3112 = vmatprep.mubr.bf16.mxu0 0
      %3113 = vmatmul.mubr.bf16.gmra.mrb[0].mxu0 %v3017
      %v3114 = vpop.f32.mrb[0].mxu0
      %v3115 = vadd.f32 %v3022, %v3114
      %v3116 = vpop.f32.mrb[0].mxu0
      %v3117 = vpop.f32.mrb[0].mxu0
      %v3118 = vadd.f32 %v3022, %v3117
      %v3119 = vpop.f32.mrb[0].mxu0
      %3120 = vdwg.mxu0
      %v3121 = vadd.f32 %v595, %v3107
      %v3122 = vadd.f32 %v596, %v3110
      %v3123 = vadd.f32 %v597, %v3115
      %v3124 = vadd.f32 %v598, %v3118
      %3125 = vadd.xlane.f32.xlu0 %v3121
      %v3126 = vpop.xlane.xlu0 %3125
      %3127 = vadd.xlane.f32.xlu0 %v3122
      %v3128 = vpop.xlane.xlu0 %3127
      %3129 = vadd.xlane.f32.xlu0 %v3123
      %v3130 = vpop.xlane.xlu0 %3129
      %v3131 = vsel %vm709, %v3124, 0.0
      %3132 = vadd.xlane.f32.xlu0 %v3131
      %v3133 = vpop.xlane.xlu0 %3132
      %v3134 = vmul.f32 %v3126, %v713
      %v3135 = vmul.f32 %v3128, %v713
      %v3136 = vmul.f32 %v3130, %v713
      %v3137 = vmul.f32 %v3133, %v713
      %v3138 = vsub.f32 %v3121, %v3134
      %v3139 = vsub.f32 %v3122, %v3135
      %v3140 = vsub.f32 %v3123, %v3136
      %v3141 = vsub.f32 %v3124, %v3137
      %v3142 = vmul.f32 %v3138, %v3138
      %v3143 = vmul.f32 %v3139, %v3139
      %v3144 = vmul.f32 %v3140, %v3140
      %v3145 = vmul.f32 %v3141, %v3141
      %3146 = vadd.xlane.f32.xlu0 %v3142
      %v3147 = vpop.xlane.xlu0 %3146
      %3148 = vadd.xlane.f32.xlu0 %v3143
      %v3149 = vpop.xlane.xlu0 %3148
      %3150 = vadd.xlane.f32.xlu0 %v3144
      %v3151 = vpop.xlane.xlu0 %3150
      %v3152 = vsel %vm709, %v3145, 0.0
      %3153 = vadd.xlane.f32.xlu0 %v3152
      %v3154 = vpop.xlane.xlu0 %3153
      %v3155 = vmul.f32 %v3147, %v713
      %v3156 = vmul.f32 %v3149, %v713
      %v3157 = vmul.f32 %v3151, %v713
      %v3158 = vmul.f32 %v3154, %v713
      %v3159 = vadd.f32 %v3155, 1e-05
      %v3160 = vadd.f32 %v3156, 1e-05
      %v3161 = vadd.f32 %v3157, 1e-05
      %v3162 = vadd.f32 %v3158, 1e-05
      %v3163 = vrsqrt.pop %v3159
      %v3164 = vrsqrt.pop %v3160
      %v3165 = vrsqrt.pop %v3161
      %v3166 = vrsqrt.pop %v3162
      %v3167 = vmul.f32 %v3138, %v3163
      %v3168 = vmul.f32 %v3139, %v3164
      %v3169 = vmul.f32 %v3140, %v3165
      %v3170 = vmul.f32 %v3141, %v3166
      %v3171 = vlaneseq
      %v3172 = vshrl.u32 %v3171, 7
      %v3173 = vsub.s32 0, %v3172
      %v3174 = vrot.slane %v652, %v3173
      %v3175 = vmul.f32 %v3167, %v3174
      %v3176 = vmul.f32 %v3168, %v3174
      %v3177 = vmul.f32 %v3169, %v3174
      %v3178 = vmul.f32 %v3170, %v3174
      %v3179 = vlaneseq
      %v3180 = vshrl.u32 %v3179, 7
      %v3181 = vsub.s32 1, %v3180
      %v3182 = vrot.slane %v652, %v3181
      %v3183 = vadd.f32 %v3175, %v3182
      %v3184 = vadd.f32 %v3176, %v3182
      %v3185 = vadd.f32 %v3177, %v3182
      %v3186 = vadd.f32 %v3178, %v3182
      %v3187 = vpack.c.bf16 %v3184, %v3183
      %v3188 = vpack.c.bf16 %v3186, %v3185
      %v3190 = vlaneseq
      %v3191 = vshrl.u32 %v3190, 7
      %v3192 = vsub.s32 0, %v3191
      %v3193 = vrot.slane %v669, %v3192
      %v3194 = vlaneseq
      %v3195 = vshrl.u32 %v3194, 7
      %v3196 = vsub.s32 1, %v3195
      %v3197 = vrot.slane %v669, %v3196
      %v3216 = vunpack.c.l.b16 %v653
      %v3217 = vunpack.c.h.b16 %v653
      %v3218 = vunpack.c.l.b16 %v654
      %v3219 = vunpack.c.h.b16 %v654
      %v3220 = vunpack.c.l.b16 %v655
      %v3221 = vunpack.c.h.b16 %v655
      %v3222 = vunpack.c.l.b16 %v656
      %v3223 = vunpack.c.h.b16 %v656
      %v3224 = vunpack.c.l.b16 %v657
      %v3225 = vunpack.c.h.b16 %v657
      %v3226 = vunpack.c.l.b16 %v658
      %v3227 = vunpack.c.h.b16 %v658
      %v3228 = vunpack.c.l.b16 %v659
      %v3229 = vunpack.c.h.b16 %v659
      %v3230 = vunpack.c.l.b16 %v660
      %v3231 = vunpack.c.h.b16 %v660
      %v3232 = vunpack.c.l.b16 %v661
      %v3233 = vunpack.c.h.b16 %v661
      %v3234 = vunpack.c.l.b16 %v662
      %v3235 = vunpack.c.h.b16 %v662
      %v3236 = vunpack.c.l.b16 %v663
      %v3237 = vunpack.c.h.b16 %v663
      %v3238 = vunpack.c.l.b16 %v664
      %v3239 = vunpack.c.h.b16 %v664
      %v3240 = vunpack.c.l.b16 %v665
      %v3241 = vunpack.c.h.b16 %v665
      %v3242 = vunpack.c.l.b16 %v666
      %v3243 = vunpack.c.h.b16 %v666
      %v3244 = vunpack.c.l.b16 %v667
      %v3245 = vunpack.c.h.b16 %v667
      %v3246 = vunpack.c.l.b16 %v668
      %v3247 = vunpack.c.h.b16 %v668
      %v3248 = vpack.c.b16 %v3218, %v3216
      %v3249 = vpack.c.b16 %v3219, %v3217
      %v3250 = vpack.c.b16 %v3222, %v3220
      %v3251 = vpack.c.b16 %v3223, %v3221
      %v3252 = vpack.c.b16 %v3226, %v3224
      %v3253 = vpack.c.b16 %v3227, %v3225
      %v3254 = vpack.c.b16 %v3230, %v3228
      %v3255 = vpack.c.b16 %v3231, %v3229
      %v3256 = vpack.c.b16 %v3234, %v3232
      %v3257 = vpack.c.b16 %v3235, %v3233
      %v3258 = vpack.c.b16 %v3238, %v3236
      %v3259 = vpack.c.b16 %v3239, %v3237
      %v3260 = vpack.c.b16 %v3242, %v3240
      %v3261 = vpack.c.b16 %v3243, %v3241
      %v3262 = vpack.c.b16 %v3246, %v3244
      %v3263 = vpack.c.b16 %v3247, %v3245
      %3280 = vmatprep.subr.bf16.mxu0 %v3249
      %3281 = vmatpush1.bf16.msra.mxu0 %v3248
      %3282 = vmatprep.subr.bf16.mxu0 %v3251
      %3283 = vmatpush1.bf16.msra.mxu0 %v3250
      %3284 = vmatprep.subr.bf16.mxu0 %v3253
      %3285 = vmatpush1.bf16.msra.mxu0 %v3252
      %3286 = vmatprep.subr.bf16.mxu0 %v3255
      %3287 = vmatpush1.bf16.msra.mxu0 %v3254
      %3288 = vmatprep.subr.bf16.mxu0 %v3257
      %3289 = vmatpush1.bf16.msra.mxu0 %v3256
      %3290 = vmatprep.subr.bf16.mxu0 %v3259
      %3291 = vmatpush1.bf16.msra.mxu0 %v3258
      %3292 = vmatprep.subr.bf16.mxu0 %v3261
      %3293 = vmatpush1.bf16.msra.mxu0 %v3260
      %3294 = vmatprep.subr.bf16.mxu0 %v3263
      %3295 = vmatpush1.bf16.msra.mxu0 %v3262
      %3296 = vmatprep.subr.bf16.mxu0 0
      %3297 = vmatpush1.bf16.msra.mxu0 0
      %3298 = vmatprep.subr.bf16.mxu0 0
      %3299 = vmatpush1.bf16.msra.mxu0 0
      %3300 = vmatprep.subr.bf16.mxu0 0
      %3301 = vmatpush1.bf16.msra.mxu0 0
      %3302 = vmatprep.subr.bf16.mxu0 0
      %3303 = vmatpush1.bf16.msra.mxu0 0
      %3304 = vmatprep.subr.bf16.mxu0 0
      %3305 = vmatpush1.bf16.msra.mxu0 0
      %3306 = vmatprep.subr.bf16.mxu0 0
      %3307 = vmatpush1.bf16.msra.mxu0 0
      %3308 = vmatprep.subr.bf16.mxu0 0
      %3309 = vmatpush1.bf16.msra.mxu0 0
      %3310 = vmatprep.subr.bf16.mxu0 0
      %3311 = vmatpush1.bf16.msra.mxu0 0
      %3312 = vmatprep.mubr.bf16.mxu0 0
      %3313 = vmatmul.mubr.bf16.gmra.mrb[0].mxu0 %v3187
      %v3314 = vpop.f32.mrb[0].mxu0
      %v3315 = vadd.f32 %v3193, %v3314
      %v3316 = vpop.f32.mrb[0].mxu0
      %v3317 = vadd.f32 %v3197, %v3316
      %v3318 = vpop.f32.mrb[0].mxu0
      %v3319 = vadd.f32 %v3193, %v3318
      %v3320 = vpop.f32.mrb[0].mxu0
      %v3321 = vadd.f32 %v3197, %v3320
      %3322 = vmatprep.mubr.bf16.mxu0 0
      %3323 = vmatmul.mubr.bf16.gmra.mrb[0].mxu0 %v3188
      %v3324 = vpop.f32.mrb[0].mxu0
      %v3325 = vadd.f32 %v3193, %v3324
      %v3326 = vpop.f32.mrb[0].mxu0
      %v3327 = vadd.f32 %v3197, %v3326
      %v3328 = vpop.f32.mrb[0].mxu0
      %v3329 = vadd.f32 %v3193, %v3328
      %v3330 = vpop.f32.mrb[0].mxu0
      %v3331 = vadd.f32 %v3197, %v3330
      %3332 = vdwg.mxu0
      %v3333 = vmul.f32 %v3315, 0.5
      %v3334 = vmul.f32 %v3317, 0.5
      %v3335 = vmul.f32 %v3319, 0.5
      %v3336 = vmul.f32 %v3321, 0.5
      %v3337 = vmul.f32 %v3325, 0.5
      %v3338 = vmul.f32 %v3327, 0.5
      %v3339 = vmul.f32 %v3329, 0.5
      %v3340 = vmul.f32 %v3331, 0.5
      %v3341 = vmul.f32 %v3315, 0.044715
      %v3342 = vmul.f32 %v3317, 0.044715
      %v3343 = vmul.f32 %v3319, 0.044715
      %v3344 = vmul.f32 %v3321, 0.044715
      %v3345 = vmul.f32 %v3325, 0.044715
      %v3346 = vmul.f32 %v3327, 0.044715
      %v3347 = vmul.f32 %v3329, 0.044715
      %v3348 = vmul.f32 %v3331, 0.044715
      %v3349 = vmul.f32 %v3341, %v3315
      %v3350 = vmul.f32 %v3342, %v3317
      %v3351 = vmul.f32 %v3343, %v3319
      %v3352 = vmul.f32 %v3344, %v3321
      %v3353 = vmul.f32 %v3345, %v3325
      %v3354 = vmul.f32 %v3346, %v3327
      %v3355 = vmul.f32 %v3347, %v3329
      %v3356 = vmul.f32 %v3348, %v3331
      %v3357 = vmul.f32 %v3349, %v3315
      %v3358 = vmul.f32 %v3350, %v3317
      %v3359 = vmul.f32 %v3351, %v3319
      %v3360 = vmul.f32 %v3352, %v3321
      %v3361 = vmul.f32 %v3353, %v3325
      %v3362 = vmul.f32 %v3354, %v3327
      %v3363 = vmul.f32 %v3355, %v3329
      %v3364 = vmul.f32 %v3356, %v3331
      %v3365 = vadd.f32 %v3315, %v3357
      %v3366 = vadd.f32 %v3317, %v3358
      %v3367 = vadd.f32 %v3319, %v3359
      %v3368 = vadd.f32 %v3321, %v3360
      %v3369 = vadd.f32 %v3325, %v3361
      %v3370 = vadd.f32 %v3327, %v3362
      %v3371 = vadd.f32 %v3329, %v3363
      %v3372 = vadd.f32 %v3331, %v3364
      %v3373 = vmul.f32 %v3365, 0.7978846
      %v3374 = vmul.f32 %v3366, 0.7978846
      %v3375 = vmul.f32 %v3367, 0.7978846
      %v3376 = vmul.f32 %v3368, 0.7978846
      %v3377 = vmul.f32 %v3369, 0.7978846
      %v3378 = vmul.f32 %v3370, 0.7978846
      %v3379 = vmul.f32 %v3371, 0.7978846
      %v3380 = vmul.f32 %v3372, 0.7978846
      %v3381 = vtanh.pop %v3373
      %v3382 = vtanh.pop %v3374
      %v3383 = vtanh.pop %v3375
      %v3384 = vtanh.pop %v3376
      %v3385 = vtanh.pop %v3377
      %v3386 = vtanh.pop %v3378
      %v3387 = vtanh.pop %v3379
      %v3388 = vtanh.pop %v3380
      %v3389 = vadd.f32 %v3381, 1.0
      %v3390 = vadd.f32 %v3382, 1.0
      %v3391 = vadd.f32 %v3383, 1.0
      %v3392 = vadd.f32 %v3384, 1.0
      %v3393 = vadd.f32 %v3385, 1.0
      %v3394 = vadd.f32 %v3386, 1.0
      %v3395 = vadd.f32 %v3387, 1.0
      %v3396 = vadd.f32 %v3388, 1.0
      %v3397 = vmul.f32 %v3333, %v3389
      %v3398 = vmul.f32 %v3334, %v3390
      %v3399 = vmul.f32 %v3335, %v3391
      %v3400 = vmul.f32 %v3336, %v3392
      %v3401 = vmul.f32 %v3337, %v3393
      %v3402 = vmul.f32 %v3338, %v3394
      %v3403 = vmul.f32 %v3339, %v3395
      %v3404 = vmul.f32 %v3340, %v3396
      %v3405 = vpack.c.bf16 %v3399, %v3397
      %v3406 = vpack.c.bf16 %v3400, %v3398
      %v3407 = vpack.c.bf16 %v3403, %v3401
      %v3408 = vpack.c.bf16 %v3404, %v3402
      %v3410 = vlaneseq
      %v3411 = vshrl.u32 %v3410, 7
      %v3412 = vsub.s32 0, %v3411
      %v3413 = vrot.slane %v702, %v3412
      %v3447 = vunpack.c.l.b16 %v670
      %v3448 = vunpack.c.l.b16 %v671
      %v3449 = vunpack.c.l.b16 %v672
      %v3450 = vunpack.c.l.b16 %v673
      %v3451 = vunpack.c.l.b16 %v674
      %v3452 = vunpack.c.l.b16 %v675
      %v3453 = vunpack.c.l.b16 %v676
      %v3454 = vunpack.c.l.b16 %v677
      %v3455 = vunpack.c.l.b16 %v678
      %v3456 = vunpack.c.l.b16 %v679
      %v3457 = vunpack.c.l.b16 %v680
      %v3458 = vunpack.c.l.b16 %v681
      %v3459 = vunpack.c.l.b16 %v682
      %v3460 = vunpack.c.l.b16 %v683
      %v3461 = vunpack.c.l.b16 %v684
      %v3462 = vunpack.c.l.b16 %v685
      %v3463 = vunpack.c.l.b16 %v686
      %v3464 = vunpack.c.l.b16 %v687
      %v3465 = vunpack.c.l.b16 %v688
      %v3466 = vunpack.c.l.b16 %v689
      %v3467 = vunpack.c.l.b16 %v690
      %v3468 = vunpack.c.l.b16 %v691
      %v3469 = vunpack.c.l.b16 %v692
      %v3470 = vunpack.c.l.b16 %v693
      %v3471 = vunpack.c.l.b16 %v694
      %v3472 = vunpack.c.l.b16 %v695
      %v3473 = vunpack.c.l.b16 %v696
      %v3474 = vunpack.c.l.b16 %v697
      %v3475 = vunpack.c.l.b16 %v698
      %v3476 = vunpack.c.l.b16 %v699
      %v3477 = vunpack.c.l.b16 %v700
      %v3478 = vunpack.c.l.b16 %v701
      %v3479 = vpack.c.b16 %v3448, %v3447
      %v3480 = vpack.c.b16 %v3450, %v3449
      %v3481 = vpack.c.b16 %v3452, %v3451
      %v3482 = vpack.c.b16 %v3454, %v3453
      %v3483 = vpack.c.b16 %v3456, %v3455
      %v3484 = vpack.c.b16 %v3458, %v3457
      %v3485 = vpack.c.b16 %v3460, %v3459
      %v3486 = vpack.c.b16 %v3462, %v3461
      %v3487 = vpack.c.b16 %v3464, %v3463
      %v3488 = vpack.c.b16 %v3466, %v3465
      %v3489 = vpack.c.b16 %v3468, %v3467
      %v3490 = vpack.c.b16 %v3470, %v3469
      %v3491 = vpack.c.b16 %v3472, %v3471
      %v3492 = vpack.c.b16 %v3474, %v3473
      %v3493 = vpack.c.b16 %v3476, %v3475
      %v3494 = vpack.c.b16 %v3478, %v3477
      %3511 = vmatprep.subr.bf16.mxu0 0
      %3512 = vmatpush1.bf16.msra.mxu0 %v3479
      %3513 = vmatprep.subr.bf16.mxu0 0
      %3514 = vmatpush1.bf16.msra.mxu0 %v3480
      %3515 = vmatprep.subr.bf16.mxu0 0
      %3516 = vmatpush1.bf16.msra.mxu0 %v3481
      %3517 = vmatprep.subr.bf16.mxu0 0
      %3518 = vmatpush1.bf16.msra.mxu0 %v3482
      %3519 = vmatprep.subr.bf16.mxu0 0
      %3520 = vmatpush1.bf16.msra.mxu0 %v3483
      %3521 = vmatprep.subr.bf16.mxu0 0
      %3522 = vmatpush1.bf16.msra.mxu0 %v3484
      %3523 = vmatprep.subr.bf16.mxu0 0
      %3524 = vmatpush1.bf16.msra.mxu0 %v3485
      %3525 = vmatprep.subr.bf16.mxu0 0
      %3526 = vmatpush1.bf16.msra.mxu0 %v3486
      %3527 = vmatprep.subr.bf16.mxu0 0
      %3528 = vmatpush1.bf16.msra.mxu0 %v3487
      %3529 = vmatprep.subr.bf16.mxu0 0
      %3530 = vmatpush1.bf16.msra.mxu0 %v3488
      %3531 = vmatprep.subr.bf16.mxu0 0
      %3532 = vmatpush1.bf16.msra.mxu0 %v3489
      %3533 = vmatprep.subr.bf16.mxu0 0
      %3534 = vmatpush1.bf16.msra.mxu0 %v3490
      %3535 = vmatprep.subr.bf16.mxu0 0
      %3536 = vmatpush1.bf16.msra.mxu0 %v3491
      %3537 = vmatprep.subr.bf16.mxu0 0
      %3538 = vmatpush1.bf16.msra.mxu0 %v3492
      %3539 = vmatprep.subr.bf16.mxu0 0
      %3540 = vmatpush1.bf16.msra.mxu0 %v3493
      %3541 = vmatprep.subr.bf16.mxu0 0
      %3542 = vmatpush1.bf16.msra.mxu0 %v3494
      %3543 = vmatprep.mubr.bf16.mxu0 %v3406
      %3544 = vmatmul.mubr.bf16.gmra.mrb[0].mxu0 %v3405
      %v3545 = vpop.f32.mrb[0].mxu0
      %v3546 = vadd.f32 %v3413, %v3545
      %v3547 = vpop.f32.mrb[0].mxu0
      %v3548 = vpop.f32.mrb[0].mxu0
      %v3549 = vadd.f32 %v3413, %v3548
      %v3550 = vpop.f32.mrb[0].mxu0
      %3551 = vmatprep.mubr.bf16.mxu0 %v3408
      %3552 = vmatmul.mubr.bf16.gmra.mrb[0].mxu0 %v3407
      %v3553 = vpop.f32.mrb[0].mxu0
      %v3554 = vadd.f32 %v3413, %v3553
      %v3555 = vpop.f32.mrb[0].mxu0
      %v3556 = vpop.f32.mrb[0].mxu0
      %v3557 = vadd.f32 %v3413, %v3556
      %v3558 = vpop.f32.mrb[0].mxu0
      %3559 = vdwg.mxu0
      %v3560 = vadd.f32 %v3121, %v3546
      %v3561 = vadd.f32 %v3122, %v3549
      %v3562 = vadd.f32 %v3123, %v3554
      %v3563 = vadd.f32 %v3124, %v3557
      %3564 = vst [vmem:[%s13] sm:$0xff] %v3560
      %3565 = vst [vmem:[%s13 + $0x8] sm:$0xff] %v3561
      %3566 = vst [vmem:[%s13 + $0x10] sm:$0xff] %v3562
      %3567 = vst [vmem:[%s13 + $0x18] sm:$0xf] %v3563
      // Predicated region
      $region77: #{model_mode0.8} parent=71 // pred_check
        %p3568 = pneg %p360
      $region78: #{model_mode0.8} parent=71 // pred_check_branch
        %3570 = sbr.rel (%p3568) target = $region80
      $region79: #{model_mode0.8} parent=71 // pred_region
        _
      $region80: #{model_mode0.8} parent=71 // pred_fallthru
        _
      // Predicated region
      $region81: #{model_mode0.8} parent=71 // pred_check
        %p3571 = pneg %p360
      $region82: #{model_mode0.8} parent=71 // pred_check_branch
        %3573 = sbr.rel (%p3571) target = $region84
      $region83: #{model_mode0.8} parent=71 // pred_region
        _
      $region84: #{model_mode0.8} parent=71 // pred_fallthru
        _
    $region72: #{model_mode0.8} parent=5 // pred_fallthru
      _
    %p3574 = scmp.le.s32.totalorder 2, %s19
    // Predicated region
    $region85: #{model_mode0.8} parent=5 // pred_check
      %p3575 = pneg %p3574
    $region86: #{model_mode0.8} parent=5 // pred_check_branch
      %3577 = sbr.rel (%p3575) target = $region88
    $region87: #{model_mode0.8} parent=5 // pred_region
      %s3578 = ssub.s32 %s19, 2
    $region88: #{model_mode0.8} parent=5 // pred_fallthru
      _
  $region6: #{model_mode0.8} parent=0 // loop_footer
    %s23 = sadd.s32 1, %s19
  $region7: #{model_mode0.8} parent=0 // loop_footer_branch
    %18 = sbr.rel target = $region3
  $region8: #{model_mode0.8} parent=0 // loop_exit
    _

// kernel: model_mode0.7
$region0: #{model_mode0.7}
  #allocation0 [shape = 'u32[]', space=smem, size = 0x4, offset = 0x4, fixed_abs, tag = 'smem constant byte address 0x4 - core index']
  #allocation1 [shape = 'u32[144,128]{1,0:T(1,128)}', space=vmem, size = 0x12000, scoped, tag = 'internal scratch']
  %s0 = inlined_call_operand.vmem [shape: f32[12,128], index: 0, kind: input, shape index: {}]
  %s1 = inlined_call_operand.vmem [shape: f32[2,1,6], index: 1, kind: input, shape index: {}]
  %s2 = inlined_call_operand.hbm [shape: f32[2,128], index: 2, kind: input, shape index: {}]
  %s3 = inlined_call_operand.hbm [shape: bf16[3,128,384], index: 3, kind: input, shape index: {}]
  %s4 = inlined_call_operand.hbm [shape: f32[3,1,384], index: 4, kind: input, shape index: {}]
  %s5 = inlined_call_operand.hbm [shape: bf16[3,128,128], index: 5, kind: input, shape index: {}]
  %s6 = inlined_call_operand.hbm [shape: f32[3,1,128], index: 6, kind: input, shape index: {}]
  %s7 = inlined_call_operand.hbm [shape: f32[3,2,128], index: 7, kind: input, shape index: {}]
  %s8 = inlined_call_operand.hbm [shape: f32[3,2,128], index: 8, kind: input, shape index: {}]
  %s9 = inlined_call_operand.vmem [shape: bf16[3,128,256], index: 9, kind: input, shape index: {}]
  %s10 = inlined_call_operand.hbm [shape: f32[3,1,256], index: 10, kind: input, shape index: {}]
  %s11 = inlined_call_operand.hbm [shape: bf16[3,256,128], index: 11, kind: input, shape index: {}]
  %s12 = inlined_call_operand.hbm [shape: f32[3,1,128], index: 12, kind: input, shape index: {}]
  %s13 = inlined_call_operand.vmem [shape: f32[12,128], index: 13, kind: output, shape index: {}]
  %s14 = sld [smem:[#allocation0]]
  $region129: #{model_mode0.7} parent=0
    _
  %s16 = ssub.s32 1, %s14
  %s17 = scalar_select 0, %s16, %s14
  $region1: #{model_mode0.7} parent=0
    #allocation2 [shape = 'u8[1024]{0}', space=vmem, size = 0x400, scoped, tag = 'input window, operand 2, single buffered']
    #allocation3 [shape = 's32[2]{0}', space=sflag, size = 0x8, scoped, tag = 'scoped memory for model_mode0.7']
    #allocation4 [shape = 'u8[196608]{0}', space=vmem, size = 0x30000, scoped, tag = 'input window, operand 3']
    #allocation5 [shape = 's32[2]{0}', space=sflag, size = 0x8, scoped, tag = 'scoped memory for model_mode0.7']
    #allocation6 [shape = 'u8[3072]{0}', space=vmem, size = 0xc00, scoped, tag = 'input window, operand 4']
    #allocation7 [shape = 'u8[65536]{0}', space=vmem, size = 0x10000, scoped, tag = 'input window, operand 5']
    #allocation8 [shape = 's32[2]{0}', space=sflag, size = 0x8, scoped, tag = 'scoped memory for model_mode0.7']
    #allocation9 [shape = 'u8[1024]{0}', space=vmem, size = 0x400, scoped, tag = 'input window, operand 6']
    #allocation10 [shape = 'u8[2048]{0}', space=vmem, size = 0x800, scoped, tag = 'input window, operand 7']
    #allocation11 [shape = 's32[2]{0}', space=sflag, size = 0x8, scoped, tag = 'scoped memory for model_mode0.7']
    #allocation12 [shape = 'u8[2048]{0}', space=vmem, size = 0x800, scoped, tag = 'input window, operand 8']
    #allocation13 [shape = 'u8[2048]{0}', space=vmem, size = 0x800, scoped, tag = 'input window, operand 10']
    #allocation14 [shape = 's32[2]{0}', space=sflag, size = 0x8, scoped, tag = 'scoped memory for model_mode0.7']
    #allocation15 [shape = 'u8[131072]{0}', space=vmem, size = 0x20000, scoped, tag = 'input window, operand 11']
    #allocation16 [shape = 'u8[1024]{0}', space=vmem, size = 0x400, scoped, tag = 'input window, operand 12']
    #allocation17 [shape = 's32[2]{0}', space=sflag, size = 0x8, scoped, tag = 'scoped memory for model_mode0.7']
    %18 = vsyncpa [#allocation3], 0
    %19 = vsyncpa [#allocation5], 0
    %s20 = scalar_lea.sflag [#allocation5], 1
    %21 = vsyncpa %s20, 0
    %22 = vsyncpa [#allocation8], 0
    %s23 = scalar_lea.sflag [#allocation8], 1
    %24 = vsyncpa %s23, 0
    %25 = vsyncpa [#allocation11], 0
    %s26 = scalar_lea.sflag [#allocation11], 1
    %27 = vsyncpa %s26, 0
    %28 = vsyncpa [#allocation14], 0
    %s29 = scalar_lea.sflag [#allocation14], 1
    %30 = vsyncpa %s29, 0
    %31 = vsyncpa [#allocation17], 0
    %s32 = scalar_lea.sflag [#allocation17], 1
    %33 = vsyncpa %s32, 0
    loop: start=0, step=1, limit=5
    $region2: #{model_mode0.7} parent=1 // loop_pre_header
      _
    $region3: #{model_mode0.7} parent=1 // loop_header
      %s35 = sphi 0, %s39
      %p36 = scmp.ge.s32.totalorder %s35, 5
      %s43 = sphi 0, %s43
      %s45 = sphi 0, %s43
      %s46 = sphi 0, %s45
      %s60 = sphi 0, %s46
      %s64 = sphi 0, %s64
      %s66 = sphi 0, %s64
      %s67 = sphi 0, %s66
      %s81 = sphi 0, %s67
      %s85 = sphi 0, %s85
      %s87 = sphi 0, %s85
      %s88 = sphi 0, %s87
      %s102 = sphi 0, %s88
      %s108 = sphi 0, %s110
      %s111 = sphi 0, %s108
      %s112 = sphi 0, %s111
      %s128 = sphi 0, %s112
      %s134 = sphi 0, %s136
      %s137 = sphi 0, %s134
      %s138 = sphi 0, %s137
      %s154 = sphi 0, %s138
      %s160 = sphi 0, %s162
      %s163 = sphi 0, %s160
      %s164 = sphi 0, %s163
      %s180 = sphi 0, %s164
      %s186 = sphi 0, %s188
      %s189 = sphi 0, %s186
      %s190 = sphi 0, %s189
      %s206 = sphi 0, %s190
      %s212 = sphi 0, %s214
      %s215 = sphi 0, %s212
      %s216 = sphi 0, %s215
      %s232 = sphi 0, %s216
      %s238 = sphi 0, %s240
      %s241 = sphi 0, %s238
      %s242 = sphi 0, %s241
      %s258 = sphi 0, %s242
      %s264 = sphi 0, %s266
      %s267 = sphi 0, %s264
      %s268 = sphi 0, %s267
      %s284 = sphi 0, %s268
      %s290 = sphi 0, %s292
      %s293 = sphi 0, %s290
      %s294 = sphi 0, %s293
      %s310 = sphi 0, %s294
      %s316 = sphi 0, %s318
      %s319 = sphi 0, %s316
      %s320 = sphi 0, %s319
      %s336 = sphi 0, %s320
      %s342 = sphi 0, %s344
      %s345 = sphi 0, %s342
      %s346 = sphi 0, %s345
      %s362 = sphi 0, %s346
      %s366 = sphi 0, %s366
      %s368 = sphi 0, %s366
      %s369 = sphi 0, %s368
      %s383 = sphi 0, %s369
    $region4: #{model_mode0.7} parent=1 // loop_header_branch
      %38 = sbr.rel (%p36) target = $region8
    $region5: #{model_mode0.7} parent=1 // loop_body
      %s40 = ssub.s32 %s35, 1
      %s41 = ssub.s32 %s35, 2
      %s42 = sadd.s32 %s35, 1
      %s44 = sadd.s32 %s43, 1
      %p47 = scmp.eq.s32.totalorder %s35, 2
      %p48 = scmp.ne.s32.totalorder %s43, %s45
      %p49 = scmp.eq.s32.totalorder %s35, 0
      %p50 = por %p48, %p49
      %p51 = scmp.ne.s32.totalorder %s43, %s45
      %p52 = scmp.eq.s32.totalorder %s40, 2
      %p53 = por %p51, %p52
      %p54 = scmp.ne.s32.totalorder %s45, %s46
      %p55 = scmp.eq.s32.totalorder %s40, 0
      %p56 = por %p54, %p55
      %p57 = scmp.ne.s32.totalorder %s45, %s46
      %p58 = scmp.eq.s32.totalorder %s41, 2
      %p59 = por %p57, %p58
      %p61 = scmp.ne.s32.totalorder %s46, %s60
      %p62 = scmp.eq.s32.totalorder %s41, 0
      %p63 = por %p61, %p62
      %s65 = sadd.s32 %s64, 1
      %p68 = scmp.eq.s32.totalorder %s35, 2
      %p69 = scmp.ne.s32.totalorder %s64, %s66
      %p70 = scmp.eq.s32.totalorder %s35, 0
      %p71 = por %p69, %p70
      %p72 = scmp.ne.s32.totalorder %s64, %s66
      %p73 = scmp.eq.s32.totalorder %s40, 2
      %p74 = por %p72, %p73
      %p75 = scmp.ne.s32.totalorder %s66, %s67
      %p76 = scmp.eq.s32.totalorder %s40, 0
      %p77 = por %p75, %p76
      %p78 = scmp.ne.s32.totalorder %s66, %s67
      %p79 = scmp.eq.s32.totalorder %s41, 2
      %p80 = por %p78, %p79
      %p82 = scmp.ne.s32.totalorder %s67, %s81
      %p83 = scmp.eq.s32.totalorder %s41, 0
      %p84 = por %p82, %p83
      %s86 = sadd.s32 %s85, 1
      %p89 = scmp.eq.s32.totalorder %s35, 2
      %p90 = scmp.ne.s32.totalorder %s85, %s87
      %p91 = scmp.eq.s32.totalorder %s35, 0
      %p92 = por %p90, %p91
      %p93 = scmp.ne.s32.totalorder %s85, %s87
      %p94 = scmp.eq.s32.totalorder %s40, 2
      %p95 = por %p93, %p94
      %p96 = scmp.ne.s32.totalorder %s87, %s88
      %p97 = scmp.eq.s32.totalorder %s40, 0
      %p98 = por %p96, %p97
      %p99 = scmp.ne.s32.totalorder %s87, %s88
      %p100 = scmp.eq.s32.totalorder %s41, 2
      %p101 = por %p99, %p100
      %p103 = scmp.ne.s32.totalorder %s88, %s102
      %p104 = scmp.eq.s32.totalorder %s41, 0
      %p105 = por %p103, %p104
      %s106 = ssub.s32 %s35, %s42
      %p107 = scmp.eq.s32.totalorder %s106, 0
      %s109 = sadd.s32 %s108, 1
      %s110 = scalar_select %p107, %s108, %s109
      %p113 = pneg %p107
      %p114 = scmp.eq.s32.totalorder %s35, 2
      %p115 = por %p113, %p114
      %p116 = scmp.ne.s32.totalorder %s108, %s111
      %p117 = scmp.eq.s32.totalorder %s35, 0
      %p118 = por %p116, %p117
      %p119 = scmp.ne.s32.totalorder %s108, %s111
      %p120 = scmp.eq.s32.totalorder %s40, 2
      %p121 = por %p119, %p120
      %p122 = scmp.ne.s32.totalorder %s111, %s112
      %p123 = scmp.eq.s32.totalorder %s40, 0
      %p124 = por %p122, %p123
      %p125 = scmp.ne.s32.totalorder %s111, %s112
      %p126 = scmp.eq.s32.totalorder %s41, 2
      %p127 = por %p125, %p126
      %p129 = scmp.ne.s32.totalorder %s112, %s128
      %p130 = scmp.eq.s32.totalorder %s41, 0
      %p131 = por %p129, %p130
      %s132 = ssub.s32 %s35, %s42
      %p133 = scmp.eq.s32.totalorder %s132, 0
      %s135 = sadd.s32 %s134, 1
      %s136 = scalar_select %p133, %s134, %s135
      %p139 = pneg %p133
      %p140 = scmp.eq.s32.totalorder %s35, 2
      %p141 = por %p139, %p140
      %p142 = scmp.ne.s32.totalorder %s134, %s137
      %p143 = scmp.eq.s32.totalorder %s35, 0
      %p144 = por %p142, %p143
      %p145 = scmp.ne.s32.totalorder %s134, %s137
      %p146 = scmp.eq.s32.totalorder %s40, 2
      %p147 = por %p145, %p146
      %p148 = scmp.ne.s32.totalorder %s137, %s138
      %p149 = scmp.eq.s32.totalorder %s40, 0
      %p150 = por %p148, %p149
      %p151 = scmp.ne.s32.totalorder %s137, %s138
      %p152 = scmp.eq.s32.totalorder %s41, 2
      %p153 = por %p151, %p152
      %p155 = scmp.ne.s32.totalorder %s138, %s154
      %p156 = scmp.eq.s32.totalorder %s41, 0
      %p157 = por %p155, %p156
      %s158 = ssub.s32 %s35, %s42
      %p159 = scmp.eq.s32.totalorder %s158, 0
      %s161 = sadd.s32 %s160, 1
      %s162 = scalar_select %p159, %s160, %s161
      %p165 = pneg %p159
      %p166 = scmp.eq.s32.totalorder %s35, 2
      %p167 = por %p165, %p166
      %p168 = scmp.ne.s32.totalorder %s160, %s163
      %p169 = scmp.eq.s32.totalorder %s35, 0
      %p170 = por %p168, %p169
      %p171 = scmp.ne.s32.totalorder %s160, %s163
      %p172 = scmp.eq.s32.totalorder %s40, 2
      %p173 = por %p171, %p172
      %p174 = scmp.ne.s32.totalorder %s163, %s164
      %p175 = scmp.eq.s32.totalorder %s40, 0
      %p176 = por %p174, %p175
      %p177 = scmp.ne.s32.totalorder %s163, %s164
      %p178 = scmp.eq.s32.totalorder %s41, 2
      %p179 = por %p177, %p178
      %p181 = scmp.ne.s32.totalorder %s164, %s180
      %p182 = scmp.eq.s32.totalorder %s41, 0
      %p183 = por %p181, %p182
      %s184 = ssub.s32 %s35, %s42
      %p185 = scmp.eq.s32.totalorder %s184, 0
      %s187 = sadd.s32 %s186, 1
      %s188 = scalar_select %p185, %s186, %s187
      %p191 = pneg %p185
      %p192 = scmp.eq.s32.totalorder %s35, 2
      %p193 = por %p191, %p192
      %p194 = scmp.ne.s32.totalorder %s186, %s189
      %p195 = scmp.eq.s32.totalorder %s35, 0
      %p196 = por %p194, %p195
      %p197 = scmp.ne.s32.totalorder %s186, %s189
      %p198 = scmp.eq.s32.totalorder %s40, 2
      %p199 = por %p197, %p198
      %p200 = scmp.ne.s32.totalorder %s189, %s190
      %p201 = scmp.eq.s32.totalorder %s40, 0
      %p202 = por %p200, %p201
      %p203 = scmp.ne.s32.totalorder %s189, %s190
      %p204 = scmp.eq.s32.totalorder %s41, 2
      %p205 = por %p203, %p204
      %p207 = scmp.ne.s32.totalorder %s190, %s206
      %p208 = scmp.eq.s32.totalorder %s41, 0
      %p209 = por %p207, %p208
      %s210 = ssub.s32 %s35, %s42
      %p211 = scmp.eq.s32.totalorder %s210, 0
      %s213 = sadd.s32 %s212, 1
      %s214 = scalar_select %p211, %s212, %s213
      %p217 = pneg %p211
      %p218 = scmp.eq.s32.totalorder %s35, 2
      %p219 = por %p217, %p218
      %p220 = scmp.ne.s32.totalorder %s212, %s215
      %p221 = scmp.eq.s32.totalorder %s35, 0
      %p222 = por %p220, %p221
      %p223 = scmp.ne.s32.totalorder %s212, %s215
      %p224 = scmp.eq.s32.totalorder %s40, 2
      %p225 = por %p223, %p224
      %p226 = scmp.ne.s32.totalorder %s215, %s216
      %p227 = scmp.eq.s32.totalorder %s40, 0
      %p228 = por %p226, %p227
      %p229 = scmp.ne.s32.totalorder %s215, %s216
      %p230 = scmp.eq.s32.totalorder %s41, 2
      %p231 = por %p229, %p230
      %p233 = scmp.ne.s32.totalorder %s216, %s232
      %p234 = scmp.eq.s32.totalorder %s41, 0
      %p235 = por %p233, %p234
      %s236 = ssub.s32 %s35, %s42
      %p237 = scmp.eq.s32.totalorder %s236, 0
      %s239 = sadd.s32 %s238, 1
      %s240 = scalar_select %p237, %s238, %s239
      %p243 = pneg %p237
      %p244 = scmp.eq.s32.totalorder %s35, 2
      %p245 = por %p243, %p244
      %p246 = scmp.ne.s32.totalorder %s238, %s241
      %p247 = scmp.eq.s32.totalorder %s35, 0
      %p248 = por %p246, %p247
      %p249 = scmp.ne.s32.totalorder %s238, %s241
      %p250 = scmp.eq.s32.totalorder %s40, 2
      %p251 = por %p249, %p250
      %p252 = scmp.ne.s32.totalorder %s241, %s242
      %p253 = scmp.eq.s32.totalorder %s40, 0
      %p254 = por %p252, %p253
      %p255 = scmp.ne.s32.totalorder %s241, %s242
      %p256 = scmp.eq.s32.totalorder %s41, 2
      %p257 = por %p255, %p256
      %p259 = scmp.ne.s32.totalorder %s242, %s258
      %p260 = scmp.eq.s32.totalorder %s41, 0
      %p261 = por %p259, %p260
      %s262 = ssub.s32 %s35, %s42
      %p263 = scmp.eq.s32.totalorder %s262, 0
      %s265 = sadd.s32 %s264, 1
      %s266 = scalar_select %p263, %s264, %s265
      %p269 = pneg %p263
      %p270 = scmp.eq.s32.totalorder %s35, 2
      %p271 = por %p269, %p270
      %p272 = scmp.ne.s32.totalorder %s264, %s267
      %p273 = scmp.eq.s32.totalorder %s35, 0
      %p274 = por %p272, %p273
      %p275 = scmp.ne.s32.totalorder %s264, %s267
      %p276 = scmp.eq.s32.totalorder %s40, 2
      %p277 = por %p275, %p276
      %p278 = scmp.ne.s32.totalorder %s267, %s268
      %p279 = scmp.eq.s32.totalorder %s40, 0
      %p280 = por %p278, %p279
      %p281 = scmp.ne.s32.totalorder %s267, %s268
      %p282 = scmp.eq.s32.totalorder %s41, 2
      %p283 = por %p281, %p282
      %p285 = scmp.ne.s32.totalorder %s268, %s284
      %p286 = scmp.eq.s32.totalorder %s41, 0
      %p287 = por %p285, %p286
      %s288 = ssub.s32 %s35, %s42
      %p289 = scmp.eq.s32.totalorder %s288, 0
      %s291 = sadd.s32 %s290, 1
      %s292 = scalar_select %p289, %s290, %s291
      %p295 = pneg %p289
      %p296 = scmp.eq.s32.totalorder %s35, 2
      %p297 = por %p295, %p296
      %p298 = scmp.ne.s32.totalorder %s290, %s293
      %p299 = scmp.eq.s32.totalorder %s35, 0
      %p300 = por %p298, %p299
      %p301 = scmp.ne.s32.totalorder %s290, %s293
      %p302 = scmp.eq.s32.totalorder %s40, 2
      %p303 = por %p301, %p302
      %p304 = scmp.ne.s32.totalorder %s293, %s294
      %p305 = scmp.eq.s32.totalorder %s40, 0
      %p306 = por %p304, %p305
      %p307 = scmp.ne.s32.totalorder %s293, %s294
      %p308 = scmp.eq.s32.totalorder %s41, 2
      %p309 = por %p307, %p308
      %p311 = scmp.ne.s32.totalorder %s294, %s310
      %p312 = scmp.eq.s32.totalorder %s41, 0
      %p313 = por %p311, %p312
      %s314 = ssub.s32 %s35, %s42
      %p315 = scmp.eq.s32.totalorder %s314, 0
      %s317 = sadd.s32 %s316, 1
      %s318 = scalar_select %p315, %s316, %s317
      %p321 = pneg %p315
      %p322 = scmp.eq.s32.totalorder %s35, 2
      %p323 = por %p321, %p322
      %p324 = scmp.ne.s32.totalorder %s316, %s319
      %p325 = scmp.eq.s32.totalorder %s35, 0
      %p326 = por %p324, %p325
      %p327 = scmp.ne.s32.totalorder %s316, %s319
      %p328 = scmp.eq.s32.totalorder %s40, 2
      %p329 = por %p327, %p328
      %p330 = scmp.ne.s32.totalorder %s319, %s320
      %p331 = scmp.eq.s32.totalorder %s40, 0
      %p332 = por %p330, %p331
      %p333 = scmp.ne.s32.totalorder %s319, %s320
      %p334 = scmp.eq.s32.totalorder %s41, 2
      %p335 = por %p333, %p334
      %p337 = scmp.ne.s32.totalorder %s320, %s336
      %p338 = scmp.eq.s32.totalorder %s41, 0
      %p339 = por %p337, %p338
      %s340 = ssub.s32 %s35, %s42
      %p341 = scmp.eq.s32.totalorder %s340, 0
      %s343 = sadd.s32 %s342, 1
      %s344 = scalar_select %p341, %s342, %s343
      %p347 = pneg %p341
      %p348 = scmp.eq.s32.totalorder %s35, 2
      %p349 = por %p347, %p348
      %p350 = scmp.ne.s32.totalorder %s342, %s345
      %p351 = scmp.eq.s32.totalorder %s35, 0
      %p352 = por %p350, %p351
      %p353 = scmp.ne.s32.totalorder %s342, %s345
      %p354 = scmp.eq.s32.totalorder %s40, 2
      %p355 = por %p353, %p354
      %p356 = scmp.ne.s32.totalorder %s345, %s346
      %p357 = scmp.eq.s32.totalorder %s40, 0
      %p358 = por %p356, %p357
      %p359 = scmp.ne.s32.totalorder %s345, %s346
      %p360 = scmp.eq.s32.totalorder %s41, 2
      %p361 = por %p359, %p360
      %p363 = scmp.ne.s32.totalorder %s346, %s362
      %p364 = scmp.eq.s32.totalorder %s41, 0
      %p365 = por %p363, %p364
      %s367 = sadd.s32 %s366, 1
      %p370 = scmp.eq.s32.totalorder %s35, 2
      %p371 = scmp.ne.s32.totalorder %s366, %s368
      %p372 = scmp.eq.s32.totalorder %s35, 0
      %p373 = por %p371, %p372
      %p374 = scmp.ne.s32.totalorder %s366, %s368
      %p375 = scmp.eq.s32.totalorder %s40, 2
      %p376 = por %p374, %p375
      %p377 = scmp.ne.s32.totalorder %s368, %s369
      %p378 = scmp.eq.s32.totalorder %s40, 0
      %p379 = por %p377, %p378
      %p380 = scmp.ne.s32.totalorder %s368, %s369
      %p381 = scmp.eq.s32.totalorder %s41, 2
      %p382 = por %p380, %p381
      %p384 = scmp.ne.s32.totalorder %s369, %s383
      %p385 = scmp.eq.s32.totalorder %s41, 0
      %p386 = por %p384, %p385
      %p387 = scmp.le.s32.totalorder 1, %s35
      %p388 = scmp.lt.s32.totalorder %s35, 4
      %p389 = pnand %p387, %p388
      %p390 = pneg %p389
      // Predicated region
      $region9: #{model_mode0.7} parent=5 // pred_check
        _
      $region10: #{model_mode0.7} parent=5 // pred_check_branch
        %392 = sbr.rel (%p389) target = $region12
      $region11: #{model_mode0.7} parent=5 // pred_region
        %s393 = ssub.s32 %s35, 1
        // Predicated region
        $region13: #{model_mode0.7} parent=11 // pred_check
          %p394 = pneg %p56
        $region14: #{model_mode0.7} parent=11 // pred_check_branch
          %396 = sbr.rel (%p394) target = $region16
        $region15: #{model_mode0.7} parent=11 // pred_region
          _
        $region16: #{model_mode0.7} parent=11 // pred_fallthru
          _
        // Predicated region
        $region17: #{model_mode0.7} parent=11 // pred_check
          %p397 = pneg %p77
        $region18: #{model_mode0.7} parent=11 // pred_check_branch
          %399 = sbr.rel (%p397) target = $region20
        $region19: #{model_mode0.7} parent=11 // pred_region
          _
        $region20: #{model_mode0.7} parent=11 // pred_fallthru
          _
        // Predicated region
        $region21: #{model_mode0.7} parent=11 // pred_check
          %p400 = pneg %p98
        $region22: #{model_mode0.7} parent=11 // pred_check_branch
          %402 = sbr.rel (%p400) target = $region24
        $region23: #{model_mode0.7} parent=11 // pred_region
          %s404 = ssub.s32 32, 32
          %405 = vsyncadd [#allocation3], %s404
          %s407 = sshll.u32 [#allocation2], 4
          %s408 = int_to_ptr.vmem [resolvable:$true] %s407
          %410 = dma.hbm_to_vmem [thread:$0]  %s2, 32, %s408, [#allocation3]
        $region24: #{model_mode0.7} parent=11 // pred_fallthru
          _
      $region12: #{model_mode0.7} parent=5 // pred_fallthru
        _
      %p411 = scmp.lt.s32.totalorder %s35, 3
      // Predicated region
      $region25: #{model_mode0.7} parent=5 // pred_check
        %p412 = pneg %p411
      $region26: #{model_mode0.7} parent=5 // pred_check_branch
        %414 = sbr.rel (%p412) target = $region28
      $region27: #{model_mode0.7} parent=5 // pred_region
        // Predicated region
        $region29: #{model_mode0.7} parent=27 // pred_check
          %p415 = pneg %p118
        $region30: #{model_mode0.7} parent=27 // pred_check_branch
          %417 = sbr.rel (%p415) target = $region32
        $region31: #{model_mode0.7} parent=27 // pred_region
          %s418 = sand.u32 %s35, 1
          %s419 = scalar_lea.sflag [#allocation5], %s418
          %s420 = sand.u32 %s108, 1
          %s421 = smul.addr %s420, 192
          %s422 = scalar_lea.vmem [#allocation4], %s421
          %s424 = ssub.s32 3072, 3072
          %425 = vsyncadd %s419, %s424
          %s426 = smul.addr %s35, 48
          %s427 = smul.addr %s426, 64
          %s428 = scalar_lea.hbm %s3, %s427
          %s429 = sshll.u32 %s422, 4
          %s430 = int_to_ptr.vmem [resolvable:$true] %s429
          %435 = dma.hbm_to_vmem [thread:$0]  %s428, 3072, %s430, %s419, 192, 192, 12
        $region32: #{model_mode0.7} parent=27 // pred_fallthru
          _
        // Predicated region
        $region33: #{model_mode0.7} parent=27 // pred_check
          %p436 = pneg %p144
        $region34: #{model_mode0.7} parent=27 // pred_check_branch
          %438 = sbr.rel (%p436) target = $region36
        $region35: #{model_mode0.7} parent=27 // pred_region
          %s439 = sand.u32 %s35, 1
          %s440 = scalar_lea.sflag [#allocation5], %s439
          %s441 = sand.u32 %s134, 1
          %s442 = smul.addr %s441, 3
          %s443 = scalar_lea.vmem [#allocation6], %s442
          %s445 = ssub.s32 48, 48
          %446 = vsyncadd %s440, %s445
          %s447 = smul.addr %s35, 3
          %s448 = smul.addr %s447, 16
          %s449 = scalar_lea.hbm %s4, %s448
          %s451 = sshll.u32 %s443, 4
          %s452 = int_to_ptr.vmem [resolvable:$true] %s451
          %454 = dma.hbm_to_vmem [thread:$0]  %s449, 48, %s452, %s440
        $region36: #{model_mode0.7} parent=27 // pred_fallthru
          _
        // Predicated region
        $region37: #{model_mode0.7} parent=27 // pred_check
          %p455 = pneg %p170
        $region38: #{model_mode0.7} parent=27 // pred_check_branch
          %457 = sbr.rel (%p455) target = $region40
        $region39: #{model_mode0.7} parent=27 // pred_region
          %s458 = sand.u32 %s35, 1
          %s459 = scalar_lea.sflag [#allocation8], %s458
          %s460 = sand.u32 %s160, 1
          %s461 = smul.addr %s460, 64
          %s462 = scalar_lea.vmem [#allocation7], %s461
          %s464 = ssub.s32 1024, 1024
          %465 = vsyncadd %s459, %s464
          %s466 = smul.addr %s35, 16
          %s467 = smul.addr %s466, 64
          %s468 = scalar_lea.hbm %s5, %s467
          %s469 = sshll.u32 %s462, 4
          %s470 = int_to_ptr.vmem [resolvable:$true] %s469
          %475 = dma.hbm_to_vmem [thread:$0]  %s468, 1024, %s470, %s459, 64, 64, 4
        $region40: #{model_mode0.7} parent=27 // pred_fallthru
          _
        // Predicated region
        $region41: #{model_mode0.7} parent=27 // pred_check
          %p476 = pneg %p196
        $region42: #{model_mode0.7} parent=27 // pred_check_branch
          %478 = sbr.rel (%p476) target = $region44
        $region43: #{model_mode0.7} parent=27 // pred_region
          %s479 = sand.u32 %s35, 1
          %s480 = scalar_lea.sflag [#allocation8], %s479
          %s481 = sand.u32 %s186, 1
          %s482 = scalar_lea.vmem [#allocation9], %s481
          %s484 = ssub.s32 16, 16
          %485 = vsyncadd %s480, %s484
          %s486 = smul.addr %s35, 16
          %s487 = scalar_lea.hbm %s6, %s486
          %s489 = sshll.u32 %s482, 4
          %s490 = int_to_ptr.vmem [resolvable:$true] %s489
          %492 = dma.hbm_to_vmem [thread:$0]  %s487, 16, %s490, %s480
        $region44: #{model_mode0.7} parent=27 // pred_fallthru
          _
        // Predicated region
        $region45: #{model_mode0.7} parent=27 // pred_check
          %p493 = pneg %p222
        $region46: #{model_mode0.7} parent=27 // pred_check_branch
          %495 = sbr.rel (%p493) target = $region48
        $region47: #{model_mode0.7} parent=27 // pred_region
          %s496 = sand.u32 %s35, 1
          %s497 = scalar_lea.sflag [#allocation11], %s496
          %s498 = sand.u32 %s212, 1
          %s499 = smul.addr %s498, 2
          %s500 = scalar_lea.vmem [#allocation10], %s499
          %s502 = ssub.s32 32, 32
          %503 = vsyncadd %s497, %s502
          %s504 = smul.addr %s35, 32
          %s505 = scalar_lea.hbm %s7, %s504
          %s507 = sshll.u32 %s500, 4
          %s508 = int_to_ptr.vmem [resolvable:$true] %s507
          %510 = dma.hbm_to_vmem [thread:$0]  %s505, 32, %s508, %s497
        $region48: #{model_mode0.7} parent=27 // pred_fallthru
          _
        // Predicated region
        $region49: #{model_mode0.7} parent=27 // pred_check
          %p511 = pneg %p248
        $region50: #{model_mode0.7} parent=27 // pred_check_branch
          %513 = sbr.rel (%p511) target = $region52
        $region51: #{model_mode0.7} parent=27 // pred_region
          %s514 = sand.u32 %s35, 1
          %s515 = scalar_lea.sflag [#allocation11], %s514
          %s516 = sand.u32 %s238, 1
          %s517 = smul.addr %s516, 2
          %s518 = scalar_lea.vmem [#allocation12], %s517
          %s520 = ssub.s32 32, 32
          %521 = vsyncadd %s515, %s520
          %s522 = smul.addr %s35, 32
          %s523 = scalar_lea.hbm %s8, %s522
          %s525 = sshll.u32 %s518, 4
          %s526 = int_to_ptr.vmem [resolvable:$true] %s525
          %528 = dma.hbm_to_vmem [thread:$0]  %s523, 32, %s526, %s515
        $region52: #{model_mode0.7} parent=27 // pred_fallthru
          _
        // Predicated region
        $region53: #{model_mode0.7} parent=27 // pred_check
          %p529 = pneg %p274
        $region54: #{model_mode0.7} parent=27 // pred_check_branch
          %531 = sbr.rel (%p529) target = $region56
        $region55: #{model_mode0.7} parent=27 // pred_region
          %p532 = scmp.lt.s32.totalorder %s35, 2
          %s533 = scalar_select %p532, %s35, 2
          %s534 = smul.addr %s533, 32
          %s535 = smul.addr %s534, 4
          %s536 = scalar_lea.vmem %s9, %s535
        $region56: #{model_mode0.7} parent=27 // pred_fallthru
          _
        // Predicated region
        $region57: #{model_mode0.7} parent=27 // pred_check
          %p537 = pneg %p300
        $region58: #{model_mode0.7} parent=27 // pred_check_branch
          %539 = sbr.rel (%p537) target = $region60
        $region59: #{model_mode0.7} parent=27 // pred_region
          %s540 = sand.u32 %s35, 1
          %s541 = scalar_lea.sflag [#allocation14], %s540
          %s542 = sand.u32 %s290, 1
          %s543 = smul.addr %s542, 2
          %s544 = scalar_lea.vmem [#allocation13], %s543
          %s546 = ssub.s32 32, 32
          %547 = vsyncadd %s541, %s546
          %s548 = smul.addr %s35, 2
          %s549 = smul.addr %s548, 16
          %s550 = scalar_lea.hbm %s10, %s549
          %s552 = sshll.u32 %s544, 4
          %s553 = int_to_ptr.vmem [resolvable:$true] %s552
          %555 = dma.hbm_to_vmem [thread:$0]  %s550, 32, %s553, %s541
        $region60: #{model_mode0.7} parent=27 // pred_fallthru
          _
        // Predicated region
        $region61: #{model_mode0.7} parent=27 // pred_check
          %p556 = pneg %p326
        $region62: #{model_mode0.7} parent=27 // pred_check_branch
          %558 = sbr.rel (%p556) target = $region64
        $region63: #{model_mode0.7} parent=27 // pred_region
          %s559 = sand.u32 %s35, 1
          %s560 = scalar_lea.sflag [#allocation14], %s559
          %s561 = sand.u32 %s316, 1
          %s562 = smul.addr %s561, 128
          %s563 = scalar_lea.vmem [#allocation15], %s562
          %s565 = ssub.s32 2048, 2048
          %566 = vsyncadd %s560, %s565
          %s567 = smul.addr %s35, 32
          %s568 = smul.addr %s567, 64
          %s569 = scalar_lea.hbm %s11, %s568
          %s570 = sshll.u32 %s563, 4
          %s571 = int_to_ptr.vmem [resolvable:$true] %s570
          %576 = dma.hbm_to_vmem [thread:$0]  %s569, 2048, %s571, %s560, 64, 64, 4
        $region64: #{model_mode0.7} parent=27 // pred_fallthru
          _
        // Predicated region
        $region65: #{model_mode0.7} parent=27 // pred_check
          %p577 = pneg %p352
        $region66: #{model_mode0.7} parent=27 // pred_check_branch
          %579 = sbr.rel (%p577) target = $region68
        $region67: #{model_mode0.7} parent=27 // pred_region
          %s580 = sand.u32 %s342, 1
          %s581 = scalar_lea.sflag [#allocation17], %s580
          %s582 = sand.u32 %s342, 1
          %s583 = scalar_lea.vmem [#allocation16], %s582
          %s585 = ssub.s32 16, 16
          %586 = vsyncadd %s581, %s585
          %s587 = smul.addr %s35, 16
          %s588 = scalar_lea.hbm %s12, %s587
          %s590 = sshll.u32 %s583, 4
          %s591 = int_to_ptr.vmem [resolvable:$true] %s590
          %593 = dma.hbm_to_vmem [thread:$0]  %s588, 16, %s591, %s581
        $region68: #{model_mode0.7} parent=27 // pred_fallthru
          _
      $region28: #{model_mode0.7} parent=5 // pred_fallthru
        _
      %p594 = scmp.le.s32.totalorder 1, %s35
      %p595 = scmp.lt.s32.totalorder %s35, 4
      %p596 = pnand %p594, %p595
      %p597 = pneg %p596
      // Predicated region
      $region69: #{model_mode0.7} parent=5 // pred_check
        _
      $region70: #{model_mode0.7} parent=5 // pred_check_branch
        %599 = sbr.rel (%p596) target = $region72
      $region71: #{model_mode0.7} parent=5 // pred_region
        %s600 = ssub.s32 %s35, 1
        // Predicated region
        $region73: #{model_mode0.7} parent=71 // pred_check
          %p601 = pneg %p98
        $region74: #{model_mode0.7} parent=71 // pred_check_branch
          %603 = sbr.rel (%p601) target = $region76
        $region75: #{model_mode0.7} parent=71 // pred_region
          %604 = dma.done [#allocation3], 32
        $region76: #{model_mode0.7} parent=71 // pred_fallthru
          _
        %s605 = sand.u32 %s40, 1
        %s606 = scalar_lea.sflag [#allocation5], %s605
        %s607 = sand.u32 %s111, 1
        %s608 = smul.addr %s607, 192
        %s609 = scalar_lea.vmem [#allocation4], %s608
        // Predicated region
        $region77: #{model_mode0.7} parent=71 // pred_check
          %p610 = pneg %p124
        $region78: #{model_mode0.7} parent=71 // pred_check_branch
          %612 = sbr.rel (%p610) target = $region80
        $region79: #{model_mode0.7} parent=71 // pred_region
          %613 = dma.done %s606, 3072
        $region80: #{model_mode0.7} parent=71 // pred_fallthru
          _
        %s614 = sand.u32 %s40, 1
        %s615 = scalar_lea.sflag [#allocation5], %s614
        %s616 = sand.u32 %s137, 1
        %s617 = smul.addr %s616, 3
        %s618 = scalar_lea.vmem [#allocation6], %s617
        // Predicated region
        $region81: #{model_mode0.7} parent=71 // pred_check
          %p619 = pneg %p150
        $region82: #{model_mode0.7} parent=71 // pred_check_branch
          %621 = sbr.rel (%p619) target = $region84
        $region83: #{model_mode0.7} parent=71 // pred_region
          %622 = dma.done %s615, 48
        $region84: #{model_mode0.7} parent=71 // pred_fallthru
          _
        %s623 = sand.u32 %s40, 1
        %s624 = scalar_lea.sflag [#allocation8], %s623
        %s625 = sand.u32 %s163, 1
        %s626 = smul.addr %s625, 64
        %s627 = scalar_lea.vmem [#allocation7], %s626
        // Predicated region
        $region85: #{model_mode0.7} parent=71 // pred_check
          %p628 = pneg %p176
        $region86: #{model_mode0.7} parent=71 // pred_check_branch
          %630 = sbr.rel (%p628) target = $region88
        $region87: #{model_mode0.7} parent=71 // pred_region
          %631 = dma.done %s624, 1024
        $region88: #{model_mode0.7} parent=71 // pred_fallthru
          _
        %s632 = sand.u32 %s40, 1
        %s633 = scalar_lea.sflag [#allocation8], %s632
        %s634 = sand.u32 %s189, 1
        %s635 = scalar_lea.vmem [#allocation9], %s634
        // Predicated region
        $region89: #{model_mode0.7} parent=71 // pred_check
          %p636 = pneg %p202
        $region90: #{model_mode0.7} parent=71 // pred_check_branch
          %638 = sbr.rel (%p636) target = $region92
        $region91: #{model_mode0.7} parent=71 // pred_region
          %639 = dma.done %s633, 16
        $region92: #{model_mode0.7} parent=71 // pred_fallthru
          _
        %s640 = sand.u32 %s40, 1
        %s641 = scalar_lea.sflag [#allocation11], %s640
        %s642 = sand.u32 %s215, 1
        %s643 = smul.addr %s642, 2
        %s644 = scalar_lea.vmem [#allocation10], %s643
        // Predicated region
        $region93: #{model_mode0.7} parent=71 // pred_check
          %p645 = pneg %p228
        $region94: #{model_mode0.7} parent=71 // pred_check_branch
          %647 = sbr.rel (%p645) target = $region96
        $region95: #{model_mode0.7} parent=71 // pred_region
          %648 = dma.done %s641, 32
        $region96: #{model_mode0.7} parent=71 // pred_fallthru
          _
        %s649 = sand.u32 %s40, 1
        %s650 = scalar_lea.sflag [#allocation11], %s649
        %s651 = sand.u32 %s241, 1
        %s652 = smul.addr %s651, 2
        %s653 = scalar_lea.vmem [#allocation12], %s652
        // Predicated region
        $region97: #{model_mode0.7} parent=71 // pred_check
          %p654 = pneg %p254
        $region98: #{model_mode0.7} parent=71 // pred_check_branch
          %656 = sbr.rel (%p654) target = $region100
        $region99: #{model_mode0.7} parent=71 // pred_region
          %657 = dma.done %s650, 32
        $region100: #{model_mode0.7} parent=71 // pred_fallthru
          _
        %s658 = sand.u32 %s40, 1
        %s659 = scalar_lea.sflag [#allocation14], %s658
        %s660 = sand.u32 %s293, 1
        %s661 = smul.addr %s660, 2
        %s662 = scalar_lea.vmem [#allocation13], %s661
        // Predicated region
        $region101: #{model_mode0.7} parent=71 // pred_check
          %p663 = pneg %p306
        $region102: #{model_mode0.7} parent=71 // pred_check_branch
          %665 = sbr.rel (%p663) target = $region104
        $region103: #{model_mode0.7} parent=71 // pred_region
          %666 = dma.done %s659, 32
        $region104: #{model_mode0.7} parent=71 // pred_fallthru
          _
        %s667 = sand.u32 %s40, 1
        %s668 = scalar_lea.sflag [#allocation14], %s667
        %s669 = sand.u32 %s319, 1
        %s670 = smul.addr %s669, 128
        %s671 = scalar_lea.vmem [#allocation15], %s670
        // Predicated region
        $region105: #{model_mode0.7} parent=71 // pred_check
          %p672 = pneg %p332
        $region106: #{model_mode0.7} parent=71 // pred_check_branch
          %674 = sbr.rel (%p672) target = $region108
        $region107: #{model_mode0.7} parent=71 // pred_region
          %675 = dma.done %s668, 2048
        $region108: #{model_mode0.7} parent=71 // pred_fallthru
          _
        %s676 = sand.u32 %s345, 1
        %s677 = scalar_lea.sflag [#allocation17], %s676
        %s678 = sand.u32 %s345, 1
        %s679 = scalar_lea.vmem [#allocation16], %s678
        // Predicated region
        $region109: #{model_mode0.7} parent=71 // pred_check
          %p680 = pneg %p358
        $region110: #{model_mode0.7} parent=71 // pred_check_branch
          %682 = sbr.rel (%p680) target = $region112
        $region111: #{model_mode0.7} parent=71 // pred_region
          %683 = dma.done %s677, 16
        $region112: #{model_mode0.7} parent=71 // pred_fallthru
          _
        %p684 = pneg %p56
        %p685 = pneg %p53
        %p686 = pneg %p77
        %p687 = pneg %p74
        %p688 = pneg %p98
        %p689 = pneg %p95
        %s690 = sand.u32 %s40, 1
        %s691 = scalar_lea.sflag [#allocation5], %s690
        %s692 = sand.u32 %s111, 1
        %s693 = smul.addr %s692, 192
        %s694 = scalar_lea.vmem [#allocation4], %s693
        %p695 = pneg %p124
        %p696 = pneg %p121
        %s697 = sand.u32 %s40, 1
        %s698 = scalar_lea.sflag [#allocation5], %s697
        %s699 = sand.u32 %s137, 1
        %s700 = smul.addr %s699, 3
        %s701 = scalar_lea.vmem [#allocation6], %s700
        %p702 = pneg %p150
        %p703 = pneg %p147
        %s704 = sand.u32 %s40, 1
        %s705 = scalar_lea.sflag [#allocation8], %s704
        %s706 = sand.u32 %s163, 1
        %s707 = smul.addr %s706, 64
        %s708 = scalar_lea.vmem [#allocation7], %s707
        %p709 = pneg %p176
        %p710 = pneg %p173
        %s711 = sand.u32 %s40, 1
        %s712 = scalar_lea.sflag [#allocation8], %s711
        %s713 = sand.u32 %s189, 1
        %s714 = scalar_lea.vmem [#allocation9], %s713
        %p715 = pneg %p202
        %p716 = pneg %p199
        %s717 = sand.u32 %s40, 1
        %s718 = scalar_lea.sflag [#allocation11], %s717
        %s719 = sand.u32 %s215, 1
        %s720 = smul.addr %s719, 2
        %s721 = scalar_lea.vmem [#allocation10], %s720
        %p722 = pneg %p228
        %p723 = pneg %p225
        %s724 = sand.u32 %s40, 1
        %s725 = scalar_lea.sflag [#allocation11], %s724
        %s726 = sand.u32 %s241, 1
        %s727 = smul.addr %s726, 2
        %s728 = scalar_lea.vmem [#allocation12], %s727
        %p729 = pneg %p254
        %p730 = pneg %p251
        %p731 = scmp.lt.s32.totalorder %s40, 2
        %s732 = scalar_select %p731, %s40, 2
        %s733 = smul.addr %s732, 32
        %s734 = smul.addr %s733, 4
        %s735 = scalar_lea.vmem %s9, %s734
        %p736 = pneg %p280
        %p737 = pneg %p277
        %s738 = sand.u32 %s40, 1
        %s739 = scalar_lea.sflag [#allocation14], %s738
        %s740 = sand.u32 %s293, 1
        %s741 = smul.addr %s740, 2
        %s742 = scalar_lea.vmem [#allocation13], %s741
        %p743 = pneg %p306
        %p744 = pneg %p303
        %s745 = sand.u32 %s40, 1
        %s746 = scalar_lea.sflag [#allocation14], %s745
        %s747 = sand.u32 %s319, 1
        %s748 = smul.addr %s747, 128
        %s749 = scalar_lea.vmem [#allocation15], %s748
        %p750 = pneg %p332
        %p751 = pneg %p329
        %s752 = sand.u32 %s345, 1
        %s753 = scalar_lea.sflag [#allocation17], %s752
        %s754 = sand.u32 %s345, 1
        %s755 = scalar_lea.vmem [#allocation16], %s754
        %p756 = pneg %p358
        %p757 = pneg %p355
        %p758 = pneg %p379
        %p759 = pneg %p376
        %p760 = scmp.lt.s32.totalorder %s40, 2
        %s761 = scalar_select %p760, %s40, 2
        %s762 = smul.addr %s761, 32
        %s763 = smul.addr %s762, 4
        %s764 = scalar_lea.vmem %s9, %s763
        %p766 = scmp.eq.s32.totalorder %s40, 0
        // Predicated region
        $region113: #{model_mode0.7} parent=71 // pred_check
          %p767 = pneg %p766
        $region114: #{model_mode0.7} parent=71 // pred_check_branch
          %769 = sbr.rel (%p767) target = $region116
        $region115: #{model_mode0.7} parent=71 // pred_region
          %v770 = vld [vmem:[%s0] sm:$0xff]
          %v771 = vld [vmem:[%s0 + $0x8] sm:$0xf]
          %772 = vst [vmem:[%s13] sm:$0xff] %v770
          %773 = vst [vmem:[%s13 + $0x8] sm:$0xf] %v771
        $region116: #{model_mode0.7} parent=71 // pred_fallthru
          _
        %v774 = vld [vmem:[%s13] sm:$0xff]
        %v775 = vld [vmem:[%s13 + $0x8] sm:$0xf]
        %v776 = vld [vmem:[%s1] sm:$0x1]
        %v777 = vld [vmem:[%s1 + $0x1] sm:$0x1]
        %v778 = vld [vmem:[%s609] sm:$0xff]
        %v779 = vld [vmem:[%s609 + $0x8] sm:$0xf]
        %v780 = vld [vmem:[%s609 + $0xc] sm:$0xff]
        %v781 = vld [vmem:[%s609 + $0x14] sm:$0xf]
        %v782 = vld [vmem:[%s609 + $0x18] sm:$0xff]
        %v783 = vld [vmem:[%s609 + $0x20] sm:$0xf]
        %v784 = vld [vmem:[%s609 + $0x24] sm:$0xff]
        %v785 = vld [vmem:[%s609 + $0x2c] sm:$0xf]
        %v786 = vld [vmem:[%s609 + $0x30] sm:$0xff]
        %v787 = vld [vmem:[%s609 + $0x38] sm:$0xf]
        %v788 = vld [vmem:[%s609 + $0x3c] sm:$0xff]
        %v789 = vld [vmem:[%s609 + $0x44] sm:$0xf]
        %v790 = vld [vmem:[%s609 + $0x48] sm:$0xff]
        %v791 = vld [vmem:[%s609 + $0x50] sm:$0xf]
        %v792 = vld [vmem:[%s609 + $0x54] sm:$0xff]
        %v793 = vld [vmem:[%s609 + $0x5c] sm:$0xf]
        %v794 = vld [vmem:[%s609 + $0x60] sm:$0xff]
        %v795 = vld [vmem:[%s609 + $0x68] sm:$0xf]
        %v796 = vld [vmem:[%s609 + $0x6c] sm:$0xff]
        %v797 = vld [vmem:[%s609 + $0x74] sm:$0xf]
        %v798 = vld [vmem:[%s609 + $0x78] sm:$0xff]
        %v799 = vld [vmem:[%s609 + $0x80] sm:$0xf]
        %v800 = vld [vmem:[%s609 + $0x84] sm:$0xff]
        %v801 = vld [vmem:[%s609 + $0x8c] sm:$0xf]
        %v802 = vld [vmem:[%s609 + $0x90] sm:$0xff]
        %v803 = vld [vmem:[%s609 + $0x98] sm:$0xf]
        %v804 = vld [vmem:[%s609 + $0x9c] sm:$0xff]
        %v805 = vld [vmem:[%s609 + $0xa4] sm:$0xf]
        %v806 = vld [vmem:[%s609 + $0xa8] sm:$0xff]
        %v807 = vld [vmem:[%s609 + $0xb0] sm:$0xf]
        %v808 = vld [vmem:[%s609 + $0xb4] sm:$0xff]
        %v809 = vld [vmem:[%s609 + $0xbc] sm:$0xf]
        %v810 = vld [vmem:[%s618] sm:$0x7]
        %v811 = vld [vmem:[%s627] sm:$0xf]
        %v812 = vld [vmem:[%s627 + $0x4] sm:$0xf]
        %v813 = vld [vmem:[%s627 + $0x8] sm:$0xf]
        %v814 = vld [vmem:[%s627 + $0xc] sm:$0xf]
        %v815 = vld [vmem:[%s627 + $0x10] sm:$0xf]
        %v816 = vld [vmem:[%s627 + $0x14] sm:$0xf]
        %v817 = vld [vmem:[%s627 + $0x18] sm:$0xf]
        %v818 = vld [vmem:[%s627 + $0x1c] sm:$0xf]
        %v819 = vld [vmem:[%s627 + $0x20] sm:$0xf]
        %v820 = vld [vmem:[%s627 + $0x24] sm:$0xf]
        %v821 = vld [vmem:[%s627 + $0x28] sm:$0xf]
        %v822 = vld [vmem:[%s627 + $0x2c] sm:$0xf]
        %v823 = vld [vmem:[%s627 + $0x30] sm:$0xf]
        %v824 = vld [vmem:[%s627 + $0x34] sm:$0xf]
        %v825 = vld [vmem:[%s627 + $0x38] sm:$0xf]
        %v826 = vld [vmem:[%s627 + $0x3c] sm:$0xf]
        %v827 = vld [vmem:[%s635] sm:$0x1]
        %v828 = vld [vmem:[%s644] sm:$0x3]
        %v829 = vld [vmem:[%s653] sm:$0x3]
        %v830 = vld [vmem:[%s764] sm:$0xff]
        %v831 = vld [vmem:[%s764 + $0x8] sm:$0xff]
        %v832 = vld [vmem:[%s764 + $0x10] sm:$0xff]
        %v833 = vld [vmem:[%s764 + $0x18] sm:$0xff]
        %v834 = vld [vmem:[%s764 + $0x20] sm:$0xff]
        %v835 = vld [vmem:[%s764 + $0x28] sm:$0xff]
        %v836 = vld [vmem:[%s764 + $0x30] sm:$0xff]
        %v837 = vld [vmem:[%s764 + $0x38] sm:$0xff]
        %v838 = vld [vmem:[%s764 + $0x40] sm:$0xff]
        %v839 = vld [vmem:[%s764 + $0x48] sm:$0xff]
        %v840 = vld [vmem:[%s764 + $0x50] sm:$0xff]
        %v841 = vld [vmem:[%s764 + $0x58] sm:$0xff]
        %v842 = vld [vmem:[%s764 + $0x60] sm:$0xff]
        %v843 = vld [vmem:[%s764 + $0x68] sm:$0xff]
        %v844 = vld [vmem:[%s764 + $0x70] sm:$0xff]
        %v845 = vld [vmem:[%s764 + $0x78] sm:$0xff]
        %v846 = vld [vmem:[%s662] sm:$0x3]
        %v847 = vld [vmem:[%s671] sm:$0xf]
        %v848 = vld [vmem:[%s671 + $0x4] sm:$0xf]
        %v849 = vld [vmem:[%s671 + $0x8] sm:$0xf]
        %v850 = vld [vmem:[%s671 + $0xc] sm:$0xf]
        %v851 = vld [vmem:[%s671 + $0x10] sm:$0xf]
        %v852 = vld [vmem:[%s671 + $0x14] sm:$0xf]
        %v853 = vld [vmem:[%s671 + $0x18] sm:$0xf]
        %v854 = vld [vmem:[%s671 + $0x1c] sm:$0xf]
        %v855 = vld [vmem:[%s671 + $0x20] sm:$0xf]
        %v856 = vld [vmem:[%s671 + $0x24] sm:$0xf]
        %v857 = vld [vmem:[%s671 + $0x28] sm:$0xf]
        %v858 = vld [vmem:[%s671 + $0x2c] sm:$0xf]
        %v859 = vld [vmem:[%s671 + $0x30] sm:$0xf]
        %v860 = vld [vmem:[%s671 + $0x34] sm:$0xf]
        %v861 = vld [vmem:[%s671 + $0x38] sm:$0xf]
        %v862 = vld [vmem:[%s671 + $0x3c] sm:$0xf]
        %v863 = vld [vmem:[%s671 + $0x40] sm:$0xf]
        %v864 = vld [vmem:[%s671 + $0x44] sm:$0xf]
        %v865 = vld [vmem:[%s671 + $0x48] sm:$0xf]
        %v866 = vld [vmem:[%s671 + $0x4c] sm:$0xf]
        %v867 = vld [vmem:[%s671 + $0x50] sm:$0xf]
        %v868 = vld [vmem:[%s671 + $0x54] sm:$0xf]
        %v869 = vld [vmem:[%s671 + $0x58] sm:$0xf]
        %v870 = vld [vmem:[%s671 + $0x5c] sm:$0xf]
        %v871 = vld [vmem:[%s671 + $0x60] sm:$0xf]
        %v872 = vld [vmem:[%s671 + $0x64] sm:$0xf]
        %v873 = vld [vmem:[%s671 + $0x68] sm:$0xf]
        %v874 = vld [vmem:[%s671 + $0x6c] sm:$0xf]
        %v875 = vld [vmem:[%s671 + $0x70] sm:$0xf]
        %v876 = vld [vmem:[%s671 + $0x74] sm:$0xf]
        %v877 = vld [vmem:[%s671 + $0x78] sm:$0xf]
        %v878 = vld [vmem:[%s671 + $0x7c] sm:$0xf]
        %v879 = vld [vmem:[%s679] sm:$0x1]
        %880 = vadd.xlane.f32.xlu0 %v774
        %v881 = vpop.xlane.xlu0 %880
        %vm882 = vcmask 1043456
        %v883 = vsel %vm882, %v775, 0.0
        %884 = vadd.xlane.f32.xlu0 %v883
        %v885 = vpop.xlane.xlu0 %884
        %v886 = vrcp.pop 128.0
        %v887 = vmul.f32 %v881, %v886
        %v888 = vmul.f32 %v885, %v886
        %v889 = vsub.f32 %v774, %v887
        %v890 = vsub.f32 %v775, %v888
        %v891 = vmul.f32 %v889, %v889
        %v892 = vmul.f32 %v890, %v890
        %893 = vadd.xlane.f32.xlu0 %v891
        %v894 = vpop.xlane.xlu0 %893
        %v895 = vsel %vm882, %v892, 0.0
        %896 = vadd.xlane.f32.xlu0 %v895
        %v897 = vpop.xlane.xlu0 %896
        %v898 = vmul.f32 %v894, %v886
        %v899 = vmul.f32 %v897, %v886
        %v900 = vadd.f32 %v898, 1e-05
        %v901 = vadd.f32 %v899, 1e-05
        %v902 = vrsqrt.pop %v900
        %v903 = vrsqrt.pop %v901
        %v904 = vmul.f32 %v889, %v902
        %v905 = vmul.f32 %v890, %v903
        %v906 = vlaneseq
        %v907 = vshrl.u32 %v906, 7
        %v908 = vsub.s32 0, %v907
        %v909 = vrot.slane %v828, %v908
        %v910 = vmul.f32 %v904, %v909
        %v911 = vmul.f32 %v905, %v909
        %v912 = vlaneseq
        %v913 = vshrl.u32 %v912, 7
        %v914 = vsub.s32 1, %v913
        %v915 = vrot.slane %v828, %v914
        %v916 = vadd.f32 %v910, %v915
        %v917 = vadd.f32 %v911, %v915
        %v918 = vpack.c.bf16 %v917, %v916
        %v920 = vlaneseq
        %v921 = vshrl.u32 %v920, 7
        %v922 = vsub.s32 0, %v921
        %v923 = vrot.slane %v810, %v922
        %v924 = vlaneseq
        %v925 = vshrl.u32 %v924, 7
        %v926 = vsub.s32 1, %v925
        %v927 = vrot.slane %v810, %v926
        %v928 = vlaneseq
        %v929 = vshrl.u32 %v928, 7
        %v930 = vsub.s32 2, %v929
        %v931 = vrot.slane %v810, %v930
        %v967 = vunpack.c.l.b16 %v778
        %v968 = vunpack.c.h.b16 %v778
        %v969 = vunpack.c.l.b16 %v779
        %v970 = vunpack.c.l.b16 %v780
        %v971 = vunpack.c.h.b16 %v780
        %v972 = vunpack.c.l.b16 %v781
        %v973 = vunpack.c.l.b16 %v782
        %v974 = vunpack.c.h.b16 %v782
        %v975 = vunpack.c.l.b16 %v783
        %v976 = vunpack.c.l.b16 %v784
        %v977 = vunpack.c.h.b16 %v784
        %v978 = vunpack.c.l.b16 %v785
        %v979 = vunpack.c.l.b16 %v786
        %v980 = vunpack.c.h.b16 %v786
        %v981 = vunpack.c.l.b16 %v787
        %v982 = vunpack.c.l.b16 %v788
        %v983 = vunpack.c.h.b16 %v788
        %v984 = vunpack.c.l.b16 %v789
        %v985 = vunpack.c.l.b16 %v790
        %v986 = vunpack.c.h.b16 %v790
        %v987 = vunpack.c.l.b16 %v791
        %v988 = vunpack.c.l.b16 %v792
        %v989 = vunpack.c.h.b16 %v792
        %v990 = vunpack.c.l.b16 %v793
        %v991 = vunpack.c.l.b16 %v794
        %v992 = vunpack.c.h.b16 %v794
        %v993 = vunpack.c.l.b16 %v795
        %v994 = vunpack.c.l.b16 %v796
        %v995 = vunpack.c.h.b16 %v796
        %v996 = vunpack.c.l.b16 %v797
        %v997 = vunpack.c.l.b16 %v798
        %v998 = vunpack.c.h.b16 %v798
        %v999 = vunpack.c.l.b16 %v799
        %v1000 = vunpack.c.l.b16 %v800
        %v1001 = vunpack.c.h.b16 %v800
        %v1002 = vunpack.c.l.b16 %v801
        %v1003 = vunpack.c.l.b16 %v802
        %v1004 = vunpack.c.h.b16 %v802
        %v1005 = vunpack.c.l.b16 %v803
        %v1006 = vunpack.c.l.b16 %v804
        %v1007 = vunpack.c.h.b16 %v804
        %v1008 = vunpack.c.l.b16 %v805
        %v1009 = vunpack.c.l.b16 %v806
        %v1010 = vunpack.c.h.b16 %v806
        %v1011 = vunpack.c.l.b16 %v807
        %v1012 = vunpack.c.l.b16 %v808
        %v1013 = vunpack.c.h.b16 %v808
        %v1014 = vunpack.c.l.b16 %v809
        %v1015 = vpack.c.b16 %v970, %v967
        %v1016 = vpack.c.b16 %v971, %v968
        %v1017 = vpack.c.b16 %v972, %v969
        %v1018 = vpack.c.b16 %v976, %v973
        %v1019 = vpack.c.b16 %v977, %v974
        %v1020 = vpack.c.b16 %v978, %v975
        %v1021 = vpack.c.b16 %v982, %v979
        %v1022 = vpack.c.b16 %v983, %v980
        %v1023 = vpack.c.b16 %v984, %v981
        %v1024 = vpack.c.b16 %v988, %v985
        %v1025 = vpack.c.b16 %v989, %v986
        %v1026 = vpack.c.b16 %v990, %v987
        %v1027 = vpack.c.b16 %v994, %v991
        %v1028 = vpack.c.b16 %v995, %v992
        %v1029 = vpack.c.b16 %v996, %v993
        %v1030 = vpack.c.b16 %v1000, %v997
        %v1031 = vpack.c.b16 %v1001, %v998
        %v1032 = vpack.c.b16 %v1002, %v999
        %v1033 = vpack.c.b16 %v1006, %v1003
        %v1034 = vpack.c.b16 %v1007, %v1004
        %v1035 = vpack.c.b16 %v1008, %v1005
        %v1036 = vpack.c.b16 %v1012, %v1009
        %v1037 = vpack.c.b16 %v1013, %v1010
        %v1038 = vpack.c.b16 %v1014, %v1011
        %1063 = vmatprep.subr.bf16.mxu0 %v1016
        %1064 = vmatpush1.bf16.msra.mxu0 %v1015
        %1065 = vmatprep.subr.bf16.mxu0 %v1019
        %1066 = vmatpush1.bf16.msra.mxu0 %v1018
        %1067 = vmatprep.subr.bf16.mxu0 %v1022
        %1068 = vmatpush1.bf16.msra.mxu0 %v1021
        %1069 = vmatprep.subr.bf16.mxu0 %v1025
        %1070 = vmatpush1.bf16.msra.mxu0 %v1024
        %1071 = vmatprep.subr.bf16.mxu0 %v1028
        %1072 = vmatpush1.bf16.msra.mxu0 %v1027
        %1073 = vmatprep.subr.bf16.mxu0 %v1031
        %1074 = vmatpush1.bf16.msra.mxu0 %v1030
        %1075 = vmatprep.subr.bf16.mxu0 %v1034
        %1076 = vmatpush1.bf16.msra.mxu0 %v1033
        %1077 = vmatprep.subr.bf16.mxu0 %v1037
        %1078 = vmatpush1.bf16.msra.mxu0 %v1036
        %1079 = vmatprep.subr.bf16.mxu0 0
        %1080 = vmatpush1.bf16.msra.mxu0 0
        %1081 = vmatprep.subr.bf16.mxu0 0
        %1082 = vmatpush1.bf16.msra.mxu0 0
        %1083 = vmatprep.subr.bf16.mxu0 0
        %1084 = vmatpush1.bf16.msra.mxu0 0
        %1085 = vmatprep.subr.bf16.mxu0 0
        %1086 = vmatpush1.bf16.msra.mxu0 0
        %1087 = vmatprep.subr.bf16.mxu0 0
        %1088 = vmatpush1.bf16.msra.mxu0 0
        %1089 = vmatprep.subr.bf16.mxu0 0
        %1090 = vmatpush1.bf16.msra.mxu0 0
        %1091 = vmatprep.subr.bf16.mxu0 0
        %1092 = vmatpush1.bf16.msra.mxu0 0
        %1093 = vmatprep.subr.bf16.mxu0 0
        %1094 = vmatpush1.bf16.msra.mxu0 0
        %1095 = vmatprep.mubr.bf16.mxu0 0
        %1096 = vmatmul.mubr.bf16.gmra.mrb[0].mxu0 %v918
        %v1097 = vpop.f32.mrb[0].mxu0
        %v1098 = vadd.f32 %v923, %v1097
        %v1099 = vpop.f32.mrb[0].mxu0
        %v1100 = vadd.f32 %v927, %v1099
        %v1101 = vpop.f32.mrb[0].mxu0
        %v1102 = vadd.f32 %v923, %v1101
        %v1103 = vpop.f32.mrb[0].mxu0
        %v1104 = vadd.f32 %v927, %v1103
        %1105 = vdwg.mxu0
        %1106 = vmatprep.subr.bf16.mxu0 0
        %1107 = vmatpush1.bf16.msra.mxu0 %v1017
        %1108 = vmatprep.subr.bf16.mxu0 0
        %1109 = vmatpush1.bf16.msra.mxu0 %v1020
        %1110 = vmatprep.subr.bf16.mxu0 0
        %1111 = vmatpush1.bf16.msra.mxu0 %v1023
        %1112 = vmatprep.subr.bf16.mxu0 0
        %1113 = vmatpush1.bf16.msra.mxu0 %v1026
        %1114 = vmatprep.subr.bf16.mxu0 0
        %1115 = vmatpush1.bf16.msra.mxu0 %v1029
        %1116 = vmatprep.subr.bf16.mxu0 0
        %1117 = vmatpush1.bf16.msra.mxu0 %v1032
        %1118 = vmatprep.subr.bf16.mxu0 0
        %1119 = vmatpush1.bf16.msra.mxu0 %v1035
        %1120 = vmatprep.subr.bf16.mxu0 0
        %1121 = vmatpush1.bf16.msra.mxu0 %v1038
        %1122 = vmatprep.subr.bf16.mxu0 0
        %1123 = vmatpush1.bf16.msra.mxu0 0
        %1124 = vmatprep.subr.bf16.mxu0 0
        %1125 = vmatpush1.bf16.msra.mxu0 0
        %1126 = vmatprep.subr.bf16.mxu0 0
        %1127 = vmatpush1.bf16.msra.mxu0 0
        %1128 = vmatprep.subr.bf16.mxu0 0
        %1129 = vmatpush1.bf16.msra.mxu0 0
        %1130 = vmatprep.subr.bf16.mxu0 0
        %1131 = vmatpush1.bf16.msra.mxu0 0
        %1132 = vmatprep.subr.bf16.mxu0 0
        %1133 = vmatpush1.bf16.msra.mxu0 0
        %1134 = vmatprep.subr.bf16.mxu0 0
        %1135 = vmatpush1.bf16.msra.mxu0 0
        %1136 = vmatprep.subr.bf16.mxu0 0
        %1137 = vmatpush1.bf16.msra.mxu0 0
        %1138 = vmatprep.mubr.bf16.mxu0 0
        %1139 = vmatmul.mubr.bf16.gmra.mrb[0].mxu0 %v918
        %v1140 = vpop.f32.mrb[0].mxu0
        %v1141 = vadd.f32 %v931, %v1140
        %v1142 = vpop.f32.mrb[0].mxu0
        %v1143 = vpop.f32.mrb[0].mxu0
        %v1144 = vadd.f32 %v931, %v1143
        %v1145 = vpop.f32.mrb[0].mxu0
        %1146 = vdwg.mxu0
        %v1149 = vcombine.high %v1098, %v1098
        %v1151 = vunpack.c.l.s4 1983009808
        %v1152 = vunpack.c.0.s8 %v1151
        %v1153 = vlaneseq
        %v1154 = vshrl.u32 %v1153, 7
        %v1155 = vsub.s32 %v1152, %v1154
        %v1156 = vrot.slane %v1098, %v1155
        %v1158 = vunpack.c.l.s4 1983009808
        %v1159 = vunpack.c.0.s8 %v1158
        %v1160 = vlaneseq
        %v1161 = vshrl.u32 %v1160, 7
        %v1162 = vsub.s32 %v1159, %v1161
        %v1163 = vrot.slane %v1149, %v1162
        %v1164 = vcombine.high %v1156, %v1156
        %v1165 = vcombine.high %v1163, %v1163
        %v1167 = vunpack.c.l.s4 1983009808
        %v1168 = vunpack.c.0.s8 %v1167
        %v1169 = vlaneseq
        %v1170 = vshrl.u32 %v1169, 7
        %v1171 = vsub.s32 %v1168, %v1170
        %v1172 = vrot.slane %v1102, %v1171
        %v1173 = vcombine.high %v1172, %v1172
        %v1174 = vcombine.low %v1156, %v1164
        %v1176 = vunpack.c.l.s4 1983009808
        %v1177 = vunpack.c.0.s8 %v1176
        %v1178 = vlaneseq
        %v1179 = vshrl.u32 %v1178, 7
        %v1180 = vsub.s32 %v1177, %v1179
        %v1181 = vrot.slane %v1174, %v1180
        %v1183 = vunpack.c.l.s4 1983009808
        %v1184 = vunpack.c.0.s8 %v1183
        %v1185 = vlaneseq
        %v1186 = vshrl.u32 %v1185, 7
        %v1187 = vsub.s32 %v1184, %v1186
        %v1188 = vrot.slane %v1163, %v1187
        %v1189 = vcombine.low %v1181, %v1188
        %v1190 = vcombine.low %v1165, %v1172
        %v1192 = vunpack.c.l.s4 1983009808
        %v1193 = vunpack.c.0.s8 %v1192
        %v1194 = vlaneseq
        %v1195 = vshrl.u32 %v1194, 7
        %v1196 = vsub.s32 %v1193, %v1195
        %v1197 = vrot.slane %v1190, %v1196
        %v1199 = vunpack.c.l.s4 1983009808
        %v1200 = vunpack.c.0.s8 %v1199
        %v1201 = vlaneseq
        %v1202 = vshrl.u32 %v1201, 7
        %v1203 = vsub.s32 %v1200, %v1202
        %v1204 = vrot.slane %v1173, %v1203
        %v1205 = vcombine.low %v1197, %v1204
        %v1208 = vpack.c.bf16 %v1189, %v1189
        %v1209 = vpack.c.bf16 %v1205, %v1205
        %v1212 = vcombine.high %v1100, %v1100
        %v1214 = vunpack.c.l.s4 1983009808
        %v1215 = vunpack.c.0.s8 %v1214
        %v1216 = vlaneseq
        %v1217 = vshrl.u32 %v1216, 7
        %v1218 = vsub.s32 %v1215, %v1217
        %v1219 = vrot.slane %v1100, %v1218
        %v1221 = vunpack.c.l.s4 1983009808
        %v1222 = vunpack.c.0.s8 %v1221
        %v1223 = vlaneseq
        %v1224 = vshrl.u32 %v1223, 7
        %v1225 = vsub.s32 %v1222, %v1224
        %v1226 = vrot.slane %v1212, %v1225
        %v1227 = vcombine.high %v1219, %v1219
        %v1228 = vcombine.high %v1226, %v1226
        %v1230 = vunpack.c.l.s4 1983009808
        %v1231 = vunpack.c.0.s8 %v1230
        %v1232 = vlaneseq
        %v1233 = vshrl.u32 %v1232, 7
        %v1234 = vsub.s32 %v1231, %v1233
        %v1235 = vrot.slane %v1104, %v1234
        %v1236 = vcombine.high %v1235, %v1235
        %v1237 = vcombine.low %v1219, %v1227
        %v1239 = vunpack.c.l.s4 1983009808
        %v1240 = vunpack.c.0.s8 %v1239
        %v1241 = vlaneseq
        %v1242 = vshrl.u32 %v1241, 7
        %v1243 = vsub.s32 %v1240, %v1242
        %v1244 = vrot.slane %v1237, %v1243
        %v1246 = vunpack.c.l.s4 1983009808
        %v1247 = vunpack.c.0.s8 %v1246
        %v1248 = vlaneseq
        %v1249 = vshrl.u32 %v1248, 7
        %v1250 = vsub.s32 %v1247, %v1249
        %v1251 = vrot.slane %v1226, %v1250
        %v1252 = vcombine.low %v1244, %v1251
        %v1253 = vcombine.low %v1228, %v1235
        %v1255 = vunpack.c.l.s4 1983009808
        %v1256 = vunpack.c.0.s8 %v1255
        %v1257 = vlaneseq
        %v1258 = vshrl.u32 %v1257, 7
        %v1259 = vsub.s32 %v1256, %v1258
        %v1260 = vrot.slane %v1253, %v1259
        %v1262 = vunpack.c.l.s4 1983009808
        %v1263 = vunpack.c.0.s8 %v1262
        %v1264 = vlaneseq
        %v1265 = vshrl.u32 %v1264, 7
        %v1266 = vsub.s32 %v1263, %v1265
        %v1267 = vrot.slane %v1236, %v1266
        %v1268 = vcombine.low %v1260, %v1267
        %v1271 = vpack.c.bf16 %v1252, %v1252
        %v1272 = vpack.c.bf16 %v1268, %v1268
        %v1275 = vcombine.high %v1141, %v1141
        %v1277 = vunpack.c.l.s4 1983009808
        %v1278 = vunpack.c.0.s8 %v1277
        %v1279 = vlaneseq
        %v1280 = vshrl.u32 %v1279, 7
        %v1281 = vsub.s32 %v1278, %v1280
        %v1282 = vrot.slane %v1141, %v1281
        %v1284 = vunpack.c.l.s4 1983009808
        %v1285 = vunpack.c.0.s8 %v1284
        %v1286 = vlaneseq
        %v1287 = vshrl.u32 %v1286, 7
        %v1288 = vsub.s32 %v1285, %v1287
        %v1289 = vrot.slane %v1275, %v1288
        %v1290 = vcombine.high %v1282, %v1282
        %v1291 = vcombine.high %v1289, %v1289
        %v1293 = vunpack.c.l.s4 1983009808
        %v1294 = vunpack.c.0.s8 %v1293
        %v1295 = vlaneseq
        %v1296 = vshrl.u32 %v1295, 7
        %v1297 = vsub.s32 %v1294, %v1296
        %v1298 = vrot.slane %v1144, %v1297
        %v1299 = vcombine.high %v1298, %v1298
        %v1300 = vcombine.low %v1282, %v1290
        %v1302 = vunpack.c.l.s4 1983009808
        %v1303 = vunpack.c.0.s8 %v1302
        %v1304 = vlaneseq
        %v1305 = vshrl.u32 %v1304, 7
        %v1306 = vsub.s32 %v1303, %v1305
        %v1307 = vrot.slane %v1300, %v1306
        %v1309 = vunpack.c.l.s4 1983009808
        %v1310 = vunpack.c.0.s8 %v1309
        %v1311 = vlaneseq
        %v1312 = vshrl.u32 %v1311, 7
        %v1313 = vsub.s32 %v1310, %v1312
        %v1314 = vrot.slane %v1289, %v1313
        %v1315 = vcombine.low %v1307, %v1314
        %v1316 = vcombine.low %v1291, %v1298
        %v1318 = vunpack.c.l.s4 1983009808
        %v1319 = vunpack.c.0.s8 %v1318
        %v1320 = vlaneseq
        %v1321 = vshrl.u32 %v1320, 7
        %v1322 = vsub.s32 %v1319, %v1321
        %v1323 = vrot.slane %v1316, %v1322
        %v1325 = vunpack.c.l.s4 1983009808
        %v1326 = vunpack.c.0.s8 %v1325
        %v1327 = vlaneseq
        %v1328 = vshrl.u32 %v1327, 7
        %v1329 = vsub.s32 %v1326, %v1328
        %v1330 = vrot.slane %v1299, %v1329
        %v1331 = vcombine.low %v1323, %v1330
        %v1334 = vpack.c.bf16 %v1315, %v1315
        %v1335 = vpack.c.bf16 %v1331, %v1331
        %vm1336 = vcmask 261120
        %v1338 = vsel %vm1336, %v1208, 0
        %v1341 = vsel %vm1336, %v1271, 0
        %1343 = vmatprep.subr.bf16.mxu0 0
        %1344 = vmatpush1.bf16.xpose.msra.mxu0 %v1341
        %1345 = vmatprep.subr.bf16.mxu0 0
        %1346 = vmatpush1.bf16.xpose.msra.mxu0 0
        %1347 = vmatprep.subr.bf16.mxu0 0
        %1348 = vmatpush1.bf16.xpose.msra.mxu0 0
        %1349 = vmatprep.subr.bf16.mxu0 0
        %1350 = vmatpush1.bf16.xpose.msra.mxu0 0
        %1351 = vmatprep.subr.bf16.mxu0 0
        %1352 = vmatpush1.bf16.xpose.msra.mxu0 0
        %1353 = vmatprep.subr.bf16.mxu0 0
        %1354 = vmatpush1.bf16.xpose.msra.mxu0 0
        %1355 = vmatprep.subr.bf16.mxu0 0
        %1356 = vmatpush1.bf16.xpose.msra.mxu0 0
        %1357 = vmatprep.subr.bf16.mxu0 0
        %1358 = vmatpush1.bf16.xpose.msra.mxu0 0
        %1359 = vmatprep.subr.bf16.mxu0 0
        %1360 = vmatpush1.bf16.xpose.msra.mxu0 0
        %1361 = vmatprep.subr.bf16.mxu0 0
        %1362 = vmatpush1.bf16.xpose.msra.mxu0 0
        %1363 = vmatprep.subr.bf16.mxu0 0
        %1364 = vmatpush1.bf16.xpose.msra.mxu0 0
        %1365 = vmatprep.subr.bf16.mxu0 0
        %1366 = vmatpush1.bf16.xpose.msra.mxu0 0
        %1367 = vmatprep.subr.bf16.mxu0 0
        %1368 = vmatpush1.bf16.xpose.msra.mxu0 0
        %1369 = vmatprep.subr.bf16.mxu0 0
        %1370 = vmatpush1.bf16.xpose.msra.mxu0 0
        %1371 = vmatprep.subr.bf16.mxu0 0
        %1372 = vmatpush1.bf16.xpose.msra.mxu0 0
        %1373 = vmatprep.subr.bf16.mxu0 0
        %1374 = vmatpush1.bf16.xpose.msra.mxu0 0
        %1375 = vmatprep.mubr.bf16.mxu0 0
        %1376 = vmatmul.mubr.bf16.gmra.mrb[0].mxu0 %v1338
        %v1377 = vpop.f32.mrb[0].mxu0
        %v1378 = vadd.f32 0.0, %v1377
        %v1379 = vpop.f32.mrb[0].mxu0
        %v1380 = vpop.f32.mrb[0].mxu0
        %v1381 = vpop.f32.mrb[0].mxu0
        %1382 = vdwg.mxu0
        %v1384 = vsel %vm1336, %v1209, 0
        %v1387 = vsel %vm1336, %v1272, 0
        %1389 = vmatprep.subr.bf16.mxu0 0
        %1390 = vmatpush1.bf16.xpose.msra.mxu0 %v1387
        %1391 = vmatprep.subr.bf16.mxu0 0
        %1392 = vmatpush1.bf16.xpose.msra.mxu0 0
        %1393 = vmatprep.subr.bf16.mxu0 0
        %1394 = vmatpush1.bf16.xpose.msra.mxu0 0
        %1395 = vmatprep.subr.bf16.mxu0 0
        %1396 = vmatpush1.bf16.xpose.msra.mxu0 0
        %1397 = vmatprep.subr.bf16.mxu0 0
        %1398 = vmatpush1.bf16.xpose.msra.mxu0 0
        %1399 = vmatprep.subr.bf16.mxu0 0
        %1400 = vmatpush1.bf16.xpose.msra.mxu0 0
        %1401 = vmatprep.subr.bf16.mxu0 0
        %1402 = vmatpush1.bf16.xpose.msra.mxu0 0
        %1403 = vmatprep.subr.bf16.mxu0 0
        %1404 = vmatpush1.bf16.xpose.msra.mxu0 0
        %1405 = vmatprep.subr.bf16.mxu0 0
        %1406 = vmatpush1.bf16.xpose.msra.mxu0 0
        %1407 = vmatprep.subr.bf16.mxu0 0
        %1408 = vmatpush1.bf16.xpose.msra.mxu0 0
        %1409 = vmatprep.subr.bf16.mxu0 0
        %1410 = vmatpush1.bf16.xpose.msra.mxu0 0
        %1411 = vmatprep.subr.bf16.mxu0 0
        %1412 = vmatpush1.bf16.xpose.msra.mxu0 0
        %1413 = vmatprep.subr.bf16.mxu0 0
        %1414 = vmatpush1.bf16.xpose.msra.mxu0 0
        %1415 = vmatprep.subr.bf16.mxu0 0
        %1416 = vmatpush1.bf16.xpose.msra.mxu0 0
        %1417 = vmatprep.subr.bf16.mxu0 0
        %1418 = vmatpush1.bf16.xpose.msra.mxu0 0
        %1419 = vmatprep.subr.bf16.mxu0 0
        %1420 = vmatpush1.bf16.xpose.msra.mxu0 0
        %1421 = vmatprep.mubr.bf16.mxu0 0
        %1422 = vmatmul.mubr.bf16.gmra.mrb[0].mxu0 %v1384
        %v1423 = vpop.f32.mrb[0].mxu0
        %v1424 = vadd.f32 0.0, %v1423
        %v1425 = vpop.f32.mrb[0].mxu0
        %v1426 = vpop.f32.mrb[0].mxu0
        %v1427 = vpop.f32.mrb[0].mxu0
        %1428 = vdwg.mxu0
        %v1429 = vmul.f32 %v1378, 0.17677669
        %v1430 = vmul.f32 %v1424, 0.17677669
        %v1433 = vlaneseq
        %v1434 = vshrl.u32 %v1433, 7
        %v1435 = vsub.s32 0, %v1434
        %v1436 = vrot.slane %v776, %v1435
        %v1437 = vlaneseq
        %v1438 = vshrl.u32 %v1437, 7
        %v1439 = vsub.s32 0, %v1438
        %v1440 = vrot.slane %v777, %v1439
        %v1443 = vadd.f32 %v1429, %v1436
        %v1444 = vadd.f32 %v1430, %v1440
        %vm1445 = vcmask 46080
        %v1446 = vsel %vm1445, %v1443, -inf
        %1447 = vmax.xlane.f32.xlu0 %v1446
        %v1448 = vpop.xlane.xlu0 %1447
        %v1449 = vsel %vm1445, %v1444, -inf
        %1450 = vmax.xlane.f32.xlu0 %v1449
        %v1451 = vpop.xlane.xlu0 %1450
        %v1452 = vsub.f32 %v1443, %v1448
        %v1453 = vsub.f32 %v1444, %v1451
        %v1454 = vmul.f32 %v1452, 1.442695
        %v1455 = vpow.pop %v1454
        %v1456 = vmul.f32 %v1453, 1.442695
        %v1457 = vpow.pop %v1456
        %v1458 = vsel %vm1445, %v1455, 0.0
        %1459 = vadd.xlane.f32.xlu0 %v1458
        %v1460 = vpop.xlane.xlu0 %1459
        %v1461 = vsel %vm1445, %v1457, 0.0
        %1462 = vadd.xlane.f32.xlu0 %v1461
        %v1463 = vpop.xlane.xlu0 %1462
        %v1464 = vrcp.pop %v1460
        %v1465 = vrcp.pop %v1463
        %v1466 = vmul.f32 %v1455, %v1464
        %v1467 = vmul.f32 %v1457, %v1465
        %v1468 = vpack.c.bf16 %v1466, %v1466
        %v1469 = vpack.c.bf16 %v1467, %v1467
        %vm1470 = vcmask 48128
        %v1472 = vsel %vm1470, %v1468, 0
        %vm1474 = vcmask 1042432
        %v1476 = vsel %vm1474, %v1334, 0
        %1478 = vmatprep.subr.bf16.mxu0 0
        %1479 = vmatpush1.bf16.msra.mxu0 %v1476
        %1480 = vmatprep.subr.bf16.mxu0 0
        %1481 = vmatpush1.bf16.msra.mxu0 0
        %1482 = vmatprep.subr.bf16.mxu0 0
        %1483 = vmatpush1.bf16.msra.mxu0 0
        %1484 = vmatprep.subr.bf16.mxu0 0
        %1485 = vmatpush1.bf16.msra.mxu0 0
        %1486 = vmatprep.subr.bf16.mxu0 0
        %1487 = vmatpush1.bf16.msra.mxu0 0
        %1488 = vmatprep.subr.bf16.mxu0 0
        %1489 = vmatpush1.bf16.msra.mxu0 0
        %1490 = vmatprep.subr.bf16.mxu0 0
        %1491 = vmatpush1.bf16.msra.mxu0 0
        %1492 = vmatprep.subr.bf16.mxu0 0
        %1493 = vmatpush1.bf16.msra.mxu0 0
        %1494 = vmatprep.subr.bf16.mxu0 0
        %1495 = vmatpush1.bf16.msra.mxu0 0
        %1496 = vmatprep.subr.bf16.mxu0 0
        %1497 = vmatpush1.bf16.msra.mxu0 0
        %1498 = vmatprep.subr.bf16.mxu0 0
        %1499 = vmatpush1.bf16.msra.mxu0 0
        %1500 = vmatprep.subr.bf16.mxu0 0
        %1501 = vmatpush1.bf16.msra.mxu0 0
        %1502 = vmatprep.subr.bf16.mxu0 0
        %1503 = vmatpush1.bf16.msra.mxu0 0
        %1504 = vmatprep.subr.bf16.mxu0 0
        %1505 = vmatpush1.bf16.msra.mxu0 0
        %1506 = vmatprep.subr.bf16.mxu0 0
        %1507 = vmatpush1.bf16.msra.mxu0 0
        %1508 = vmatprep.subr.bf16.mxu0 0
        %1509 = vmatpush1.bf16.msra.mxu0 0
        %1510 = vmatprep.mubr.bf16.mxu0 0
        %1511 = vmatmul.mubr.bf16.gmra.mrb[0].mxu0 %v1472
        %v1512 = vpop.f32.mrb[0].mxu0
        %v1513 = vadd.f32 0.0, %v1512
        %v1514 = vpop.f32.mrb[0].mxu0
        %v1515 = vpop.f32.mrb[0].mxu0
        %v1516 = vpop.f32.mrb[0].mxu0
        %1517 = vdwg.mxu0
        %v1519 = vsel %vm1470, %v1469, 0
        %v1522 = vsel %vm1474, %v1335, 0
        %1524 = vmatprep.subr.bf16.mxu0 0
        %1525 = vmatpush1.bf16.msra.mxu0 %v1522
        %1526 = vmatprep.subr.bf16.mxu0 0
        %1527 = vmatpush1.bf16.msra.mxu0 0
        %1528 = vmatprep.subr.bf16.mxu0 0
        %1529 = vmatpush1.bf16.msra.mxu0 0
        %1530 = vmatprep.subr.bf16.mxu0 0
        %1531 = vmatpush1.bf16.msra.mxu0 0
        %1532 = vmatprep.subr.bf16.mxu0 0
        %1533 = vmatpush1.bf16.msra.mxu0 0
        %1534 = vmatprep.subr.bf16.mxu0 0
        %1535 = vmatpush1.bf16.msra.mxu0 0
        %1536 = vmatprep.subr.bf16.mxu0 0
        %1537 = vmatpush1.bf16.msra.mxu0 0
        %1538 = vmatprep.subr.bf16.mxu0 0
        %1539 = vmatpush1.bf16.msra.mxu0 0
        %1540 = vmatprep.subr.bf16.mxu0 0
        %1541 = vmatpush1.bf16.msra.mxu0 0
        %1542 = vmatprep.subr.bf16.mxu0 0
        %1543 = vmatpush1.bf16.msra.mxu0 0
        %1544 = vmatprep.subr.bf16.mxu0 0
        %1545 = vmatpush1.bf16.msra.mxu0 0
        %1546 = vmatprep.subr.bf16.mxu0 0
        %1547 = vmatpush1.bf16.msra.mxu0 0
        %1548 = vmatprep.subr.bf16.mxu0 0
        %1549 = vmatpush1.bf16.msra.mxu0 0
        %1550 = vmatprep.subr.bf16.mxu0 0
        %1551 = vmatpush1.bf16.msra.mxu0 0
        %1552 = vmatprep.subr.bf16.mxu0 0
        %1553 = vmatpush1.bf16.msra.mxu0 0
        %1554 = vmatprep.subr.bf16.mxu0 0
        %1555 = vmatpush1.bf16.msra.mxu0 0
        %1556 = vmatprep.mubr.bf16.mxu0 0
        %1557 = vmatmul.mubr.bf16.gmra.mrb[0].mxu0 %v1519
        %v1558 = vpop.f32.mrb[0].mxu0
        %v1559 = vadd.f32 0.0, %v1558
        %v1560 = vpop.f32.mrb[0].mxu0
        %v1561 = vpop.f32.mrb[0].mxu0
        %v1562 = vpop.f32.mrb[0].mxu0
        %1563 = vdwg.mxu0
        %v1566 = vcombine.high %v1513, %v1513
        %v1568 = vunpack.c.l.s4 1983009808
        %v1569 = vunpack.c.0.s8 %v1568
        %v1570 = vlaneseq
        %v1571 = vshrl.u32 %v1570, 7
        %v1572 = vsub.s32 %v1569, %v1571
        %v1573 = vrot.slane %v1513, %v1572
        %v1575 = vunpack.c.l.s4 1983009808
        %v1576 = vunpack.c.0.s8 %v1575
        %v1577 = vlaneseq
        %v1578 = vshrl.u32 %v1577, 7
        %v1579 = vsub.s32 %v1576, %v1578
        %v1580 = vrot.slane %v1566, %v1579
        %v1581 = vcombine.high %v1573, %v1573
        %v1582 = vcombine.high %v1559, %v1559
        %v1584 = vunpack.c.l.s4 1983009808
        %v1585 = vunpack.c.0.s8 %v1584
        %v1586 = vlaneseq
        %v1587 = vshrl.u32 %v1586, 7
        %v1588 = vsub.s32 %v1585, %v1587
        %v1589 = vrot.slane %v1559, %v1588
        %v1591 = vunpack.c.l.s4 1983009808
        %v1592 = vunpack.c.0.s8 %v1591
        %v1593 = vlaneseq
        %v1594 = vshrl.u32 %v1593, 7
        %v1595 = vsub.s32 %v1592, %v1594
        %v1596 = vrot.slane %v1582, %v1595
        %v1597 = vcombine.high %v1589, %v1589
        %1599 = vrot.lane.b32.xlu0 %v1208, 96
        %v1600 = vpop.permute.xlu0 %1599
        %1602 = vrot.lane.b32.xlu0 %v1271, 96
        %v1603 = vpop.permute.xlu0 %1602
        %v1605 = vsel %vm1336, %v1600, 0
        %v1608 = vsel %vm1336, %v1603, 0
        %1610 = vmatprep.subr.bf16.mxu0 0
        %1611 = vmatpush1.bf16.xpose.msra.mxu0 %v1608
        %1612 = vmatprep.subr.bf16.mxu0 0
        %1613 = vmatpush1.bf16.xpose.msra.mxu0 0
        %1614 = vmatprep.subr.bf16.mxu0 0
        %1615 = vmatpush1.bf16.xpose.msra.mxu0 0
        %1616 = vmatprep.subr.bf16.mxu0 0
        %1617 = vmatpush1.bf16.xpose.msra.mxu0 0
        %1618 = vmatprep.subr.bf16.mxu0 0
        %1619 = vmatpush1.bf16.xpose.msra.mxu0 0
        %1620 = vmatprep.subr.bf16.mxu0 0
        %1621 = vmatpush1.bf16.xpose.msra.mxu0 0
        %1622 = vmatprep.subr.bf16.mxu0 0
        %1623 = vmatpush1.bf16.xpose.msra.mxu0 0
        %1624 = vmatprep.subr.bf16.mxu0 0
        %1625 = vmatpush1.bf16.xpose.msra.mxu0 0
        %1626 = vmatprep.subr.bf16.mxu0 0
        %1627 = vmatpush1.bf16.xpose.msra.mxu0 0
        %1628 = vmatprep.subr.bf16.mxu0 0
        %1629 = vmatpush1.bf16.xpose.msra.mxu0 0
        %1630 = vmatprep.subr.bf16.mxu0 0
        %1631 = vmatpush1.bf16.xpose.msra.mxu0 0
        %1632 = vmatprep.subr.bf16.mxu0 0
        %1633 = vmatpush1.bf16.xpose.msra.mxu0 0
        %1634 = vmatprep.subr.bf16.mxu0 0
        %1635 = vmatpush1.bf16.xpose.msra.mxu0 0
        %1636 = vmatprep.subr.bf16.mxu0 0
        %1637 = vmatpush1.bf16.xpose.msra.mxu0 0
        %1638 = vmatprep.subr.bf16.mxu0 0
        %1639 = vmatpush1.bf16.xpose.msra.mxu0 0
        %1640 = vmatprep.subr.bf16.mxu0 0
        %1641 = vmatpush1.bf16.xpose.msra.mxu0 0
        %1642 = vmatprep.mubr.bf16.mxu0 0
        %1643 = vmatmul.mubr.bf16.gmra.mrb[0].mxu0 %v1605
        %v1644 = vpop.f32.mrb[0].mxu0
        %v1645 = vadd.f32 0.0, %v1644
        %v1646 = vpop.f32.mrb[0].mxu0
        %v1647 = vpop.f32.mrb[0].mxu0
        %v1648 = vpop.f32.mrb[0].mxu0
        %1649 = vdwg.mxu0
        %1651 = vrot.lane.b32.xlu0 %v1209, 96
        %v1652 = vpop.permute.xlu0 %1651
        %1654 = vrot.lane.b32.xlu0 %v1272, 96
        %v1655 = vpop.permute.xlu0 %1654
        %v1657 = vsel %vm1336, %v1652, 0
        %v1660 = vsel %vm1336, %v1655, 0
        %1662 = vmatprep.subr.bf16.mxu0 0
        %1663 = vmatpush1.bf16.xpose.msra.mxu0 %v1660
        %1664 = vmatprep.subr.bf16.mxu0 0
        %1665 = vmatpush1.bf16.xpose.msra.mxu0 0
        %1666 = vmatprep.subr.bf16.mxu0 0
        %1667 = vmatpush1.bf16.xpose.msra.mxu0 0
        %1668 = vmatprep.subr.bf16.mxu0 0
        %1669 = vmatpush1.bf16.xpose.msra.mxu0 0
        %1670 = vmatprep.subr.bf16.mxu0 0
        %1671 = vmatpush1.bf16.xpose.msra.mxu0 0
        %1672 = vmatprep.subr.bf16.mxu0 0
        %1673 = vmatpush1.bf16.xpose.msra.mxu0 0
        %1674 = vmatprep.subr.bf16.mxu0 0
        %1675 = vmatpush1.bf16.xpose.msra.mxu0 0
        %1676 = vmatprep.subr.bf16.mxu0 0
        %1677 = vmatpush1.bf16.xpose.msra.mxu0 0
        %1678 = vmatprep.subr.bf16.mxu0 0
        %1679 = vmatpush1.bf16.xpose.msra.mxu0 0
        %1680 = vmatprep.subr.bf16.mxu0 0
        %1681 = vmatpush1.bf16.xpose.msra.mxu0 0
        %1682 = vmatprep.subr.bf16.mxu0 0
        %1683 = vmatpush1.bf16.xpose.msra.mxu0 0
        %1684 = vmatprep.subr.bf16.mxu0 0
        %1685 = vmatpush1.bf16.xpose.msra.mxu0 0
        %1686 = vmatprep.subr.bf16.mxu0 0
        %1687 = vmatpush1.bf16.xpose.msra.mxu0 0
        %1688 = vmatprep.subr.bf16.mxu0 0
        %1689 = vmatpush1.bf16.xpose.msra.mxu0 0
        %1690 = vmatprep.subr.bf16.mxu0 0
        %1691 = vmatpush1.bf16.xpose.msra.mxu0 0
        %1692 = vmatprep.subr.bf16.mxu0 0
        %1693 = vmatpush1.bf16.xpose.msra.mxu0 0
        %1694 = vmatprep.mubr.bf16.mxu0 0
        %1695 = vmatmul.mubr.bf16.gmra.mrb[0].mxu0 %v1657
        %v1696 = vpop.f32.mrb[0].mxu0
        %v1697 = vadd.f32 0.0, %v1696
        %v1698 = vpop.f32.mrb[0].mxu0
        %v1699 = vpop.f32.mrb[0].mxu0
        %v1700 = vpop.f32.mrb[0].mxu0
        %1701 = vdwg.mxu0
        %v1702 = vmul.f32 %v1645, 0.17677669
        %v1703 = vmul.f32 %v1697, 0.17677669
        %v1704 = vadd.f32 %v1702, %v1436
        %v1705 = vadd.f32 %v1703, %v1440
        %v1706 = vsel %vm1445, %v1704, -inf
        %1707 = vmax.xlane.f32.xlu0 %v1706
        %v1708 = vpop.xlane.xlu0 %1707
        %v1709 = vsel %vm1445, %v1705, -inf
        %1710 = vmax.xlane.f32.xlu0 %v1709
        %v1711 = vpop.xlane.xlu0 %1710
        %v1712 = vsub.f32 %v1704, %v1708
        %v1713 = vsub.f32 %v1705, %v1711
        %v1714 = vmul.f32 %v1712, 1.442695
        %v1715 = vpow.pop %v1714
        %v1716 = vmul.f32 %v1713, 1.442695
        %v1717 = vpow.pop %v1716
        %v1718 = vsel %vm1445, %v1715, 0.0
        %1719 = vadd.xlane.f32.xlu0 %v1718
        %v1720 = vpop.xlane.xlu0 %1719
        %v1721 = vsel %vm1445, %v1717, 0.0
        %1722 = vadd.xlane.f32.xlu0 %v1721
        %v1723 = vpop.xlane.xlu0 %1722
        %v1724 = vrcp.pop %v1720
        %v1725 = vrcp.pop %v1723
        %v1726 = vmul.f32 %v1715, %v1724
        %v1727 = vmul.f32 %v1717, %v1725
        %v1728 = vpack.c.bf16 %v1726, %v1726
        %v1729 = vpack.c.bf16 %v1727, %v1727
        %1731 = vrot.lane.b32.xlu0 %v1334, 96
        %v1732 = vpop.permute.xlu0 %1731
        %v1734 = vsel %vm1470, %v1728, 0
        %v1737 = vsel %vm1474, %v1732, 0
        %1739 = vmatprep.subr.bf16.mxu0 0
        %1740 = vmatpush1.bf16.msra.mxu0 %v1737
        %1741 = vmatprep.subr.bf16.mxu0 0
        %1742 = vmatpush1.bf16.msra.mxu0 0
        %1743 = vmatprep.subr.bf16.mxu0 0
        %1744 = vmatpush1.bf16.msra.mxu0 0
        %1745 = vmatprep.subr.bf16.mxu0 0
        %1746 = vmatpush1.bf16.msra.mxu0 0
        %1747 = vmatprep.subr.bf16.mxu0 0
        %1748 = vmatpush1.bf16.msra.mxu0 0
        %1749 = vmatprep.subr.bf16.mxu0 0
        %1750 = vmatpush1.bf16.msra.mxu0 0
        %1751 = vmatprep.subr.bf16.mxu0 0
        %1752 = vmatpush1.bf16.msra.mxu0 0
        %1753 = vmatprep.subr.bf16.mxu0 0
        %1754 = vmatpush1.bf16.msra.mxu0 0
        %1755 = vmatprep.subr.bf16.mxu0 0
        %1756 = vmatpush1.bf16.msra.mxu0 0
        %1757 = vmatprep.subr.bf16.mxu0 0
        %1758 = vmatpush1.bf16.msra.mxu0 0
        %1759 = vmatprep.subr.bf16.mxu0 0
        %1760 = vmatpush1.bf16.msra.mxu0 0
        %1761 = vmatprep.subr.bf16.mxu0 0
        %1762 = vmatpush1.bf16.msra.mxu0 0
        %1763 = vmatprep.subr.bf16.mxu0 0
        %1764 = vmatpush1.bf16.msra.mxu0 0
        %1765 = vmatprep.subr.bf16.mxu0 0
        %1766 = vmatpush1.bf16.msra.mxu0 0
        %1767 = vmatprep.subr.bf16.mxu0 0
        %1768 = vmatpush1.bf16.msra.mxu0 0
        %1769 = vmatprep.subr.bf16.mxu0 0
        %1770 = vmatpush1.bf16.msra.mxu0 0
        %1771 = vmatprep.mubr.bf16.mxu0 0
        %1772 = vmatmul.mubr.bf16.gmra.mrb[0].mxu0 %v1734
        %v1773 = vpop.f32.mrb[0].mxu0
        %v1774 = vadd.f32 0.0, %v1773
        %v1775 = vpop.f32.mrb[0].mxu0
        %v1776 = vpop.f32.mrb[0].mxu0
        %v1777 = vpop.f32.mrb[0].mxu0
        %1778 = vdwg.mxu0
        %1780 = vrot.lane.b32.xlu0 %v1335, 96
        %v1781 = vpop.permute.xlu0 %1780
        %v1783 = vsel %vm1470, %v1729, 0
        %v1786 = vsel %vm1474, %v1781, 0
        %1788 = vmatprep.subr.bf16.mxu0 0
        %1789 = vmatpush1.bf16.msra.mxu0 %v1786
        %1790 = vmatprep.subr.bf16.mxu0 0
        %1791 = vmatpush1.bf16.msra.mxu0 0
        %1792 = vmatprep.subr.bf16.mxu0 0
        %1793 = vmatpush1.bf16.msra.mxu0 0
        %1794 = vmatprep.subr.bf16.mxu0 0
        %1795 = vmatpush1.bf16.msra.mxu0 0
        %1796 = vmatprep.subr.bf16.mxu0 0
        %1797 = vmatpush1.bf16.msra.mxu0 0
        %1798 = vmatprep.subr.bf16.mxu0 0
        %1799 = vmatpush1.bf16.msra.mxu0 0
        %1800 = vmatprep.subr.bf16.mxu0 0
        %1801 = vmatpush1.bf16.msra.mxu0 0
        %1802 = vmatprep.subr.bf16.mxu0 0
        %1803 = vmatpush1.bf16.msra.mxu0 0
        %1804 = vmatprep.subr.bf16.mxu0 0
        %1805 = vmatpush1.bf16.msra.mxu0 0
        %1806 = vmatprep.subr.bf16.mxu0 0
        %1807 = vmatpush1.bf16.msra.mxu0 0
        %1808 = vmatprep.subr.bf16.mxu0 0
        %1809 = vmatpush1.bf16.msra.mxu0 0
        %1810 = vmatprep.subr.bf16.mxu0 0
        %1811 = vmatpush1.bf16.msra.mxu0 0
        %1812 = vmatprep.subr.bf16.mxu0 0
        %1813 = vmatpush1.bf16.msra.mxu0 0
        %1814 = vmatprep.subr.bf16.mxu0 0
        %1815 = vmatpush1.bf16.msra.mxu0 0
        %1816 = vmatprep.subr.bf16.mxu0 0
        %1817 = vmatpush1.bf16.msra.mxu0 0
        %1818 = vmatprep.subr.bf16.mxu0 0
        %1819 = vmatpush1.bf16.msra.mxu0 0
        %1820 = vmatprep.mubr.bf16.mxu0 0
        %1821 = vmatmul.mubr.bf16.gmra.mrb[0].mxu0 %v1783
        %v1822 = vpop.f32.mrb[0].mxu0
        %v1823 = vadd.f32 0.0, %v1822
        %v1824 = vpop.f32.mrb[0].mxu0
        %v1825 = vpop.f32.mrb[0].mxu0
        %v1826 = vpop.f32.mrb[0].mxu0
        %1827 = vdwg.mxu0
        %v1830 = vcombine.high %v1774, %v1774
        %v1832 = vunpack.c.l.s4 1983009808
        %v1833 = vunpack.c.0.s8 %v1832
        %v1834 = vlaneseq
        %v1835 = vshrl.u32 %v1834, 7
        %v1836 = vsub.s32 %v1833, %v1835
        %v1837 = vrot.slane %v1774, %v1836
        %v1839 = vunpack.c.l.s4 1983009808
        %v1840 = vunpack.c.0.s8 %v1839
        %v1841 = vlaneseq
        %v1842 = vshrl.u32 %v1841, 7
        %v1843 = vsub.s32 %v1840, %v1842
        %v1844 = vrot.slane %v1830, %v1843
        %v1845 = vcombine.high %v1837, %v1837
        %v1846 = vcombine.high %v1823, %v1823
        %v1848 = vunpack.c.l.s4 1983009808
        %v1849 = vunpack.c.0.s8 %v1848
        %v1850 = vlaneseq
        %v1851 = vshrl.u32 %v1850, 7
        %v1852 = vsub.s32 %v1849, %v1851
        %v1853 = vrot.slane %v1823, %v1852
        %v1855 = vunpack.c.l.s4 1983009808
        %v1856 = vunpack.c.0.s8 %v1855
        %v1857 = vlaneseq
        %v1858 = vshrl.u32 %v1857, 7
        %v1859 = vsub.s32 %v1856, %v1858
        %v1860 = vrot.slane %v1846, %v1859
        %v1861 = vcombine.high %v1853, %v1853
        %1862 = vrot.lane.b32.xlu0 %v1208, 64
        %v1863 = vpop.permute.xlu0 %1862
        %1864 = vrot.lane.b32.xlu0 %v1271, 64
        %v1865 = vpop.permute.xlu0 %1864
        %v1867 = vsel %vm1336, %v1863, 0
        %v1870 = vsel %vm1336, %v1865, 0
        %1872 = vmatprep.subr.bf16.mxu0 0
        %1873 = vmatpush1.bf16.xpose.msra.mxu0 %v1870
        %1874 = vmatprep.subr.bf16.mxu0 0
        %1875 = vmatpush1.bf16.xpose.msra.mxu0 0
        %1876 = vmatprep.subr.bf16.mxu0 0
        %1877 = vmatpush1.bf16.xpose.msra.mxu0 0
        %1878 = vmatprep.subr.bf16.mxu0 0
        %1879 = vmatpush1.bf16.xpose.msra.mxu0 0
        %1880 = vmatprep.subr.bf16.mxu0 0
        %1881 = vmatpush1.bf16.xpose.msra.mxu0 0
        %1882 = vmatprep.subr.bf16.mxu0 0
        %1883 = vmatpush1.bf16.xpose.msra.mxu0 0
        %1884 = vmatprep.subr.bf16.mxu0 0
        %1885 = vmatpush1.bf16.xpose.msra.mxu0 0
        %1886 = vmatprep.subr.bf16.mxu0 0
        %1887 = vmatpush1.bf16.xpose.msra.mxu0 0
        %1888 = vmatprep.subr.bf16.mxu0 0
        %1889 = vmatpush1.bf16.xpose.msra.mxu0 0
        %1890 = vmatprep.subr.bf16.mxu0 0
        %1891 = vmatpush1.bf16.xpose.msra.mxu0 0
        %1892 = vmatprep.subr.bf16.mxu0 0
        %1893 = vmatpush1.bf16.xpose.msra.mxu0 0
        %1894 = vmatprep.subr.bf16.mxu0 0
        %1895 = vmatpush1.bf16.xpose.msra.mxu0 0
        %1896 = vmatprep.subr.bf16.mxu0 0
        %1897 = vmatpush1.bf16.xpose.msra.mxu0 0
        %1898 = vmatprep.subr.bf16.mxu0 0
        %1899 = vmatpush1.bf16.xpose.msra.mxu0 0
        %1900 = vmatprep.subr.bf16.mxu0 0
        %1901 = vmatpush1.bf16.xpose.msra.mxu0 0
        %1902 = vmatprep.subr.bf16.mxu0 0
        %1903 = vmatpush1.bf16.xpose.msra.mxu0 0
        %1904 = vmatprep.mubr.bf16.mxu0 0
        %1905 = vmatmul.mubr.bf16.gmra.mrb[0].mxu0 %v1867
        %v1906 = vpop.f32.mrb[0].mxu0
        %v1907 = vadd.f32 0.0, %v1906
        %v1908 = vpop.f32.mrb[0].mxu0
        %v1909 = vpop.f32.mrb[0].mxu0
        %v1910 = vpop.f32.mrb[0].mxu0
        %1911 = vdwg.mxu0
        %1912 = vrot.lane.b32.xlu0 %v1209, 64
        %v1913 = vpop.permute.xlu0 %1912
        %1914 = vrot.lane.b32.xlu0 %v1272, 64
        %v1915 = vpop.permute.xlu0 %1914
        %v1917 = vsel %vm1336, %v1913, 0
        %v1920 = vsel %vm1336, %v1915, 0
        %1922 = vmatprep.subr.bf16.mxu0 0
        %1923 = vmatpush1.bf16.xpose.msra.mxu0 %v1920
        %1924 = vmatprep.subr.bf16.mxu0 0
        %1925 = vmatpush1.bf16.xpose.msra.mxu0 0
        %1926 = vmatprep.subr.bf16.mxu0 0
        %1927 = vmatpush1.bf16.xpose.msra.mxu0 0
        %1928 = vmatprep.subr.bf16.mxu0 0
        %1929 = vmatpush1.bf16.xpose.msra.mxu0 0
        %1930 = vmatprep.subr.bf16.mxu0 0
        %1931 = vmatpush1.bf16.xpose.msra.mxu0 0
        %1932 = vmatprep.subr.bf16.mxu0 0
        %1933 = vmatpush1.bf16.xpose.msra.mxu0 0
        %1934 = vmatprep.subr.bf16.mxu0 0
        %1935 = vmatpush1.bf16.xpose.msra.mxu0 0
        %1936 = vmatprep.subr.bf16.mxu0 0
        %1937 = vmatpush1.bf16.xpose.msra.mxu0 0
        %1938 = vmatprep.subr.bf16.mxu0 0
        %1939 = vmatpush1.bf16.xpose.msra.mxu0 0
        %1940 = vmatprep.subr.bf16.mxu0 0
        %1941 = vmatpush1.bf16.xpose.msra.mxu0 0
        %1942 = vmatprep.subr.bf16.mxu0 0
        %1943 = vmatpush1.bf16.xpose.msra.mxu0 0
        %1944 = vmatprep.subr.bf16.mxu0 0
        %1945 = vmatpush1.bf16.xpose.msra.mxu0 0
        %1946 = vmatprep.subr.bf16.mxu0 0
        %1947 = vmatpush1.bf16.xpose.msra.mxu0 0
        %1948 = vmatprep.subr.bf16.mxu0 0
        %1949 = vmatpush1.bf16.xpose.msra.mxu0 0
        %1950 = vmatprep.subr.bf16.mxu0 0
        %1951 = vmatpush1.bf16.xpose.msra.mxu0 0
        %1952 = vmatprep.subr.bf16.mxu0 0
        %1953 = vmatpush1.bf16.xpose.msra.mxu0 0
        %1954 = vmatprep.mubr.bf16.mxu0 0
        %1955 = vmatmul.mubr.bf16.gmra.mrb[0].mxu0 %v1917
        %v1956 = vpop.f32.mrb[0].mxu0
        %v1957 = vadd.f32 0.0, %v1956
        %v1958 = vpop.f32.mrb[0].mxu0
        %v1959 = vpop.f32.mrb[0].mxu0
        %v1960 = vpop.f32.mrb[0].mxu0
        %1961 = vdwg.mxu0
        %v1962 = vmul.f32 %v1907, 0.17677669
        %v1963 = vmul.f32 %v1957, 0.17677669
        %v1964 = vadd.f32 %v1962, %v1436
        %v1965 = vadd.f32 %v1963, %v1440
        %v1966 = vsel %vm1445, %v1964, -inf
        %1967 = vmax.xlane.f32.xlu0 %v1966
        %v1968 = vpop.xlane.xlu0 %1967
        %v1969 = vsel %vm1445, %v1965, -inf
        %1970 = vmax.xlane.f32.xlu0 %v1969
        %v1971 = vpop.xlane.xlu0 %1970
        %v1972 = vsub.f32 %v1964, %v1968
        %v1973 = vsub.f32 %v1965, %v1971
        %v1974 = vmul.f32 %v1972, 1.442695
        %v1975 = vpow.pop %v1974
        %v1976 = vmul.f32 %v1973, 1.442695
        %v1977 = vpow.pop %v1976
        %v1978 = vsel %vm1445, %v1975, 0.0
        %1979 = vadd.xlane.f32.xlu0 %v1978
        %v1980 = vpop.xlane.xlu0 %1979
        %v1981 = vsel %vm1445, %v1977, 0.0
        %1982 = vadd.xlane.f32.xlu0 %v1981
        %v1983 = vpop.xlane.xlu0 %1982
        %v1984 = vrcp.pop %v1980
        %v1985 = vrcp.pop %v1983
        %v1986 = vmul.f32 %v1975, %v1984
        %v1987 = vmul.f32 %v1977, %v1985
        %v1988 = vpack.c.bf16 %v1986, %v1986
        %v1989 = vpack.c.bf16 %v1987, %v1987
        %1990 = vrot.lane.b32.xlu0 %v1334, 64
        %v1991 = vpop.permute.xlu0 %1990
        %v1993 = vsel %vm1470, %v1988, 0
        %v1996 = vsel %vm1474, %v1991, 0
        %1998 = vmatprep.subr.bf16.mxu0 0
        %1999 = vmatpush1.bf16.msra.mxu0 %v1996
        %2000 = vmatprep.subr.bf16.mxu0 0
        %2001 = vmatpush1.bf16.msra.mxu0 0
        %2002 = vmatprep.subr.bf16.mxu0 0
        %2003 = vmatpush1.bf16.msra.mxu0 0
        %2004 = vmatprep.subr.bf16.mxu0 0
        %2005 = vmatpush1.bf16.msra.mxu0 0
        %2006 = vmatprep.subr.bf16.mxu0 0
        %2007 = vmatpush1.bf16.msra.mxu0 0
        %2008 = vmatprep.subr.bf16.mxu0 0
        %2009 = vmatpush1.bf16.msra.mxu0 0
        %2010 = vmatprep.subr.bf16.mxu0 0
        %2011 = vmatpush1.bf16.msra.mxu0 0
        %2012 = vmatprep.subr.bf16.mxu0 0
        %2013 = vmatpush1.bf16.msra.mxu0 0
        %2014 = vmatprep.subr.bf16.mxu0 0
        %2015 = vmatpush1.bf16.msra.mxu0 0
        %2016 = vmatprep.subr.bf16.mxu0 0
        %2017 = vmatpush1.bf16.msra.mxu0 0
        %2018 = vmatprep.subr.bf16.mxu0 0
        %2019 = vmatpush1.bf16.msra.mxu0 0
        %2020 = vmatprep.subr.bf16.mxu0 0
        %2021 = vmatpush1.bf16.msra.mxu0 0
        %2022 = vmatprep.subr.bf16.mxu0 0
        %2023 = vmatpush1.bf16.msra.mxu0 0
        %2024 = vmatprep.subr.bf16.mxu0 0
        %2025 = vmatpush1.bf16.msra.mxu0 0
        %2026 = vmatprep.subr.bf16.mxu0 0
        %2027 = vmatpush1.bf16.msra.mxu0 0
        %2028 = vmatprep.subr.bf16.mxu0 0
        %2029 = vmatpush1.bf16.msra.mxu0 0
        %2030 = vmatprep.mubr.bf16.mxu0 0
        %2031 = vmatmul.mubr.bf16.gmra.mrb[0].mxu0 %v1993
        %v2032 = vpop.f32.mrb[0].mxu0
        %v2033 = vadd.f32 0.0, %v2032
        %v2034 = vpop.f32.mrb[0].mxu0
        %v2035 = vpop.f32.mrb[0].mxu0
        %v2036 = vpop.f32.mrb[0].mxu0
        %2037 = vdwg.mxu0
        %2038 = vrot.lane.b32.xlu0 %v1335, 64
        %v2039 = vpop.permute.xlu0 %2038
        %v2041 = vsel %vm1470, %v1989, 0
        %v2044 = vsel %vm1474, %v2039, 0
        %2046 = vmatprep.subr.bf16.mxu0 0
        %2047 = vmatpush1.bf16.msra.mxu0 %v2044
        %2048 = vmatprep.subr.bf16.mxu0 0
        %2049 = vmatpush1.bf16.msra.mxu0 0
        %2050 = vmatprep.subr.bf16.mxu0 0
        %2051 = vmatpush1.bf16.msra.mxu0 0
        %2052 = vmatprep.subr.bf16.mxu0 0
        %2053 = vmatpush1.bf16.msra.mxu0 0
        %2054 = vmatprep.subr.bf16.mxu0 0
        %2055 = vmatpush1.bf16.msra.mxu0 0
        %2056 = vmatprep.subr.bf16.mxu0 0
        %2057 = vmatpush1.bf16.msra.mxu0 0
        %2058 = vmatprep.subr.bf16.mxu0 0
        %2059 = vmatpush1.bf16.msra.mxu0 0
        %2060 = vmatprep.subr.bf16.mxu0 0
        %2061 = vmatpush1.bf16.msra.mxu0 0
        %2062 = vmatprep.subr.bf16.mxu0 0
        %2063 = vmatpush1.bf16.msra.mxu0 0
        %2064 = vmatprep.subr.bf16.mxu0 0
        %2065 = vmatpush1.bf16.msra.mxu0 0
        %2066 = vmatprep.subr.bf16.mxu0 0
        %2067 = vmatpush1.bf16.msra.mxu0 0
        %2068 = vmatprep.subr.bf16.mxu0 0
        %2069 = vmatpush1.bf16.msra.mxu0 0
        %2070 = vmatprep.subr.bf16.mxu0 0
        %2071 = vmatpush1.bf16.msra.mxu0 0
        %2072 = vmatprep.subr.bf16.mxu0 0
        %2073 = vmatpush1.bf16.msra.mxu0 0
        %2074 = vmatprep.subr.bf16.mxu0 0
        %2075 = vmatpush1.bf16.msra.mxu0 0
        %2076 = vmatprep.subr.bf16.mxu0 0
        %2077 = vmatpush1.bf16.msra.mxu0 0
        %2078 = vmatprep.mubr.bf16.mxu0 0
        %2079 = vmatmul.mubr.bf16.gmra.mrb[0].mxu0 %v2041
        %v2080 = vpop.f32.mrb[0].mxu0
        %v2081 = vadd.f32 0.0, %v2080
        %v2082 = vpop.f32.mrb[0].mxu0
        %v2083 = vpop.f32.mrb[0].mxu0
        %v2084 = vpop.f32.mrb[0].mxu0
        %2085 = vdwg.mxu0
        %v2088 = vcombine.high %v2033, %v2033
        %v2090 = vunpack.c.l.s4 1983009808
        %v2091 = vunpack.c.0.s8 %v2090
        %v2092 = vlaneseq
        %v2093 = vshrl.u32 %v2092, 7
        %v2094 = vsub.s32 %v2091, %v2093
        %v2095 = vrot.slane %v2033, %v2094
        %v2097 = vunpack.c.l.s4 1983009808
        %v2098 = vunpack.c.0.s8 %v2097
        %v2099 = vlaneseq
        %v2100 = vshrl.u32 %v2099, 7
        %v2101 = vsub.s32 %v2098, %v2100
        %v2102 = vrot.slane %v2088, %v2101
        %v2103 = vcombine.high %v2095, %v2095
        %v2104 = vcombine.high %v2081, %v2081
        %v2106 = vunpack.c.l.s4 1983009808
        %v2107 = vunpack.c.0.s8 %v2106
        %v2108 = vlaneseq
        %v2109 = vshrl.u32 %v2108, 7
        %v2110 = vsub.s32 %v2107, %v2109
        %v2111 = vrot.slane %v2081, %v2110
        %v2113 = vunpack.c.l.s4 1983009808
        %v2114 = vunpack.c.0.s8 %v2113
        %v2115 = vlaneseq
        %v2116 = vshrl.u32 %v2115, 7
        %v2117 = vsub.s32 %v2114, %v2116
        %v2118 = vrot.slane %v2104, %v2117
        %v2119 = vcombine.high %v2111, %v2111
        %2120 = vrot.lane.b32.xlu0 %v1208, 32
        %v2121 = vpop.permute.xlu0 %2120
        %2122 = vrot.lane.b32.xlu0 %v1271, 32
        %v2123 = vpop.permute.xlu0 %2122
        %v2125 = vsel %vm1336, %v2121, 0
        %v2128 = vsel %vm1336, %v2123, 0
        %2130 = vmatprep.subr.bf16.mxu0 0
        %2131 = vmatpush1.bf16.xpose.msra.mxu0 %v2128
        %2132 = vmatprep.subr.bf16.mxu0 0
        %2133 = vmatpush1.bf16.xpose.msra.mxu0 0
        %2134 = vmatprep.subr.bf16.mxu0 0
        %2135 = vmatpush1.bf16.xpose.msra.mxu0 0
        %2136 = vmatprep.subr.bf16.mxu0 0
        %2137 = vmatpush1.bf16.xpose.msra.mxu0 0
        %2138 = vmatprep.subr.bf16.mxu0 0
        %2139 = vmatpush1.bf16.xpose.msra.mxu0 0
        %2140 = vmatprep.subr.bf16.mxu0 0
        %2141 = vmatpush1.bf16.xpose.msra.mxu0 0
        %2142 = vmatprep.subr.bf16.mxu0 0
        %2143 = vmatpush1.bf16.xpose.msra.mxu0 0
        %2144 = vmatprep.subr.bf16.mxu0 0
        %2145 = vmatpush1.bf16.xpose.msra.mxu0 0
        %2146 = vmatprep.subr.bf16.mxu0 0
        %2147 = vmatpush1.bf16.xpose.msra.mxu0 0
        %2148 = vmatprep.subr.bf16.mxu0 0
        %2149 = vmatpush1.bf16.xpose.msra.mxu0 0
        %2150 = vmatprep.subr.bf16.mxu0 0
        %2151 = vmatpush1.bf16.xpose.msra.mxu0 0
        %2152 = vmatprep.subr.bf16.mxu0 0
        %2153 = vmatpush1.bf16.xpose.msra.mxu0 0
        %2154 = vmatprep.subr.bf16.mxu0 0
        %2155 = vmatpush1.bf16.xpose.msra.mxu0 0
        %2156 = vmatprep.subr.bf16.mxu0 0
        %2157 = vmatpush1.bf16.xpose.msra.mxu0 0
        %2158 = vmatprep.subr.bf16.mxu0 0
        %2159 = vmatpush1.bf16.xpose.msra.mxu0 0
        %2160 = vmatprep.subr.bf16.mxu0 0
        %2161 = vmatpush1.bf16.xpose.msra.mxu0 0
        %2162 = vmatprep.mubr.bf16.mxu0 0
        %2163 = vmatmul.mubr.bf16.gmra.mrb[0].mxu0 %v2125
        %v2164 = vpop.f32.mrb[0].mxu0
        %v2165 = vadd.f32 0.0, %v2164
        %v2166 = vpop.f32.mrb[0].mxu0
        %v2167 = vpop.f32.mrb[0].mxu0
        %v2168 = vpop.f32.mrb[0].mxu0
        %2169 = vdwg.mxu0
        %2170 = vrot.lane.b32.xlu0 %v1209, 32
        %v2171 = vpop.permute.xlu0 %2170
        %2172 = vrot.lane.b32.xlu0 %v1272, 32
        %v2173 = vpop.permute.xlu0 %2172
        %v2175 = vsel %vm1336, %v2171, 0
        %v2178 = vsel %vm1336, %v2173, 0
        %2180 = vmatprep.subr.bf16.mxu0 0
        %2181 = vmatpush1.bf16.xpose.msra.mxu0 %v2178
        %2182 = vmatprep.subr.bf16.mxu0 0
        %2183 = vmatpush1.bf16.xpose.msra.mxu0 0
        %2184 = vmatprep.subr.bf16.mxu0 0
        %2185 = vmatpush1.bf16.xpose.msra.mxu0 0
        %2186 = vmatprep.subr.bf16.mxu0 0
        %2187 = vmatpush1.bf16.xpose.msra.mxu0 0
        %2188 = vmatprep.subr.bf16.mxu0 0
        %2189 = vmatpush1.bf16.xpose.msra.mxu0 0
        %2190 = vmatprep.subr.bf16.mxu0 0
        %2191 = vmatpush1.bf16.xpose.msra.mxu0 0
        %2192 = vmatprep.subr.bf16.mxu0 0
        %2193 = vmatpush1.bf16.xpose.msra.mxu0 0
        %2194 = vmatprep.subr.bf16.mxu0 0
        %2195 = vmatpush1.bf16.xpose.msra.mxu0 0
        %2196 = vmatprep.subr.bf16.mxu0 0
        %2197 = vmatpush1.bf16.xpose.msra.mxu0 0
        %2198 = vmatprep.subr.bf16.mxu0 0
        %2199 = vmatpush1.bf16.xpose.msra.mxu0 0
        %2200 = vmatprep.subr.bf16.mxu0 0
        %2201 = vmatpush1.bf16.xpose.msra.mxu0 0
        %2202 = vmatprep.subr.bf16.mxu0 0
        %2203 = vmatpush1.bf16.xpose.msra.mxu0 0
        %2204 = vmatprep.subr.bf16.mxu0 0
        %2205 = vmatpush1.bf16.xpose.msra.mxu0 0
        %2206 = vmatprep.subr.bf16.mxu0 0
        %2207 = vmatpush1.bf16.xpose.msra.mxu0 0
        %2208 = vmatprep.subr.bf16.mxu0 0
        %2209 = vmatpush1.bf16.xpose.msra.mxu0 0
        %2210 = vmatprep.subr.bf16.mxu0 0
        %2211 = vmatpush1.bf16.xpose.msra.mxu0 0
        %2212 = vmatprep.mubr.bf16.mxu0 0
        %2213 = vmatmul.mubr.bf16.gmra.mrb[0].mxu0 %v2175
        %v2214 = vpop.f32.mrb[0].mxu0
        %v2215 = vadd.f32 0.0, %v2214
        %v2216 = vpop.f32.mrb[0].mxu0
        %v2217 = vpop.f32.mrb[0].mxu0
        %v2218 = vpop.f32.mrb[0].mxu0
        %2219 = vdwg.mxu0
        %v2220 = vmul.f32 %v2165, 0.17677669
        %v2221 = vmul.f32 %v2215, 0.17677669
        %v2222 = vadd.f32 %v2220, %v1436
        %v2223 = vadd.f32 %v2221, %v1440
        %v2224 = vsel %vm1445, %v2222, -inf
        %2225 = vmax.xlane.f32.xlu0 %v2224
        %v2226 = vpop.xlane.xlu0 %2225
        %v2227 = vsel %vm1445, %v2223, -inf
        %2228 = vmax.xlane.f32.xlu0 %v2227
        %v2229 = vpop.xlane.xlu0 %2228
        %v2230 = vsub.f32 %v2222, %v2226
        %v2231 = vsub.f32 %v2223, %v2229
        %v2232 = vmul.f32 %v2230, 1.442695
        %v2233 = vpow.pop %v2232
        %v2234 = vmul.f32 %v2231, 1.442695
        %v2235 = vpow.pop %v2234
        %v2236 = vsel %vm1445, %v2233, 0.0
        %2237 = vadd.xlane.f32.xlu0 %v2236
        %v2238 = vpop.xlane.xlu0 %2237
        %v2239 = vsel %vm1445, %v2235, 0.0
        %2240 = vadd.xlane.f32.xlu0 %v2239
        %v2241 = vpop.xlane.xlu0 %2240
        %v2242 = vrcp.pop %v2238
        %v2243 = vrcp.pop %v2241
        %v2244 = vmul.f32 %v2233, %v2242
        %v2245 = vmul.f32 %v2235, %v2243
        %v2246 = vpack.c.bf16 %v2244, %v2244
        %v2247 = vpack.c.bf16 %v2245, %v2245
        %2248 = vrot.lane.b32.xlu0 %v1334, 32
        %v2249 = vpop.permute.xlu0 %2248
        %v2251 = vsel %vm1470, %v2246, 0
        %v2254 = vsel %vm1474, %v2249, 0
        %2256 = vmatprep.subr.bf16.mxu0 0
        %2257 = vmatpush1.bf16.msra.mxu0 %v2254
        %2258 = vmatprep.subr.bf16.mxu0 0
        %2259 = vmatpush1.bf16.msra.mxu0 0
        %2260 = vmatprep.subr.bf16.mxu0 0
        %2261 = vmatpush1.bf16.msra.mxu0 0
        %2262 = vmatprep.subr.bf16.mxu0 0
        %2263 = vmatpush1.bf16.msra.mxu0 0
        %2264 = vmatprep.subr.bf16.mxu0 0
        %2265 = vmatpush1.bf16.msra.mxu0 0
        %2266 = vmatprep.subr.bf16.mxu0 0
        %2267 = vmatpush1.bf16.msra.mxu0 0
        %2268 = vmatprep.subr.bf16.mxu0 0
        %2269 = vmatpush1.bf16.msra.mxu0 0
        %2270 = vmatprep.subr.bf16.mxu0 0
        %2271 = vmatpush1.bf16.msra.mxu0 0
        %2272 = vmatprep.subr.bf16.mxu0 0
        %2273 = vmatpush1.bf16.msra.mxu0 0
        %2274 = vmatprep.subr.bf16.mxu0 0
        %2275 = vmatpush1.bf16.msra.mxu0 0
        %2276 = vmatprep.subr.bf16.mxu0 0
        %2277 = vmatpush1.bf16.msra.mxu0 0
        %2278 = vmatprep.subr.bf16.mxu0 0
        %2279 = vmatpush1.bf16.msra.mxu0 0
        %2280 = vmatprep.subr.bf16.mxu0 0
        %2281 = vmatpush1.bf16.msra.mxu0 0
        %2282 = vmatprep.subr.bf16.mxu0 0
        %2283 = vmatpush1.bf16.msra.mxu0 0
        %2284 = vmatprep.subr.bf16.mxu0 0
        %2285 = vmatpush1.bf16.msra.mxu0 0
        %2286 = vmatprep.subr.bf16.mxu0 0
        %2287 = vmatpush1.bf16.msra.mxu0 0
        %2288 = vmatprep.mubr.bf16.mxu0 0
        %2289 = vmatmul.mubr.bf16.gmra.mrb[0].mxu0 %v2251
        %v2290 = vpop.f32.mrb[0].mxu0
        %v2291 = vadd.f32 0.0, %v2290
        %v2292 = vpop.f32.mrb[0].mxu0
        %v2293 = vpop.f32.mrb[0].mxu0
        %v2294 = vpop.f32.mrb[0].mxu0
        %2295 = vdwg.mxu0
        %2296 = vrot.lane.b32.xlu0 %v1335, 32
        %v2297 = vpop.permute.xlu0 %2296
        %v2299 = vsel %vm1470, %v2247, 0
        %v2302 = vsel %vm1474, %v2297, 0
        %2304 = vmatprep.subr.bf16.mxu0 0
        %2305 = vmatpush1.bf16.msra.mxu0 %v2302
        %2306 = vmatprep.subr.bf16.mxu0 0
        %2307 = vmatpush1.bf16.msra.mxu0 0
        %2308 = vmatprep.subr.bf16.mxu0 0
        %2309 = vmatpush1.bf16.msra.mxu0 0
        %2310 = vmatprep.subr.bf16.mxu0 0
        %2311 = vmatpush1.bf16.msra.mxu0 0
        %2312 = vmatprep.subr.bf16.mxu0 0
        %2313 = vmatpush1.bf16.msra.mxu0 0
        %2314 = vmatprep.subr.bf16.mxu0 0
        %2315 = vmatpush1.bf16.msra.mxu0 0
        %2316 = vmatprep.subr.bf16.mxu0 0
        %2317 = vmatpush1.bf16.msra.mxu0 0
        %2318 = vmatprep.subr.bf16.mxu0 0
        %2319 = vmatpush1.bf16.msra.mxu0 0
        %2320 = vmatprep.subr.bf16.mxu0 0
        %2321 = vmatpush1.bf16.msra.mxu0 0
        %2322 = vmatprep.subr.bf16.mxu0 0
        %2323 = vmatpush1.bf16.msra.mxu0 0
        %2324 = vmatprep.subr.bf16.mxu0 0
        %2325 = vmatpush1.bf16.msra.mxu0 0
        %2326 = vmatprep.subr.bf16.mxu0 0
        %2327 = vmatpush1.bf16.msra.mxu0 0
        %2328 = vmatprep.subr.bf16.mxu0 0
        %2329 = vmatpush1.bf16.msra.mxu0 0
        %2330 = vmatprep.subr.bf16.mxu0 0
        %2331 = vmatpush1.bf16.msra.mxu0 0
        %2332 = vmatprep.subr.bf16.mxu0 0
        %2333 = vmatpush1.bf16.msra.mxu0 0
        %2334 = vmatprep.subr.bf16.mxu0 0
        %2335 = vmatpush1.bf16.msra.mxu0 0
        %2336 = vmatprep.mubr.bf16.mxu0 0
        %2337 = vmatmul.mubr.bf16.gmra.mrb[0].mxu0 %v2299
        %v2338 = vpop.f32.mrb[0].mxu0
        %v2339 = vadd.f32 0.0, %v2338
        %v2340 = vpop.f32.mrb[0].mxu0
        %v2341 = vpop.f32.mrb[0].mxu0
        %v2342 = vpop.f32.mrb[0].mxu0
        %2343 = vdwg.mxu0
        %v2346 = vcombine.high %v2291, %v2291
        %v2348 = vunpack.c.l.s4 1983009808
        %v2349 = vunpack.c.0.s8 %v2348
        %v2350 = vlaneseq
        %v2351 = vshrl.u32 %v2350, 7
        %v2352 = vsub.s32 %v2349, %v2351
        %v2353 = vrot.slane %v2291, %v2352
        %v2355 = vunpack.c.l.s4 1983009808
        %v2356 = vunpack.c.0.s8 %v2355
        %v2357 = vlaneseq
        %v2358 = vshrl.u32 %v2357, 7
        %v2359 = vsub.s32 %v2356, %v2358
        %v2360 = vrot.slane %v2346, %v2359
        %v2361 = vcombine.high %v2353, %v2353
        %v2362 = vcombine.high %v2339, %v2339
        %v2364 = vunpack.c.l.s4 1983009808
        %v2365 = vunpack.c.0.s8 %v2364
        %v2366 = vlaneseq
        %v2367 = vshrl.u32 %v2366, 7
        %v2368 = vsub.s32 %v2365, %v2367
        %v2369 = vrot.slane %v2339, %v2368
        %v2371 = vunpack.c.l.s4 1983009808
        %v2372 = vunpack.c.0.s8 %v2371
        %v2373 = vlaneseq
        %v2374 = vshrl.u32 %v2373, 7
        %v2375 = vsub.s32 %v2372, %v2374
        %v2376 = vrot.slane %v2362, %v2375
        %v2377 = vcombine.high %v2369, %v2369
        %v2378 = vcombine.low %v1573, %v1581
        %v2379 = vcombine.low %v1580, %v1589
        %v2381 = vunpack.c.l.s4 1983009808
        %v2382 = vunpack.c.0.s8 %v2381
        %v2383 = vlaneseq
        %v2384 = vshrl.u32 %v2383, 7
        %v2385 = vsub.s32 %v2382, %v2384
        %v2386 = vrot.slane %v2378, %v2385
        %v2388 = vunpack.c.l.s4 1983009808
        %v2389 = vunpack.c.0.s8 %v2388
        %v2390 = vlaneseq
        %v2391 = vshrl.u32 %v2390, 7
        %v2392 = vsub.s32 %v2389, %v2391
        %v2393 = vrot.slane %v2379, %v2392
        %v2394 = vcombine.low %v2386, %v2393
        %v2395 = vcombine.low %v1597, %v1596
        %v2397 = vunpack.c.l.s4 1983009808
        %v2398 = vunpack.c.0.s8 %v2397
        %v2399 = vlaneseq
        %v2400 = vshrl.u32 %v2399, 7
        %v2401 = vsub.s32 %v2398, %v2400
        %v2402 = vrot.slane %v2395, %v2401
        %v2405 = vcombine.low %v1837, %v1845
        %v2406 = vcombine.low %v1844, %v1853
        %v2408 = vunpack.c.l.s4 1983009808
        %v2409 = vunpack.c.0.s8 %v2408
        %v2410 = vlaneseq
        %v2411 = vshrl.u32 %v2410, 7
        %v2412 = vsub.s32 %v2409, %v2411
        %v2413 = vrot.slane %v2405, %v2412
        %v2415 = vunpack.c.l.s4 1983009808
        %v2416 = vunpack.c.0.s8 %v2415
        %v2417 = vlaneseq
        %v2418 = vshrl.u32 %v2417, 7
        %v2419 = vsub.s32 %v2416, %v2418
        %v2420 = vrot.slane %v2406, %v2419
        %v2421 = vcombine.low %v2413, %v2420
        %v2422 = vcombine.low %v1861, %v1860
        %v2424 = vunpack.c.l.s4 1983009808
        %v2425 = vunpack.c.0.s8 %v2424
        %v2426 = vlaneseq
        %v2427 = vshrl.u32 %v2426, 7
        %v2428 = vsub.s32 %v2425, %v2427
        %v2429 = vrot.slane %v2422, %v2428
        %2430 = vrot.lane.b32.xlu0 %v2421, 32
        %v2431 = vpop.permute.xlu0 %2430
        %2432 = vrot.lane.b32.xlu0 %v2429, 32
        %v2433 = vpop.permute.xlu0 %2432
        %v2436 = vcombine.low %v2095, %v2103
        %v2437 = vcombine.low %v2102, %v2111
        %v2439 = vunpack.c.l.s4 1983009808
        %v2440 = vunpack.c.0.s8 %v2439
        %v2441 = vlaneseq
        %v2442 = vshrl.u32 %v2441, 7
        %v2443 = vsub.s32 %v2440, %v2442
        %v2444 = vrot.slane %v2436, %v2443
        %v2446 = vunpack.c.l.s4 1983009808
        %v2447 = vunpack.c.0.s8 %v2446
        %v2448 = vlaneseq
        %v2449 = vshrl.u32 %v2448, 7
        %v2450 = vsub.s32 %v2447, %v2449
        %v2451 = vrot.slane %v2437, %v2450
        %v2452 = vcombine.low %v2444, %v2451
        %v2453 = vcombine.low %v2119, %v2118
        %v2455 = vunpack.c.l.s4 1983009808
        %v2456 = vunpack.c.0.s8 %v2455
        %v2457 = vlaneseq
        %v2458 = vshrl.u32 %v2457, 7
        %v2459 = vsub.s32 %v2456, %v2458
        %v2460 = vrot.slane %v2453, %v2459
        %2461 = vrot.lane.b32.xlu0 %v2452, 64
        %v2462 = vpop.permute.xlu0 %2461
        %2463 = vrot.lane.b32.xlu0 %v2460, 64
        %v2464 = vpop.permute.xlu0 %2463
        %v2467 = vcombine.low %v2353, %v2361
        %v2468 = vcombine.low %v2360, %v2369
        %v2470 = vunpack.c.l.s4 1983009808
        %v2471 = vunpack.c.0.s8 %v2470
        %v2472 = vlaneseq
        %v2473 = vshrl.u32 %v2472, 7
        %v2474 = vsub.s32 %v2471, %v2473
        %v2475 = vrot.slane %v2467, %v2474
        %v2477 = vunpack.c.l.s4 1983009808
        %v2478 = vunpack.c.0.s8 %v2477
        %v2479 = vlaneseq
        %v2480 = vshrl.u32 %v2479, 7
        %v2481 = vsub.s32 %v2478, %v2480
        %v2482 = vrot.slane %v2468, %v2481
        %v2483 = vcombine.low %v2475, %v2482
        %v2484 = vcombine.low %v2377, %v2376
        %v2486 = vunpack.c.l.s4 1983009808
        %v2487 = vunpack.c.0.s8 %v2486
        %v2488 = vlaneseq
        %v2489 = vshrl.u32 %v2488, 7
        %v2490 = vsub.s32 %v2487, %v2489
        %v2491 = vrot.slane %v2484, %v2490
        %2492 = vrot.lane.b32.xlu0 %v2483, 96
        %v2493 = vpop.permute.xlu0 %2492
        %2494 = vrot.lane.b32.xlu0 %v2491, 96
        %v2495 = vpop.permute.xlu0 %2494
        %v2498 = vsel %vm1336, %v2394, %v2431
        %v2499 = vsel %vm1336, %v2402, %v2433
        %vm2500 = vcmask 523264
        %v2501 = vsel %vm2500, %v2498, %v2462
        %v2502 = vsel %vm2500, %v2499, %v2464
        %vm2503 = vcmask 785408
        %v2504 = vsel %vm2503, %v2501, %v2493
        %v2505 = vsel %vm2503, %v2502, %v2495
        %v2506 = vpack.c.bf16 %v2505, %v2504
        %v2508 = vlaneseq
        %v2509 = vshrl.u32 %v2508, 7
        %v2510 = vsub.s32 0, %v2509
        %v2511 = vrot.slane %v827, %v2510
        %v2529 = vunpack.c.l.b16 %v811
        %v2530 = vunpack.c.l.b16 %v812
        %v2531 = vunpack.c.l.b16 %v813
        %v2532 = vunpack.c.l.b16 %v814
        %v2533 = vunpack.c.l.b16 %v815
        %v2534 = vunpack.c.l.b16 %v816
        %v2535 = vunpack.c.l.b16 %v817
        %v2536 = vunpack.c.l.b16 %v818
        %v2537 = vunpack.c.l.b16 %v819
        %v2538 = vunpack.c.l.b16 %v820
        %v2539 = vunpack.c.l.b16 %v821
        %v2540 = vunpack.c.l.b16 %v822
        %v2541 = vunpack.c.l.b16 %v823
        %v2542 = vunpack.c.l.b16 %v824
        %v2543 = vunpack.c.l.b16 %v825
        %v2544 = vunpack.c.l.b16 %v826
        %v2545 = vpack.c.b16 %v2530, %v2529
        %v2546 = vpack.c.b16 %v2532, %v2531
        %v2547 = vpack.c.b16 %v2534, %v2533
        %v2548 = vpack.c.b16 %v2536, %v2535
        %v2549 = vpack.c.b16 %v2538, %v2537
        %v2550 = vpack.c.b16 %v2540, %v2539
        %v2551 = vpack.c.b16 %v2542, %v2541
        %v2552 = vpack.c.b16 %v2544, %v2543
        %2561 = vmatprep.subr.bf16.mxu0 0
        %2562 = vmatpush1.bf16.msra.mxu0 %v2545
        %2563 = vmatprep.subr.bf16.mxu0 0
        %2564 = vmatpush1.bf16.msra.mxu0 %v2546
        %2565 = vmatprep.subr.bf16.mxu0 0
        %2566 = vmatpush1.bf16.msra.mxu0 %v2547
        %2567 = vmatprep.subr.bf16.mxu0 0
        %2568 = vmatpush1.bf16.msra.mxu0 %v2548
        %2569 = vmatprep.subr.bf16.mxu0 0
        %2570 = vmatpush1.bf16.msra.mxu0 %v2549
        %2571 = vmatprep.subr.bf16.mxu0 0
        %2572 = vmatpush1.bf16.msra.mxu0 %v2550
        %2573 = vmatprep.subr.bf16.mxu0 0
        %2574 = vmatpush1.bf16.msra.mxu0 %v2551
        %2575 = vmatprep.subr.bf16.mxu0 0
        %2576 = vmatpush1.bf16.msra.mxu0 %v2552
        %2577 = vmatprep.subr.bf16.mxu0 0
        %2578 = vmatpush1.bf16.msra.mxu0 0
        %2579 = vmatprep.subr.bf16.mxu0 0
        %2580 = vmatpush1.bf16.msra.mxu0 0
        %2581 = vmatprep.subr.bf16.mxu0 0
        %2582 = vmatpush1.bf16.msra.mxu0 0
        %2583 = vmatprep.subr.bf16.mxu0 0
        %2584 = vmatpush1.bf16.msra.mxu0 0
        %2585 = vmatprep.subr.bf16.mxu0 0
        %2586 = vmatpush1.bf16.msra.mxu0 0
        %2587 = vmatprep.subr.bf16.mxu0 0
        %2588 = vmatpush1.bf16.msra.mxu0 0
        %2589 = vmatprep.subr.bf16.mxu0 0
        %2590 = vmatpush1.bf16.msra.mxu0 0
        %2591 = vmatprep.subr.bf16.mxu0 0
        %2592 = vmatpush1.bf16.msra.mxu0 0
        %2593 = vmatprep.mubr.bf16.mxu0 0
        %2594 = vmatmul.mubr.bf16.gmra.mrb[0].mxu0 %v2506
        %v2595 = vpop.f32.mrb[0].mxu0
        %v2596 = vadd.f32 %v2511, %v2595
        %v2597 = vpop.f32.mrb[0].mxu0
        %v2598 = vpop.f32.mrb[0].mxu0
        %v2599 = vadd.f32 %v2511, %v2598
        %v2600 = vpop.f32.mrb[0].mxu0
        %2601 = vdwg.mxu0
        %v2602 = vadd.f32 %v774, %v2596
        %v2603 = vadd.f32 %v775, %v2599
        %2604 = vadd.xlane.f32.xlu0 %v2602
        %v2605 = vpop.xlane.xlu0 %2604
        %v2606 = vsel %vm882, %v2603, 0.0
        %2607 = vadd.xlane.f32.xlu0 %v2606
        %v2608 = vpop.xlane.xlu0 %2607
        %v2609 = vmul.f32 %v2605, %v886
        %v2610 = vmul.f32 %v2608, %v886
        %v2611 = vsub.f32 %v2602, %v2609
        %v2612 = vsub.f32 %v2603, %v2610
        %v2613 = vmul.f32 %v2611, %v2611
        %v2614 = vmul.f32 %v2612, %v2612
        %2615 = vadd.xlane.f32.xlu0 %v2613
        %v2616 = vpop.xlane.xlu0 %2615
        %v2617 = vsel %vm882, %v2614, 0.0
        %2618 = vadd.xlane.f32.xlu0 %v2617
        %v2619 = vpop.xlane.xlu0 %2618
        %v2620 = vmul.f32 %v2616, %v886
        %v2621 = vmul.f32 %v2619, %v886
        %v2622 = vadd.f32 %v2620, 1e-05
        %v2623 = vadd.f32 %v2621, 1e-05
        %v2624 = vrsqrt.pop %v2622
        %v2625 = vrsqrt.pop %v2623
        %v2626 = vmul.f32 %v2611, %v2624
        %v2627 = vmul.f32 %v2612, %v2625
        %v2628 = vlaneseq
        %v2629 = vshrl.u32 %v2628, 7
        %v2630 = vsub.s32 0, %v2629
        %v2631 = vrot.slane %v829, %v2630
        %v2632 = vmul.f32 %v2626, %v2631
        %v2633 = vmul.f32 %v2627, %v2631
        %v2634 = vlaneseq
        %v2635 = vshrl.u32 %v2634, 7
        %v2636 = vsub.s32 1, %v2635
        %v2637 = vrot.slane %v829, %v2636
        %v2638 = vadd.f32 %v2632, %v2637
        %v2639 = vadd.f32 %v2633, %v2637
        %v2640 = vpack.c.bf16 %v2639, %v2638
        %v2642 = vlaneseq
        %v2643 = vshrl.u32 %v2642, 7
        %v2644 = vsub.s32 0, %v2643
        %v2645 = vrot.slane %v846, %v2644
        %v2646 = vlaneseq
        %v2647 = vshrl.u32 %v2646, 7
        %v2648 = vsub.s32 1, %v2647
        %v2649 = vrot.slane %v846, %v2648
        %v2668 = vunpack.c.l.b16 %v830
        %v2669 = vunpack.c.h.b16 %v830
        %v2670 = vunpack.c.l.b16 %v831
        %v2671 = vunpack.c.h.b16 %v831
        %v2672 = vunpack.c.l.b16 %v832
        %v2673 = vunpack.c.h.b16 %v832
        %v2674 = vunpack.c.l.b16 %v833
        %v2675 = vunpack.c.h.b16 %v833
        %v2676 = vunpack.c.l.b16 %v834
        %v2677 = vunpack.c.h.b16 %v834
        %v2678 = vunpack.c.l.b16 %v835
        %v2679 = vunpack.c.h.b16 %v835
        %v2680 = vunpack.c.l.b16 %v836
        %v2681 = vunpack.c.h.b16 %v836
        %v2682 = vunpack.c.l.b16 %v837
        %v2683 = vunpack.c.h.b16 %v837
        %v2684 = vunpack.c.l.b16 %v838
        %v2685 = vunpack.c.h.b16 %v838
        %v2686 = vunpack.c.l.b16 %v839
        %v2687 = vunpack.c.h.b16 %v839
        %v2688 = vunpack.c.l.b16 %v840
        %v2689 = vunpack.c.h.b16 %v840
        %v2690 = vunpack.c.l.b16 %v841
        %v2691 = vunpack.c.h.b16 %v841
        %v2692 = vunpack.c.l.b16 %v842
        %v2693 = vunpack.c.h.b16 %v842
        %v2694 = vunpack.c.l.b16 %v843
        %v2695 = vunpack.c.h.b16 %v843
        %v2696 = vunpack.c.l.b16 %v844
        %v2697 = vunpack.c.h.b16 %v844
        %v2698 = vunpack.c.l.b16 %v845
        %v2699 = vunpack.c.h.b16 %v845
        %v2700 = vpack.c.b16 %v2670, %v2668
        %v2701 = vpack.c.b16 %v2671, %v2669
        %v2702 = vpack.c.b16 %v2674, %v2672
        %v2703 = vpack.c.b16 %v2675, %v2673
        %v2704 = vpack.c.b16 %v2678, %v2676
        %v2705 = vpack.c.b16 %v2679, %v2677
        %v2706 = vpack.c.b16 %v2682, %v2680
        %v2707 = vpack.c.b16 %v2683, %v2681
        %v2708 = vpack.c.b16 %v2686, %v2684
        %v2709 = vpack.c.b16 %v2687, %v2685
        %v2710 = vpack.c.b16 %v2690, %v2688
        %v2711 = vpack.c.b16 %v2691, %v2689
        %v2712 = vpack.c.b16 %v2694, %v2692
        %v2713 = vpack.c.b16 %v2695, %v2693
        %v2714 = vpack.c.b16 %v2698, %v2696
        %v2715 = vpack.c.b16 %v2699, %v2697
        %2732 = vmatprep.subr.bf16.mxu0 %v2701
        %2733 = vmatpush1.bf16.msra.mxu0 %v2700
        %2734 = vmatprep.subr.bf16.mxu0 %v2703
        %2735 = vmatpush1.bf16.msra.mxu0 %v2702
        %2736 = vmatprep.subr.bf16.mxu0 %v2705
        %2737 = vmatpush1.bf16.msra.mxu0 %v2704
        %2738 = vmatprep.subr.bf16.mxu0 %v2707
        %2739 = vmatpush1.bf16.msra.mxu0 %v2706
        %2740 = vmatprep.subr.bf16.mxu0 %v2709
        %2741 = vmatpush1.bf16.msra.mxu0 %v2708
        %2742 = vmatprep.subr.bf16.mxu0 %v2711
        %2743 = vmatpush1.bf16.msra.mxu0 %v2710
        %2744 = vmatprep.subr.bf16.mxu0 %v2713
        %2745 = vmatpush1.bf16.msra.mxu0 %v2712
        %2746 = vmatprep.subr.bf16.mxu0 %v2715
        %2747 = vmatpush1.bf16.msra.mxu0 %v2714
        %2748 = vmatprep.subr.bf16.mxu0 0
        %2749 = vmatpush1.bf16.msra.mxu0 0
        %2750 = vmatprep.subr.bf16.mxu0 0
        %2751 = vmatpush1.bf16.msra.mxu0 0
        %2752 = vmatprep.subr.bf16.mxu0 0
        %2753 = vmatpush1.bf16.msra.mxu0 0
        %2754 = vmatprep.subr.bf16.mxu0 0
        %2755 = vmatpush1.bf16.msra.mxu0 0
        %2756 = vmatprep.subr.bf16.mxu0 0
        %2757 = vmatpush1.bf16.msra.mxu0 0
        %2758 = vmatprep.subr.bf16.mxu0 0
        %2759 = vmatpush1.bf16.msra.mxu0 0
        %2760 = vmatprep.subr.bf16.mxu0 0
        %2761 = vmatpush1.bf16.msra.mxu0 0
        %2762 = vmatprep.subr.bf16.mxu0 0
        %2763 = vmatpush1.bf16.msra.mxu0 0
        %2764 = vmatprep.mubr.bf16.mxu0 0
        %2765 = vmatmul.mubr.bf16.gmra.mrb[0].mxu0 %v2640
        %v2766 = vpop.f32.mrb[0].mxu0
        %v2767 = vadd.f32 %v2645, %v2766
        %v2768 = vpop.f32.mrb[0].mxu0
        %v2769 = vadd.f32 %v2649, %v2768
        %v2770 = vpop.f32.mrb[0].mxu0
        %v2771 = vadd.f32 %v2645, %v2770
        %v2772 = vpop.f32.mrb[0].mxu0
        %v2773 = vadd.f32 %v2649, %v2772
        %2774 = vdwg.mxu0
        %v2775 = vmul.f32 %v2767, 0.5
        %v2776 = vmul.f32 %v2769, 0.5
        %v2777 = vmul.f32 %v2771, 0.5
        %v2778 = vmul.f32 %v2773, 0.5
        %v2779 = vmul.f32 %v2767, 0.044715
        %v2780 = vmul.f32 %v2769, 0.044715
        %v2781 = vmul.f32 %v2771, 0.044715
        %v2782 = vmul.f32 %v2773, 0.044715
        %v2783 = vmul.f32 %v2779, %v2767
        %v2784 = vmul.f32 %v2780, %v2769
        %v2785 = vmul.f32 %v2781, %v2771
        %v2786 = vmul.f32 %v2782, %v2773
        %v2787 = vmul.f32 %v2783, %v2767
        %v2788 = vmul.f32 %v2784, %v2769
        %v2789 = vmul.f32 %v2785, %v2771
        %v2790 = vmul.f32 %v2786, %v2773
        %v2791 = vadd.f32 %v2767, %v2787
        %v2792 = vadd.f32 %v2769, %v2788
        %v2793 = vadd.f32 %v2771, %v2789
        %v2794 = vadd.f32 %v2773, %v2790
        %v2795 = vmul.f32 %v2791, 0.7978846
        %v2796 = vmul.f32 %v2792, 0.7978846
        %v2797 = vmul.f32 %v2793, 0.7978846
        %v2798 = vmul.f32 %v2794, 0.7978846
        %v2799 = vtanh.pop %v2795
        %v2800 = vtanh.pop %v2796
        %v2801 = vtanh.pop %v2797
        %v2802 = vtanh.pop %v2798
        %v2803 = vadd.f32 %v2799, 1.0
        %v2804 = vadd.f32 %v2800, 1.0
        %v2805 = vadd.f32 %v2801, 1.0
        %v2806 = vadd.f32 %v2802, 1.0
        %v2807 = vmul.f32 %v2775, %v2803
        %v2808 = vmul.f32 %v2776, %v2804
        %v2809 = vmul.f32 %v2777, %v2805
        %v2810 = vmul.f32 %v2778, %v2806
        %v2811 = vpack.c.bf16 %v2809, %v2807
        %v2812 = vpack.c.bf16 %v2810, %v2808
        %v2814 = vlaneseq
        %v2815 = vshrl.u32 %v2814, 7
        %v2816 = vsub.s32 0, %v2815
        %v2817 = vrot.slane %v879, %v2816
        %v2851 = vunpack.c.l.b16 %v847
        %v2852 = vunpack.c.l.b16 %v848
        %v2853 = vunpack.c.l.b16 %v849
        %v2854 = vunpack.c.l.b16 %v850
        %v2855 = vunpack.c.l.b16 %v851
        %v2856 = vunpack.c.l.b16 %v852
        %v2857 = vunpack.c.l.b16 %v853
        %v2858 = vunpack.c.l.b16 %v854
        %v2859 = vunpack.c.l.b16 %v855
        %v2860 = vunpack.c.l.b16 %v856
        %v2861 = vunpack.c.l.b16 %v857
        %v2862 = vunpack.c.l.b16 %v858
        %v2863 = vunpack.c.l.b16 %v859
        %v2864 = vunpack.c.l.b16 %v860
        %v2865 = vunpack.c.l.b16 %v861
        %v2866 = vunpack.c.l.b16 %v862
        %v2867 = vunpack.c.l.b16 %v863
        %v2868 = vunpack.c.l.b16 %v864
        %v2869 = vunpack.c.l.b16 %v865
        %v2870 = vunpack.c.l.b16 %v866
        %v2871 = vunpack.c.l.b16 %v867
        %v2872 = vunpack.c.l.b16 %v868
        %v2873 = vunpack.c.l.b16 %v869
        %v2874 = vunpack.c.l.b16 %v870
        %v2875 = vunpack.c.l.b16 %v871
        %v2876 = vunpack.c.l.b16 %v872
        %v2877 = vunpack.c.l.b16 %v873
        %v2878 = vunpack.c.l.b16 %v874
        %v2879 = vunpack.c.l.b16 %v875
        %v2880 = vunpack.c.l.b16 %v876
        %v2881 = vunpack.c.l.b16 %v877
        %v2882 = vunpack.c.l.b16 %v878
        %v2883 = vpack.c.b16 %v2852, %v2851
        %v2884 = vpack.c.b16 %v2854, %v2853
        %v2885 = vpack.c.b16 %v2856, %v2855
        %v2886 = vpack.c.b16 %v2858, %v2857
        %v2887 = vpack.c.b16 %v2860, %v2859
        %v2888 = vpack.c.b16 %v2862, %v2861
        %v2889 = vpack.c.b16 %v2864, %v2863
        %v2890 = vpack.c.b16 %v2866, %v2865
        %v2891 = vpack.c.b16 %v2868, %v2867
        %v2892 = vpack.c.b16 %v2870, %v2869
        %v2893 = vpack.c.b16 %v2872, %v2871
        %v2894 = vpack.c.b16 %v2874, %v2873
        %v2895 = vpack.c.b16 %v2876, %v2875
        %v2896 = vpack.c.b16 %v2878, %v2877
        %v2897 = vpack.c.b16 %v2880, %v2879
        %v2898 = vpack.c.b16 %v2882, %v2881
        %2915 = vmatprep.subr.bf16.mxu0 0
        %2916 = vmatpush1.bf16.msra.mxu0 %v2883
        %2917 = vmatprep.subr.bf16.mxu0 0
        %2918 = vmatpush1.bf16.msra.mxu0 %v2884
        %2919 = vmatprep.subr.bf16.mxu0 0
        %2920 = vmatpush1.bf16.msra.mxu0 %v2885
        %2921 = vmatprep.subr.bf16.mxu0 0
        %2922 = vmatpush1.bf16.msra.mxu0 %v2886
        %2923 = vmatprep.subr.bf16.mxu0 0
        %2924 = vmatpush1.bf16.msra.mxu0 %v2887
        %2925 = vmatprep.subr.bf16.mxu0 0
        %2926 = vmatpush1.bf16.msra.mxu0 %v2888
        %2927 = vmatprep.subr.bf16.mxu0 0
        %2928 = vmatpush1.bf16.msra.mxu0 %v2889
        %2929 = vmatprep.subr.bf16.mxu0 0
        %2930 = vmatpush1.bf16.msra.mxu0 %v2890
        %2931 = vmatprep.subr.bf16.mxu0 0
        %2932 = vmatpush1.bf16.msra.mxu0 %v2891
        %2933 = vmatprep.subr.bf16.mxu0 0
        %2934 = vmatpush1.bf16.msra.mxu0 %v2892
        %2935 = vmatprep.subr.bf16.mxu0 0
        %2936 = vmatpush1.bf16.msra.mxu0 %v2893
        %2937 = vmatprep.subr.bf16.mxu0 0
        %2938 = vmatpush1.bf16.msra.mxu0 %v2894
        %2939 = vmatprep.subr.bf16.mxu0 0
        %2940 = vmatpush1.bf16.msra.mxu0 %v2895
        %2941 = vmatprep.subr.bf16.mxu0 0
        %2942 = vmatpush1.bf16.msra.mxu0 %v2896
        %2943 = vmatprep.subr.bf16.mxu0 0
        %2944 = vmatpush1.bf16.msra.mxu0 %v2897
        %2945 = vmatprep.subr.bf16.mxu0 0
        %2946 = vmatpush1.bf16.msra.mxu0 %v2898
        %2947 = vmatprep.mubr.bf16.mxu0 %v2812
        %2948 = vmatmul.mubr.bf16.gmra.mrb[0].mxu0 %v2811
        %v2949 = vpop.f32.mrb[0].mxu0
        %v2950 = vadd.f32 %v2817, %v2949
        %v2951 = vpop.f32.mrb[0].mxu0
        %v2952 = vpop.f32.mrb[0].mxu0
        %v2953 = vadd.f32 %v2817, %v2952
        %v2954 = vpop.f32.mrb[0].mxu0
        %2955 = vdwg.mxu0
        %v2956 = vadd.f32 %v2602, %v2950
        %v2957 = vadd.f32 %v2603, %v2953
        %2958 = vst [vmem:[%s13] sm:$0xff] %v2956
        %2959 = vst [vmem:[%s13 + $0x8] sm:$0xf] %v2957
        // Predicated region
        $region117: #{model_mode0.7} parent=71 // pred_check
          %p2960 = pneg %p376
        $region118: #{model_mode0.7} parent=71 // pred_check_branch
          %2962 = sbr.rel (%p2960) target = $region120
        $region119: #{model_mode0.7} parent=71 // pred_region
          _
        $region120: #{model_mode0.7} parent=71 // pred_fallthru
          _
        // Predicated region
        $region121: #{model_mode0.7} parent=71 // pred_check
          %p2963 = pneg %p376
        $region122: #{model_mode0.7} parent=71 // pred_check_branch
          %2965 = sbr.rel (%p2963) target = $region124
        $region123: #{model_mode0.7} parent=71 // pred_region
          _
        $region124: #{model_mode0.7} parent=71 // pred_fallthru
          _
      $region72: #{model_mode0.7} parent=5 // pred_fallthru
        _
      %p2966 = scmp.le.s32.totalorder 2, %s35
      // Predicated region
      $region125: #{model_mode0.7} parent=5 // pred_check
        %p2967 = pneg %p2966
      $region126: #{model_mode0.7} parent=5 // pred_check_branch
        %2969 = sbr.rel (%p2967) target = $region128
      $region127: #{model_mode0.7} parent=5 // pred_region
        %s2970 = ssub.s32 %s35, 2
      $region128: #{model_mode0.7} parent=5 // pred_fallthru
        _
    $region6: #{model_mode0.7} parent=1 // loop_footer
      %s39 = sadd.s32 1, %s35
    $region7: #{model_mode0.7} parent=1 // loop_footer_branch
      %34 = sbr.rel target = $region3
    $region8: #{model_mode0.7} parent=1 // loop_exit
      _
    %2971 = vsyncpa [#allocation3], 1
    %s2972 = scalar_lea.sflag [#allocation3], 1
    %2973 = vsyncpa %s2972, 1
    %2974 = vsyncpa [#allocation5], 1
    %s2975 = scalar_lea.sflag [#allocation5], 1
    %2976 = vsyncpa %s2975, 1
    %2977 = vsyncpa [#allocation8], 1
    %s2978 = scalar_lea.sflag [#allocation8], 1
    %2979 = vsyncpa %s2978, 1
    %2980 = vsyncpa [#allocation11], 1
    %s2981 = scalar_lea.sflag [#allocation11], 1
    %2982 = vsyncpa %s2981, 1
    %2983 = vsyncpa [#allocation14], 1
    %s2984 = scalar_lea.sflag [#allocation14], 1
    %2985 = vsyncpa %s2984, 1
    %2986 = vsyncpa [#allocation17], 1
    %s2987 = scalar_lea.sflag [#allocation17], 1
    %2988 = vsyncpa %s2987, 1

</llo_original>
